<compile_context>
chip_gen: v6e
topology: v6e:2x2x1
jax: 0.10.0
libtpu: 0.0.40
codegen_flags: <defaults>
</compile_context>

<pallas_src>
import jax
import jax.numpy as jnp
from jax.experimental import pallas as pl
from jax.experimental.pallas import tpu as pltpu

BN_EPS = 1e-5


# ------------------------------ in-kernel helpers --------------------------- #

def _channel_matrices(wo, cout):
    """Selector matrices mapping the (ox, co) lane layout <-> channels.

    sel  : (wo*cout, cout), sel[l, c]  = 1 iff l % cout == c   (lane -> channel sum)
    selT : (cout, wo*cout), selT[c, l] = 1 iff l % cout == c   (channel -> lanes bcast)
    Built with 2-D iota + bitwise ops (cout is always a power of two here).
    """
    assert cout & (cout - 1) == 0, "channel counts are powers of two"
    nout = wo * cout
    l = jax.lax.broadcasted_iota(jnp.int32, (nout, cout), 0)
    c = jax.lax.broadcasted_iota(jnp.int32, (nout, cout), 1)
    sel = ((l & (cout - 1)) == c).astype(jnp.float32)
    lt = jax.lax.broadcasted_iota(jnp.int32, (cout, nout), 1)
    ct = jax.lax.broadcasted_iota(jnp.int32, (cout, nout), 0)
    sel_t = ((lt & (cout - 1)) == ct).astype(jnp.float32)
    return sel, sel_t


def _conv_bn_relu_block(rows, w_ref, g_ref, b_ref):
    """One [3x3 stride-2 conv (pad 1) -> BatchNorm(batch stats) -> ReLU] block.

    rows : list of `hi` f32/bf16 values, each (N, Wi*Cin) -- one per image row.
    w_ref: (3, Wi*Cin, Wo*Cout) banded conv weights (bf16).
    Returns (list of `ho` f32 values (N, Wo*Cout), ho, wo).
    """
    hi = len(rows)
    ho = (hi - 1) // 2 + 1
    cout = g_ref.shape[-1]
    nout = w_ref.shape[-1]
    wo = nout // cout
    n = rows[0].shape[0]

    rows_bf = [r.astype(jnp.bfloat16) for r in rows]

    # ---- conv: per output row, accumulate the <=3 valid row-taps on the MXU.
    # Taps whose input row lies in the zero-pad halo are skipped statically.
    y_rows = []
    for oy in range(ho):
        acc = None
        for ky in range(3):
            ry = 2 * oy + ky - 1
            if 0 <= ry < hi:
                d = jnp.dot(rows_bf[ry], w_ref[ky],
                            preferred_element_type=jnp.float32)
                acc = d if acc is None else acc + d
        y_rows.append(acc)

    # ---- BatchNorm (training-mode batch stats over N,H,W; biased var), one
    # pass (sum & sum-of-squares), folded into per-channel scale/shift.  f32.
    s = ss = None
    for y in y_rows:
        rs = jnp.sum(y, axis=0, keepdims=True)          # (1, nout)
        rq = jnp.sum(y * y, axis=0, keepdims=True)
        s = rs if s is None else s + rs
        ss = rq if ss is None else ss + rq
    if wo == 1:
        csum, csq = s, ss
        sel_t = None
    else:
        sel, sel_t = _channel_matrices(wo, cout)
        csum = jnp.dot(s, sel, preferred_element_type=jnp.float32)   # (1, cout)
        csq = jnp.dot(ss, sel, preferred_element_type=jnp.float32)

    cnt = float(n * ho * wo)
    mean = csum * (1.0 / cnt)
    var = jnp.maximum(csq * (1.0 / cnt) - mean * mean, 0.0)
    scale = g_ref[...] * jax.lax.rsqrt(var + BN_EPS)                  # (1, cout)
    shift = b_ref[...] - mean * scale

    if wo == 1:
        scale_l, shift_l = scale, shift
    else:
        scale_l = jnp.dot(scale, sel_t, preferred_element_type=jnp.float32)
        shift_l = jnp.dot(shift, sel_t, preferred_element_type=jnp.float32)

    out_rows = [jnp.maximum(y * scale_l + shift_l, 0.0) for y in y_rows]
    return out_rows, ho, wo


def discriminator_kernel(*refs):
    # refs = [x, (w, gamma, beta) * 5, w_last, out]
    x_ref = refs[0]
    out_ref = refs[-1]
    wl_ref = refs[-2]
    block_refs = refs[1:-2]

    rows = [x_ref[i] for i in range(x_ref.shape[0])]     # (N, W0*C0) bf16 rows
    ho = wo = 1
    for i in range(0, len(block_refs), 3):
        rows, ho, wo = _conv_bn_relu_block(
            rows, block_refs[i], block_refs[i + 1], block_refs[i + 2])

    # Head: AdaptiveAvgPool2d(1) + bias-free 1x1 conv_last.  Both are linear,
    # so pool first, then a single (N,512)@(512,n_classes) matmul epilogue.
    cout = block_refs[-2].shape[-1]                      # 512
    if ho == 1 and wo == 1:
        pooled = rows[0]                                 # (N, 512) f32
    else:
        tot = rows[0]
        for r in rows[1:]:
            tot = tot + r
        if wo == 1:
            pooled = tot * (1.0 / (ho * wo))
        else:
            sel, _ = _channel_matrices(wo, cout)
            pooled = jnp.dot(tot, sel,
                             preferred_element_type=jnp.float32) * (1.0 / (ho * wo))
    out_ref[...] = jnp.dot(pooled, wl_ref[...], preferred_element_type=jnp.float32)


# --------------------------------- wrapper ---------------------------------- #

def _banded_conv_weights(w, wi):
    """Fold kx taps + stride-2 column selection of a 3x3/stride-2/pad-1 conv
    into dense matrices.  w: (3, 3, cin, cout) -> (3, wi*cin, wo*cout) with
    row index = real_col*cin + ci, col index = out_col*cout + co.  Taps that
    would read the zero-pad halo simply have no entry (stay zero)."""
    kh, kw, cin, cout = w.shape
    wo = (wi - 1) // 2 + 1
    b = jnp.zeros((kh, wi, cin, wo, cout), w.dtype)
    for ox in range(wo):
        for kx in range(kw):
            rx = 2 * ox + kx - 1
            if 0 <= rx < wi:
                b = b.at[:, rx, :, ox, :].set(w[:, kx])
    return b.reshape(kh, wi * cin, wo * cout)


def discriminator_forward(x_nchw, params):
    n, c0, h0, w0 = x_nchw.shape
    # One-time layout glue on the (tiny) real input: NCHW -> (H, N, W*C), bf16.
    x_nhwc = jnp.transpose(x_nchw, (0, 2, 3, 1)).astype(jnp.float32)
    x_rows = jnp.transpose(x_nhwc, (1, 0, 2, 3)).reshape(h0, n, w0 * c0)
    x_rows = x_rows.astype(jnp.bfloat16)

    kernel_inputs = [x_rows]
    wi = w0
    for (w, gamma, beta) in params["blocks"]:
        bw = _banded_conv_weights(w, wi).astype(jnp.bfloat16)   # bf16 MXU operand
        kernel_inputs += [bw,
                          gamma.reshape(1, -1).astype(jnp.float32),
                          beta.reshape(1, -1).astype(jnp.float32)]
        wi = (wi - 1) // 2 + 1
    kernel_inputs.append(params["w_last"].astype(jnp.float32))

    n_classes = params["w_last"].shape[1]
    return pl.pallas_call(
        discriminator_kernel,
        out_shape=jax.ShapeDtypeStruct((n, n_classes), jnp.float32),
        in_specs=[pl.BlockSpec(memory_space=pltpu.MemorySpace.VMEM)
                  for _ in kernel_inputs],
        out_specs=pl.BlockSpec(memory_space=pltpu.MemorySpace.VMEM),
    )(*kernel_inputs)


# ------------------------------ params & reference -------------------------- #

def init_params(key, in_channels=1, n_classes=1):
    """Deterministic kaiming-normal init matching Discriminator.__init__."""
    channels = [in_channels * 2, 32, 64, 128, 256, 512]
    blocks = []
    for i in range(len(channels) - 1):
        key, sub = jax.random.split(key)
        cin, cout = channels[i], channels[i + 1]
        fan_in = cin * 3 * 3
        w = jax.random.normal(sub, (3, 3, cin, cout), jnp.float32) * jnp.sqrt(2.0 / fan_in)
        gamma = jnp.ones((cout,), jnp.float32)    # BatchNorm weight init = 1.0
        beta = jnp.zeros((cout,), jnp.float32)    # BatchNorm bias   init = 0.0
        blocks.append((w, gamma, beta))
    key, sub = jax.random.split(key)
    w_last = jax.random.normal(sub, (512, n_classes), jnp.float32) * jnp.sqrt(2.0 / 512.0)
    return {"blocks": blocks, "w_last": w_last}


# TODO(synk): BatchNorm running-stat updates (a training-mode side effect) are
# not emitted; only the batch-stat normalization used by the forward pass is.
def reference_forward(x_nchw, params):
    """Pure-JAX reference (lax.conv) with the same numerics as the kernel:
    bf16 conv operands, f32 accumulation, f32 BN/ReLU."""
    x = jnp.transpose(x_nchw, (0, 2, 3, 1)).astype(jnp.float32)
    for (w, gamma, beta) in params["blocks"]:
        y = jax.lax.conv_general_dilated(
            x.astype(jnp.bfloat16), w.astype(jnp.bfloat16),
            window_strides=(2, 2), padding=((1, 1), (1, 1)),
            dimension_numbers=("NHWC", "HWIO", "NHWC"),
            preferred_element_type=jnp.float32)
        mean = jnp.mean(y, axis=(0, 1, 2), keepdims=True)
        var = jnp.mean(jnp.square(y - mean), axis=(0, 1, 2), keepdims=True)
        yhat = (y - mean) * jax.lax.rsqrt(var + BN_EPS)
        x = jnp.maximum(yhat * gamma.reshape(1, 1, 1, -1) + beta.reshape(1, 1, 1, -1), 0.0)
    y = jnp.einsum("nhwc,ck->nhwk", x, params["w_last"])   # 1x1 conv_last, no bias
    return jnp.mean(y, axis=(1, 2))                        # AdaptiveAvgPool2d(1) + view


if __name__ == "__main__":
    key = jax.random.PRNGKey(0)
    pkey, xkey = jax.random.split(key)
    in_channels, n_classes = 1, 1
    params = init_params(pkey, in_channels=in_channels, n_classes=n_classes)

    # The first conv of cls_net expects in_channels * 2 channels.
    x = jax.random.normal(xkey, (2, in_channels * 2, 16, 16), jnp.float32)

    out = jax.jit(discriminator_forward)(x, params)
    out = jax.block_until_ready(out)

    ref = reference_forward(x, params)
    assert out.shape == (2, n_classes), out.shape
    assert bool(jnp.all(jnp.isfinite(out)))
    assert bool(jnp.allclose(out, ref, atol=2e-2, rtol=2e-2)), (out, ref)

    print("KERNEL_OK")
</pallas_src>

<mosaic_0001>
module attributes {stable_mosaic.version = 11 : i64} {
  func.func @discriminator_kernel(%arg0: memref<16x2x32xbf16, #tpu.memory_space<vmem>>, %arg1: memref<3x32x256xbf16, #tpu.memory_space<vmem>>, %arg2: memref<1x32xf32, #tpu.memory_space<vmem>>, %arg3: memref<1x32xf32, #tpu.memory_space<vmem>>, %arg4: memref<3x256x256xbf16, #tpu.memory_space<vmem>>, %arg5: memref<1x64xf32, #tpu.memory_space<vmem>>, %arg6: memref<1x64xf32, #tpu.memory_space<vmem>>, %arg7: memref<3x256x256xbf16, #tpu.memory_space<vmem>>, %arg8: memref<1x128xf32, #tpu.memory_space<vmem>>, %arg9: memref<1x128xf32, #tpu.memory_space<vmem>>, %arg10: memref<3x256x256xbf16, #tpu.memory_space<vmem>>, %arg11: memref<1x256xf32, #tpu.memory_space<vmem>>, %arg12: memref<1x256xf32, #tpu.memory_space<vmem>>, %arg13: memref<3x256x512xbf16, #tpu.memory_space<vmem>>, %arg14: memref<1x512xf32, #tpu.memory_space<vmem>>, %arg15: memref<1x512xf32, #tpu.memory_space<vmem>>, %arg16: memref<512x1xf32, #tpu.memory_space<vmem>>, %arg17: memref<2x1xf32, #tpu.memory_space<vmem>>) attributes {dimension_semantics = [], scalar_prefetch = 0 : i64, scratch_operands = 0 : i64, tpu.core_type = #tpu.core_type<tc>} {
    %c0 = arith.constant 0 : index
    %c0_0 = arith.constant 0 : index
    %c0_1 = arith.constant 0 : index
    %0 = vector.load %arg0[%c0, %c0_0, %c0_1] : memref<16x2x32xbf16, #tpu.memory_space<vmem>>, vector<1x2x32xbf16>
    %1 = vector.shape_cast %0 : vector<1x2x32xbf16> to vector<2x32xbf16>
    %c1 = arith.constant 1 : index
    %c0_2 = arith.constant 0 : index
    %c0_3 = arith.constant 0 : index
    %2 = vector.load %arg0[%c1, %c0_2, %c0_3] : memref<16x2x32xbf16, #tpu.memory_space<vmem>>, vector<1x2x32xbf16>
    %3 = vector.shape_cast %2 : vector<1x2x32xbf16> to vector<2x32xbf16>
    %c2 = arith.constant 2 : index
    %c0_4 = arith.constant 0 : index
    %c0_5 = arith.constant 0 : index
    %4 = vector.load %arg0[%c2, %c0_4, %c0_5] : memref<16x2x32xbf16, #tpu.memory_space<vmem>>, vector<1x2x32xbf16>
    %5 = vector.shape_cast %4 : vector<1x2x32xbf16> to vector<2x32xbf16>
    %c3 = arith.constant 3 : index
    %c0_6 = arith.constant 0 : index
    %c0_7 = arith.constant 0 : index
    %6 = vector.load %arg0[%c3, %c0_6, %c0_7] : memref<16x2x32xbf16, #tpu.memory_space<vmem>>, vector<1x2x32xbf16>
    %7 = vector.shape_cast %6 : vector<1x2x32xbf16> to vector<2x32xbf16>
    %c4 = arith.constant 4 : index
    %c0_8 = arith.constant 0 : index
    %c0_9 = arith.constant 0 : index
    %8 = vector.load %arg0[%c4, %c0_8, %c0_9] : memref<16x2x32xbf16, #tpu.memory_space<vmem>>, vector<1x2x32xbf16>
    %9 = vector.shape_cast %8 : vector<1x2x32xbf16> to vector<2x32xbf16>
    %c5 = arith.constant 5 : index
    %c0_10 = arith.constant 0 : index
    %c0_11 = arith.constant 0 : index
    %10 = vector.load %arg0[%c5, %c0_10, %c0_11] : memref<16x2x32xbf16, #tpu.memory_space<vmem>>, vector<1x2x32xbf16>
    %11 = vector.shape_cast %10 : vector<1x2x32xbf16> to vector<2x32xbf16>
    %c6 = arith.constant 6 : index
    %c0_12 = arith.constant 0 : index
    %c0_13 = arith.constant 0 : index
    %12 = vector.load %arg0[%c6, %c0_12, %c0_13] : memref<16x2x32xbf16, #tpu.memory_space<vmem>>, vector<1x2x32xbf16>
    %13 = vector.shape_cast %12 : vector<1x2x32xbf16> to vector<2x32xbf16>
    %c7 = arith.constant 7 : index
    %c0_14 = arith.constant 0 : index
    %c0_15 = arith.constant 0 : index
    %14 = vector.load %arg0[%c7, %c0_14, %c0_15] : memref<16x2x32xbf16, #tpu.memory_space<vmem>>, vector<1x2x32xbf16>
    %15 = vector.shape_cast %14 : vector<1x2x32xbf16> to vector<2x32xbf16>
    %c8 = arith.constant 8 : index
    %c0_16 = arith.constant 0 : index
    %c0_17 = arith.constant 0 : index
    %16 = vector.load %arg0[%c8, %c0_16, %c0_17] : memref<16x2x32xbf16, #tpu.memory_space<vmem>>, vector<1x2x32xbf16>
    %17 = vector.shape_cast %16 : vector<1x2x32xbf16> to vector<2x32xbf16>
    %c9 = arith.constant 9 : index
    %c0_18 = arith.constant 0 : index
    %c0_19 = arith.constant 0 : index
    %18 = vector.load %arg0[%c9, %c0_18, %c0_19] : memref<16x2x32xbf16, #tpu.memory_space<vmem>>, vector<1x2x32xbf16>
    %19 = vector.shape_cast %18 : vector<1x2x32xbf16> to vector<2x32xbf16>
    %c10 = arith.constant 10 : index
    %c0_20 = arith.constant 0 : index
    %c0_21 = arith.constant 0 : index
    %20 = vector.load %arg0[%c10, %c0_20, %c0_21] : memref<16x2x32xbf16, #tpu.memory_space<vmem>>, vector<1x2x32xbf16>
    %21 = vector.shape_cast %20 : vector<1x2x32xbf16> to vector<2x32xbf16>
    %c11 = arith.constant 11 : index
    %c0_22 = arith.constant 0 : index
    %c0_23 = arith.constant 0 : index
    %22 = vector.load %arg0[%c11, %c0_22, %c0_23] : memref<16x2x32xbf16, #tpu.memory_space<vmem>>, vector<1x2x32xbf16>
    %23 = vector.shape_cast %22 : vector<1x2x32xbf16> to vector<2x32xbf16>
    %c12 = arith.constant 12 : index
    %c0_24 = arith.constant 0 : index
    %c0_25 = arith.constant 0 : index
    %24 = vector.load %arg0[%c12, %c0_24, %c0_25] : memref<16x2x32xbf16, #tpu.memory_space<vmem>>, vector<1x2x32xbf16>
    %25 = vector.shape_cast %24 : vector<1x2x32xbf16> to vector<2x32xbf16>
    %c13 = arith.constant 13 : index
    %c0_26 = arith.constant 0 : index
    %c0_27 = arith.constant 0 : index
    %26 = vector.load %arg0[%c13, %c0_26, %c0_27] : memref<16x2x32xbf16, #tpu.memory_space<vmem>>, vector<1x2x32xbf16>
    %27 = vector.shape_cast %26 : vector<1x2x32xbf16> to vector<2x32xbf16>
    %c14 = arith.constant 14 : index
    %c0_28 = arith.constant 0 : index
    %c0_29 = arith.constant 0 : index
    %28 = vector.load %arg0[%c14, %c0_28, %c0_29] : memref<16x2x32xbf16, #tpu.memory_space<vmem>>, vector<1x2x32xbf16>
    %29 = vector.shape_cast %28 : vector<1x2x32xbf16> to vector<2x32xbf16>
    %c15 = arith.constant 15 : index
    %c0_30 = arith.constant 0 : index
    %c0_31 = arith.constant 0 : index
    %30 = vector.load %arg0[%c15, %c0_30, %c0_31] : memref<16x2x32xbf16, #tpu.memory_space<vmem>>, vector<1x2x32xbf16>
    %31 = vector.shape_cast %30 : vector<1x2x32xbf16> to vector<2x32xbf16>
    %c1_32 = arith.constant 1 : index
    %c0_33 = arith.constant 0 : index
    %c0_34 = arith.constant 0 : index
    %32 = vector.load %arg1[%c1_32, %c0_33, %c0_34] : memref<3x32x256xbf16, #tpu.memory_space<vmem>>, vector<1x32x256xbf16>
    %33 = vector.shape_cast %32 : vector<1x32x256xbf16> to vector<32x256xbf16>
    %cst = arith.constant dense<0.000000e+00> : vector<2x256xf32>
    %34 = tpu.matmul %1, %33, %cst {dimension_numbers = #tpu.dot_dimension_numbers<[1], [0], [0], [1], [0, 0, 1, 1], [], []>} : vector<2x32xbf16>, vector<32x256xbf16>, vector<2x256xf32> -> vector<2x256xf32>
    %c2_35 = arith.constant 2 : index
    %c0_36 = arith.constant 0 : index
    %c0_37 = arith.constant 0 : index
    %35 = vector.load %arg1[%c2_35, %c0_36, %c0_37] : memref<3x32x256xbf16, #tpu.memory_space<vmem>>, vector<1x32x256xbf16>
    %36 = vector.shape_cast %35 : vector<1x32x256xbf16> to vector<32x256xbf16>
    %cst_38 = arith.constant dense<0.000000e+00> : vector<2x256xf32>
    %37 = tpu.matmul %3, %36, %cst_38 {dimension_numbers = #tpu.dot_dimension_numbers<[1], [0], [0], [1], [0, 0, 1, 1], [], []>} : vector<2x32xbf16>, vector<32x256xbf16>, vector<2x256xf32> -> vector<2x256xf32>
    %38 = arith.addf %34, %37 : vector<2x256xf32>
    %c0_39 = arith.constant 0 : index
    %c0_40 = arith.constant 0 : index
    %c0_41 = arith.constant 0 : index
    %39 = vector.load %arg1[%c0_39, %c0_40, %c0_41] : memref<3x32x256xbf16, #tpu.memory_space<vmem>>, vector<1x32x256xbf16>
    %40 = vector.shape_cast %39 : vector<1x32x256xbf16> to vector<32x256xbf16>
    %cst_42 = arith.constant dense<0.000000e+00> : vector<2x256xf32>
    %41 = tpu.matmul %3, %40, %cst_42 {dimension_numbers = #tpu.dot_dimension_numbers<[1], [0], [0], [1], [0, 0, 1, 1], [], []>} : vector<2x32xbf16>, vector<32x256xbf16>, vector<2x256xf32> -> vector<2x256xf32>
    %c1_43 = arith.constant 1 : index
    %c0_44 = arith.constant 0 : index
    %c0_45 = arith.constant 0 : index
    %42 = vector.load %arg1[%c1_43, %c0_44, %c0_45] : memref<3x32x256xbf16, #tpu.memory_space<vmem>>, vector<1x32x256xbf16>
    %43 = vector.shape_cast %42 : vector<1x32x256xbf16> to vector<32x256xbf16>
    %cst_46 = arith.constant dense<0.000000e+00> : vector<2x256xf32>
    %44 = tpu.matmul %5, %43, %cst_46 {dimension_numbers = #tpu.dot_dimension_numbers<[1], [0], [0], [1], [0, 0, 1, 1], [], []>} : vector<2x32xbf16>, vector<32x256xbf16>, vector<2x256xf32> -> vector<2x256xf32>
    %45 = arith.addf %41, %44 : vector<2x256xf32>
    %c2_47 = arith.constant 2 : index
    %c0_48 = arith.constant 0 : index
    %c0_49 = arith.constant 0 : index
    %46 = vector.load %arg1[%c2_47, %c0_48, %c0_49] : memref<3x32x256xbf16, #tpu.memory_space<vmem>>, vector<1x32x256xbf16>
    %47 = vector.shape_cast %46 : vector<1x32x256xbf16> to vector<32x256xbf16>
    %cst_50 = arith.constant dense<0.000000e+00> : vector<2x256xf32>
    %48 = tpu.matmul %7, %47, %cst_50 {dimension_numbers = #tpu.dot_dimension_numbers<[1], [0], [0], [1], [0, 0, 1, 1], [], []>} : vector<2x32xbf16>, vector<32x256xbf16>, vector<2x256xf32> -> vector<2x256xf32>
    %49 = arith.addf %45, %48 : vector<2x256xf32>
    %c0_51 = arith.constant 0 : index
    %c0_52 = arith.constant 0 : index
    %c0_53 = arith.constant 0 : index
    %50 = vector.load %arg1[%c0_51, %c0_52, %c0_53] : memref<3x32x256xbf16, #tpu.memory_space<vmem>>, vector<1x32x256xbf16>
    %51 = vector.shape_cast %50 : vector<1x32x256xbf16> to vector<32x256xbf16>
    %cst_54 = arith.constant dense<0.000000e+00> : vector<2x256xf32>
    %52 = tpu.matmul %7, %51, %cst_54 {dimension_numbers = #tpu.dot_dimension_numbers<[1], [0], [0], [1], [0, 0, 1, 1], [], []>} : vector<2x32xbf16>, vector<32x256xbf16>, vector<2x256xf32> -> vector<2x256xf32>
    %c1_55 = arith.constant 1 : index
    %c0_56 = arith.constant 0 : index
    %c0_57 = arith.constant 0 : index
    %53 = vector.load %arg1[%c1_55, %c0_56, %c0_57] : memref<3x32x256xbf16, #tpu.memory_space<vmem>>, vector<1x32x256xbf16>
    %54 = vector.shape_cast %53 : vector<1x32x256xbf16> to vector<32x256xbf16>
    %cst_58 = arith.constant dense<0.000000e+00> : vector<2x256xf32>
    %55 = tpu.matmul %9, %54, %cst_58 {dimension_numbers = #tpu.dot_dimension_numbers<[1], [0], [0], [1], [0, 0, 1, 1], [], []>} : vector<2x32xbf16>, vector<32x256xbf16>, vector<2x256xf32> -> vector<2x256xf32>
    %56 = arith.addf %52, %55 : vector<2x256xf32>
    %c2_59 = arith.constant 2 : index
    %c0_60 = arith.constant 0 : index
    %c0_61 = arith.constant 0 : index
    %57 = vector.load %arg1[%c2_59, %c0_60, %c0_61] : memref<3x32x256xbf16, #tpu.memory_space<vmem>>, vector<1x32x256xbf16>
    %58 = vector.shape_cast %57 : vector<1x32x256xbf16> to vector<32x256xbf16>
    %cst_62 = arith.constant dense<0.000000e+00> : vector<2x256xf32>
    %59 = tpu.matmul %11, %58, %cst_62 {dimension_numbers = #tpu.dot_dimension_numbers<[1], [0], [0], [1], [0, 0, 1, 1], [], []>} : vector<2x32xbf16>, vector<32x256xbf16>, vector<2x256xf32> -> vector<2x256xf32>
    %60 = arith.addf %56, %59 : vector<2x256xf32>
    %c0_63 = arith.constant 0 : index
    %c0_64 = arith.constant 0 : index
    %c0_65 = arith.constant 0 : index
    %61 = vector.load %arg1[%c0_63, %c0_64, %c0_65] : memref<3x32x256xbf16, #tpu.memory_space<vmem>>, vector<1x32x256xbf16>
    %62 = vector.shape_cast %61 : vector<1x32x256xbf16> to vector<32x256xbf16>
    %cst_66 = arith.constant dense<0.000000e+00> : vector<2x256xf32>
    %63 = tpu.matmul %11, %62, %cst_66 {dimension_numbers = #tpu.dot_dimension_numbers<[1], [0], [0], [1], [0, 0, 1, 1], [], []>} : vector<2x32xbf16>, vector<32x256xbf16>, vector<2x256xf32> -> vector<2x256xf32>
    %c1_67 = arith.constant 1 : index
    %c0_68 = arith.constant 0 : index
    %c0_69 = arith.constant 0 : index
    %64 = vector.load %arg1[%c1_67, %c0_68, %c0_69] : memref<3x32x256xbf16, #tpu.memory_space<vmem>>, vector<1x32x256xbf16>
    %65 = vector.shape_cast %64 : vector<1x32x256xbf16> to vector<32x256xbf16>
    %cst_70 = arith.constant dense<0.000000e+00> : vector<2x256xf32>
    %66 = tpu.matmul %13, %65, %cst_70 {dimension_numbers = #tpu.dot_dimension_numbers<[1], [0], [0], [1], [0, 0, 1, 1], [], []>} : vector<2x32xbf16>, vector<32x256xbf16>, vector<2x256xf32> -> vector<2x256xf32>
    %67 = arith.addf %63, %66 : vector<2x256xf32>
    %c2_71 = arith.constant 2 : index
    %c0_72 = arith.constant 0 : index
    %c0_73 = arith.constant 0 : index
    %68 = vector.load %arg1[%c2_71, %c0_72, %c0_73] : memref<3x32x256xbf16, #tpu.memory_space<vmem>>, vector<1x32x256xbf16>
    %69 = vector.shape_cast %68 : vector<1x32x256xbf16> to vector<32x256xbf16>
    %cst_74 = arith.constant dense<0.000000e+00> : vector<2x256xf32>
    %70 = tpu.matmul %15, %69, %cst_74 {dimension_numbers = #tpu.dot_dimension_numbers<[1], [0], [0], [1], [0, 0, 1, 1], [], []>} : vector<2x32xbf16>, vector<32x256xbf16>, vector<2x256xf32> -> vector<2x256xf32>
    %71 = arith.addf %67, %70 : vector<2x256xf32>
    %c0_75 = arith.constant 0 : index
    %c0_76 = arith.constant 0 : index
    %c0_77 = arith.constant 0 : index
    %72 = vector.load %arg1[%c0_75, %c0_76, %c0_77] : memref<3x32x256xbf16, #tpu.memory_space<vmem>>, vector<1x32x256xbf16>
    %73 = vector.shape_cast %72 : vector<1x32x256xbf16> to vector<32x256xbf16>
    %cst_78 = arith.constant dense<0.000000e+00> : vector<2x256xf32>
    %74 = tpu.matmul %15, %73, %cst_78 {dimension_numbers = #tpu.dot_dimension_numbers<[1], [0], [0], [1], [0, 0, 1, 1], [], []>} : vector<2x32xbf16>, vector<32x256xbf16>, vector<2x256xf32> -> vector<2x256xf32>
    %c1_79 = arith.constant 1 : index
    %c0_80 = arith.constant 0 : index
    %c0_81 = arith.constant 0 : index
    %75 = vector.load %arg1[%c1_79, %c0_80, %c0_81] : memref<3x32x256xbf16, #tpu.memory_space<vmem>>, vector<1x32x256xbf16>
    %76 = vector.shape_cast %75 : vector<1x32x256xbf16> to vector<32x256xbf16>
    %cst_82 = arith.constant dense<0.000000e+00> : vector<2x256xf32>
    %77 = tpu.matmul %17, %76, %cst_82 {dimension_numbers = #tpu.dot_dimension_numbers<[1], [0], [0], [1], [0, 0, 1, 1], [], []>} : vector<2x32xbf16>, vector<32x256xbf16>, vector<2x256xf32> -> vector<2x256xf32>
    %78 = arith.addf %74, %77 : vector<2x256xf32>
    %c2_83 = arith.constant 2 : index
    %c0_84 = arith.constant 0 : index
    %c0_85 = arith.constant 0 : index
    %79 = vector.load %arg1[%c2_83, %c0_84, %c0_85] : memref<3x32x256xbf16, #tpu.memory_space<vmem>>, vector<1x32x256xbf16>
    %80 = vector.shape_cast %79 : vector<1x32x256xbf16> to vector<32x256xbf16>
    %cst_86 = arith.constant dense<0.000000e+00> : vector<2x256xf32>
    %81 = tpu.matmul %19, %80, %cst_86 {dimension_numbers = #tpu.dot_dimension_numbers<[1], [0], [0], [1], [0, 0, 1, 1], [], []>} : vector<2x32xbf16>, vector<32x256xbf16>, vector<2x256xf32> -> vector<2x256xf32>
    %82 = arith.addf %78, %81 : vector<2x256xf32>
    %c0_87 = arith.constant 0 : index
    %c0_88 = arith.constant 0 : index
    %c0_89 = arith.constant 0 : index
    %83 = vector.load %arg1[%c0_87, %c0_88, %c0_89] : memref<3x32x256xbf16, #tpu.memory_space<vmem>>, vector<1x32x256xbf16>
    %84 = vector.shape_cast %83 : vector<1x32x256xbf16> to vector<32x256xbf16>
    %cst_90 = arith.constant dense<0.000000e+00> : vector<2x256xf32>
    %85 = tpu.matmul %19, %84, %cst_90 {dimension_numbers = #tpu.dot_dimension_numbers<[1], [0], [0], [1], [0, 0, 1, 1], [], []>} : vector<2x32xbf16>, vector<32x256xbf16>, vector<2x256xf32> -> vector<2x256xf32>
    %c1_91 = arith.constant 1 : index
    %c0_92 = arith.constant 0 : index
    %c0_93 = arith.constant 0 : index
    %86 = vector.load %arg1[%c1_91, %c0_92, %c0_93] : memref<3x32x256xbf16, #tpu.memory_space<vmem>>, vector<1x32x256xbf16>
    %87 = vector.shape_cast %86 : vector<1x32x256xbf16> to vector<32x256xbf16>
    %cst_94 = arith.constant dense<0.000000e+00> : vector<2x256xf32>
    %88 = tpu.matmul %21, %87, %cst_94 {dimension_numbers = #tpu.dot_dimension_numbers<[1], [0], [0], [1], [0, 0, 1, 1], [], []>} : vector<2x32xbf16>, vector<32x256xbf16>, vector<2x256xf32> -> vector<2x256xf32>
    %89 = arith.addf %85, %88 : vector<2x256xf32>
    %c2_95 = arith.constant 2 : index
    %c0_96 = arith.constant 0 : index
    %c0_97 = arith.constant 0 : index
    %90 = vector.load %arg1[%c2_95, %c0_96, %c0_97] : memref<3x32x256xbf16, #tpu.memory_space<vmem>>, vector<1x32x256xbf16>
    %91 = vector.shape_cast %90 : vector<1x32x256xbf16> to vector<32x256xbf16>
    %cst_98 = arith.constant dense<0.000000e+00> : vector<2x256xf32>
    %92 = tpu.matmul %23, %91, %cst_98 {dimension_numbers = #tpu.dot_dimension_numbers<[1], [0], [0], [1], [0, 0, 1, 1], [], []>} : vector<2x32xbf16>, vector<32x256xbf16>, vector<2x256xf32> -> vector<2x256xf32>
    %93 = arith.addf %89, %92 : vector<2x256xf32>
    %c0_99 = arith.constant 0 : index
    %c0_100 = arith.constant 0 : index
    %c0_101 = arith.constant 0 : index
    %94 = vector.load %arg1[%c0_99, %c0_100, %c0_101] : memref<3x32x256xbf16, #tpu.memory_space<vmem>>, vector<1x32x256xbf16>
    %95 = vector.shape_cast %94 : vector<1x32x256xbf16> to vector<32x256xbf16>
    %cst_102 = arith.constant dense<0.000000e+00> : vector<2x256xf32>
    %96 = tpu.matmul %23, %95, %cst_102 {dimension_numbers = #tpu.dot_dimension_numbers<[1], [0], [0], [1], [0, 0, 1, 1], [], []>} : vector<2x32xbf16>, vector<32x256xbf16>, vector<2x256xf32> -> vector<2x256xf32>
    %c1_103 = arith.constant 1 : index
    %c0_104 = arith.constant 0 : index
    %c0_105 = arith.constant 0 : index
    %97 = vector.load %arg1[%c1_103, %c0_104, %c0_105] : memref<3x32x256xbf16, #tpu.memory_space<vmem>>, vector<1x32x256xbf16>
    %98 = vector.shape_cast %97 : vector<1x32x256xbf16> to vector<32x256xbf16>
    %cst_106 = arith.constant dense<0.000000e+00> : vector<2x256xf32>
    %99 = tpu.matmul %25, %98, %cst_106 {dimension_numbers = #tpu.dot_dimension_numbers<[1], [0], [0], [1], [0, 0, 1, 1], [], []>} : vector<2x32xbf16>, vector<32x256xbf16>, vector<2x256xf32> -> vector<2x256xf32>
    %100 = arith.addf %96, %99 : vector<2x256xf32>
    %c2_107 = arith.constant 2 : index
    %c0_108 = arith.constant 0 : index
    %c0_109 = arith.constant 0 : index
    %101 = vector.load %arg1[%c2_107, %c0_108, %c0_109] : memref<3x32x256xbf16, #tpu.memory_space<vmem>>, vector<1x32x256xbf16>
    %102 = vector.shape_cast %101 : vector<1x32x256xbf16> to vector<32x256xbf16>
    %cst_110 = arith.constant dense<0.000000e+00> : vector<2x256xf32>
    %103 = tpu.matmul %27, %102, %cst_110 {dimension_numbers = #tpu.dot_dimension_numbers<[1], [0], [0], [1], [0, 0, 1, 1], [], []>} : vector<2x32xbf16>, vector<32x256xbf16>, vector<2x256xf32> -> vector<2x256xf32>
    %104 = arith.addf %100, %103 : vector<2x256xf32>
    %c0_111 = arith.constant 0 : index
    %c0_112 = arith.constant 0 : index
    %c0_113 = arith.constant 0 : index
    %105 = vector.load %arg1[%c0_111, %c0_112, %c0_113] : memref<3x32x256xbf16, #tpu.memory_space<vmem>>, vector<1x32x256xbf16>
    %106 = vector.shape_cast %105 : vector<1x32x256xbf16> to vector<32x256xbf16>
    %cst_114 = arith.constant dense<0.000000e+00> : vector<2x256xf32>
    %107 = tpu.matmul %27, %106, %cst_114 {dimension_numbers = #tpu.dot_dimension_numbers<[1], [0], [0], [1], [0, 0, 1, 1], [], []>} : vector<2x32xbf16>, vector<32x256xbf16>, vector<2x256xf32> -> vector<2x256xf32>
    %c1_115 = arith.constant 1 : index
    %c0_116 = arith.constant 0 : index
    %c0_117 = arith.constant 0 : index
    %108 = vector.load %arg1[%c1_115, %c0_116, %c0_117] : memref<3x32x256xbf16, #tpu.memory_space<vmem>>, vector<1x32x256xbf16>
    %109 = vector.shape_cast %108 : vector<1x32x256xbf16> to vector<32x256xbf16>
    %cst_118 = arith.constant dense<0.000000e+00> : vector<2x256xf32>
    %110 = tpu.matmul %29, %109, %cst_118 {dimension_numbers = #tpu.dot_dimension_numbers<[1], [0], [0], [1], [0, 0, 1, 1], [], []>} : vector<2x32xbf16>, vector<32x256xbf16>, vector<2x256xf32> -> vector<2x256xf32>
    %111 = arith.addf %107, %110 : vector<2x256xf32>
    %c2_119 = arith.constant 2 : index
    %c0_120 = arith.constant 0 : index
    %c0_121 = arith.constant 0 : index
    %112 = vector.load %arg1[%c2_119, %c0_120, %c0_121] : memref<3x32x256xbf16, #tpu.memory_space<vmem>>, vector<1x32x256xbf16>
    %113 = vector.shape_cast %112 : vector<1x32x256xbf16> to vector<32x256xbf16>
    %cst_122 = arith.constant dense<0.000000e+00> : vector<2x256xf32>
    %114 = tpu.matmul %31, %113, %cst_122 {dimension_numbers = #tpu.dot_dimension_numbers<[1], [0], [0], [1], [0, 0, 1, 1], [], []>} : vector<2x32xbf16>, vector<32x256xbf16>, vector<2x256xf32> -> vector<2x256xf32>
    %115 = arith.addf %111, %114 : vector<2x256xf32>
    %cst_123 = arith.constant dense<0.000000e+00> : vector<256xf32>
    %116 = vector.multi_reduction <add>, %38, %cst_123 [0] : vector<2x256xf32> to vector<256xf32>
    %117 = vector.shape_cast %116 : vector<256xf32> to vector<1x256xf32>
    %118 = arith.mulf %38, %38 : vector<2x256xf32>
    %cst_124 = arith.constant dense<0.000000e+00> : vector<256xf32>
    %119 = vector.multi_reduction <add>, %118, %cst_124 [0] : vector<2x256xf32> to vector<256xf32>
    %120 = vector.shape_cast %119 : vector<256xf32> to vector<1x256xf32>
    %cst_125 = arith.constant dense<0.000000e+00> : vector<256xf32>
    %121 = vector.multi_reduction <add>, %49, %cst_125 [0] : vector<2x256xf32> to vector<256xf32>
    %122 = vector.shape_cast %121 : vector<256xf32> to vector<1x256xf32>
    %123 = arith.mulf %49, %49 : vector<2x256xf32>
    %cst_126 = arith.constant dense<0.000000e+00> : vector<256xf32>
    %124 = vector.multi_reduction <add>, %123, %cst_126 [0] : vector<2x256xf32> to vector<256xf32>
    %125 = vector.shape_cast %124 : vector<256xf32> to vector<1x256xf32>
    %126 = arith.addf %117, %122 : vector<1x256xf32>
    %127 = arith.addf %120, %125 : vector<1x256xf32>
    %cst_127 = arith.constant dense<0.000000e+00> : vector<256xf32>
    %128 = vector.multi_reduction <add>, %60, %cst_127 [0] : vector<2x256xf32> to vector<256xf32>
    %129 = vector.shape_cast %128 : vector<256xf32> to vector<1x256xf32>
    %130 = arith.mulf %60, %60 : vector<2x256xf32>
    %cst_128 = arith.constant dense<0.000000e+00> : vector<256xf32>
    %131 = vector.multi_reduction <add>, %130, %cst_128 [0] : vector<2x256xf32> to vector<256xf32>
    %132 = vector.shape_cast %131 : vector<256xf32> to vector<1x256xf32>
    %133 = arith.addf %126, %129 : vector<1x256xf32>
    %134 = arith.addf %127, %132 : vector<1x256xf32>
    %cst_129 = arith.constant dense<0.000000e+00> : vector<256xf32>
    %135 = vector.multi_reduction <add>, %71, %cst_129 [0] : vector<2x256xf32> to vector<256xf32>
    %136 = vector.shape_cast %135 : vector<256xf32> to vector<1x256xf32>
    %137 = arith.mulf %71, %71 : vector<2x256xf32>
    %cst_130 = arith.constant dense<0.000000e+00> : vector<256xf32>
    %138 = vector.multi_reduction <add>, %137, %cst_130 [0] : vector<2x256xf32> to vector<256xf32>
    %139 = vector.shape_cast %138 : vector<256xf32> to vector<1x256xf32>
    %140 = arith.addf %133, %136 : vector<1x256xf32>
    %141 = arith.addf %134, %139 : vector<1x256xf32>
    %cst_131 = arith.constant dense<0.000000e+00> : vector<256xf32>
    %142 = vector.multi_reduction <add>, %82, %cst_131 [0] : vector<2x256xf32> to vector<256xf32>
    %143 = vector.shape_cast %142 : vector<256xf32> to vector<1x256xf32>
    %144 = arith.mulf %82, %82 : vector<2x256xf32>
    %cst_132 = arith.constant dense<0.000000e+00> : vector<256xf32>
    %145 = vector.multi_reduction <add>, %144, %cst_132 [0] : vector<2x256xf32> to vector<256xf32>
    %146 = vector.shape_cast %145 : vector<256xf32> to vector<1x256xf32>
    %147 = arith.addf %140, %143 : vector<1x256xf32>
    %148 = arith.addf %141, %146 : vector<1x256xf32>
    %cst_133 = arith.constant dense<0.000000e+00> : vector<256xf32>
    %149 = vector.multi_reduction <add>, %93, %cst_133 [0] : vector<2x256xf32> to vector<256xf32>
    %150 = vector.shape_cast %149 : vector<256xf32> to vector<1x256xf32>
    %151 = arith.mulf %93, %93 : vector<2x256xf32>
    %cst_134 = arith.constant dense<0.000000e+00> : vector<256xf32>
    %152 = vector.multi_reduction <add>, %151, %cst_134 [0] : vector<2x256xf32> to vector<256xf32>
    %153 = vector.shape_cast %152 : vector<256xf32> to vector<1x256xf32>
    %154 = arith.addf %147, %150 : vector<1x256xf32>
    %155 = arith.addf %148, %153 : vector<1x256xf32>
    %cst_135 = arith.constant dense<0.000000e+00> : vector<256xf32>
    %156 = vector.multi_reduction <add>, %104, %cst_135 [0] : vector<2x256xf32> to vector<256xf32>
    %157 = vector.shape_cast %156 : vector<256xf32> to vector<1x256xf32>
    %158 = arith.mulf %104, %104 : vector<2x256xf32>
    %cst_136 = arith.constant dense<0.000000e+00> : vector<256xf32>
    %159 = vector.multi_reduction <add>, %158, %cst_136 [0] : vector<2x256xf32> to vector<256xf32>
    %160 = vector.shape_cast %159 : vector<256xf32> to vector<1x256xf32>
    %161 = arith.addf %154, %157 : vector<1x256xf32>
    %162 = arith.addf %155, %160 : vector<1x256xf32>
    %cst_137 = arith.constant dense<0.000000e+00> : vector<256xf32>
    %163 = vector.multi_reduction <add>, %115, %cst_137 [0] : vector<2x256xf32> to vector<256xf32>
    %164 = vector.shape_cast %163 : vector<256xf32> to vector<1x256xf32>
    %165 = arith.mulf %115, %115 : vector<2x256xf32>
    %cst_138 = arith.constant dense<0.000000e+00> : vector<256xf32>
    %166 = vector.multi_reduction <add>, %165, %cst_138 [0] : vector<2x256xf32> to vector<256xf32>
    %167 = vector.shape_cast %166 : vector<256xf32> to vector<1x256xf32>
    %168 = arith.addf %161, %164 : vector<1x256xf32>
    %169 = arith.addf %162, %167 : vector<1x256xf32>
    %170 = tpu.iota {dimensions = array<i32: 0>} : vector<256x32xi32>
    %171 = tpu.iota {dimensions = array<i32: 1>} : vector<256x32xi32>
    %c31_i32 = arith.constant 31 : i32
    %172 = vector.broadcast %c31_i32 : i32 to vector<256x32xi32>
    %173 = arith.andi %170, %172 : vector<256x32xi32>
    %174 = arith.cmpi eq, %173, %171 : vector<256x32xi32>
    %175 = arith.extui %174 : vector<256x32xi1> to vector<256x32xi32>
    %176 = arith.sitofp %175 : vector<256x32xi32> to vector<256x32xf32>
    %177 = tpu.iota {dimensions = array<i32: 1>} : vector<32x256xi32>
    %178 = tpu.iota {dimensions = array<i32: 0>} : vector<32x256xi32>
    %c31_i32_139 = arith.constant 31 : i32
    %179 = vector.broadcast %c31_i32_139 : i32 to vector<32x256xi32>
    %180 = arith.andi %177, %179 : vector<32x256xi32>
    %181 = arith.cmpi eq, %180, %178 : vector<32x256xi32>
    %182 = arith.extui %181 : vector<32x256xi1> to vector<32x256xi32>
    %183 = arith.sitofp %182 : vector<32x256xi32> to vector<32x256xf32>
    %cst_140 = arith.constant dense<0.000000e+00> : vector<1x32xf32>
    %184 = tpu.matmul %168, %176, %cst_140 {dimension_numbers = #tpu.dot_dimension_numbers<[1], [0], [0], [1], [0, 0, 1, 1], [], []>} : vector<1x256xf32>, vector<256x32xf32>, vector<1x32xf32> -> vector<1x32xf32>
    %cst_141 = arith.constant dense<0.000000e+00> : vector<1x32xf32>
    %185 = tpu.matmul %169, %176, %cst_141 {dimension_numbers = #tpu.dot_dimension_numbers<[1], [0], [0], [1], [0, 0, 1, 1], [], []>} : vector<1x256xf32>, vector<256x32xf32>, vector<1x32xf32> -> vector<1x32xf32>
    %cst_142 = arith.constant 7.812500e-03 : f32
    %186 = vector.broadcast %cst_142 : f32 to vector<1x32xf32>
    %187 = arith.mulf %184, %186 : vector<1x32xf32>
    %cst_143 = arith.constant 7.812500e-03 : f32
    %188 = vector.broadcast %cst_143 : f32 to vector<1x32xf32>
    %189 = arith.mulf %185, %188 : vector<1x32xf32>
    %190 = arith.mulf %187, %187 : vector<1x32xf32>
    %191 = arith.subf %189, %190 : vector<1x32xf32>
    %cst_144 = arith.constant 0.000000e+00 : f32
    %192 = vector.broadcast %cst_144 : f32 to vector<1x32xf32>
    %193 = arith.maximumf %191, %192 : vector<1x32xf32>
    %c0_145 = arith.constant 0 : index
    %c0_146 = arith.constant 0 : index
    %194 = vector.load %arg2[%c0_145, %c0_146] : memref<1x32xf32, #tpu.memory_space<vmem>>, vector<1x32xf32>
    %cst_147 = arith.constant 9.99999974E-6 : f32
    %195 = vector.broadcast %cst_147 : f32 to vector<1x32xf32>
    %196 = arith.addf %193, %195 : vector<1x32xf32>
    %197 = math.rsqrt %196 : vector<1x32xf32>
    %198 = arith.mulf %194, %197 : vector<1x32xf32>
    %c0_148 = arith.constant 0 : index
    %c0_149 = arith.constant 0 : index
    %199 = vector.load %arg3[%c0_148, %c0_149] : memref<1x32xf32, #tpu.memory_space<vmem>>, vector<1x32xf32>
    %200 = arith.mulf %187, %198 : vector<1x32xf32>
    %201 = arith.subf %199, %200 : vector<1x32xf32>
    %cst_150 = arith.constant dense<0.000000e+00> : vector<1x256xf32>
    %202 = tpu.matmul %198, %183, %cst_150 {dimension_numbers = #tpu.dot_dimension_numbers<[1], [0], [0], [1], [0, 0, 1, 1], [], []>} : vector<1x32xf32>, vector<32x256xf32>, vector<1x256xf32> -> vector<1x256xf32>
    %cst_151 = arith.constant dense<0.000000e+00> : vector<1x256xf32>
    %203 = tpu.matmul %201, %183, %cst_151 {dimension_numbers = #tpu.dot_dimension_numbers<[1], [0], [0], [1], [0, 0, 1, 1], [], []>} : vector<1x32xf32>, vector<32x256xf32>, vector<1x256xf32> -> vector<1x256xf32>
    %204 = vector.broadcast %202 : vector<1x256xf32> to vector<2x256xf32>
    %205 = arith.mulf %38, %204 : vector<2x256xf32>
    %206 = vector.broadcast %203 : vector<1x256xf32> to vector<2x256xf32>
    %207 = arith.addf %205, %206 : vector<2x256xf32>
    %cst_152 = arith.constant 0.000000e+00 : f32
    %208 = vector.broadcast %cst_152 : f32 to vector<2x256xf32>
    %209 = arith.maximumf %207, %208 : vector<2x256xf32>
    %210 = vector.broadcast %202 : vector<1x256xf32> to vector<2x256xf32>
    %211 = arith.mulf %49, %210 : vector<2x256xf32>
    %212 = vector.broadcast %203 : vector<1x256xf32> to vector<2x256xf32>
    %213 = arith.addf %211, %212 : vector<2x256xf32>
    %cst_153 = arith.constant 0.000000e+00 : f32
    %214 = vector.broadcast %cst_153 : f32 to vector<2x256xf32>
    %215 = arith.maximumf %213, %214 : vector<2x256xf32>
    %216 = vector.broadcast %202 : vector<1x256xf32> to vector<2x256xf32>
    %217 = arith.mulf %60, %216 : vector<2x256xf32>
    %218 = vector.broadcast %203 : vector<1x256xf32> to vector<2x256xf32>
    %219 = arith.addf %217, %218 : vector<2x256xf32>
    %cst_154 = arith.constant 0.000000e+00 : f32
    %220 = vector.broadcast %cst_154 : f32 to vector<2x256xf32>
    %221 = arith.maximumf %219, %220 : vector<2x256xf32>
    %222 = vector.broadcast %202 : vector<1x256xf32> to vector<2x256xf32>
    %223 = arith.mulf %71, %222 : vector<2x256xf32>
    %224 = vector.broadcast %203 : vector<1x256xf32> to vector<2x256xf32>
    %225 = arith.addf %223, %224 : vector<2x256xf32>
    %cst_155 = arith.constant 0.000000e+00 : f32
    %226 = vector.broadcast %cst_155 : f32 to vector<2x256xf32>
    %227 = arith.maximumf %225, %226 : vector<2x256xf32>
    %228 = vector.broadcast %202 : vector<1x256xf32> to vector<2x256xf32>
    %229 = arith.mulf %82, %228 : vector<2x256xf32>
    %230 = vector.broadcast %203 : vector<1x256xf32> to vector<2x256xf32>
    %231 = arith.addf %229, %230 : vector<2x256xf32>
    %cst_156 = arith.constant 0.000000e+00 : f32
    %232 = vector.broadcast %cst_156 : f32 to vector<2x256xf32>
    %233 = arith.maximumf %231, %232 : vector<2x256xf32>
    %234 = vector.broadcast %202 : vector<1x256xf32> to vector<2x256xf32>
    %235 = arith.mulf %93, %234 : vector<2x256xf32>
    %236 = vector.broadcast %203 : vector<1x256xf32> to vector<2x256xf32>
    %237 = arith.addf %235, %236 : vector<2x256xf32>
    %cst_157 = arith.constant 0.000000e+00 : f32
    %238 = vector.broadcast %cst_157 : f32 to vector<2x256xf32>
    %239 = arith.maximumf %237, %238 : vector<2x256xf32>
    %240 = vector.broadcast %202 : vector<1x256xf32> to vector<2x256xf32>
    %241 = arith.mulf %104, %240 : vector<2x256xf32>
    %242 = vector.broadcast %203 : vector<1x256xf32> to vector<2x256xf32>
    %243 = arith.addf %241, %242 : vector<2x256xf32>
    %cst_158 = arith.constant 0.000000e+00 : f32
    %244 = vector.broadcast %cst_158 : f32 to vector<2x256xf32>
    %245 = arith.maximumf %243, %244 : vector<2x256xf32>
    %246 = vector.broadcast %202 : vector<1x256xf32> to vector<2x256xf32>
    %247 = arith.mulf %115, %246 : vector<2x256xf32>
    %248 = vector.broadcast %203 : vector<1x256xf32> to vector<2x256xf32>
    %249 = arith.addf %247, %248 : vector<2x256xf32>
    %cst_159 = arith.constant 0.000000e+00 : f32
    %250 = vector.broadcast %cst_159 : f32 to vector<2x256xf32>
    %251 = arith.maximumf %249, %250 : vector<2x256xf32>
    %252 = arith.truncf %209 : vector<2x256xf32> to vector<2x256xbf16>
    %253 = arith.truncf %215 : vector<2x256xf32> to vector<2x256xbf16>
    %254 = arith.truncf %221 : vector<2x256xf32> to vector<2x256xbf16>
    %255 = arith.truncf %227 : vector<2x256xf32> to vector<2x256xbf16>
    %256 = arith.truncf %233 : vector<2x256xf32> to vector<2x256xbf16>
    %257 = arith.truncf %239 : vector<2x256xf32> to vector<2x256xbf16>
    %258 = arith.truncf %245 : vector<2x256xf32> to vector<2x256xbf16>
    %259 = arith.truncf %251 : vector<2x256xf32> to vector<2x256xbf16>
    %c1_160 = arith.constant 1 : index
    %c0_161 = arith.constant 0 : index
    %c0_162 = arith.constant 0 : index
    %260 = vector.load %arg4[%c1_160, %c0_161, %c0_162] : memref<3x256x256xbf16, #tpu.memory_space<vmem>>, vector<1x256x256xbf16>
    %261 = vector.shape_cast %260 : vector<1x256x256xbf16> to vector<256x256xbf16>
    %cst_163 = arith.constant dense<0.000000e+00> : vector<2x256xf32>
    %262 = tpu.matmul %252, %261, %cst_163 {dimension_numbers = #tpu.dot_dimension_numbers<[1], [0], [0], [1], [0, 0, 1, 1], [], []>} : vector<2x256xbf16>, vector<256x256xbf16>, vector<2x256xf32> -> vector<2x256xf32>
    %c2_164 = arith.constant 2 : index
    %c0_165 = arith.constant 0 : index
    %c0_166 = arith.constant 0 : index
    %263 = vector.load %arg4[%c2_164, %c0_165, %c0_166] : memref<3x256x256xbf16, #tpu.memory_space<vmem>>, vector<1x256x256xbf16>
    %264 = vector.shape_cast %263 : vector<1x256x256xbf16> to vector<256x256xbf16>
    %cst_167 = arith.constant dense<0.000000e+00> : vector<2x256xf32>
    %265 = tpu.matmul %253, %264, %cst_167 {dimension_numbers = #tpu.dot_dimension_numbers<[1], [0], [0], [1], [0, 0, 1, 1], [], []>} : vector<2x256xbf16>, vector<256x256xbf16>, vector<2x256xf32> -> vector<2x256xf32>
    %266 = arith.addf %262, %265 : vector<2x256xf32>
    %c0_168 = arith.constant 0 : index
    %c0_169 = arith.constant 0 : index
    %c0_170 = arith.constant 0 : index
    %267 = vector.load %arg4[%c0_168, %c0_169, %c0_170] : memref<3x256x256xbf16, #tpu.memory_space<vmem>>, vector<1x256x256xbf16>
    %268 = vector.shape_cast %267 : vector<1x256x256xbf16> to vector<256x256xbf16>
    %cst_171 = arith.constant dense<0.000000e+00> : vector<2x256xf32>
    %269 = tpu.matmul %253, %268, %cst_171 {dimension_numbers = #tpu.dot_dimension_numbers<[1], [0], [0], [1], [0, 0, 1, 1], [], []>} : vector<2x256xbf16>, vector<256x256xbf16>, vector<2x256xf32> -> vector<2x256xf32>
    %c1_172 = arith.constant 1 : index
    %c0_173 = arith.constant 0 : index
    %c0_174 = arith.constant 0 : index
    %270 = vector.load %arg4[%c1_172, %c0_173, %c0_174] : memref<3x256x256xbf16, #tpu.memory_space<vmem>>, vector<1x256x256xbf16>
    %271 = vector.shape_cast %270 : vector<1x256x256xbf16> to vector<256x256xbf16>
    %cst_175 = arith.constant dense<0.000000e+00> : vector<2x256xf32>
    %272 = tpu.matmul %254, %271, %cst_175 {dimension_numbers = #tpu.dot_dimension_numbers<[1], [0], [0], [1], [0, 0, 1, 1], [], []>} : vector<2x256xbf16>, vector<256x256xbf16>, vector<2x256xf32> -> vector<2x256xf32>
    %273 = arith.addf %269, %272 : vector<2x256xf32>
    %c2_176 = arith.constant 2 : index
    %c0_177 = arith.constant 0 : index
    %c0_178 = arith.constant 0 : index
    %274 = vector.load %arg4[%c2_176, %c0_177, %c0_178] : memref<3x256x256xbf16, #tpu.memory_space<vmem>>, vector<1x256x256xbf16>
    %275 = vector.shape_cast %274 : vector<1x256x256xbf16> to vector<256x256xbf16>
    %cst_179 = arith.constant dense<0.000000e+00> : vector<2x256xf32>
    %276 = tpu.matmul %255, %275, %cst_179 {dimension_numbers = #tpu.dot_dimension_numbers<[1], [0], [0], [1], [0, 0, 1, 1], [], []>} : vector<2x256xbf16>, vector<256x256xbf16>, vector<2x256xf32> -> vector<2x256xf32>
    %277 = arith.addf %273, %276 : vector<2x256xf32>
    %c0_180 = arith.constant 0 : index
    %c0_181 = arith.constant 0 : index
    %c0_182 = arith.constant 0 : index
    %278 = vector.load %arg4[%c0_180, %c0_181, %c0_182] : memref<3x256x256xbf16, #tpu.memory_space<vmem>>, vector<1x256x256xbf16>
    %279 = vector.shape_cast %278 : vector<1x256x256xbf16> to vector<256x256xbf16>
    %cst_183 = arith.constant dense<0.000000e+00> : vector<2x256xf32>
    %280 = tpu.matmul %255, %279, %cst_183 {dimension_numbers = #tpu.dot_dimension_numbers<[1], [0], [0], [1], [0, 0, 1, 1], [], []>} : vector<2x256xbf16>, vector<256x256xbf16>, vector<2x256xf32> -> vector<2x256xf32>
    %c1_184 = arith.constant 1 : index
    %c0_185 = arith.constant 0 : index
    %c0_186 = arith.constant 0 : index
    %281 = vector.load %arg4[%c1_184, %c0_185, %c0_186] : memref<3x256x256xbf16, #tpu.memory_space<vmem>>, vector<1x256x256xbf16>
    %282 = vector.shape_cast %281 : vector<1x256x256xbf16> to vector<256x256xbf16>
    %cst_187 = arith.constant dense<0.000000e+00> : vector<2x256xf32>
    %283 = tpu.matmul %256, %282, %cst_187 {dimension_numbers = #tpu.dot_dimension_numbers<[1], [0], [0], [1], [0, 0, 1, 1], [], []>} : vector<2x256xbf16>, vector<256x256xbf16>, vector<2x256xf32> -> vector<2x256xf32>
    %284 = arith.addf %280, %283 : vector<2x256xf32>
    %c2_188 = arith.constant 2 : index
    %c0_189 = arith.constant 0 : index
    %c0_190 = arith.constant 0 : index
    %285 = vector.load %arg4[%c2_188, %c0_189, %c0_190] : memref<3x256x256xbf16, #tpu.memory_space<vmem>>, vector<1x256x256xbf16>
    %286 = vector.shape_cast %285 : vector<1x256x256xbf16> to vector<256x256xbf16>
    %cst_191 = arith.constant dense<0.000000e+00> : vector<2x256xf32>
    %287 = tpu.matmul %257, %286, %cst_191 {dimension_numbers = #tpu.dot_dimension_numbers<[1], [0], [0], [1], [0, 0, 1, 1], [], []>} : vector<2x256xbf16>, vector<256x256xbf16>, vector<2x256xf32> -> vector<2x256xf32>
    %288 = arith.addf %284, %287 : vector<2x256xf32>
    %c0_192 = arith.constant 0 : index
    %c0_193 = arith.constant 0 : index
    %c0_194 = arith.constant 0 : index
    %289 = vector.load %arg4[%c0_192, %c0_193, %c0_194] : memref<3x256x256xbf16, #tpu.memory_space<vmem>>, vector<1x256x256xbf16>
    %290 = vector.shape_cast %289 : vector<1x256x256xbf16> to vector<256x256xbf16>
    %cst_195 = arith.constant dense<0.000000e+00> : vector<2x256xf32>
    %291 = tpu.matmul %257, %290, %cst_195 {dimension_numbers = #tpu.dot_dimension_numbers<[1], [0], [0], [1], [0, 0, 1, 1], [], []>} : vector<2x256xbf16>, vector<256x256xbf16>, vector<2x256xf32> -> vector<2x256xf32>
    %c1_196 = arith.constant 1 : index
    %c0_197 = arith.constant 0 : index
    %c0_198 = arith.constant 0 : index
    %292 = vector.load %arg4[%c1_196, %c0_197, %c0_198] : memref<3x256x256xbf16, #tpu.memory_space<vmem>>, vector<1x256x256xbf16>
    %293 = vector.shape_cast %292 : vector<1x256x256xbf16> to vector<256x256xbf16>
    %cst_199 = arith.constant dense<0.000000e+00> : vector<2x256xf32>
    %294 = tpu.matmul %258, %293, %cst_199 {dimension_numbers = #tpu.dot_dimension_numbers<[1], [0], [0], [1], [0, 0, 1, 1], [], []>} : vector<2x256xbf16>, vector<256x256xbf16>, vector<2x256xf32> -> vector<2x256xf32>
    %295 = arith.addf %291, %294 : vector<2x256xf32>
    %c2_200 = arith.constant 2 : index
    %c0_201 = arith.constant 0 : index
    %c0_202 = arith.constant 0 : index
    %296 = vector.load %arg4[%c2_200, %c0_201, %c0_202] : memref<3x256x256xbf16, #tpu.memory_space<vmem>>, vector<1x256x256xbf16>
    %297 = vector.shape_cast %296 : vector<1x256x256xbf16> to vector<256x256xbf16>
    %cst_203 = arith.constant dense<0.000000e+00> : vector<2x256xf32>
    %298 = tpu.matmul %259, %297, %cst_203 {dimension_numbers = #tpu.dot_dimension_numbers<[1], [0], [0], [1], [0, 0, 1, 1], [], []>} : vector<2x256xbf16>, vector<256x256xbf16>, vector<2x256xf32> -> vector<2x256xf32>
    %299 = arith.addf %295, %298 : vector<2x256xf32>
    %cst_204 = arith.constant dense<0.000000e+00> : vector<256xf32>
    %300 = vector.multi_reduction <add>, %266, %cst_204 [0] : vector<2x256xf32> to vector<256xf32>
    %301 = vector.shape_cast %300 : vector<256xf32> to vector<1x256xf32>
    %302 = arith.mulf %266, %266 : vector<2x256xf32>
    %cst_205 = arith.constant dense<0.000000e+00> : vector<256xf32>
    %303 = vector.multi_reduction <add>, %302, %cst_205 [0] : vector<2x256xf32> to vector<256xf32>
    %304 = vector.shape_cast %303 : vector<256xf32> to vector<1x256xf32>
    %cst_206 = arith.constant dense<0.000000e+00> : vector<256xf32>
    %305 = vector.multi_reduction <add>, %277, %cst_206 [0] : vector<2x256xf32> to vector<256xf32>
    %306 = vector.shape_cast %305 : vector<256xf32> to vector<1x256xf32>
    %307 = arith.mulf %277, %277 : vector<2x256xf32>
    %cst_207 = arith.constant dense<0.000000e+00> : vector<256xf32>
    %308 = vector.multi_reduction <add>, %307, %cst_207 [0] : vector<2x256xf32> to vector<256xf32>
    %309 = vector.shape_cast %308 : vector<256xf32> to vector<1x256xf32>
    %310 = arith.addf %301, %306 : vector<1x256xf32>
    %311 = arith.addf %304, %309 : vector<1x256xf32>
    %cst_208 = arith.constant dense<0.000000e+00> : vector<256xf32>
    %312 = vector.multi_reduction <add>, %288, %cst_208 [0] : vector<2x256xf32> to vector<256xf32>
    %313 = vector.shape_cast %312 : vector<256xf32> to vector<1x256xf32>
    %314 = arith.mulf %288, %288 : vector<2x256xf32>
    %cst_209 = arith.constant dense<0.000000e+00> : vector<256xf32>
    %315 = vector.multi_reduction <add>, %314, %cst_209 [0] : vector<2x256xf32> to vector<256xf32>
    %316 = vector.shape_cast %315 : vector<256xf32> to vector<1x256xf32>
    %317 = arith.addf %310, %313 : vector<1x256xf32>
    %318 = arith.addf %311, %316 : vector<1x256xf32>
    %cst_210 = arith.constant dense<0.000000e+00> : vector<256xf32>
    %319 = vector.multi_reduction <add>, %299, %cst_210 [0] : vector<2x256xf32> to vector<256xf32>
    %320 = vector.shape_cast %319 : vector<256xf32> to vector<1x256xf32>
    %321 = arith.mulf %299, %299 : vector<2x256xf32>
    %cst_211 = arith.constant dense<0.000000e+00> : vector<256xf32>
    %322 = vector.multi_reduction <add>, %321, %cst_211 [0] : vector<2x256xf32> to vector<256xf32>
    %323 = vector.shape_cast %322 : vector<256xf32> to vector<1x256xf32>
    %324 = arith.addf %317, %320 : vector<1x256xf32>
    %325 = arith.addf %318, %323 : vector<1x256xf32>
    %326 = tpu.iota {dimensions = array<i32: 0>} : vector<256x64xi32>
    %327 = tpu.iota {dimensions = array<i32: 1>} : vector<256x64xi32>
    %c63_i32 = arith.constant 63 : i32
    %328 = vector.broadcast %c63_i32 : i32 to vector<256x64xi32>
    %329 = arith.andi %326, %328 : vector<256x64xi32>
    %330 = arith.cmpi eq, %329, %327 : vector<256x64xi32>
    %331 = arith.extui %330 : vector<256x64xi1> to vector<256x64xi32>
    %332 = arith.sitofp %331 : vector<256x64xi32> to vector<256x64xf32>
    %333 = tpu.iota {dimensions = array<i32: 1>} : vector<64x256xi32>
    %334 = tpu.iota {dimensions = array<i32: 0>} : vector<64x256xi32>
    %c63_i32_212 = arith.constant 63 : i32
    %335 = vector.broadcast %c63_i32_212 : i32 to vector<64x256xi32>
    %336 = arith.andi %333, %335 : vector<64x256xi32>
    %337 = arith.cmpi eq, %336, %334 : vector<64x256xi32>
    %338 = arith.extui %337 : vector<64x256xi1> to vector<64x256xi32>
    %339 = arith.sitofp %338 : vector<64x256xi32> to vector<64x256xf32>
    %cst_213 = arith.constant dense<0.000000e+00> : vector<1x64xf32>
    %340 = tpu.matmul %324, %332, %cst_213 {dimension_numbers = #tpu.dot_dimension_numbers<[1], [0], [0], [1], [0, 0, 1, 1], [], []>} : vector<1x256xf32>, vector<256x64xf32>, vector<1x64xf32> -> vector<1x64xf32>
    %cst_214 = arith.constant dense<0.000000e+00> : vector<1x64xf32>
    %341 = tpu.matmul %325, %332, %cst_214 {dimension_numbers = #tpu.dot_dimension_numbers<[1], [0], [0], [1], [0, 0, 1, 1], [], []>} : vector<1x256xf32>, vector<256x64xf32>, vector<1x64xf32> -> vector<1x64xf32>
    %cst_215 = arith.constant 3.125000e-02 : f32
    %342 = vector.broadcast %cst_215 : f32 to vector<1x64xf32>
    %343 = arith.mulf %340, %342 : vector<1x64xf32>
    %cst_216 = arith.constant 3.125000e-02 : f32
    %344 = vector.broadcast %cst_216 : f32 to vector<1x64xf32>
    %345 = arith.mulf %341, %344 : vector<1x64xf32>
    %346 = arith.mulf %343, %343 : vector<1x64xf32>
    %347 = arith.subf %345, %346 : vector<1x64xf32>
    %cst_217 = arith.constant 0.000000e+00 : f32
    %348 = vector.broadcast %cst_217 : f32 to vector<1x64xf32>
    %349 = arith.maximumf %347, %348 : vector<1x64xf32>
    %c0_218 = arith.constant 0 : index
    %c0_219 = arith.constant 0 : index
    %350 = vector.load %arg5[%c0_218, %c0_219] : memref<1x64xf32, #tpu.memory_space<vmem>>, vector<1x64xf32>
    %cst_220 = arith.constant 9.99999974E-6 : f32
    %351 = vector.broadcast %cst_220 : f32 to vector<1x64xf32>
    %352 = arith.addf %349, %351 : vector<1x64xf32>
    %353 = math.rsqrt %352 : vector<1x64xf32>
    %354 = arith.mulf %350, %353 : vector<1x64xf32>
    %c0_221 = arith.constant 0 : index
    %c0_222 = arith.constant 0 : index
    %355 = vector.load %arg6[%c0_221, %c0_222] : memref<1x64xf32, #tpu.memory_space<vmem>>, vector<1x64xf32>
    %356 = arith.mulf %343, %354 : vector<1x64xf32>
    %357 = arith.subf %355, %356 : vector<1x64xf32>
    %cst_223 = arith.constant dense<0.000000e+00> : vector<1x256xf32>
    %358 = tpu.matmul %354, %339, %cst_223 {dimension_numbers = #tpu.dot_dimension_numbers<[1], [0], [0], [1], [0, 0, 1, 1], [], []>} : vector<1x64xf32>, vector<64x256xf32>, vector<1x256xf32> -> vector<1x256xf32>
    %cst_224 = arith.constant dense<0.000000e+00> : vector<1x256xf32>
    %359 = tpu.matmul %357, %339, %cst_224 {dimension_numbers = #tpu.dot_dimension_numbers<[1], [0], [0], [1], [0, 0, 1, 1], [], []>} : vector<1x64xf32>, vector<64x256xf32>, vector<1x256xf32> -> vector<1x256xf32>
    %360 = vector.broadcast %358 : vector<1x256xf32> to vector<2x256xf32>
    %361 = arith.mulf %266, %360 : vector<2x256xf32>
    %362 = vector.broadcast %359 : vector<1x256xf32> to vector<2x256xf32>
    %363 = arith.addf %361, %362 : vector<2x256xf32>
    %cst_225 = arith.constant 0.000000e+00 : f32
    %364 = vector.broadcast %cst_225 : f32 to vector<2x256xf32>
    %365 = arith.maximumf %363, %364 : vector<2x256xf32>
    %366 = vector.broadcast %358 : vector<1x256xf32> to vector<2x256xf32>
    %367 = arith.mulf %277, %366 : vector<2x256xf32>
    %368 = vector.broadcast %359 : vector<1x256xf32> to vector<2x256xf32>
    %369 = arith.addf %367, %368 : vector<2x256xf32>
    %cst_226 = arith.constant 0.000000e+00 : f32
    %370 = vector.broadcast %cst_226 : f32 to vector<2x256xf32>
    %371 = arith.maximumf %369, %370 : vector<2x256xf32>
    %372 = vector.broadcast %358 : vector<1x256xf32> to vector<2x256xf32>
    %373 = arith.mulf %288, %372 : vector<2x256xf32>
    %374 = vector.broadcast %359 : vector<1x256xf32> to vector<2x256xf32>
    %375 = arith.addf %373, %374 : vector<2x256xf32>
    %cst_227 = arith.constant 0.000000e+00 : f32
    %376 = vector.broadcast %cst_227 : f32 to vector<2x256xf32>
    %377 = arith.maximumf %375, %376 : vector<2x256xf32>
    %378 = vector.broadcast %358 : vector<1x256xf32> to vector<2x256xf32>
    %379 = arith.mulf %299, %378 : vector<2x256xf32>
    %380 = vector.broadcast %359 : vector<1x256xf32> to vector<2x256xf32>
    %381 = arith.addf %379, %380 : vector<2x256xf32>
    %cst_228 = arith.constant 0.000000e+00 : f32
    %382 = vector.broadcast %cst_228 : f32 to vector<2x256xf32>
    %383 = arith.maximumf %381, %382 : vector<2x256xf32>
    %384 = arith.truncf %365 : vector<2x256xf32> to vector<2x256xbf16>
    %385 = arith.truncf %371 : vector<2x256xf32> to vector<2x256xbf16>
    %386 = arith.truncf %377 : vector<2x256xf32> to vector<2x256xbf16>
    %387 = arith.truncf %383 : vector<2x256xf32> to vector<2x256xbf16>
    %c1_229 = arith.constant 1 : index
    %c0_230 = arith.constant 0 : index
    %c0_231 = arith.constant 0 : index
    %388 = vector.load %arg7[%c1_229, %c0_230, %c0_231] : memref<3x256x256xbf16, #tpu.memory_space<vmem>>, vector<1x256x256xbf16>
    %389 = vector.shape_cast %388 : vector<1x256x256xbf16> to vector<256x256xbf16>
    %cst_232 = arith.constant dense<0.000000e+00> : vector<2x256xf32>
    %390 = tpu.matmul %384, %389, %cst_232 {dimension_numbers = #tpu.dot_dimension_numbers<[1], [0], [0], [1], [0, 0, 1, 1], [], []>} : vector<2x256xbf16>, vector<256x256xbf16>, vector<2x256xf32> -> vector<2x256xf32>
    %c2_233 = arith.constant 2 : index
    %c0_234 = arith.constant 0 : index
    %c0_235 = arith.constant 0 : index
    %391 = vector.load %arg7[%c2_233, %c0_234, %c0_235] : memref<3x256x256xbf16, #tpu.memory_space<vmem>>, vector<1x256x256xbf16>
    %392 = vector.shape_cast %391 : vector<1x256x256xbf16> to vector<256x256xbf16>
    %cst_236 = arith.constant dense<0.000000e+00> : vector<2x256xf32>
    %393 = tpu.matmul %385, %392, %cst_236 {dimension_numbers = #tpu.dot_dimension_numbers<[1], [0], [0], [1], [0, 0, 1, 1], [], []>} : vector<2x256xbf16>, vector<256x256xbf16>, vector<2x256xf32> -> vector<2x256xf32>
    %394 = arith.addf %390, %393 : vector<2x256xf32>
    %c0_237 = arith.constant 0 : index
    %c0_238 = arith.constant 0 : index
    %c0_239 = arith.constant 0 : index
    %395 = vector.load %arg7[%c0_237, %c0_238, %c0_239] : memref<3x256x256xbf16, #tpu.memory_space<vmem>>, vector<1x256x256xbf16>
    %396 = vector.shape_cast %395 : vector<1x256x256xbf16> to vector<256x256xbf16>
    %cst_240 = arith.constant dense<0.000000e+00> : vector<2x256xf32>
    %397 = tpu.matmul %385, %396, %cst_240 {dimension_numbers = #tpu.dot_dimension_numbers<[1], [0], [0], [1], [0, 0, 1, 1], [], []>} : vector<2x256xbf16>, vector<256x256xbf16>, vector<2x256xf32> -> vector<2x256xf32>
    %c1_241 = arith.constant 1 : index
    %c0_242 = arith.constant 0 : index
    %c0_243 = arith.constant 0 : index
    %398 = vector.load %arg7[%c1_241, %c0_242, %c0_243] : memref<3x256x256xbf16, #tpu.memory_space<vmem>>, vector<1x256x256xbf16>
    %399 = vector.shape_cast %398 : vector<1x256x256xbf16> to vector<256x256xbf16>
    %cst_244 = arith.constant dense<0.000000e+00> : vector<2x256xf32>
    %400 = tpu.matmul %386, %399, %cst_244 {dimension_numbers = #tpu.dot_dimension_numbers<[1], [0], [0], [1], [0, 0, 1, 1], [], []>} : vector<2x256xbf16>, vector<256x256xbf16>, vector<2x256xf32> -> vector<2x256xf32>
    %401 = arith.addf %397, %400 : vector<2x256xf32>
    %c2_245 = arith.constant 2 : index
    %c0_246 = arith.constant 0 : index
    %c0_247 = arith.constant 0 : index
    %402 = vector.load %arg7[%c2_245, %c0_246, %c0_247] : memref<3x256x256xbf16, #tpu.memory_space<vmem>>, vector<1x256x256xbf16>
    %403 = vector.shape_cast %402 : vector<1x256x256xbf16> to vector<256x256xbf16>
    %cst_248 = arith.constant dense<0.000000e+00> : vector<2x256xf32>
    %404 = tpu.matmul %387, %403, %cst_248 {dimension_numbers = #tpu.dot_dimension_numbers<[1], [0], [0], [1], [0, 0, 1, 1], [], []>} : vector<2x256xbf16>, vector<256x256xbf16>, vector<2x256xf32> -> vector<2x256xf32>
    %405 = arith.addf %401, %404 : vector<2x256xf32>
    %cst_249 = arith.constant dense<0.000000e+00> : vector<256xf32>
    %406 = vector.multi_reduction <add>, %394, %cst_249 [0] : vector<2x256xf32> to vector<256xf32>
    %407 = vector.shape_cast %406 : vector<256xf32> to vector<1x256xf32>
    %408 = arith.mulf %394, %394 : vector<2x256xf32>
    %cst_250 = arith.constant dense<0.000000e+00> : vector<256xf32>
    %409 = vector.multi_reduction <add>, %408, %cst_250 [0] : vector<2x256xf32> to vector<256xf32>
    %410 = vector.shape_cast %409 : vector<256xf32> to vector<1x256xf32>
    %cst_251 = arith.constant dense<0.000000e+00> : vector<256xf32>
    %411 = vector.multi_reduction <add>, %405, %cst_251 [0] : vector<2x256xf32> to vector<256xf32>
    %412 = vector.shape_cast %411 : vector<256xf32> to vector<1x256xf32>
    %413 = arith.mulf %405, %405 : vector<2x256xf32>
    %cst_252 = arith.constant dense<0.000000e+00> : vector<256xf32>
    %414 = vector.multi_reduction <add>, %413, %cst_252 [0] : vector<2x256xf32> to vector<256xf32>
    %415 = vector.shape_cast %414 : vector<256xf32> to vector<1x256xf32>
    %416 = arith.addf %407, %412 : vector<1x256xf32>
    %417 = arith.addf %410, %415 : vector<1x256xf32>
    %418 = tpu.iota {dimensions = array<i32: 0>} : vector<256x128xi32>
    %419 = tpu.iota {dimensions = array<i32: 1>} : vector<256x128xi32>
    %c127_i32 = arith.constant 127 : i32
    %420 = vector.broadcast %c127_i32 : i32 to vector<256x128xi32>
    %421 = arith.andi %418, %420 : vector<256x128xi32>
    %422 = arith.cmpi eq, %421, %419 : vector<256x128xi32>
    %423 = arith.extui %422 : vector<256x128xi1> to vector<256x128xi32>
    %424 = arith.sitofp %423 : vector<256x128xi32> to vector<256x128xf32>
    %425 = tpu.iota {dimensions = array<i32: 1>} : vector<128x256xi32>
    %426 = tpu.iota {dimensions = array<i32: 0>} : vector<128x256xi32>
    %c127_i32_253 = arith.constant 127 : i32
    %427 = vector.broadcast %c127_i32_253 : i32 to vector<128x256xi32>
    %428 = arith.andi %425, %427 : vector<128x256xi32>
    %429 = arith.cmpi eq, %428, %426 : vector<128x256xi32>
    %430 = arith.extui %429 : vector<128x256xi1> to vector<128x256xi32>
    %431 = arith.sitofp %430 : vector<128x256xi32> to vector<128x256xf32>
    %cst_254 = arith.constant dense<0.000000e+00> : vector<1x128xf32>
    %432 = tpu.matmul %416, %424, %cst_254 {dimension_numbers = #tpu.dot_dimension_numbers<[1], [0], [0], [1], [0, 0, 1, 1], [], []>} : vector<1x256xf32>, vector<256x128xf32>, vector<1x128xf32> -> vector<1x128xf32>
    %cst_255 = arith.constant dense<0.000000e+00> : vector<1x128xf32>
    %433 = tpu.matmul %417, %424, %cst_255 {dimension_numbers = #tpu.dot_dimension_numbers<[1], [0], [0], [1], [0, 0, 1, 1], [], []>} : vector<1x256xf32>, vector<256x128xf32>, vector<1x128xf32> -> vector<1x128xf32>
    %cst_256 = arith.constant 1.250000e-01 : f32
    %434 = vector.broadcast %cst_256 : f32 to vector<1x128xf32>
    %435 = arith.mulf %432, %434 : vector<1x128xf32>
    %cst_257 = arith.constant 1.250000e-01 : f32
    %436 = vector.broadcast %cst_257 : f32 to vector<1x128xf32>
    %437 = arith.mulf %433, %436 : vector<1x128xf32>
    %438 = arith.mulf %435, %435 : vector<1x128xf32>
    %439 = arith.subf %437, %438 : vector<1x128xf32>
    %cst_258 = arith.constant 0.000000e+00 : f32
    %440 = vector.broadcast %cst_258 : f32 to vector<1x128xf32>
    %441 = arith.maximumf %439, %440 : vector<1x128xf32>
    %c0_259 = arith.constant 0 : index
    %c0_260 = arith.constant 0 : index
    %442 = vector.load %arg8[%c0_259, %c0_260] : memref<1x128xf32, #tpu.memory_space<vmem>>, vector<1x128xf32>
    %cst_261 = arith.constant 9.99999974E-6 : f32
    %443 = vector.broadcast %cst_261 : f32 to vector<1x128xf32>
    %444 = arith.addf %441, %443 : vector<1x128xf32>
    %445 = math.rsqrt %444 : vector<1x128xf32>
    %446 = arith.mulf %442, %445 : vector<1x128xf32>
    %c0_262 = arith.constant 0 : index
    %c0_263 = arith.constant 0 : index
    %447 = vector.load %arg9[%c0_262, %c0_263] : memref<1x128xf32, #tpu.memory_space<vmem>>, vector<1x128xf32>
    %448 = arith.mulf %435, %446 : vector<1x128xf32>
    %449 = arith.subf %447, %448 : vector<1x128xf32>
    %cst_264 = arith.constant dense<0.000000e+00> : vector<1x256xf32>
    %450 = tpu.matmul %446, %431, %cst_264 {dimension_numbers = #tpu.dot_dimension_numbers<[1], [0], [0], [1], [0, 0, 1, 1], [], []>} : vector<1x128xf32>, vector<128x256xf32>, vector<1x256xf32> -> vector<1x256xf32>
    %cst_265 = arith.constant dense<0.000000e+00> : vector<1x256xf32>
    %451 = tpu.matmul %449, %431, %cst_265 {dimension_numbers = #tpu.dot_dimension_numbers<[1], [0], [0], [1], [0, 0, 1, 1], [], []>} : vector<1x128xf32>, vector<128x256xf32>, vector<1x256xf32> -> vector<1x256xf32>
    %452 = vector.broadcast %450 : vector<1x256xf32> to vector<2x256xf32>
    %453 = arith.mulf %394, %452 : vector<2x256xf32>
    %454 = vector.broadcast %451 : vector<1x256xf32> to vector<2x256xf32>
    %455 = arith.addf %453, %454 : vector<2x256xf32>
    %cst_266 = arith.constant 0.000000e+00 : f32
    %456 = vector.broadcast %cst_266 : f32 to vector<2x256xf32>
    %457 = arith.maximumf %455, %456 : vector<2x256xf32>
    %458 = vector.broadcast %450 : vector<1x256xf32> to vector<2x256xf32>
    %459 = arith.mulf %405, %458 : vector<2x256xf32>
    %460 = vector.broadcast %451 : vector<1x256xf32> to vector<2x256xf32>
    %461 = arith.addf %459, %460 : vector<2x256xf32>
    %cst_267 = arith.constant 0.000000e+00 : f32
    %462 = vector.broadcast %cst_267 : f32 to vector<2x256xf32>
    %463 = arith.maximumf %461, %462 : vector<2x256xf32>
    %464 = arith.truncf %457 : vector<2x256xf32> to vector<2x256xbf16>
    %465 = arith.truncf %463 : vector<2x256xf32> to vector<2x256xbf16>
    %c1_268 = arith.constant 1 : index
    %c0_269 = arith.constant 0 : index
    %c0_270 = arith.constant 0 : index
    %466 = vector.load %arg10[%c1_268, %c0_269, %c0_270] : memref<3x256x256xbf16, #tpu.memory_space<vmem>>, vector<1x256x256xbf16>
    %467 = vector.shape_cast %466 : vector<1x256x256xbf16> to vector<256x256xbf16>
    %cst_271 = arith.constant dense<0.000000e+00> : vector<2x256xf32>
    %468 = tpu.matmul %464, %467, %cst_271 {dimension_numbers = #tpu.dot_dimension_numbers<[1], [0], [0], [1], [0, 0, 1, 1], [], []>} : vector<2x256xbf16>, vector<256x256xbf16>, vector<2x256xf32> -> vector<2x256xf32>
    %c2_272 = arith.constant 2 : index
    %c0_273 = arith.constant 0 : index
    %c0_274 = arith.constant 0 : index
    %469 = vector.load %arg10[%c2_272, %c0_273, %c0_274] : memref<3x256x256xbf16, #tpu.memory_space<vmem>>, vector<1x256x256xbf16>
    %470 = vector.shape_cast %469 : vector<1x256x256xbf16> to vector<256x256xbf16>
    %cst_275 = arith.constant dense<0.000000e+00> : vector<2x256xf32>
    %471 = tpu.matmul %465, %470, %cst_275 {dimension_numbers = #tpu.dot_dimension_numbers<[1], [0], [0], [1], [0, 0, 1, 1], [], []>} : vector<2x256xbf16>, vector<256x256xbf16>, vector<2x256xf32> -> vector<2x256xf32>
    %472 = arith.addf %468, %471 : vector<2x256xf32>
    %cst_276 = arith.constant dense<0.000000e+00> : vector<256xf32>
    %473 = vector.multi_reduction <add>, %472, %cst_276 [0] : vector<2x256xf32> to vector<256xf32>
    %474 = vector.shape_cast %473 : vector<256xf32> to vector<1x256xf32>
    %475 = arith.mulf %472, %472 : vector<2x256xf32>
    %cst_277 = arith.constant dense<0.000000e+00> : vector<256xf32>
    %476 = vector.multi_reduction <add>, %475, %cst_277 [0] : vector<2x256xf32> to vector<256xf32>
    %477 = vector.shape_cast %476 : vector<256xf32> to vector<1x256xf32>
    %cst_278 = arith.constant 5.000000e-01 : f32
    %478 = vector.broadcast %cst_278 : f32 to vector<1x256xf32>
    %479 = arith.mulf %474, %478 : vector<1x256xf32>
    %cst_279 = arith.constant 5.000000e-01 : f32
    %480 = vector.broadcast %cst_279 : f32 to vector<1x256xf32>
    %481 = arith.mulf %477, %480 : vector<1x256xf32>
    %482 = arith.mulf %479, %479 : vector<1x256xf32>
    %483 = arith.subf %481, %482 : vector<1x256xf32>
    %cst_280 = arith.constant 0.000000e+00 : f32
    %484 = vector.broadcast %cst_280 : f32 to vector<1x256xf32>
    %485 = arith.maximumf %483, %484 : vector<1x256xf32>
    %c0_281 = arith.constant 0 : index
    %c0_282 = arith.constant 0 : index
    %486 = vector.load %arg11[%c0_281, %c0_282] : memref<1x256xf32, #tpu.memory_space<vmem>>, vector<1x256xf32>
    %cst_283 = arith.constant 9.99999974E-6 : f32
    %487 = vector.broadcast %cst_283 : f32 to vector<1x256xf32>
    %488 = arith.addf %485, %487 : vector<1x256xf32>
    %489 = math.rsqrt %488 : vector<1x256xf32>
    %490 = arith.mulf %486, %489 : vector<1x256xf32>
    %c0_284 = arith.constant 0 : index
    %c0_285 = arith.constant 0 : index
    %491 = vector.load %arg12[%c0_284, %c0_285] : memref<1x256xf32, #tpu.memory_space<vmem>>, vector<1x256xf32>
    %492 = arith.mulf %479, %490 : vector<1x256xf32>
    %493 = arith.subf %491, %492 : vector<1x256xf32>
    %494 = vector.broadcast %490 : vector<1x256xf32> to vector<2x256xf32>
    %495 = arith.mulf %472, %494 : vector<2x256xf32>
    %496 = vector.broadcast %493 : vector<1x256xf32> to vector<2x256xf32>
    %497 = arith.addf %495, %496 : vector<2x256xf32>
    %cst_286 = arith.constant 0.000000e+00 : f32
    %498 = vector.broadcast %cst_286 : f32 to vector<2x256xf32>
    %499 = arith.maximumf %497, %498 : vector<2x256xf32>
    %500 = arith.truncf %499 : vector<2x256xf32> to vector<2x256xbf16>
    %c1_287 = arith.constant 1 : index
    %c0_288 = arith.constant 0 : index
    %c0_289 = arith.constant 0 : index
    %501 = vector.load %arg13[%c1_287, %c0_288, %c0_289] : memref<3x256x512xbf16, #tpu.memory_space<vmem>>, vector<1x256x512xbf16>
    %502 = vector.shape_cast %501 : vector<1x256x512xbf16> to vector<256x512xbf16>
    %cst_290 = arith.constant dense<0.000000e+00> : vector<2x512xf32>
    %503 = tpu.matmul %500, %502, %cst_290 {dimension_numbers = #tpu.dot_dimension_numbers<[1], [0], [0], [1], [0, 0, 1, 1], [], []>} : vector<2x256xbf16>, vector<256x512xbf16>, vector<2x512xf32> -> vector<2x512xf32>
    %cst_291 = arith.constant dense<0.000000e+00> : vector<512xf32>
    %504 = vector.multi_reduction <add>, %503, %cst_291 [0] : vector<2x512xf32> to vector<512xf32>
    %505 = vector.shape_cast %504 : vector<512xf32> to vector<1x512xf32>
    %506 = arith.mulf %503, %503 : vector<2x512xf32>
    %cst_292 = arith.constant dense<0.000000e+00> : vector<512xf32>
    %507 = vector.multi_reduction <add>, %506, %cst_292 [0] : vector<2x512xf32> to vector<512xf32>
    %508 = vector.shape_cast %507 : vector<512xf32> to vector<1x512xf32>
    %cst_293 = arith.constant 5.000000e-01 : f32
    %509 = vector.broadcast %cst_293 : f32 to vector<1x512xf32>
    %510 = arith.mulf %505, %509 : vector<1x512xf32>
    %cst_294 = arith.constant 5.000000e-01 : f32
    %511 = vector.broadcast %cst_294 : f32 to vector<1x512xf32>
    %512 = arith.mulf %508, %511 : vector<1x512xf32>
    %513 = arith.mulf %510, %510 : vector<1x512xf32>
    %514 = arith.subf %512, %513 : vector<1x512xf32>
    %cst_295 = arith.constant 0.000000e+00 : f32
    %515 = vector.broadcast %cst_295 : f32 to vector<1x512xf32>
    %516 = arith.maximumf %514, %515 : vector<1x512xf32>
    %c0_296 = arith.constant 0 : index
    %c0_297 = arith.constant 0 : index
    %517 = vector.load %arg14[%c0_296, %c0_297] : memref<1x512xf32, #tpu.memory_space<vmem>>, vector<1x512xf32>
    %cst_298 = arith.constant 9.99999974E-6 : f32
    %518 = vector.broadcast %cst_298 : f32 to vector<1x512xf32>
    %519 = arith.addf %516, %518 : vector<1x512xf32>
    %520 = math.rsqrt %519 : vector<1x512xf32>
    %521 = arith.mulf %517, %520 : vector<1x512xf32>
    %c0_299 = arith.constant 0 : index
    %c0_300 = arith.constant 0 : index
    %522 = vector.load %arg15[%c0_299, %c0_300] : memref<1x512xf32, #tpu.memory_space<vmem>>, vector<1x512xf32>
    %523 = arith.mulf %510, %521 : vector<1x512xf32>
    %524 = arith.subf %522, %523 : vector<1x512xf32>
    %525 = vector.broadcast %521 : vector<1x512xf32> to vector<2x512xf32>
    %526 = arith.mulf %503, %525 : vector<2x512xf32>
    %527 = vector.broadcast %524 : vector<1x512xf32> to vector<2x512xf32>
    %528 = arith.addf %526, %527 : vector<2x512xf32>
    %cst_301 = arith.constant 0.000000e+00 : f32
    %529 = vector.broadcast %cst_301 : f32 to vector<2x512xf32>
    %530 = arith.maximumf %528, %529 : vector<2x512xf32>
    %c0_302 = arith.constant 0 : index
    %c0_303 = arith.constant 0 : index
    %531 = vector.load %arg16[%c0_302, %c0_303] : memref<512x1xf32, #tpu.memory_space<vmem>>, vector<512x1xf32>
    %cst_304 = arith.constant dense<0.000000e+00> : vector<2x1xf32>
    %532 = tpu.matmul %530, %531, %cst_304 {dimension_numbers = #tpu.dot_dimension_numbers<[1], [0], [0], [1], [0, 0, 1, 1], [], []>} : vector<2x512xf32>, vector<512x1xf32>, vector<2x1xf32> -> vector<2x1xf32>
    %c0_305 = arith.constant 0 : index
    %c0_306 = arith.constant 0 : index
    %533 = vector.load %arg17[%c0_305, %c0_306] : memref<2x1xf32, #tpu.memory_space<vmem>>, vector<2x1xf32>
    tpu.vector_store %arg17[%c0_305, %c0_306], %532 {strides = array<i32>} : memref<2x1xf32, #tpu.memory_space<vmem>>, vector<2x1xf32>,
    return
  }
}

</mosaic_0001>

<llo_original>
// kernel: discriminator_forward.1
$region0: #{discriminator_forward.1}
  #allocation0 [shape = 'u32[]', space=smem, size = 0x4, offset = 0x4, fixed_abs, tag = 'smem constant byte address 0x4 - core index']
  #allocation1 [shape = 'u32[144,128]{1,0:T(1,128)}', space=vmem, size = 0x12000, scoped, tag = 'internal scratch']
  %s0 = inlined_call_operand.vmem [shape: bf16[16,2,32], index: 0, kind: input, shape index: {}]
  %s1 = inlined_call_operand.vmem [shape: bf16[3,32,256], index: 1, kind: input, shape index: {}]
  %s2 = inlined_call_operand.vmem [shape: f32[1,32], index: 2, kind: input, shape index: {}]
  %s3 = inlined_call_operand.vmem [shape: f32[1,32], index: 3, kind: input, shape index: {}]
  %s4 = inlined_call_operand.vmem [shape: bf16[3,256,256], index: 4, kind: input, shape index: {}]
  %s5 = inlined_call_operand.vmem [shape: f32[1,64], index: 5, kind: input, shape index: {}]
  %s6 = inlined_call_operand.vmem [shape: f32[1,64], index: 6, kind: input, shape index: {}]
  %s7 = inlined_call_operand.vmem [shape: bf16[3,256,256], index: 7, kind: input, shape index: {}]
  %s8 = inlined_call_operand.vmem [shape: f32[1,128], index: 8, kind: input, shape index: {}]
  %s9 = inlined_call_operand.vmem [shape: f32[1,128], index: 9, kind: input, shape index: {}]
  %s10 = inlined_call_operand.vmem [shape: bf16[3,256,256], index: 10, kind: input, shape index: {}]
  %s11 = inlined_call_operand.vmem [shape: f32[1,256], index: 11, kind: input, shape index: {}]
  %s12 = inlined_call_operand.vmem [shape: f32[1,256], index: 12, kind: input, shape index: {}]
  %s13 = inlined_call_operand.vmem [shape: bf16[3,256,512], index: 13, kind: input, shape index: {}]
  %s14 = inlined_call_operand.vmem [shape: f32[1,512], index: 14, kind: input, shape index: {}]
  %s15 = inlined_call_operand.vmem [shape: f32[1,512], index: 15, kind: input, shape index: {}]
  %s16 = inlined_call_operand.vmem [shape: f32[512,1], index: 16, kind: input, shape index: {}]
  %s17 = inlined_call_operand.vmem [shape: f32[2,1], index: 17, kind: output, shape index: {}]
  %s18 = sld [smem:[#allocation0]]
  $region78: #{discriminator_forward.1} parent=0
    _
  %s20 = ssub.s32 1, %s18
  %s21 = scalar_select 0, %s20, %s18
  // Predicated region
  $region2: #{discriminator_forward.1} parent=0 // pred_check
    _
  $region3: #{discriminator_forward.1} parent=0 // pred_check_branch
    %23 = sbr.rel (0) target = $region5
  $region4: #{discriminator_forward.1} parent=0 // pred_region
    _
  $region5: #{discriminator_forward.1} parent=0 // pred_fallthru
    _
  // Predicated region
  $region6: #{discriminator_forward.1} parent=0 // pred_check
    _
  $region7: #{discriminator_forward.1} parent=0 // pred_check_branch
    %25 = sbr.rel (0) target = $region9
  $region8: #{discriminator_forward.1} parent=0 // pred_region
    _
  $region9: #{discriminator_forward.1} parent=0 // pred_fallthru
    _
  // Predicated region
  $region10: #{discriminator_forward.1} parent=0 // pred_check
    _
  $region11: #{discriminator_forward.1} parent=0 // pred_check_branch
    %27 = sbr.rel (0) target = $region13
  $region12: #{discriminator_forward.1} parent=0 // pred_region
    _
  $region13: #{discriminator_forward.1} parent=0 // pred_fallthru
    _
  // Predicated region
  $region14: #{discriminator_forward.1} parent=0 // pred_check
    _
  $region15: #{discriminator_forward.1} parent=0 // pred_check_branch
    %29 = sbr.rel (0) target = $region17
  $region16: #{discriminator_forward.1} parent=0 // pred_region
    _
  $region17: #{discriminator_forward.1} parent=0 // pred_fallthru
    _
  // Predicated region
  $region18: #{discriminator_forward.1} parent=0 // pred_check
    _
  $region19: #{discriminator_forward.1} parent=0 // pred_check_branch
    %31 = sbr.rel (0) target = $region21
  $region20: #{discriminator_forward.1} parent=0 // pred_region
    _
  $region21: #{discriminator_forward.1} parent=0 // pred_fallthru
    _
  // Predicated region
  $region22: #{discriminator_forward.1} parent=0 // pred_check
    _
  $region23: #{discriminator_forward.1} parent=0 // pred_check_branch
    %33 = sbr.rel (0) target = $region25
  $region24: #{discriminator_forward.1} parent=0 // pred_region
    _
  $region25: #{discriminator_forward.1} parent=0 // pred_fallthru
    _
  // Predicated region
  $region26: #{discriminator_forward.1} parent=0 // pred_check
    _
  $region27: #{discriminator_forward.1} parent=0 // pred_check_branch
    %35 = sbr.rel (0) target = $region29
  $region28: #{discriminator_forward.1} parent=0 // pred_region
    _
  $region29: #{discriminator_forward.1} parent=0 // pred_fallthru
    _
  // Predicated region
  $region30: #{discriminator_forward.1} parent=0 // pred_check
    _
  $region31: #{discriminator_forward.1} parent=0 // pred_check_branch
    %37 = sbr.rel (0) target = $region33
  $region32: #{discriminator_forward.1} parent=0 // pred_region
    _
  $region33: #{discriminator_forward.1} parent=0 // pred_fallthru
    _
  // Predicated region
  $region34: #{discriminator_forward.1} parent=0 // pred_check
    _
  $region35: #{discriminator_forward.1} parent=0 // pred_check_branch
    %39 = sbr.rel (0) target = $region37
  $region36: #{discriminator_forward.1} parent=0 // pred_region
    _
  $region37: #{discriminator_forward.1} parent=0 // pred_fallthru
    _
  // Predicated region
  $region38: #{discriminator_forward.1} parent=0 // pred_check
    _
  $region39: #{discriminator_forward.1} parent=0 // pred_check_branch
    %41 = sbr.rel (0) target = $region41
  $region40: #{discriminator_forward.1} parent=0 // pred_region
    _
  $region41: #{discriminator_forward.1} parent=0 // pred_fallthru
    _
  // Predicated region
  $region42: #{discriminator_forward.1} parent=0 // pred_check
    _
  $region43: #{discriminator_forward.1} parent=0 // pred_check_branch
    %43 = sbr.rel (0) target = $region45
  $region44: #{discriminator_forward.1} parent=0 // pred_region
    _
  $region45: #{discriminator_forward.1} parent=0 // pred_fallthru
    _
  // Predicated region
  $region46: #{discriminator_forward.1} parent=0 // pred_check
    _
  $region47: #{discriminator_forward.1} parent=0 // pred_check_branch
    %45 = sbr.rel (0) target = $region49
  $region48: #{discriminator_forward.1} parent=0 // pred_region
    _
  $region49: #{discriminator_forward.1} parent=0 // pred_fallthru
    _
  // Predicated region
  $region50: #{discriminator_forward.1} parent=0 // pred_check
    _
  $region51: #{discriminator_forward.1} parent=0 // pred_check_branch
    %47 = sbr.rel (0) target = $region53
  $region52: #{discriminator_forward.1} parent=0 // pred_region
    _
  $region53: #{discriminator_forward.1} parent=0 // pred_fallthru
    _
  // Predicated region
  $region54: #{discriminator_forward.1} parent=0 // pred_check
    _
  $region55: #{discriminator_forward.1} parent=0 // pred_check_branch
    %49 = sbr.rel (0) target = $region57
  $region56: #{discriminator_forward.1} parent=0 // pred_region
    _
  $region57: #{discriminator_forward.1} parent=0 // pred_fallthru
    _
  // Predicated region
  $region58: #{discriminator_forward.1} parent=0 // pred_check
    _
  $region59: #{discriminator_forward.1} parent=0 // pred_check_branch
    %51 = sbr.rel (0) target = $region61
  $region60: #{discriminator_forward.1} parent=0 // pred_region
    _
  $region61: #{discriminator_forward.1} parent=0 // pred_fallthru
    _
  // Predicated region
  $region62: #{discriminator_forward.1} parent=0 // pred_check
    _
  $region63: #{discriminator_forward.1} parent=0 // pred_check_branch
    %53 = sbr.rel (0) target = $region65
  $region64: #{discriminator_forward.1} parent=0 // pred_region
    _
  $region65: #{discriminator_forward.1} parent=0 // pred_fallthru
    _
  // Predicated region
  $region66: #{discriminator_forward.1} parent=0 // pred_check
    _
  $region67: #{discriminator_forward.1} parent=0 // pred_check_branch
    %55 = sbr.rel (0) target = $region69
  $region68: #{discriminator_forward.1} parent=0 // pred_region
    _
  $region69: #{discriminator_forward.1} parent=0 // pred_fallthru
    _
  %v57 = vld [vmem:[%s0] sm:$0x1]
  %s58 = scalar_lea.vmem %s0, 1
  %v59 = vld [vmem:[%s58] sm:$0x1]
  %s60 = scalar_lea.vmem %s0, 2
  %v61 = vld [vmem:[%s60] sm:$0x1]
  %s62 = scalar_lea.vmem %s0, 3
  %v63 = vld [vmem:[%s62] sm:$0x1]
  %s64 = scalar_lea.vmem %s0, 4
  %v65 = vld [vmem:[%s64] sm:$0x1]
  %s66 = scalar_lea.vmem %s0, 5
  %v67 = vld [vmem:[%s66] sm:$0x1]
  %s68 = scalar_lea.vmem %s0, 6
  %v69 = vld [vmem:[%s68] sm:$0x1]
  %s70 = scalar_lea.vmem %s0, 7
  %v71 = vld [vmem:[%s70] sm:$0x1]
  %s72 = scalar_lea.vmem %s0, 8
  %v73 = vld [vmem:[%s72] sm:$0x1]
  %s74 = scalar_lea.vmem %s0, 9
  %v75 = vld [vmem:[%s74] sm:$0x1]
  %s76 = scalar_lea.vmem %s0, 10
  %v77 = vld [vmem:[%s76] sm:$0x1]
  %s78 = scalar_lea.vmem %s0, 11
  %v79 = vld [vmem:[%s78] sm:$0x1]
  %s80 = scalar_lea.vmem %s0, 12
  %v81 = vld [vmem:[%s80] sm:$0x1]
  %s82 = scalar_lea.vmem %s0, 13
  %v83 = vld [vmem:[%s82] sm:$0x1]
  %s84 = scalar_lea.vmem %s0, 14
  %v85 = vld [vmem:[%s84] sm:$0x1]
  %s86 = scalar_lea.vmem %s0, 15
  %v87 = vld [vmem:[%s86] sm:$0x1]
  %s88 = scalar_lea.vmem %s1, 32
  %v89 = vld [vmem:[%s88] sm:$0xff]
  %v90 = vld [vmem:[%s88 + $0x8] sm:$0xff]
  %v91 = vld [vmem:[%s88 + $0x10] sm:$0xff]
  %v92 = vld [vmem:[%s88 + $0x18] sm:$0xff]
  %s93 = scalar_lea.vmem %s1, 64
  %v94 = vld [vmem:[%s93] sm:$0xff]
  %v95 = vld [vmem:[%s93 + $0x8] sm:$0xff]
  %v96 = vld [vmem:[%s93 + $0x10] sm:$0xff]
  %v97 = vld [vmem:[%s93 + $0x18] sm:$0xff]
  %v102 = vunpack.c.l.b16 %v94
  %v103 = vunpack.c.h.b16 %v94
  %v104 = vunpack.c.l.b16 %v95
  %v105 = vunpack.c.h.b16 %v95
  %v106 = vunpack.c.l.b16 %v96
  %v107 = vunpack.c.h.b16 %v96
  %v108 = vunpack.c.l.b16 %v97
  %v109 = vunpack.c.h.b16 %v97
  %v110 = vpack.c.b16 %v104, %v102
  %v111 = vpack.c.b16 %v105, %v103
  %v112 = vpack.c.b16 %v108, %v106
  %v113 = vpack.c.b16 %v109, %v107
  %vm118 = vcmask 261120
  %v120 = vsel %vm118, %v59, 0
  %122 = vmatprep.subr.bf16.mxu0 0
  %123 = vmatpush1.bf16.msra.mxu0 0
  %124 = vmatprep.subr.bf16.mxu0 0
  %125 = vmatpush1.bf16.msra.mxu0 0
  %126 = vmatprep.subr.bf16.mxu0 0
  %127 = vmatpush1.bf16.msra.mxu0 0
  %128 = vmatprep.subr.bf16.mxu0 0
  %129 = vmatpush1.bf16.msra.mxu0 0
  %130 = vmatprep.subr.bf16.mxu0 0
  %131 = vmatpush1.bf16.msra.mxu0 0
  %132 = vmatprep.subr.bf16.mxu0 0
  %133 = vmatpush1.bf16.msra.mxu0 0
  %134 = vmatprep.subr.bf16.mxu0 %v113
  %135 = vmatpush1.bf16.msra.mxu0 %v112
  %136 = vmatprep.subr.bf16.mxu0 %v111
  %137 = vmatpush1.bf16.msra.mxu0 %v110
  %138 = vmatprep.subr.bf16.mxu0 0
  %139 = vmatpush2.bf16.msra.mxu0 0
  %140 = vmatprep.subr.bf16.mxu0 0
  %141 = vmatpush2.bf16.msra.mxu0 0
  %142 = vmatprep.subr.bf16.mxu0 0
  %143 = vmatpush2.bf16.msra.mxu0 0
  %144 = vmatprep.subr.bf16.mxu0 0
  %145 = vmatpush2.bf16.msra.mxu0 0
  %146 = vmatprep.subr.bf16.mxu0 0
  %147 = vmatpush2.bf16.msra.mxu0 0
  %148 = vmatprep.subr.bf16.mxu0 0
  %149 = vmatpush2.bf16.msra.mxu0 0
  %150 = vmatprep.subr.bf16.mxu0 0
  %151 = vmatpush2.bf16.msra.mxu0 0
  %152 = vmatprep.subr.bf16.mxu0 0
  %153 = vmatpush2.bf16.msra.mxu0 0
  %154 = vmatprep.mubr.bf16.mxu0 0
  %155 = vmatmul.mubr.bf16.gmra.mxu0 %v120
  %v156 = vpop.f32.mrf.mxu0
  %v157 = vadd.f32 0.0, %v156
  %v158 = vpop.f32.mrf.mxu0
  %v159 = vadd.f32 0.0, %v158
  %v160 = vpop.f32.mrf.mxu0
  %v161 = vpop.f32.mrf.mxu0
  %162 = vdwg.mxu0
  %v167 = vunpack.c.l.b16 %v89
  %v168 = vunpack.c.h.b16 %v89
  %v169 = vunpack.c.l.b16 %v90
  %v170 = vunpack.c.h.b16 %v90
  %v171 = vunpack.c.l.b16 %v91
  %v172 = vunpack.c.h.b16 %v91
  %v173 = vunpack.c.l.b16 %v92
  %v174 = vunpack.c.h.b16 %v92
  %v175 = vpack.c.b16 %v169, %v167
  %v176 = vpack.c.b16 %v170, %v168
  %v177 = vpack.c.b16 %v173, %v171
  %v178 = vpack.c.b16 %v174, %v172
  %v184 = vsel %vm118, %v57, 0
  %186 = vmatprep.subr.bf16.mxu0 0
  %187 = vmatpush1.bf16.msra.mxu0 0
  %188 = vmatprep.subr.bf16.mxu0 0
  %189 = vmatpush1.bf16.msra.mxu0 0
  %190 = vmatprep.subr.bf16.mxu0 0
  %191 = vmatpush1.bf16.msra.mxu0 0
  %192 = vmatprep.subr.bf16.mxu0 0
  %193 = vmatpush1.bf16.msra.mxu0 0
  %194 = vmatprep.subr.bf16.mxu0 0
  %195 = vmatpush1.bf16.msra.mxu0 0
  %196 = vmatprep.subr.bf16.mxu0 0
  %197 = vmatpush1.bf16.msra.mxu0 0
  %198 = vmatprep.subr.bf16.mxu0 %v178
  %199 = vmatpush1.bf16.msra.mxu0 %v177
  %200 = vmatprep.subr.bf16.mxu0 %v176
  %201 = vmatpush1.bf16.msra.mxu0 %v175
  %202 = vmatprep.subr.bf16.mxu0 0
  %203 = vmatpush2.bf16.msra.mxu0 0
  %204 = vmatprep.subr.bf16.mxu0 0
  %205 = vmatpush2.bf16.msra.mxu0 0
  %206 = vmatprep.subr.bf16.mxu0 0
  %207 = vmatpush2.bf16.msra.mxu0 0
  %208 = vmatprep.subr.bf16.mxu0 0
  %209 = vmatpush2.bf16.msra.mxu0 0
  %210 = vmatprep.subr.bf16.mxu0 0
  %211 = vmatpush2.bf16.msra.mxu0 0
  %212 = vmatprep.subr.bf16.mxu0 0
  %213 = vmatpush2.bf16.msra.mxu0 0
  %214 = vmatprep.subr.bf16.mxu0 0
  %215 = vmatpush2.bf16.msra.mxu0 0
  %216 = vmatprep.subr.bf16.mxu0 0
  %217 = vmatpush2.bf16.msra.mxu0 0
  %218 = vmatprep.mubr.bf16.mxu0 0
  %219 = vmatmul.mubr.bf16.gmra.mxu0 %v184
  %v220 = vpop.f32.mrf.mxu0
  %v221 = vadd.f32 %v157, %v220
  %v222 = vpop.f32.mrf.mxu0
  %v223 = vadd.f32 %v159, %v222
  %v224 = vpop.f32.mrf.mxu0
  %v225 = vpop.f32.mrf.mxu0
  %226 = vdwg.mxu0
  %v227 = vld [vmem:[%s1] sm:$0xff]
  %v228 = vld [vmem:[%s1 + $0x8] sm:$0xff]
  %v229 = vld [vmem:[%s1 + $0x10] sm:$0xff]
  %v230 = vld [vmem:[%s1 + $0x18] sm:$0xff]
  %v232 = vsel %vm118, %v61, 0
  %234 = vmatprep.subr.bf16.mxu0 0
  %235 = vmatpush1.bf16.msra.mxu0 0
  %236 = vmatprep.subr.bf16.mxu0 0
  %237 = vmatpush1.bf16.msra.mxu0 0
  %238 = vmatprep.subr.bf16.mxu0 0
  %239 = vmatpush1.bf16.msra.mxu0 0
  %240 = vmatprep.subr.bf16.mxu0 0
  %241 = vmatpush1.bf16.msra.mxu0 0
  %242 = vmatprep.subr.bf16.mxu0 0
  %243 = vmatpush1.bf16.msra.mxu0 0
  %244 = vmatprep.subr.bf16.mxu0 0
  %245 = vmatpush1.bf16.msra.mxu0 0
  %246 = vmatprep.subr.bf16.mxu0 %v178
  %247 = vmatpush1.bf16.msra.mxu0 %v177
  %248 = vmatprep.subr.bf16.mxu0 %v176
  %249 = vmatpush1.bf16.msra.mxu0 %v175
  %250 = vmatprep.subr.bf16.mxu0 0
  %251 = vmatpush2.bf16.msra.mxu0 0
  %252 = vmatprep.subr.bf16.mxu0 0
  %253 = vmatpush2.bf16.msra.mxu0 0
  %254 = vmatprep.subr.bf16.mxu0 0
  %255 = vmatpush2.bf16.msra.mxu0 0
  %256 = vmatprep.subr.bf16.mxu0 0
  %257 = vmatpush2.bf16.msra.mxu0 0
  %258 = vmatprep.subr.bf16.mxu0 0
  %259 = vmatpush2.bf16.msra.mxu0 0
  %260 = vmatprep.subr.bf16.mxu0 0
  %261 = vmatpush2.bf16.msra.mxu0 0
  %262 = vmatprep.subr.bf16.mxu0 0
  %263 = vmatpush2.bf16.msra.mxu0 0
  %264 = vmatprep.subr.bf16.mxu0 0
  %265 = vmatpush2.bf16.msra.mxu0 0
  %266 = vmatprep.mubr.bf16.mxu0 0
  %267 = vmatmul.mubr.bf16.gmra.mxu0 %v232
  %v268 = vpop.f32.mrf.mxu0
  %v269 = vadd.f32 0.0, %v268
  %v270 = vpop.f32.mrf.mxu0
  %v271 = vadd.f32 0.0, %v270
  %v272 = vpop.f32.mrf.mxu0
  %v273 = vpop.f32.mrf.mxu0
  %274 = vdwg.mxu0
  %v279 = vunpack.c.l.b16 %v227
  %v280 = vunpack.c.h.b16 %v227
  %v281 = vunpack.c.l.b16 %v228
  %v282 = vunpack.c.h.b16 %v228
  %v283 = vunpack.c.l.b16 %v229
  %v284 = vunpack.c.h.b16 %v229
  %v285 = vunpack.c.l.b16 %v230
  %v286 = vunpack.c.h.b16 %v230
  %v287 = vpack.c.b16 %v281, %v279
  %v288 = vpack.c.b16 %v282, %v280
  %v289 = vpack.c.b16 %v285, %v283
  %v290 = vpack.c.b16 %v286, %v284
  %295 = vmatprep.subr.bf16.mxu0 0
  %296 = vmatpush1.bf16.msra.mxu0 0
  %297 = vmatprep.subr.bf16.mxu0 0
  %298 = vmatpush1.bf16.msra.mxu0 0
  %299 = vmatprep.subr.bf16.mxu0 0
  %300 = vmatpush1.bf16.msra.mxu0 0
  %301 = vmatprep.subr.bf16.mxu0 0
  %302 = vmatpush1.bf16.msra.mxu0 0
  %303 = vmatprep.subr.bf16.mxu0 0
  %304 = vmatpush1.bf16.msra.mxu0 0
  %305 = vmatprep.subr.bf16.mxu0 0
  %306 = vmatpush1.bf16.msra.mxu0 0
  %307 = vmatprep.subr.bf16.mxu0 %v290
  %308 = vmatpush1.bf16.msra.mxu0 %v289
  %309 = vmatprep.subr.bf16.mxu0 %v288
  %310 = vmatpush1.bf16.msra.mxu0 %v287
  %311 = vmatprep.subr.bf16.mxu0 0
  %312 = vmatpush2.bf16.msra.mxu0 0
  %313 = vmatprep.subr.bf16.mxu0 0
  %314 = vmatpush2.bf16.msra.mxu0 0
  %315 = vmatprep.subr.bf16.mxu0 0
  %316 = vmatpush2.bf16.msra.mxu0 0
  %317 = vmatprep.subr.bf16.mxu0 0
  %318 = vmatpush2.bf16.msra.mxu0 0
  %319 = vmatprep.subr.bf16.mxu0 0
  %320 = vmatpush2.bf16.msra.mxu0 0
  %321 = vmatprep.subr.bf16.mxu0 0
  %322 = vmatpush2.bf16.msra.mxu0 0
  %323 = vmatprep.subr.bf16.mxu0 0
  %324 = vmatpush2.bf16.msra.mxu0 0
  %325 = vmatprep.subr.bf16.mxu0 0
  %326 = vmatpush2.bf16.msra.mxu0 0
  %327 = vmatprep.mubr.bf16.mxu0 0
  %328 = vmatmul.mubr.bf16.gmra.mxu0 %v120
  %v329 = vpop.f32.mrf.mxu0
  %v330 = vadd.f32 %v269, %v329
  %v331 = vpop.f32.mrf.mxu0
  %v332 = vadd.f32 %v271, %v331
  %v333 = vpop.f32.mrf.mxu0
  %v334 = vpop.f32.mrf.mxu0
  %335 = vdwg.mxu0
  %v337 = vsel %vm118, %v63, 0
  %339 = vmatprep.subr.bf16.mxu0 0
  %340 = vmatpush1.bf16.msra.mxu0 0
  %341 = vmatprep.subr.bf16.mxu0 0
  %342 = vmatpush1.bf16.msra.mxu0 0
  %343 = vmatprep.subr.bf16.mxu0 0
  %344 = vmatpush1.bf16.msra.mxu0 0
  %345 = vmatprep.subr.bf16.mxu0 0
  %346 = vmatpush1.bf16.msra.mxu0 0
  %347 = vmatprep.subr.bf16.mxu0 0
  %348 = vmatpush1.bf16.msra.mxu0 0
  %349 = vmatprep.subr.bf16.mxu0 0
  %350 = vmatpush1.bf16.msra.mxu0 0
  %351 = vmatprep.subr.bf16.mxu0 %v113
  %352 = vmatpush1.bf16.msra.mxu0 %v112
  %353 = vmatprep.subr.bf16.mxu0 %v111
  %354 = vmatpush1.bf16.msra.mxu0 %v110
  %355 = vmatprep.subr.bf16.mxu0 0
  %356 = vmatpush2.bf16.msra.mxu0 0
  %357 = vmatprep.subr.bf16.mxu0 0
  %358 = vmatpush2.bf16.msra.mxu0 0
  %359 = vmatprep.subr.bf16.mxu0 0
  %360 = vmatpush2.bf16.msra.mxu0 0
  %361 = vmatprep.subr.bf16.mxu0 0
  %362 = vmatpush2.bf16.msra.mxu0 0
  %363 = vmatprep.subr.bf16.mxu0 0
  %364 = vmatpush2.bf16.msra.mxu0 0
  %365 = vmatprep.subr.bf16.mxu0 0
  %366 = vmatpush2.bf16.msra.mxu0 0
  %367 = vmatprep.subr.bf16.mxu0 0
  %368 = vmatpush2.bf16.msra.mxu0 0
  %369 = vmatprep.subr.bf16.mxu0 0
  %370 = vmatpush2.bf16.msra.mxu0 0
  %371 = vmatprep.mubr.bf16.mxu0 0
  %372 = vmatmul.mubr.bf16.gmra.mxu0 %v337
  %v373 = vpop.f32.mrf.mxu0
  %v374 = vadd.f32 0.0, %v373
  %v375 = vpop.f32.mrf.mxu0
  %v376 = vadd.f32 0.0, %v375
  %v377 = vpop.f32.mrf.mxu0
  %v378 = vpop.f32.mrf.mxu0
  %379 = vdwg.mxu0
  %v380 = vadd.f32 %v330, %v374
  %v381 = vadd.f32 %v332, %v376
  %v383 = vsel %vm118, %v65, 0
  %385 = vmatprep.subr.bf16.mxu0 0
  %386 = vmatpush1.bf16.msra.mxu0 0
  %387 = vmatprep.subr.bf16.mxu0 0
  %388 = vmatpush1.bf16.msra.mxu0 0
  %389 = vmatprep.subr.bf16.mxu0 0
  %390 = vmatpush1.bf16.msra.mxu0 0
  %391 = vmatprep.subr.bf16.mxu0 0
  %392 = vmatpush1.bf16.msra.mxu0 0
  %393 = vmatprep.subr.bf16.mxu0 0
  %394 = vmatpush1.bf16.msra.mxu0 0
  %395 = vmatprep.subr.bf16.mxu0 0
  %396 = vmatpush1.bf16.msra.mxu0 0
  %397 = vmatprep.subr.bf16.mxu0 %v178
  %398 = vmatpush1.bf16.msra.mxu0 %v177
  %399 = vmatprep.subr.bf16.mxu0 %v176
  %400 = vmatpush1.bf16.msra.mxu0 %v175
  %401 = vmatprep.subr.bf16.mxu0 0
  %402 = vmatpush2.bf16.msra.mxu0 0
  %403 = vmatprep.subr.bf16.mxu0 0
  %404 = vmatpush2.bf16.msra.mxu0 0
  %405 = vmatprep.subr.bf16.mxu0 0
  %406 = vmatpush2.bf16.msra.mxu0 0
  %407 = vmatprep.subr.bf16.mxu0 0
  %408 = vmatpush2.bf16.msra.mxu0 0
  %409 = vmatprep.subr.bf16.mxu0 0
  %410 = vmatpush2.bf16.msra.mxu0 0
  %411 = vmatprep.subr.bf16.mxu0 0
  %412 = vmatpush2.bf16.msra.mxu0 0
  %413 = vmatprep.subr.bf16.mxu0 0
  %414 = vmatpush2.bf16.msra.mxu0 0
  %415 = vmatprep.subr.bf16.mxu0 0
  %416 = vmatpush2.bf16.msra.mxu0 0
  %417 = vmatprep.mubr.bf16.mxu0 0
  %418 = vmatmul.mubr.bf16.gmra.mxu0 %v383
  %v419 = vpop.f32.mrf.mxu0
  %v420 = vadd.f32 0.0, %v419
  %v421 = vpop.f32.mrf.mxu0
  %v422 = vadd.f32 0.0, %v421
  %v423 = vpop.f32.mrf.mxu0
  %v424 = vpop.f32.mrf.mxu0
  %425 = vdwg.mxu0
  %426 = vmatprep.subr.bf16.mxu0 0
  %427 = vmatpush1.bf16.msra.mxu0 0
  %428 = vmatprep.subr.bf16.mxu0 0
  %429 = vmatpush1.bf16.msra.mxu0 0
  %430 = vmatprep.subr.bf16.mxu0 0
  %431 = vmatpush1.bf16.msra.mxu0 0
  %432 = vmatprep.subr.bf16.mxu0 0
  %433 = vmatpush1.bf16.msra.mxu0 0
  %434 = vmatprep.subr.bf16.mxu0 0
  %435 = vmatpush1.bf16.msra.mxu0 0
  %436 = vmatprep.subr.bf16.mxu0 0
  %437 = vmatpush1.bf16.msra.mxu0 0
  %438 = vmatprep.subr.bf16.mxu0 %v290
  %439 = vmatpush1.bf16.msra.mxu0 %v289
  %440 = vmatprep.subr.bf16.mxu0 %v288
  %441 = vmatpush1.bf16.msra.mxu0 %v287
  %442 = vmatprep.subr.bf16.mxu0 0
  %443 = vmatpush2.bf16.msra.mxu0 0
  %444 = vmatprep.subr.bf16.mxu0 0
  %445 = vmatpush2.bf16.msra.mxu0 0
  %446 = vmatprep.subr.bf16.mxu0 0
  %447 = vmatpush2.bf16.msra.mxu0 0
  %448 = vmatprep.subr.bf16.mxu0 0
  %449 = vmatpush2.bf16.msra.mxu0 0
  %450 = vmatprep.subr.bf16.mxu0 0
  %451 = vmatpush2.bf16.msra.mxu0 0
  %452 = vmatprep.subr.bf16.mxu0 0
  %453 = vmatpush2.bf16.msra.mxu0 0
  %454 = vmatprep.subr.bf16.mxu0 0
  %455 = vmatpush2.bf16.msra.mxu0 0
  %456 = vmatprep.subr.bf16.mxu0 0
  %457 = vmatpush2.bf16.msra.mxu0 0
  %458 = vmatprep.mubr.bf16.mxu0 0
  %459 = vmatmul.mubr.bf16.gmra.mxu0 %v337
  %v460 = vpop.f32.mrf.mxu0
  %v461 = vadd.f32 %v420, %v460
  %v462 = vpop.f32.mrf.mxu0
  %v463 = vadd.f32 %v422, %v462
  %v464 = vpop.f32.mrf.mxu0
  %v465 = vpop.f32.mrf.mxu0
  %466 = vdwg.mxu0
  %v468 = vsel %vm118, %v67, 0
  %470 = vmatprep.subr.bf16.mxu0 0
  %471 = vmatpush1.bf16.msra.mxu0 0
  %472 = vmatprep.subr.bf16.mxu0 0
  %473 = vmatpush1.bf16.msra.mxu0 0
  %474 = vmatprep.subr.bf16.mxu0 0
  %475 = vmatpush1.bf16.msra.mxu0 0
  %476 = vmatprep.subr.bf16.mxu0 0
  %477 = vmatpush1.bf16.msra.mxu0 0
  %478 = vmatprep.subr.bf16.mxu0 0
  %479 = vmatpush1.bf16.msra.mxu0 0
  %480 = vmatprep.subr.bf16.mxu0 0
  %481 = vmatpush1.bf16.msra.mxu0 0
  %482 = vmatprep.subr.bf16.mxu0 %v113
  %483 = vmatpush1.bf16.msra.mxu0 %v112
  %484 = vmatprep.subr.bf16.mxu0 %v111
  %485 = vmatpush1.bf16.msra.mxu0 %v110
  %486 = vmatprep.subr.bf16.mxu0 0
  %487 = vmatpush2.bf16.msra.mxu0 0
  %488 = vmatprep.subr.bf16.mxu0 0
  %489 = vmatpush2.bf16.msra.mxu0 0
  %490 = vmatprep.subr.bf16.mxu0 0
  %491 = vmatpush2.bf16.msra.mxu0 0
  %492 = vmatprep.subr.bf16.mxu0 0
  %493 = vmatpush2.bf16.msra.mxu0 0
  %494 = vmatprep.subr.bf16.mxu0 0
  %495 = vmatpush2.bf16.msra.mxu0 0
  %496 = vmatprep.subr.bf16.mxu0 0
  %497 = vmatpush2.bf16.msra.mxu0 0
  %498 = vmatprep.subr.bf16.mxu0 0
  %499 = vmatpush2.bf16.msra.mxu0 0
  %500 = vmatprep.subr.bf16.mxu0 0
  %501 = vmatpush2.bf16.msra.mxu0 0
  %502 = vmatprep.mubr.bf16.mxu0 0
  %503 = vmatmul.mubr.bf16.gmra.mxu0 %v468
  %v504 = vpop.f32.mrf.mxu0
  %v505 = vadd.f32 0.0, %v504
  %v506 = vpop.f32.mrf.mxu0
  %v507 = vadd.f32 0.0, %v506
  %v508 = vpop.f32.mrf.mxu0
  %v509 = vpop.f32.mrf.mxu0
  %510 = vdwg.mxu0
  %v511 = vadd.f32 %v461, %v505
  %v512 = vadd.f32 %v463, %v507
  %v514 = vsel %vm118, %v69, 0
  %516 = vmatprep.subr.bf16.mxu0 0
  %517 = vmatpush1.bf16.msra.mxu0 0
  %518 = vmatprep.subr.bf16.mxu0 0
  %519 = vmatpush1.bf16.msra.mxu0 0
  %520 = vmatprep.subr.bf16.mxu0 0
  %521 = vmatpush1.bf16.msra.mxu0 0
  %522 = vmatprep.subr.bf16.mxu0 0
  %523 = vmatpush1.bf16.msra.mxu0 0
  %524 = vmatprep.subr.bf16.mxu0 0
  %525 = vmatpush1.bf16.msra.mxu0 0
  %526 = vmatprep.subr.bf16.mxu0 0
  %527 = vmatpush1.bf16.msra.mxu0 0
  %528 = vmatprep.subr.bf16.mxu0 %v178
  %529 = vmatpush1.bf16.msra.mxu0 %v177
  %530 = vmatprep.subr.bf16.mxu0 %v176
  %531 = vmatpush1.bf16.msra.mxu0 %v175
  %532 = vmatprep.subr.bf16.mxu0 0
  %533 = vmatpush2.bf16.msra.mxu0 0
  %534 = vmatprep.subr.bf16.mxu0 0
  %535 = vmatpush2.bf16.msra.mxu0 0
  %536 = vmatprep.subr.bf16.mxu0 0
  %537 = vmatpush2.bf16.msra.mxu0 0
  %538 = vmatprep.subr.bf16.mxu0 0
  %539 = vmatpush2.bf16.msra.mxu0 0
  %540 = vmatprep.subr.bf16.mxu0 0
  %541 = vmatpush2.bf16.msra.mxu0 0
  %542 = vmatprep.subr.bf16.mxu0 0
  %543 = vmatpush2.bf16.msra.mxu0 0
  %544 = vmatprep.subr.bf16.mxu0 0
  %545 = vmatpush2.bf16.msra.mxu0 0
  %546 = vmatprep.subr.bf16.mxu0 0
  %547 = vmatpush2.bf16.msra.mxu0 0
  %548 = vmatprep.mubr.bf16.mxu0 0
  %549 = vmatmul.mubr.bf16.gmra.mxu0 %v514
  %v550 = vpop.f32.mrf.mxu0
  %v551 = vadd.f32 0.0, %v550
  %v552 = vpop.f32.mrf.mxu0
  %v553 = vadd.f32 0.0, %v552
  %v554 = vpop.f32.mrf.mxu0
  %v555 = vpop.f32.mrf.mxu0
  %556 = vdwg.mxu0
  %557 = vmatprep.subr.bf16.mxu0 0
  %558 = vmatpush1.bf16.msra.mxu0 0
  %559 = vmatprep.subr.bf16.mxu0 0
  %560 = vmatpush1.bf16.msra.mxu0 0
  %561 = vmatprep.subr.bf16.mxu0 0
  %562 = vmatpush1.bf16.msra.mxu0 0
  %563 = vmatprep.subr.bf16.mxu0 0
  %564 = vmatpush1.bf16.msra.mxu0 0
  %565 = vmatprep.subr.bf16.mxu0 0
  %566 = vmatpush1.bf16.msra.mxu0 0
  %567 = vmatprep.subr.bf16.mxu0 0
  %568 = vmatpush1.bf16.msra.mxu0 0
  %569 = vmatprep.subr.bf16.mxu0 %v290
  %570 = vmatpush1.bf16.msra.mxu0 %v289
  %571 = vmatprep.subr.bf16.mxu0 %v288
  %572 = vmatpush1.bf16.msra.mxu0 %v287
  %573 = vmatprep.subr.bf16.mxu0 0
  %574 = vmatpush2.bf16.msra.mxu0 0
  %575 = vmatprep.subr.bf16.mxu0 0
  %576 = vmatpush2.bf16.msra.mxu0 0
  %577 = vmatprep.subr.bf16.mxu0 0
  %578 = vmatpush2.bf16.msra.mxu0 0
  %579 = vmatprep.subr.bf16.mxu0 0
  %580 = vmatpush2.bf16.msra.mxu0 0
  %581 = vmatprep.subr.bf16.mxu0 0
  %582 = vmatpush2.bf16.msra.mxu0 0
  %583 = vmatprep.subr.bf16.mxu0 0
  %584 = vmatpush2.bf16.msra.mxu0 0
  %585 = vmatprep.subr.bf16.mxu0 0
  %586 = vmatpush2.bf16.msra.mxu0 0
  %587 = vmatprep.subr.bf16.mxu0 0
  %588 = vmatpush2.bf16.msra.mxu0 0
  %589 = vmatprep.mubr.bf16.mxu0 0
  %590 = vmatmul.mubr.bf16.gmra.mxu0 %v468
  %v591 = vpop.f32.mrf.mxu0
  %v592 = vadd.f32 %v551, %v591
  %v593 = vpop.f32.mrf.mxu0
  %v594 = vadd.f32 %v553, %v593
  %v595 = vpop.f32.mrf.mxu0
  %v596 = vpop.f32.mrf.mxu0
  %597 = vdwg.mxu0
  %v599 = vsel %vm118, %v71, 0
  %601 = vmatprep.subr.bf16.mxu0 0
  %602 = vmatpush1.bf16.msra.mxu0 0
  %603 = vmatprep.subr.bf16.mxu0 0
  %604 = vmatpush1.bf16.msra.mxu0 0
  %605 = vmatprep.subr.bf16.mxu0 0
  %606 = vmatpush1.bf16.msra.mxu0 0
  %607 = vmatprep.subr.bf16.mxu0 0
  %608 = vmatpush1.bf16.msra.mxu0 0
  %609 = vmatprep.subr.bf16.mxu0 0
  %610 = vmatpush1.bf16.msra.mxu0 0
  %611 = vmatprep.subr.bf16.mxu0 0
  %612 = vmatpush1.bf16.msra.mxu0 0
  %613 = vmatprep.subr.bf16.mxu0 %v113
  %614 = vmatpush1.bf16.msra.mxu0 %v112
  %615 = vmatprep.subr.bf16.mxu0 %v111
  %616 = vmatpush1.bf16.msra.mxu0 %v110
  %617 = vmatprep.subr.bf16.mxu0 0
  %618 = vmatpush2.bf16.msra.mxu0 0
  %619 = vmatprep.subr.bf16.mxu0 0
  %620 = vmatpush2.bf16.msra.mxu0 0
  %621 = vmatprep.subr.bf16.mxu0 0
  %622 = vmatpush2.bf16.msra.mxu0 0
  %623 = vmatprep.subr.bf16.mxu0 0
  %624 = vmatpush2.bf16.msra.mxu0 0
  %625 = vmatprep.subr.bf16.mxu0 0
  %626 = vmatpush2.bf16.msra.mxu0 0
  %627 = vmatprep.subr.bf16.mxu0 0
  %628 = vmatpush2.bf16.msra.mxu0 0
  %629 = vmatprep.subr.bf16.mxu0 0
  %630 = vmatpush2.bf16.msra.mxu0 0
  %631 = vmatprep.subr.bf16.mxu0 0
  %632 = vmatpush2.bf16.msra.mxu0 0
  %633 = vmatprep.mubr.bf16.mxu0 0
  %634 = vmatmul.mubr.bf16.gmra.mxu0 %v599
  %v635 = vpop.f32.mrf.mxu0
  %v636 = vadd.f32 0.0, %v635
  %v637 = vpop.f32.mrf.mxu0
  %v638 = vadd.f32 0.0, %v637
  %v639 = vpop.f32.mrf.mxu0
  %v640 = vpop.f32.mrf.mxu0
  %641 = vdwg.mxu0
  %v642 = vadd.f32 %v592, %v636
  %v643 = vadd.f32 %v594, %v638
  %v645 = vsel %vm118, %v73, 0
  %647 = vmatprep.subr.bf16.mxu0 0
  %648 = vmatpush1.bf16.msra.mxu0 0
  %649 = vmatprep.subr.bf16.mxu0 0
  %650 = vmatpush1.bf16.msra.mxu0 0
  %651 = vmatprep.subr.bf16.mxu0 0
  %652 = vmatpush1.bf16.msra.mxu0 0
  %653 = vmatprep.subr.bf16.mxu0 0
  %654 = vmatpush1.bf16.msra.mxu0 0
  %655 = vmatprep.subr.bf16.mxu0 0
  %656 = vmatpush1.bf16.msra.mxu0 0
  %657 = vmatprep.subr.bf16.mxu0 0
  %658 = vmatpush1.bf16.msra.mxu0 0
  %659 = vmatprep.subr.bf16.mxu0 %v178
  %660 = vmatpush1.bf16.msra.mxu0 %v177
  %661 = vmatprep.subr.bf16.mxu0 %v176
  %662 = vmatpush1.bf16.msra.mxu0 %v175
  %663 = vmatprep.subr.bf16.mxu0 0
  %664 = vmatpush2.bf16.msra.mxu0 0
  %665 = vmatprep.subr.bf16.mxu0 0
  %666 = vmatpush2.bf16.msra.mxu0 0
  %667 = vmatprep.subr.bf16.mxu0 0
  %668 = vmatpush2.bf16.msra.mxu0 0
  %669 = vmatprep.subr.bf16.mxu0 0
  %670 = vmatpush2.bf16.msra.mxu0 0
  %671 = vmatprep.subr.bf16.mxu0 0
  %672 = vmatpush2.bf16.msra.mxu0 0
  %673 = vmatprep.subr.bf16.mxu0 0
  %674 = vmatpush2.bf16.msra.mxu0 0
  %675 = vmatprep.subr.bf16.mxu0 0
  %676 = vmatpush2.bf16.msra.mxu0 0
  %677 = vmatprep.subr.bf16.mxu0 0
  %678 = vmatpush2.bf16.msra.mxu0 0
  %679 = vmatprep.mubr.bf16.mxu0 0
  %680 = vmatmul.mubr.bf16.gmra.mxu0 %v645
  %v681 = vpop.f32.mrf.mxu0
  %v682 = vadd.f32 0.0, %v681
  %v683 = vpop.f32.mrf.mxu0
  %v684 = vadd.f32 0.0, %v683
  %v685 = vpop.f32.mrf.mxu0
  %v686 = vpop.f32.mrf.mxu0
  %687 = vdwg.mxu0
  %688 = vmatprep.subr.bf16.mxu0 0
  %689 = vmatpush1.bf16.msra.mxu0 0
  %690 = vmatprep.subr.bf16.mxu0 0
  %691 = vmatpush1.bf16.msra.mxu0 0
  %692 = vmatprep.subr.bf16.mxu0 0
  %693 = vmatpush1.bf16.msra.mxu0 0
  %694 = vmatprep.subr.bf16.mxu0 0
  %695 = vmatpush1.bf16.msra.mxu0 0
  %696 = vmatprep.subr.bf16.mxu0 0
  %697 = vmatpush1.bf16.msra.mxu0 0
  %698 = vmatprep.subr.bf16.mxu0 0
  %699 = vmatpush1.bf16.msra.mxu0 0
  %700 = vmatprep.subr.bf16.mxu0 %v290
  %701 = vmatpush1.bf16.msra.mxu0 %v289
  %702 = vmatprep.subr.bf16.mxu0 %v288
  %703 = vmatpush1.bf16.msra.mxu0 %v287
  %704 = vmatprep.subr.bf16.mxu0 0
  %705 = vmatpush2.bf16.msra.mxu0 0
  %706 = vmatprep.subr.bf16.mxu0 0
  %707 = vmatpush2.bf16.msra.mxu0 0
  %708 = vmatprep.subr.bf16.mxu0 0
  %709 = vmatpush2.bf16.msra.mxu0 0
  %710 = vmatprep.subr.bf16.mxu0 0
  %711 = vmatpush2.bf16.msra.mxu0 0
  %712 = vmatprep.subr.bf16.mxu0 0
  %713 = vmatpush2.bf16.msra.mxu0 0
  %714 = vmatprep.subr.bf16.mxu0 0
  %715 = vmatpush2.bf16.msra.mxu0 0
  %716 = vmatprep.subr.bf16.mxu0 0
  %717 = vmatpush2.bf16.msra.mxu0 0
  %718 = vmatprep.subr.bf16.mxu0 0
  %719 = vmatpush2.bf16.msra.mxu0 0
  %720 = vmatprep.mubr.bf16.mxu0 0
  %721 = vmatmul.mubr.bf16.gmra.mxu0 %v599
  %v722 = vpop.f32.mrf.mxu0
  %v723 = vadd.f32 %v682, %v722
  %v724 = vpop.f32.mrf.mxu0
  %v725 = vadd.f32 %v684, %v724
  %v726 = vpop.f32.mrf.mxu0
  %v727 = vpop.f32.mrf.mxu0
  %728 = vdwg.mxu0
  %v730 = vsel %vm118, %v75, 0
  %732 = vmatprep.subr.bf16.mxu0 0
  %733 = vmatpush1.bf16.msra.mxu0 0
  %734 = vmatprep.subr.bf16.mxu0 0
  %735 = vmatpush1.bf16.msra.mxu0 0
  %736 = vmatprep.subr.bf16.mxu0 0
  %737 = vmatpush1.bf16.msra.mxu0 0
  %738 = vmatprep.subr.bf16.mxu0 0
  %739 = vmatpush1.bf16.msra.mxu0 0
  %740 = vmatprep.subr.bf16.mxu0 0
  %741 = vmatpush1.bf16.msra.mxu0 0
  %742 = vmatprep.subr.bf16.mxu0 0
  %743 = vmatpush1.bf16.msra.mxu0 0
  %744 = vmatprep.subr.bf16.mxu0 %v113
  %745 = vmatpush1.bf16.msra.mxu0 %v112
  %746 = vmatprep.subr.bf16.mxu0 %v111
  %747 = vmatpush1.bf16.msra.mxu0 %v110
  %748 = vmatprep.subr.bf16.mxu0 0
  %749 = vmatpush2.bf16.msra.mxu0 0
  %750 = vmatprep.subr.bf16.mxu0 0
  %751 = vmatpush2.bf16.msra.mxu0 0
  %752 = vmatprep.subr.bf16.mxu0 0
  %753 = vmatpush2.bf16.msra.mxu0 0
  %754 = vmatprep.subr.bf16.mxu0 0
  %755 = vmatpush2.bf16.msra.mxu0 0
  %756 = vmatprep.subr.bf16.mxu0 0
  %757 = vmatpush2.bf16.msra.mxu0 0
  %758 = vmatprep.subr.bf16.mxu0 0
  %759 = vmatpush2.bf16.msra.mxu0 0
  %760 = vmatprep.subr.bf16.mxu0 0
  %761 = vmatpush2.bf16.msra.mxu0 0
  %762 = vmatprep.subr.bf16.mxu0 0
  %763 = vmatpush2.bf16.msra.mxu0 0
  %764 = vmatprep.mubr.bf16.mxu0 0
  %765 = vmatmul.mubr.bf16.gmra.mxu0 %v730
  %v766 = vpop.f32.mrf.mxu0
  %v767 = vadd.f32 0.0, %v766
  %v768 = vpop.f32.mrf.mxu0
  %v769 = vadd.f32 0.0, %v768
  %v770 = vpop.f32.mrf.mxu0
  %v771 = vpop.f32.mrf.mxu0
  %772 = vdwg.mxu0
  %v773 = vadd.f32 %v723, %v767
  %v774 = vadd.f32 %v725, %v769
  %v776 = vsel %vm118, %v77, 0
  %778 = vmatprep.subr.bf16.mxu0 0
  %779 = vmatpush1.bf16.msra.mxu0 0
  %780 = vmatprep.subr.bf16.mxu0 0
  %781 = vmatpush1.bf16.msra.mxu0 0
  %782 = vmatprep.subr.bf16.mxu0 0
  %783 = vmatpush1.bf16.msra.mxu0 0
  %784 = vmatprep.subr.bf16.mxu0 0
  %785 = vmatpush1.bf16.msra.mxu0 0
  %786 = vmatprep.subr.bf16.mxu0 0
  %787 = vmatpush1.bf16.msra.mxu0 0
  %788 = vmatprep.subr.bf16.mxu0 0
  %789 = vmatpush1.bf16.msra.mxu0 0
  %790 = vmatprep.subr.bf16.mxu0 %v178
  %791 = vmatpush1.bf16.msra.mxu0 %v177
  %792 = vmatprep.subr.bf16.mxu0 %v176
  %793 = vmatpush1.bf16.msra.mxu0 %v175
  %794 = vmatprep.subr.bf16.mxu0 0
  %795 = vmatpush2.bf16.msra.mxu0 0
  %796 = vmatprep.subr.bf16.mxu0 0
  %797 = vmatpush2.bf16.msra.mxu0 0
  %798 = vmatprep.subr.bf16.mxu0 0
  %799 = vmatpush2.bf16.msra.mxu0 0
  %800 = vmatprep.subr.bf16.mxu0 0
  %801 = vmatpush2.bf16.msra.mxu0 0
  %802 = vmatprep.subr.bf16.mxu0 0
  %803 = vmatpush2.bf16.msra.mxu0 0
  %804 = vmatprep.subr.bf16.mxu0 0
  %805 = vmatpush2.bf16.msra.mxu0 0
  %806 = vmatprep.subr.bf16.mxu0 0
  %807 = vmatpush2.bf16.msra.mxu0 0
  %808 = vmatprep.subr.bf16.mxu0 0
  %809 = vmatpush2.bf16.msra.mxu0 0
  %810 = vmatprep.mubr.bf16.mxu0 0
  %811 = vmatmul.mubr.bf16.gmra.mxu0 %v776
  %v812 = vpop.f32.mrf.mxu0
  %v813 = vadd.f32 0.0, %v812
  %v814 = vpop.f32.mrf.mxu0
  %v815 = vadd.f32 0.0, %v814
  %v816 = vpop.f32.mrf.mxu0
  %v817 = vpop.f32.mrf.mxu0
  %818 = vdwg.mxu0
  %819 = vmatprep.subr.bf16.mxu0 0
  %820 = vmatpush1.bf16.msra.mxu0 0
  %821 = vmatprep.subr.bf16.mxu0 0
  %822 = vmatpush1.bf16.msra.mxu0 0
  %823 = vmatprep.subr.bf16.mxu0 0
  %824 = vmatpush1.bf16.msra.mxu0 0
  %825 = vmatprep.subr.bf16.mxu0 0
  %826 = vmatpush1.bf16.msra.mxu0 0
  %827 = vmatprep.subr.bf16.mxu0 0
  %828 = vmatpush1.bf16.msra.mxu0 0
  %829 = vmatprep.subr.bf16.mxu0 0
  %830 = vmatpush1.bf16.msra.mxu0 0
  %831 = vmatprep.subr.bf16.mxu0 %v290
  %832 = vmatpush1.bf16.msra.mxu0 %v289
  %833 = vmatprep.subr.bf16.mxu0 %v288
  %834 = vmatpush1.bf16.msra.mxu0 %v287
  %835 = vmatprep.subr.bf16.mxu0 0
  %836 = vmatpush2.bf16.msra.mxu0 0
  %837 = vmatprep.subr.bf16.mxu0 0
  %838 = vmatpush2.bf16.msra.mxu0 0
  %839 = vmatprep.subr.bf16.mxu0 0
  %840 = vmatpush2.bf16.msra.mxu0 0
  %841 = vmatprep.subr.bf16.mxu0 0
  %842 = vmatpush2.bf16.msra.mxu0 0
  %843 = vmatprep.subr.bf16.mxu0 0
  %844 = vmatpush2.bf16.msra.mxu0 0
  %845 = vmatprep.subr.bf16.mxu0 0
  %846 = vmatpush2.bf16.msra.mxu0 0
  %847 = vmatprep.subr.bf16.mxu0 0
  %848 = vmatpush2.bf16.msra.mxu0 0
  %849 = vmatprep.subr.bf16.mxu0 0
  %850 = vmatpush2.bf16.msra.mxu0 0
  %851 = vmatprep.mubr.bf16.mxu0 0
  %852 = vmatmul.mubr.bf16.gmra.mxu0 %v730
  %v853 = vpop.f32.mrf.mxu0
  %v854 = vadd.f32 %v813, %v853
  %v855 = vpop.f32.mrf.mxu0
  %v856 = vadd.f32 %v815, %v855
  %v857 = vpop.f32.mrf.mxu0
  %v858 = vpop.f32.mrf.mxu0
  %859 = vdwg.mxu0
  %v861 = vsel %vm118, %v79, 0
  %863 = vmatprep.subr.bf16.mxu0 0
  %864 = vmatpush1.bf16.msra.mxu0 0
  %865 = vmatprep.subr.bf16.mxu0 0
  %866 = vmatpush1.bf16.msra.mxu0 0
  %867 = vmatprep.subr.bf16.mxu0 0
  %868 = vmatpush1.bf16.msra.mxu0 0
  %869 = vmatprep.subr.bf16.mxu0 0
  %870 = vmatpush1.bf16.msra.mxu0 0
  %871 = vmatprep.subr.bf16.mxu0 0
  %872 = vmatpush1.bf16.msra.mxu0 0
  %873 = vmatprep.subr.bf16.mxu0 0
  %874 = vmatpush1.bf16.msra.mxu0 0
  %875 = vmatprep.subr.bf16.mxu0 %v113
  %876 = vmatpush1.bf16.msra.mxu0 %v112
  %877 = vmatprep.subr.bf16.mxu0 %v111
  %878 = vmatpush1.bf16.msra.mxu0 %v110
  %879 = vmatprep.subr.bf16.mxu0 0
  %880 = vmatpush2.bf16.msra.mxu0 0
  %881 = vmatprep.subr.bf16.mxu0 0
  %882 = vmatpush2.bf16.msra.mxu0 0
  %883 = vmatprep.subr.bf16.mxu0 0
  %884 = vmatpush2.bf16.msra.mxu0 0
  %885 = vmatprep.subr.bf16.mxu0 0
  %886 = vmatpush2.bf16.msra.mxu0 0
  %887 = vmatprep.subr.bf16.mxu0 0
  %888 = vmatpush2.bf16.msra.mxu0 0
  %889 = vmatprep.subr.bf16.mxu0 0
  %890 = vmatpush2.bf16.msra.mxu0 0
  %891 = vmatprep.subr.bf16.mxu0 0
  %892 = vmatpush2.bf16.msra.mxu0 0
  %893 = vmatprep.subr.bf16.mxu0 0
  %894 = vmatpush2.bf16.msra.mxu0 0
  %895 = vmatprep.mubr.bf16.mxu0 0
  %896 = vmatmul.mubr.bf16.gmra.mxu0 %v861
  %v897 = vpop.f32.mrf.mxu0
  %v898 = vadd.f32 0.0, %v897
  %v899 = vpop.f32.mrf.mxu0
  %v900 = vadd.f32 0.0, %v899
  %v901 = vpop.f32.mrf.mxu0
  %v902 = vpop.f32.mrf.mxu0
  %903 = vdwg.mxu0
  %v904 = vadd.f32 %v854, %v898
  %v905 = vadd.f32 %v856, %v900
  %v907 = vsel %vm118, %v81, 0
  %909 = vmatprep.subr.bf16.mxu0 0
  %910 = vmatpush1.bf16.msra.mxu0 0
  %911 = vmatprep.subr.bf16.mxu0 0
  %912 = vmatpush1.bf16.msra.mxu0 0
  %913 = vmatprep.subr.bf16.mxu0 0
  %914 = vmatpush1.bf16.msra.mxu0 0
  %915 = vmatprep.subr.bf16.mxu0 0
  %916 = vmatpush1.bf16.msra.mxu0 0
  %917 = vmatprep.subr.bf16.mxu0 0
  %918 = vmatpush1.bf16.msra.mxu0 0
  %919 = vmatprep.subr.bf16.mxu0 0
  %920 = vmatpush1.bf16.msra.mxu0 0
  %921 = vmatprep.subr.bf16.mxu0 %v178
  %922 = vmatpush1.bf16.msra.mxu0 %v177
  %923 = vmatprep.subr.bf16.mxu0 %v176
  %924 = vmatpush1.bf16.msra.mxu0 %v175
  %925 = vmatprep.subr.bf16.mxu0 0
  %926 = vmatpush2.bf16.msra.mxu0 0
  %927 = vmatprep.subr.bf16.mxu0 0
  %928 = vmatpush2.bf16.msra.mxu0 0
  %929 = vmatprep.subr.bf16.mxu0 0
  %930 = vmatpush2.bf16.msra.mxu0 0
  %931 = vmatprep.subr.bf16.mxu0 0
  %932 = vmatpush2.bf16.msra.mxu0 0
  %933 = vmatprep.subr.bf16.mxu0 0
  %934 = vmatpush2.bf16.msra.mxu0 0
  %935 = vmatprep.subr.bf16.mxu0 0
  %936 = vmatpush2.bf16.msra.mxu0 0
  %937 = vmatprep.subr.bf16.mxu0 0
  %938 = vmatpush2.bf16.msra.mxu0 0
  %939 = vmatprep.subr.bf16.mxu0 0
  %940 = vmatpush2.bf16.msra.mxu0 0
  %941 = vmatprep.mubr.bf16.mxu0 0
  %942 = vmatmul.mubr.bf16.gmra.mxu0 %v907
  %v943 = vpop.f32.mrf.mxu0
  %v944 = vadd.f32 0.0, %v943
  %v945 = vpop.f32.mrf.mxu0
  %v946 = vadd.f32 0.0, %v945
  %v947 = vpop.f32.mrf.mxu0
  %v948 = vpop.f32.mrf.mxu0
  %949 = vdwg.mxu0
  %950 = vmatprep.subr.bf16.mxu0 0
  %951 = vmatpush1.bf16.msra.mxu0 0
  %952 = vmatprep.subr.bf16.mxu0 0
  %953 = vmatpush1.bf16.msra.mxu0 0
  %954 = vmatprep.subr.bf16.mxu0 0
  %955 = vmatpush1.bf16.msra.mxu0 0
  %956 = vmatprep.subr.bf16.mxu0 0
  %957 = vmatpush1.bf16.msra.mxu0 0
  %958 = vmatprep.subr.bf16.mxu0 0
  %959 = vmatpush1.bf16.msra.mxu0 0
  %960 = vmatprep.subr.bf16.mxu0 0
  %961 = vmatpush1.bf16.msra.mxu0 0
  %962 = vmatprep.subr.bf16.mxu0 %v290
  %963 = vmatpush1.bf16.msra.mxu0 %v289
  %964 = vmatprep.subr.bf16.mxu0 %v288
  %965 = vmatpush1.bf16.msra.mxu0 %v287
  %966 = vmatprep.subr.bf16.mxu0 0
  %967 = vmatpush2.bf16.msra.mxu0 0
  %968 = vmatprep.subr.bf16.mxu0 0
  %969 = vmatpush2.bf16.msra.mxu0 0
  %970 = vmatprep.subr.bf16.mxu0 0
  %971 = vmatpush2.bf16.msra.mxu0 0
  %972 = vmatprep.subr.bf16.mxu0 0
  %973 = vmatpush2.bf16.msra.mxu0 0
  %974 = vmatprep.subr.bf16.mxu0 0
  %975 = vmatpush2.bf16.msra.mxu0 0
  %976 = vmatprep.subr.bf16.mxu0 0
  %977 = vmatpush2.bf16.msra.mxu0 0
  %978 = vmatprep.subr.bf16.mxu0 0
  %979 = vmatpush2.bf16.msra.mxu0 0
  %980 = vmatprep.subr.bf16.mxu0 0
  %981 = vmatpush2.bf16.msra.mxu0 0
  %982 = vmatprep.mubr.bf16.mxu0 0
  %983 = vmatmul.mubr.bf16.gmra.mxu0 %v861
  %v984 = vpop.f32.mrf.mxu0
  %v985 = vadd.f32 %v944, %v984
  %v986 = vpop.f32.mrf.mxu0
  %v987 = vadd.f32 %v946, %v986
  %v988 = vpop.f32.mrf.mxu0
  %v989 = vpop.f32.mrf.mxu0
  %990 = vdwg.mxu0
  %v992 = vsel %vm118, %v83, 0
  %994 = vmatprep.subr.bf16.mxu0 0
  %995 = vmatpush1.bf16.msra.mxu0 0
  %996 = vmatprep.subr.bf16.mxu0 0
  %997 = vmatpush1.bf16.msra.mxu0 0
  %998 = vmatprep.subr.bf16.mxu0 0
  %999 = vmatpush1.bf16.msra.mxu0 0
  %1000 = vmatprep.subr.bf16.mxu0 0
  %1001 = vmatpush1.bf16.msra.mxu0 0
  %1002 = vmatprep.subr.bf16.mxu0 0
  %1003 = vmatpush1.bf16.msra.mxu0 0
  %1004 = vmatprep.subr.bf16.mxu0 0
  %1005 = vmatpush1.bf16.msra.mxu0 0
  %1006 = vmatprep.subr.bf16.mxu0 %v113
  %1007 = vmatpush1.bf16.msra.mxu0 %v112
  %1008 = vmatprep.subr.bf16.mxu0 %v111
  %1009 = vmatpush1.bf16.msra.mxu0 %v110
  %1010 = vmatprep.subr.bf16.mxu0 0
  %1011 = vmatpush2.bf16.msra.mxu0 0
  %1012 = vmatprep.subr.bf16.mxu0 0
  %1013 = vmatpush2.bf16.msra.mxu0 0
  %1014 = vmatprep.subr.bf16.mxu0 0
  %1015 = vmatpush2.bf16.msra.mxu0 0
  %1016 = vmatprep.subr.bf16.mxu0 0
  %1017 = vmatpush2.bf16.msra.mxu0 0
  %1018 = vmatprep.subr.bf16.mxu0 0
  %1019 = vmatpush2.bf16.msra.mxu0 0
  %1020 = vmatprep.subr.bf16.mxu0 0
  %1021 = vmatpush2.bf16.msra.mxu0 0
  %1022 = vmatprep.subr.bf16.mxu0 0
  %1023 = vmatpush2.bf16.msra.mxu0 0
  %1024 = vmatprep.subr.bf16.mxu0 0
  %1025 = vmatpush2.bf16.msra.mxu0 0
  %1026 = vmatprep.mubr.bf16.mxu0 0
  %1027 = vmatmul.mubr.bf16.gmra.mxu0 %v992
  %v1028 = vpop.f32.mrf.mxu0
  %v1029 = vadd.f32 0.0, %v1028
  %v1030 = vpop.f32.mrf.mxu0
  %v1031 = vadd.f32 0.0, %v1030
  %v1032 = vpop.f32.mrf.mxu0
  %v1033 = vpop.f32.mrf.mxu0
  %1034 = vdwg.mxu0
  %v1035 = vadd.f32 %v985, %v1029
  %v1036 = vadd.f32 %v987, %v1031
  %v1038 = vsel %vm118, %v85, 0
  %1040 = vmatprep.subr.bf16.mxu0 0
  %1041 = vmatpush1.bf16.msra.mxu0 0
  %1042 = vmatprep.subr.bf16.mxu0 0
  %1043 = vmatpush1.bf16.msra.mxu0 0
  %1044 = vmatprep.subr.bf16.mxu0 0
  %1045 = vmatpush1.bf16.msra.mxu0 0
  %1046 = vmatprep.subr.bf16.mxu0 0
  %1047 = vmatpush1.bf16.msra.mxu0 0
  %1048 = vmatprep.subr.bf16.mxu0 0
  %1049 = vmatpush1.bf16.msra.mxu0 0
  %1050 = vmatprep.subr.bf16.mxu0 0
  %1051 = vmatpush1.bf16.msra.mxu0 0
  %1052 = vmatprep.subr.bf16.mxu0 %v178
  %1053 = vmatpush1.bf16.msra.mxu0 %v177
  %1054 = vmatprep.subr.bf16.mxu0 %v176
  %1055 = vmatpush1.bf16.msra.mxu0 %v175
  %1056 = vmatprep.subr.bf16.mxu0 0
  %1057 = vmatpush2.bf16.msra.mxu0 0
  %1058 = vmatprep.subr.bf16.mxu0 0
  %1059 = vmatpush2.bf16.msra.mxu0 0
  %1060 = vmatprep.subr.bf16.mxu0 0
  %1061 = vmatpush2.bf16.msra.mxu0 0
  %1062 = vmatprep.subr.bf16.mxu0 0
  %1063 = vmatpush2.bf16.msra.mxu0 0
  %1064 = vmatprep.subr.bf16.mxu0 0
  %1065 = vmatpush2.bf16.msra.mxu0 0
  %1066 = vmatprep.subr.bf16.mxu0 0
  %1067 = vmatpush2.bf16.msra.mxu0 0
  %1068 = vmatprep.subr.bf16.mxu0 0
  %1069 = vmatpush2.bf16.msra.mxu0 0
  %1070 = vmatprep.subr.bf16.mxu0 0
  %1071 = vmatpush2.bf16.msra.mxu0 0
  %1072 = vmatprep.mubr.bf16.mxu0 0
  %1073 = vmatmul.mubr.bf16.gmra.mxu0 %v1038
  %v1074 = vpop.f32.mrf.mxu0
  %v1075 = vadd.f32 0.0, %v1074
  %v1076 = vpop.f32.mrf.mxu0
  %v1077 = vadd.f32 0.0, %v1076
  %v1078 = vpop.f32.mrf.mxu0
  %v1079 = vpop.f32.mrf.mxu0
  %1080 = vdwg.mxu0
  %1081 = vmatprep.subr.bf16.mxu0 0
  %1082 = vmatpush1.bf16.msra.mxu0 0
  %1083 = vmatprep.subr.bf16.mxu0 0
  %1084 = vmatpush1.bf16.msra.mxu0 0
  %1085 = vmatprep.subr.bf16.mxu0 0
  %1086 = vmatpush1.bf16.msra.mxu0 0
  %1087 = vmatprep.subr.bf16.mxu0 0
  %1088 = vmatpush1.bf16.msra.mxu0 0
  %1089 = vmatprep.subr.bf16.mxu0 0
  %1090 = vmatpush1.bf16.msra.mxu0 0
  %1091 = vmatprep.subr.bf16.mxu0 0
  %1092 = vmatpush1.bf16.msra.mxu0 0
  %1093 = vmatprep.subr.bf16.mxu0 %v290
  %1094 = vmatpush1.bf16.msra.mxu0 %v289
  %1095 = vmatprep.subr.bf16.mxu0 %v288
  %1096 = vmatpush1.bf16.msra.mxu0 %v287
  %1097 = vmatprep.subr.bf16.mxu0 0
  %1098 = vmatpush2.bf16.msra.mxu0 0
  %1099 = vmatprep.subr.bf16.mxu0 0
  %1100 = vmatpush2.bf16.msra.mxu0 0
  %1101 = vmatprep.subr.bf16.mxu0 0
  %1102 = vmatpush2.bf16.msra.mxu0 0
  %1103 = vmatprep.subr.bf16.mxu0 0
  %1104 = vmatpush2.bf16.msra.mxu0 0
  %1105 = vmatprep.subr.bf16.mxu0 0
  %1106 = vmatpush2.bf16.msra.mxu0 0
  %1107 = vmatprep.subr.bf16.mxu0 0
  %1108 = vmatpush2.bf16.msra.mxu0 0
  %1109 = vmatprep.subr.bf16.mxu0 0
  %1110 = vmatpush2.bf16.msra.mxu0 0
  %1111 = vmatprep.subr.bf16.mxu0 0
  %1112 = vmatpush2.bf16.msra.mxu0 0
  %1113 = vmatprep.mubr.bf16.mxu0 0
  %1114 = vmatmul.mubr.bf16.gmra.mxu0 %v992
  %v1115 = vpop.f32.mrf.mxu0
  %v1116 = vadd.f32 %v1075, %v1115
  %v1117 = vpop.f32.mrf.mxu0
  %v1118 = vadd.f32 %v1077, %v1117
  %v1119 = vpop.f32.mrf.mxu0
  %v1120 = vpop.f32.mrf.mxu0
  %1121 = vdwg.mxu0
  %v1123 = vsel %vm118, %v87, 0
  %1125 = vmatprep.subr.bf16.mxu0 0
  %1126 = vmatpush1.bf16.msra.mxu0 0
  %1127 = vmatprep.subr.bf16.mxu0 0
  %1128 = vmatpush1.bf16.msra.mxu0 0
  %1129 = vmatprep.subr.bf16.mxu0 0
  %1130 = vmatpush1.bf16.msra.mxu0 0
  %1131 = vmatprep.subr.bf16.mxu0 0
  %1132 = vmatpush1.bf16.msra.mxu0 0
  %1133 = vmatprep.subr.bf16.mxu0 0
  %1134 = vmatpush1.bf16.msra.mxu0 0
  %1135 = vmatprep.subr.bf16.mxu0 0
  %1136 = vmatpush1.bf16.msra.mxu0 0
  %1137 = vmatprep.subr.bf16.mxu0 %v113
  %1138 = vmatpush1.bf16.msra.mxu0 %v112
  %1139 = vmatprep.subr.bf16.mxu0 %v111
  %1140 = vmatpush1.bf16.msra.mxu0 %v110
  %1141 = vmatprep.subr.bf16.mxu0 0
  %1142 = vmatpush2.bf16.msra.mxu0 0
  %1143 = vmatprep.subr.bf16.mxu0 0
  %1144 = vmatpush2.bf16.msra.mxu0 0
  %1145 = vmatprep.subr.bf16.mxu0 0
  %1146 = vmatpush2.bf16.msra.mxu0 0
  %1147 = vmatprep.subr.bf16.mxu0 0
  %1148 = vmatpush2.bf16.msra.mxu0 0
  %1149 = vmatprep.subr.bf16.mxu0 0
  %1150 = vmatpush2.bf16.msra.mxu0 0
  %1151 = vmatprep.subr.bf16.mxu0 0
  %1152 = vmatpush2.bf16.msra.mxu0 0
  %1153 = vmatprep.subr.bf16.mxu0 0
  %1154 = vmatpush2.bf16.msra.mxu0 0
  %1155 = vmatprep.subr.bf16.mxu0 0
  %1156 = vmatpush2.bf16.msra.mxu0 0
  %1157 = vmatprep.mubr.bf16.mxu0 0
  %1158 = vmatmul.mubr.bf16.gmra.mxu0 %v1123
  %v1159 = vpop.f32.mrf.mxu0
  %v1160 = vadd.f32 0.0, %v1159
  %v1161 = vpop.f32.mrf.mxu0
  %v1162 = vadd.f32 0.0, %v1161
  %v1163 = vpop.f32.mrf.mxu0
  %v1164 = vpop.f32.mrf.mxu0
  %1165 = vdwg.mxu0
  %v1166 = vadd.f32 %v1116, %v1160
  %v1167 = vadd.f32 %v1118, %v1162
  %vm1168 = vcmask 1041408
  %v1169 = vsel %vm1168, %v221, 0.0
  %v1170 = vrot.slane %v1169, 4
  %v1171 = vadd.f32 %v1169, %v1170
  %v1172 = vrot.slane %v1171, 2
  %v1173 = vadd.f32 %v1171, %v1172
  %v1174 = vrot.slane %v1173, 1
  %v1175 = vadd.f32 %v1173, %v1174
  %v1176 = vsel %vm1168, %v223, 0.0
  %v1177 = vrot.slane %v1176, 4
  %v1178 = vadd.f32 %v1176, %v1177
  %v1179 = vrot.slane %v1178, 2
  %v1180 = vadd.f32 %v1178, %v1179
  %v1181 = vrot.slane %v1180, 1
  %v1182 = vadd.f32 %v1180, %v1181
  %v1183 = vmul.f32 %v221, %v221
  %v1184 = vmul.f32 %v223, %v223
  %v1185 = vsel %vm1168, %v1183, 0.0
  %v1186 = vrot.slane %v1185, 4
  %v1187 = vadd.f32 %v1185, %v1186
  %v1188 = vrot.slane %v1187, 2
  %v1189 = vadd.f32 %v1187, %v1188
  %v1190 = vrot.slane %v1189, 1
  %v1191 = vadd.f32 %v1189, %v1190
  %v1192 = vsel %vm1168, %v1184, 0.0
  %v1193 = vrot.slane %v1192, 4
  %v1194 = vadd.f32 %v1192, %v1193
  %v1195 = vrot.slane %v1194, 2
  %v1196 = vadd.f32 %v1194, %v1195
  %v1197 = vrot.slane %v1196, 1
  %v1198 = vadd.f32 %v1196, %v1197
  %v1199 = vsel %vm1168, %v380, 0.0
  %v1200 = vrot.slane %v1199, 4
  %v1201 = vadd.f32 %v1199, %v1200
  %v1202 = vrot.slane %v1201, 2
  %v1203 = vadd.f32 %v1201, %v1202
  %v1204 = vrot.slane %v1203, 1
  %v1205 = vadd.f32 %v1203, %v1204
  %v1206 = vsel %vm1168, %v381, 0.0
  %v1207 = vrot.slane %v1206, 4
  %v1208 = vadd.f32 %v1206, %v1207
  %v1209 = vrot.slane %v1208, 2
  %v1210 = vadd.f32 %v1208, %v1209
  %v1211 = vrot.slane %v1210, 1
  %v1212 = vadd.f32 %v1210, %v1211
  %v1213 = vmul.f32 %v380, %v380
  %v1214 = vmul.f32 %v381, %v381
  %v1215 = vsel %vm1168, %v1213, 0.0
  %v1216 = vrot.slane %v1215, 4
  %v1217 = vadd.f32 %v1215, %v1216
  %v1218 = vrot.slane %v1217, 2
  %v1219 = vadd.f32 %v1217, %v1218
  %v1220 = vrot.slane %v1219, 1
  %v1221 = vadd.f32 %v1219, %v1220
  %v1222 = vsel %vm1168, %v1214, 0.0
  %v1223 = vrot.slane %v1222, 4
  %v1224 = vadd.f32 %v1222, %v1223
  %v1225 = vrot.slane %v1224, 2
  %v1226 = vadd.f32 %v1224, %v1225
  %v1227 = vrot.slane %v1226, 1
  %v1228 = vadd.f32 %v1226, %v1227
  %v1229 = vadd.f32 %v1175, %v1205
  %v1230 = vadd.f32 %v1182, %v1212
  %v1231 = vadd.f32 %v1191, %v1221
  %v1232 = vadd.f32 %v1198, %v1228
  %v1233 = vsel %vm1168, %v511, 0.0
  %v1234 = vrot.slane %v1233, 4
  %v1235 = vadd.f32 %v1233, %v1234
  %v1236 = vrot.slane %v1235, 2
  %v1237 = vadd.f32 %v1235, %v1236
  %v1238 = vrot.slane %v1237, 1
  %v1239 = vadd.f32 %v1237, %v1238
  %v1240 = vsel %vm1168, %v512, 0.0
  %v1241 = vrot.slane %v1240, 4
  %v1242 = vadd.f32 %v1240, %v1241
  %v1243 = vrot.slane %v1242, 2
  %v1244 = vadd.f32 %v1242, %v1243
  %v1245 = vrot.slane %v1244, 1
  %v1246 = vadd.f32 %v1244, %v1245
  %v1247 = vmul.f32 %v511, %v511
  %v1248 = vmul.f32 %v512, %v512
  %v1249 = vsel %vm1168, %v1247, 0.0
  %v1250 = vrot.slane %v1249, 4
  %v1251 = vadd.f32 %v1249, %v1250
  %v1252 = vrot.slane %v1251, 2
  %v1253 = vadd.f32 %v1251, %v1252
  %v1254 = vrot.slane %v1253, 1
  %v1255 = vadd.f32 %v1253, %v1254
  %v1256 = vsel %vm1168, %v1248, 0.0
  %v1257 = vrot.slane %v1256, 4
  %v1258 = vadd.f32 %v1256, %v1257
  %v1259 = vrot.slane %v1258, 2
  %v1260 = vadd.f32 %v1258, %v1259
  %v1261 = vrot.slane %v1260, 1
  %v1262 = vadd.f32 %v1260, %v1261
  %v1263 = vadd.f32 %v1229, %v1239
  %v1264 = vadd.f32 %v1230, %v1246
  %v1265 = vadd.f32 %v1231, %v1255
  %v1266 = vadd.f32 %v1232, %v1262
  %v1267 = vsel %vm1168, %v642, 0.0
  %v1268 = vrot.slane %v1267, 4
  %v1269 = vadd.f32 %v1267, %v1268
  %v1270 = vrot.slane %v1269, 2
  %v1271 = vadd.f32 %v1269, %v1270
  %v1272 = vrot.slane %v1271, 1
  %v1273 = vadd.f32 %v1271, %v1272
  %v1274 = vsel %vm1168, %v643, 0.0
  %v1275 = vrot.slane %v1274, 4
  %v1276 = vadd.f32 %v1274, %v1275
  %v1277 = vrot.slane %v1276, 2
  %v1278 = vadd.f32 %v1276, %v1277
  %v1279 = vrot.slane %v1278, 1
  %v1280 = vadd.f32 %v1278, %v1279
  %v1281 = vmul.f32 %v642, %v642
  %v1282 = vmul.f32 %v643, %v643
  %v1283 = vsel %vm1168, %v1281, 0.0
  %v1284 = vrot.slane %v1283, 4
  %v1285 = vadd.f32 %v1283, %v1284
  %v1286 = vrot.slane %v1285, 2
  %v1287 = vadd.f32 %v1285, %v1286
  %v1288 = vrot.slane %v1287, 1
  %v1289 = vadd.f32 %v1287, %v1288
  %v1290 = vsel %vm1168, %v1282, 0.0
  %v1291 = vrot.slane %v1290, 4
  %v1292 = vadd.f32 %v1290, %v1291
  %v1293 = vrot.slane %v1292, 2
  %v1294 = vadd.f32 %v1292, %v1293
  %v1295 = vrot.slane %v1294, 1
  %v1296 = vadd.f32 %v1294, %v1295
  %v1297 = vadd.f32 %v1263, %v1273
  %v1298 = vadd.f32 %v1264, %v1280
  %v1299 = vadd.f32 %v1265, %v1289
  %v1300 = vadd.f32 %v1266, %v1296
  %v1301 = vsel %vm1168, %v773, 0.0
  %v1302 = vrot.slane %v1301, 4
  %v1303 = vadd.f32 %v1301, %v1302
  %v1304 = vrot.slane %v1303, 2
  %v1305 = vadd.f32 %v1303, %v1304
  %v1306 = vrot.slane %v1305, 1
  %v1307 = vadd.f32 %v1305, %v1306
  %v1308 = vsel %vm1168, %v774, 0.0
  %v1309 = vrot.slane %v1308, 4
  %v1310 = vadd.f32 %v1308, %v1309
  %v1311 = vrot.slane %v1310, 2
  %v1312 = vadd.f32 %v1310, %v1311
  %v1313 = vrot.slane %v1312, 1
  %v1314 = vadd.f32 %v1312, %v1313
  %v1315 = vmul.f32 %v773, %v773
  %v1316 = vmul.f32 %v774, %v774
  %v1317 = vsel %vm1168, %v1315, 0.0
  %v1318 = vrot.slane %v1317, 4
  %v1319 = vadd.f32 %v1317, %v1318
  %v1320 = vrot.slane %v1319, 2
  %v1321 = vadd.f32 %v1319, %v1320
  %v1322 = vrot.slane %v1321, 1
  %v1323 = vadd.f32 %v1321, %v1322
  %v1324 = vsel %vm1168, %v1316, 0.0
  %v1325 = vrot.slane %v1324, 4
  %v1326 = vadd.f32 %v1324, %v1325
  %v1327 = vrot.slane %v1326, 2
  %v1328 = vadd.f32 %v1326, %v1327
  %v1329 = vrot.slane %v1328, 1
  %v1330 = vadd.f32 %v1328, %v1329
  %v1331 = vadd.f32 %v1297, %v1307
  %v1332 = vadd.f32 %v1298, %v1314
  %v1333 = vadd.f32 %v1299, %v1323
  %v1334 = vadd.f32 %v1300, %v1330
  %v1335 = vsel %vm1168, %v904, 0.0
  %v1336 = vrot.slane %v1335, 4
  %v1337 = vadd.f32 %v1335, %v1336
  %v1338 = vrot.slane %v1337, 2
  %v1339 = vadd.f32 %v1337, %v1338
  %v1340 = vrot.slane %v1339, 1
  %v1341 = vadd.f32 %v1339, %v1340
  %v1342 = vsel %vm1168, %v905, 0.0
  %v1343 = vrot.slane %v1342, 4
  %v1344 = vadd.f32 %v1342, %v1343
  %v1345 = vrot.slane %v1344, 2
  %v1346 = vadd.f32 %v1344, %v1345
  %v1347 = vrot.slane %v1346, 1
  %v1348 = vadd.f32 %v1346, %v1347
  %v1349 = vmul.f32 %v904, %v904
  %v1350 = vmul.f32 %v905, %v905
  %v1351 = vsel %vm1168, %v1349, 0.0
  %v1352 = vrot.slane %v1351, 4
  %v1353 = vadd.f32 %v1351, %v1352
  %v1354 = vrot.slane %v1353, 2
  %v1355 = vadd.f32 %v1353, %v1354
  %v1356 = vrot.slane %v1355, 1
  %v1357 = vadd.f32 %v1355, %v1356
  %v1358 = vsel %vm1168, %v1350, 0.0
  %v1359 = vrot.slane %v1358, 4
  %v1360 = vadd.f32 %v1358, %v1359
  %v1361 = vrot.slane %v1360, 2
  %v1362 = vadd.f32 %v1360, %v1361
  %v1363 = vrot.slane %v1362, 1
  %v1364 = vadd.f32 %v1362, %v1363
  %v1365 = vadd.f32 %v1331, %v1341
  %v1366 = vadd.f32 %v1332, %v1348
  %v1367 = vadd.f32 %v1333, %v1357
  %v1368 = vadd.f32 %v1334, %v1364
  %v1369 = vsel %vm1168, %v1035, 0.0
  %v1370 = vrot.slane %v1369, 4
  %v1371 = vadd.f32 %v1369, %v1370
  %v1372 = vrot.slane %v1371, 2
  %v1373 = vadd.f32 %v1371, %v1372
  %v1374 = vrot.slane %v1373, 1
  %v1375 = vadd.f32 %v1373, %v1374
  %v1376 = vsel %vm1168, %v1036, 0.0
  %v1377 = vrot.slane %v1376, 4
  %v1378 = vadd.f32 %v1376, %v1377
  %v1379 = vrot.slane %v1378, 2
  %v1380 = vadd.f32 %v1378, %v1379
  %v1381 = vrot.slane %v1380, 1
  %v1382 = vadd.f32 %v1380, %v1381
  %v1383 = vmul.f32 %v1035, %v1035
  %v1384 = vmul.f32 %v1036, %v1036
  %v1385 = vsel %vm1168, %v1383, 0.0
  %v1386 = vrot.slane %v1385, 4
  %v1387 = vadd.f32 %v1385, %v1386
  %v1388 = vrot.slane %v1387, 2
  %v1389 = vadd.f32 %v1387, %v1388
  %v1390 = vrot.slane %v1389, 1
  %v1391 = vadd.f32 %v1389, %v1390
  %v1392 = vsel %vm1168, %v1384, 0.0
  %v1393 = vrot.slane %v1392, 4
  %v1394 = vadd.f32 %v1392, %v1393
  %v1395 = vrot.slane %v1394, 2
  %v1396 = vadd.f32 %v1394, %v1395
  %v1397 = vrot.slane %v1396, 1
  %v1398 = vadd.f32 %v1396, %v1397
  %v1399 = vadd.f32 %v1365, %v1375
  %v1400 = vadd.f32 %v1366, %v1382
  %v1401 = vadd.f32 %v1367, %v1391
  %v1402 = vadd.f32 %v1368, %v1398
  %v1403 = vsel %vm1168, %v1166, 0.0
  %v1404 = vrot.slane %v1403, 4
  %v1405 = vadd.f32 %v1403, %v1404
  %v1406 = vrot.slane %v1405, 2
  %v1407 = vadd.f32 %v1405, %v1406
  %v1408 = vrot.slane %v1407, 1
  %v1409 = vadd.f32 %v1407, %v1408
  %v1410 = vsel %vm1168, %v1167, 0.0
  %v1411 = vrot.slane %v1410, 4
  %v1412 = vadd.f32 %v1410, %v1411
  %v1413 = vrot.slane %v1412, 2
  %v1414 = vadd.f32 %v1412, %v1413
  %v1415 = vrot.slane %v1414, 1
  %v1416 = vadd.f32 %v1414, %v1415
  %v1417 = vmul.f32 %v1166, %v1166
  %v1418 = vmul.f32 %v1167, %v1167
  %v1419 = vsel %vm1168, %v1417, 0.0
  %v1420 = vrot.slane %v1419, 4
  %v1421 = vadd.f32 %v1419, %v1420
  %v1422 = vrot.slane %v1421, 2
  %v1423 = vadd.f32 %v1421, %v1422
  %v1424 = vrot.slane %v1423, 1
  %v1425 = vadd.f32 %v1423, %v1424
  %v1426 = vsel %vm1168, %v1418, 0.0
  %v1427 = vrot.slane %v1426, 4
  %v1428 = vadd.f32 %v1426, %v1427
  %v1429 = vrot.slane %v1428, 2
  %v1430 = vadd.f32 %v1428, %v1429
  %v1431 = vrot.slane %v1430, 1
  %v1432 = vadd.f32 %v1430, %v1431
  %v1433 = vadd.f32 %v1399, %v1409
  %v1434 = vadd.f32 %v1400, %v1416
  %v1435 = vadd.f32 %v1401, %v1425
  %v1436 = vadd.f32 %v1402, %v1432
  %v1437 = vlaneseq
  %v1438 = vshrl.u32 %v1437, 7
  %v1439 = vadd.s32 %v1438, 8
  %v1440 = vadd.s32 %v1438, 16
  %v1441 = vadd.s32 %v1438, 24
  %v1442 = vadd.s32 %v1438, 32
  %v1443 = vadd.s32 %v1438, 40
  %v1444 = vadd.s32 %v1438, 48
  %v1445 = vadd.s32 %v1438, 56
  %v1446 = vadd.s32 %v1438, 64
  %v1447 = vadd.s32 %v1438, 72
  %v1448 = vadd.s32 %v1438, 80
  %v1449 = vadd.s32 %v1438, 88
  %v1450 = vadd.s32 %v1438, 96
  %v1451 = vadd.s32 %v1438, 104
  %v1452 = vadd.s32 %v1438, 112
  %v1453 = vadd.s32 %v1438, 120
  %v1454 = vadd.s32 %v1438, 128
  %v1455 = vadd.s32 %v1438, 136
  %v1456 = vadd.s32 %v1438, 144
  %v1457 = vadd.s32 %v1438, 152
  %v1458 = vadd.s32 %v1438, 160
  %v1459 = vadd.s32 %v1438, 168
  %v1460 = vadd.s32 %v1438, 176
  %v1461 = vadd.s32 %v1438, 184
  %v1462 = vadd.s32 %v1438, 192
  %v1463 = vadd.s32 %v1438, 200
  %v1464 = vadd.s32 %v1438, 208
  %v1465 = vadd.s32 %v1438, 216
  %v1466 = vadd.s32 %v1438, 224
  %v1467 = vadd.s32 %v1438, 232
  %v1468 = vadd.s32 %v1438, 240
  %v1469 = vadd.s32 %v1438, 248
  %v1470 = vlaneseq
  %v1471 = vand.u32 %v1470, 127
  %v1472 = vand.u32 %v1438, 31
  %v1473 = vand.u32 %v1439, 31
  %v1474 = vand.u32 %v1440, 31
  %v1475 = vand.u32 %v1441, 31
  %v1476 = vand.u32 %v1442, 31
  %v1477 = vand.u32 %v1443, 31
  %v1478 = vand.u32 %v1444, 31
  %v1479 = vand.u32 %v1445, 31
  %v1480 = vand.u32 %v1446, 31
  %v1481 = vand.u32 %v1447, 31
  %v1482 = vand.u32 %v1448, 31
  %v1483 = vand.u32 %v1449, 31
  %v1484 = vand.u32 %v1450, 31
  %v1485 = vand.u32 %v1451, 31
  %v1486 = vand.u32 %v1452, 31
  %v1487 = vand.u32 %v1453, 31
  %v1488 = vand.u32 %v1454, 31
  %v1489 = vand.u32 %v1455, 31
  %v1490 = vand.u32 %v1456, 31
  %v1491 = vand.u32 %v1457, 31
  %v1492 = vand.u32 %v1458, 31
  %v1493 = vand.u32 %v1459, 31
  %v1494 = vand.u32 %v1460, 31
  %v1495 = vand.u32 %v1461, 31
  %v1496 = vand.u32 %v1462, 31
  %v1497 = vand.u32 %v1463, 31
  %v1498 = vand.u32 %v1464, 31
  %v1499 = vand.u32 %v1465, 31
  %v1500 = vand.u32 %v1466, 31
  %v1501 = vand.u32 %v1467, 31
  %v1502 = vand.u32 %v1468, 31
  %v1503 = vand.u32 %v1469, 31
  %vm1504 = vcmp.eq.s32.totalorder %v1472, %v1471
  %vm1505 = vcmp.eq.s32.totalorder %v1473, %v1471
  %vm1506 = vcmp.eq.s32.totalorder %v1474, %v1471
  %vm1507 = vcmp.eq.s32.totalorder %v1475, %v1471
  %vm1508 = vcmp.eq.s32.totalorder %v1476, %v1471
  %vm1509 = vcmp.eq.s32.totalorder %v1477, %v1471
  %vm1510 = vcmp.eq.s32.totalorder %v1478, %v1471
  %vm1511 = vcmp.eq.s32.totalorder %v1479, %v1471
  %vm1512 = vcmp.eq.s32.totalorder %v1480, %v1471
  %vm1513 = vcmp.eq.s32.totalorder %v1481, %v1471
  %vm1514 = vcmp.eq.s32.totalorder %v1482, %v1471
  %vm1515 = vcmp.eq.s32.totalorder %v1483, %v1471
  %vm1516 = vcmp.eq.s32.totalorder %v1484, %v1471
  %vm1517 = vcmp.eq.s32.totalorder %v1485, %v1471
  %vm1518 = vcmp.eq.s32.totalorder %v1486, %v1471
  %vm1519 = vcmp.eq.s32.totalorder %v1487, %v1471
  %vm1520 = vcmp.eq.s32.totalorder %v1488, %v1471
  %vm1521 = vcmp.eq.s32.totalorder %v1489, %v1471
  %vm1522 = vcmp.eq.s32.totalorder %v1490, %v1471
  %vm1523 = vcmp.eq.s32.totalorder %v1491, %v1471
  %vm1524 = vcmp.eq.s32.totalorder %v1492, %v1471
  %vm1525 = vcmp.eq.s32.totalorder %v1493, %v1471
  %vm1526 = vcmp.eq.s32.totalorder %v1494, %v1471
  %vm1527 = vcmp.eq.s32.totalorder %v1495, %v1471
  %vm1528 = vcmp.eq.s32.totalorder %v1496, %v1471
  %vm1529 = vcmp.eq.s32.totalorder %v1497, %v1471
  %vm1530 = vcmp.eq.s32.totalorder %v1498, %v1471
  %vm1531 = vcmp.eq.s32.totalorder %v1499, %v1471
  %vm1532 = vcmp.eq.s32.totalorder %v1500, %v1471
  %vm1533 = vcmp.eq.s32.totalorder %v1501, %v1471
  %vm1534 = vcmp.eq.s32.totalorder %v1502, %v1471
  %vm1535 = vcmp.eq.s32.totalorder %v1503, %v1471
  %v1536 = vsel %vm1504, 1, 0
  %v1537 = vsel %vm1505, 1, 0
  %v1538 = vsel %vm1506, 1, 0
  %v1539 = vsel %vm1507, 1, 0
  %v1540 = vsel %vm1508, 1, 0
  %v1541 = vsel %vm1509, 1, 0
  %v1542 = vsel %vm1510, 1, 0
  %v1543 = vsel %vm1511, 1, 0
  %v1544 = vsel %vm1512, 1, 0
  %v1545 = vsel %vm1513, 1, 0
  %v1546 = vsel %vm1514, 1, 0
  %v1547 = vsel %vm1515, 1, 0
  %v1548 = vsel %vm1516, 1, 0
  %v1549 = vsel %vm1517, 1, 0
  %v1550 = vsel %vm1518, 1, 0
  %v1551 = vsel %vm1519, 1, 0
  %v1552 = vsel %vm1520, 1, 0
  %v1553 = vsel %vm1521, 1, 0
  %v1554 = vsel %vm1522, 1, 0
  %v1555 = vsel %vm1523, 1, 0
  %v1556 = vsel %vm1524, 1, 0
  %v1557 = vsel %vm1525, 1, 0
  %v1558 = vsel %vm1526, 1, 0
  %v1559 = vsel %vm1527, 1, 0
  %v1560 = vsel %vm1528, 1, 0
  %v1561 = vsel %vm1529, 1, 0
  %v1562 = vsel %vm1530, 1, 0
  %v1563 = vsel %vm1531, 1, 0
  %v1564 = vsel %vm1532, 1, 0
  %v1565 = vsel %vm1533, 1, 0
  %v1566 = vsel %vm1534, 1, 0
  %v1567 = vsel %vm1535, 1, 0
  %v1568 = vcvt.s32.f32 %v1536
  %v1569 = vcvt.s32.f32 %v1537
  %v1570 = vcvt.s32.f32 %v1538
  %v1571 = vcvt.s32.f32 %v1539
  %v1572 = vcvt.s32.f32 %v1540
  %v1573 = vcvt.s32.f32 %v1541
  %v1574 = vcvt.s32.f32 %v1542
  %v1575 = vcvt.s32.f32 %v1543
  %v1576 = vcvt.s32.f32 %v1544
  %v1577 = vcvt.s32.f32 %v1545
  %v1578 = vcvt.s32.f32 %v1546
  %v1579 = vcvt.s32.f32 %v1547
  %v1580 = vcvt.s32.f32 %v1548
  %v1581 = vcvt.s32.f32 %v1549
  %v1582 = vcvt.s32.f32 %v1550
  %v1583 = vcvt.s32.f32 %v1551
  %v1584 = vcvt.s32.f32 %v1552
  %v1585 = vcvt.s32.f32 %v1553
  %v1586 = vcvt.s32.f32 %v1554
  %v1587 = vcvt.s32.f32 %v1555
  %v1588 = vcvt.s32.f32 %v1556
  %v1589 = vcvt.s32.f32 %v1557
  %v1590 = vcvt.s32.f32 %v1558
  %v1591 = vcvt.s32.f32 %v1559
  %v1592 = vcvt.s32.f32 %v1560
  %v1593 = vcvt.s32.f32 %v1561
  %v1594 = vcvt.s32.f32 %v1562
  %v1595 = vcvt.s32.f32 %v1563
  %v1596 = vcvt.s32.f32 %v1564
  %v1597 = vcvt.s32.f32 %v1565
  %v1598 = vcvt.s32.f32 %v1566
  %v1599 = vcvt.s32.f32 %v1567
  %v1600 = vadd.s32 %v1471, 128
  %v1601 = vand.u32 %v1471, 31
  %v1602 = vand.u32 %v1600, 31
  %vm1603 = vcmp.eq.s32.totalorder %v1601, %v1438
  %vm1604 = vcmp.eq.s32.totalorder %v1602, %v1438
  %vm1605 = vcmp.eq.s32.totalorder %v1601, %v1439
  %vm1606 = vcmp.eq.s32.totalorder %v1602, %v1439
  %vm1607 = vcmp.eq.s32.totalorder %v1601, %v1440
  %vm1608 = vcmp.eq.s32.totalorder %v1602, %v1440
  %vm1609 = vcmp.eq.s32.totalorder %v1601, %v1441
  %vm1610 = vcmp.eq.s32.totalorder %v1602, %v1441
  %v1611 = vsel %vm1603, 1, 0
  %v1612 = vsel %vm1604, 1, 0
  %v1613 = vsel %vm1605, 1, 0
  %v1614 = vsel %vm1606, 1, 0
  %v1615 = vsel %vm1607, 1, 0
  %v1616 = vsel %vm1608, 1, 0
  %v1617 = vsel %vm1609, 1, 0
  %v1618 = vsel %vm1610, 1, 0
  %v1619 = vcvt.s32.f32 %v1611
  %v1620 = vcvt.s32.f32 %v1612
  %v1621 = vcvt.s32.f32 %v1613
  %v1622 = vcvt.s32.f32 %v1614
  %v1623 = vcvt.s32.f32 %v1615
  %v1624 = vcvt.s32.f32 %v1616
  %v1625 = vcvt.s32.f32 %v1617
  %v1626 = vcvt.s32.f32 %v1618
  %1627 = vmatprep.subr.mxu0 0.0
  %1628 = vmatpush1.msra.mxu0 %v1583
  %1629 = vmatprep.subr.mxu0 0.0
  %1630 = vmatpush1.msra.mxu0 %v1582
  %1631 = vmatprep.subr.mxu0 0.0
  %1632 = vmatpush1.msra.mxu0 %v1581
  %1633 = vmatprep.subr.mxu0 0.0
  %1634 = vmatpush1.msra.mxu0 %v1580
  %1635 = vmatprep.subr.mxu0 0.0
  %1636 = vmatpush1.msra.mxu0 %v1579
  %1637 = vmatprep.subr.mxu0 0.0
  %1638 = vmatpush1.msra.mxu0 %v1578
  %1639 = vmatprep.subr.mxu0 0.0
  %1640 = vmatpush1.msra.mxu0 %v1577
  %1641 = vmatprep.subr.mxu0 0.0
  %1642 = vmatpush1.msra.mxu0 %v1576
  %1643 = vmatprep.subr.mxu0 0.0
  %1644 = vmatpush1.msra.mxu0 %v1575
  %1645 = vmatprep.subr.mxu0 0.0
  %1646 = vmatpush1.msra.mxu0 %v1574
  %1647 = vmatprep.subr.mxu0 0.0
  %1648 = vmatpush1.msra.mxu0 %v1573
  %1649 = vmatprep.subr.mxu0 0.0
  %1650 = vmatpush1.msra.mxu0 %v1572
  %1651 = vmatprep.subr.mxu0 0.0
  %1652 = vmatpush1.msra.mxu0 %v1571
  %1653 = vmatprep.subr.mxu0 0.0
  %1654 = vmatpush1.msra.mxu0 %v1570
  %1655 = vmatprep.subr.mxu0 0.0
  %1656 = vmatpush1.msra.mxu0 %v1569
  %1657 = vmatprep.subr.mxu0 0.0
  %1658 = vmatpush1.msra.mxu0 %v1568
  %1659 = vmatprep.subr.mxu0 0.0
  %1660 = vmatpush2.msra.mxu0 %v1599
  %1661 = vmatprep.subr.mxu0 0.0
  %1662 = vmatpush2.msra.mxu0 %v1598
  %1663 = vmatprep.subr.mxu0 0.0
  %1664 = vmatpush2.msra.mxu0 %v1597
  %1665 = vmatprep.subr.mxu0 0.0
  %1666 = vmatpush2.msra.mxu0 %v1596
  %1667 = vmatprep.subr.mxu0 0.0
  %1668 = vmatpush2.msra.mxu0 %v1595
  %1669 = vmatprep.subr.mxu0 0.0
  %1670 = vmatpush2.msra.mxu0 %v1594
  %1671 = vmatprep.subr.mxu0 0.0
  %1672 = vmatpush2.msra.mxu0 %v1593
  %1673 = vmatprep.subr.mxu0 0.0
  %1674 = vmatpush2.msra.mxu0 %v1592
  %1675 = vmatprep.subr.mxu0 0.0
  %1676 = vmatpush2.msra.mxu0 %v1591
  %1677 = vmatprep.subr.mxu0 0.0
  %1678 = vmatpush2.msra.mxu0 %v1590
  %1679 = vmatprep.subr.mxu0 0.0
  %1680 = vmatpush2.msra.mxu0 %v1589
  %1681 = vmatprep.subr.mxu0 0.0
  %1682 = vmatpush2.msra.mxu0 %v1588
  %1683 = vmatprep.subr.mxu0 0.0
  %1684 = vmatpush2.msra.mxu0 %v1587
  %1685 = vmatprep.subr.mxu0 0.0
  %1686 = vmatpush2.msra.mxu0 %v1586
  %1687 = vmatprep.subr.mxu0 0.0
  %1688 = vmatpush2.msra.mxu0 %v1585
  %1689 = vmatprep.subr.mxu0 0.0
  %1690 = vmatpush2.msra.mxu0 %v1584
  %1691 = vmatprep.mubr.f32.mxu0 %v1434
  %1692 = vmatmul.mubr.f32.gmra.mxu0 %v1433
  %v1693 = vpop.f32.mrf.mxu0
  %v1694 = vadd.f32 0.0, %v1693
  %v1695 = vpop.f32.mrf.mxu0
  %1696 = vdwg.mxu0
  %1697 = vmatprep.subr.mxu0 0.0
  %1698 = vmatpush1.msra.mxu0 %v1583
  %1699 = vmatprep.subr.mxu0 0.0
  %1700 = vmatpush1.msra.mxu0 %v1582
  %1701 = vmatprep.subr.mxu0 0.0
  %1702 = vmatpush1.msra.mxu0 %v1581
  %1703 = vmatprep.subr.mxu0 0.0
  %1704 = vmatpush1.msra.mxu0 %v1580
  %1705 = vmatprep.subr.mxu0 0.0
  %1706 = vmatpush1.msra.mxu0 %v1579
  %1707 = vmatprep.subr.mxu0 0.0
  %1708 = vmatpush1.msra.mxu0 %v1578
  %1709 = vmatprep.subr.mxu0 0.0
  %1710 = vmatpush1.msra.mxu0 %v1577
  %1711 = vmatprep.subr.mxu0 0.0
  %1712 = vmatpush1.msra.mxu0 %v1576
  %1713 = vmatprep.subr.mxu0 0.0
  %1714 = vmatpush1.msra.mxu0 %v1575
  %1715 = vmatprep.subr.mxu0 0.0
  %1716 = vmatpush1.msra.mxu0 %v1574
  %1717 = vmatprep.subr.mxu0 0.0
  %1718 = vmatpush1.msra.mxu0 %v1573
  %1719 = vmatprep.subr.mxu0 0.0
  %1720 = vmatpush1.msra.mxu0 %v1572
  %1721 = vmatprep.subr.mxu0 0.0
  %1722 = vmatpush1.msra.mxu0 %v1571
  %1723 = vmatprep.subr.mxu0 0.0
  %1724 = vmatpush1.msra.mxu0 %v1570
  %1725 = vmatprep.subr.mxu0 0.0
  %1726 = vmatpush1.msra.mxu0 %v1569
  %1727 = vmatprep.subr.mxu0 0.0
  %1728 = vmatpush1.msra.mxu0 %v1568
  %1729 = vmatprep.subr.mxu0 0.0
  %1730 = vmatpush2.msra.mxu0 %v1599
  %1731 = vmatprep.subr.mxu0 0.0
  %1732 = vmatpush2.msra.mxu0 %v1598
  %1733 = vmatprep.subr.mxu0 0.0
  %1734 = vmatpush2.msra.mxu0 %v1597
  %1735 = vmatprep.subr.mxu0 0.0
  %1736 = vmatpush2.msra.mxu0 %v1596
  %1737 = vmatprep.subr.mxu0 0.0
  %1738 = vmatpush2.msra.mxu0 %v1595
  %1739 = vmatprep.subr.mxu0 0.0
  %1740 = vmatpush2.msra.mxu0 %v1594
  %1741 = vmatprep.subr.mxu0 0.0
  %1742 = vmatpush2.msra.mxu0 %v1593
  %1743 = vmatprep.subr.mxu0 0.0
  %1744 = vmatpush2.msra.mxu0 %v1592
  %1745 = vmatprep.subr.mxu0 0.0
  %1746 = vmatpush2.msra.mxu0 %v1591
  %1747 = vmatprep.subr.mxu0 0.0
  %1748 = vmatpush2.msra.mxu0 %v1590
  %1749 = vmatprep.subr.mxu0 0.0
  %1750 = vmatpush2.msra.mxu0 %v1589
  %1751 = vmatprep.subr.mxu0 0.0
  %1752 = vmatpush2.msra.mxu0 %v1588
  %1753 = vmatprep.subr.mxu0 0.0
  %1754 = vmatpush2.msra.mxu0 %v1587
  %1755 = vmatprep.subr.mxu0 0.0
  %1756 = vmatpush2.msra.mxu0 %v1586
  %1757 = vmatprep.subr.mxu0 0.0
  %1758 = vmatpush2.msra.mxu0 %v1585
  %1759 = vmatprep.subr.mxu0 0.0
  %1760 = vmatpush2.msra.mxu0 %v1584
  %1761 = vmatprep.mubr.f32.mxu0 %v1436
  %1762 = vmatmul.mubr.f32.gmra.mxu0 %v1435
  %v1763 = vpop.f32.mrf.mxu0
  %v1764 = vadd.f32 0.0, %v1763
  %v1765 = vpop.f32.mrf.mxu0
  %1766 = vdwg.mxu0
  %v1767 = vmul.f32 %v1694, 0.0078125
  %v1768 = vmul.f32 %v1764, 0.0078125
  %v1769 = vmul.f32 %v1767, %v1767
  %v1770 = vsub.f32 %v1768, %v1769
  %v1771 = vmax.f32 %v1770, 0.0
  %v1772 = vld [vmem:[%s2] sm:$0x1]
  %v1773 = vadd.f32 %v1771, 1e-05
  %v1774 = vrsqrt.pop %v1773
  %v1775 = vmul.f32 %v1772, %v1774
  %v1776 = vld [vmem:[%s3] sm:$0x1]
  %v1777 = vmul.f32 %v1767, %v1775
  %v1778 = vsub.f32 %v1776, %v1777
  %v1780 = vsel %vm118, %v1775, 0
  %1782 = vmatprep.subr.mxu0 0.0
  %1783 = vmatpush1.msra.mxu0 0.0
  %1784 = vmatprep.subr.mxu0 0.0
  %1785 = vmatpush1.msra.mxu0 0.0
  %1786 = vmatprep.subr.mxu0 0.0
  %1787 = vmatpush1.msra.mxu0 0.0
  %1788 = vmatprep.subr.mxu0 0.0
  %1789 = vmatpush1.msra.mxu0 0.0
  %1790 = vmatprep.subr.mxu0 0.0
  %1791 = vmatpush1.msra.mxu0 0.0
  %1792 = vmatprep.subr.mxu0 0.0
  %1793 = vmatpush1.msra.mxu0 0.0
  %1794 = vmatprep.subr.mxu0 0.0
  %1795 = vmatpush1.msra.mxu0 0.0
  %1796 = vmatprep.subr.mxu0 0.0
  %1797 = vmatpush1.msra.mxu0 0.0
  %1798 = vmatprep.subr.mxu0 0.0
  %1799 = vmatpush1.msra.mxu0 0.0
  %1800 = vmatprep.subr.mxu0 0.0
  %1801 = vmatpush1.msra.mxu0 0.0
  %1802 = vmatprep.subr.mxu0 0.0
  %1803 = vmatpush1.msra.mxu0 0.0
  %1804 = vmatprep.subr.mxu0 0.0
  %1805 = vmatpush1.msra.mxu0 0.0
  %1806 = vmatprep.subr.mxu0 %v1626
  %1807 = vmatpush1.msra.mxu0 %v1625
  %1808 = vmatprep.subr.mxu0 %v1624
  %1809 = vmatpush1.msra.mxu0 %v1623
  %1810 = vmatprep.subr.mxu0 %v1622
  %1811 = vmatpush1.msra.mxu0 %v1621
  %1812 = vmatprep.subr.mxu0 %v1620
  %1813 = vmatpush1.msra.mxu0 %v1619
  %1814 = vmatprep.subr.mxu0 0.0
  %1815 = vmatpush2.msra.mxu0 0.0
  %1816 = vmatprep.subr.mxu0 0.0
  %1817 = vmatpush2.msra.mxu0 0.0
  %1818 = vmatprep.subr.mxu0 0.0
  %1819 = vmatpush2.msra.mxu0 0.0
  %1820 = vmatprep.subr.mxu0 0.0
  %1821 = vmatpush2.msra.mxu0 0.0
  %1822 = vmatprep.subr.mxu0 0.0
  %1823 = vmatpush2.msra.mxu0 0.0
  %1824 = vmatprep.subr.mxu0 0.0
  %1825 = vmatpush2.msra.mxu0 0.0
  %1826 = vmatprep.subr.mxu0 0.0
  %1827 = vmatpush2.msra.mxu0 0.0
  %1828 = vmatprep.subr.mxu0 0.0
  %1829 = vmatpush2.msra.mxu0 0.0
  %1830 = vmatprep.subr.mxu0 0.0
  %1831 = vmatpush2.msra.mxu0 0.0
  %1832 = vmatprep.subr.mxu0 0.0
  %1833 = vmatpush2.msra.mxu0 0.0
  %1834 = vmatprep.subr.mxu0 0.0
  %1835 = vmatpush2.msra.mxu0 0.0
  %1836 = vmatprep.subr.mxu0 0.0
  %1837 = vmatpush2.msra.mxu0 0.0
  %1838 = vmatprep.subr.mxu0 0.0
  %1839 = vmatpush2.msra.mxu0 0.0
  %1840 = vmatprep.subr.mxu0 0.0
  %1841 = vmatpush2.msra.mxu0 0.0
  %1842 = vmatprep.subr.mxu0 0.0
  %1843 = vmatpush2.msra.mxu0 0.0
  %1844 = vmatprep.subr.mxu0 0.0
  %1845 = vmatpush2.msra.mxu0 0.0
  %1846 = vmatprep.mubr.f32.mxu0 0.0
  %1847 = vmatmul.mubr.f32.gmra.mxu0 %v1780
  %v1848 = vpop.f32.mrf.mxu0
  %v1849 = vadd.f32 0.0, %v1848
  %v1850 = vpop.f32.mrf.mxu0
  %v1851 = vadd.f32 0.0, %v1850
  %1852 = vdwg.mxu0
  %v1854 = vsel %vm118, %v1778, 0
  %1856 = vmatprep.subr.mxu0 0.0
  %1857 = vmatpush1.msra.mxu0 0.0
  %1858 = vmatprep.subr.mxu0 0.0
  %1859 = vmatpush1.msra.mxu0 0.0
  %1860 = vmatprep.subr.mxu0 0.0
  %1861 = vmatpush1.msra.mxu0 0.0
  %1862 = vmatprep.subr.mxu0 0.0
  %1863 = vmatpush1.msra.mxu0 0.0
  %1864 = vmatprep.subr.mxu0 0.0
  %1865 = vmatpush1.msra.mxu0 0.0
  %1866 = vmatprep.subr.mxu0 0.0
  %1867 = vmatpush1.msra.mxu0 0.0
  %1868 = vmatprep.subr.mxu0 0.0
  %1869 = vmatpush1.msra.mxu0 0.0
  %1870 = vmatprep.subr.mxu0 0.0
  %1871 = vmatpush1.msra.mxu0 0.0
  %1872 = vmatprep.subr.mxu0 0.0
  %1873 = vmatpush1.msra.mxu0 0.0
  %1874 = vmatprep.subr.mxu0 0.0
  %1875 = vmatpush1.msra.mxu0 0.0
  %1876 = vmatprep.subr.mxu0 0.0
  %1877 = vmatpush1.msra.mxu0 0.0
  %1878 = vmatprep.subr.mxu0 0.0
  %1879 = vmatpush1.msra.mxu0 0.0
  %1880 = vmatprep.subr.mxu0 %v1626
  %1881 = vmatpush1.msra.mxu0 %v1625
  %1882 = vmatprep.subr.mxu0 %v1624
  %1883 = vmatpush1.msra.mxu0 %v1623
  %1884 = vmatprep.subr.mxu0 %v1622
  %1885 = vmatpush1.msra.mxu0 %v1621
  %1886 = vmatprep.subr.mxu0 %v1620
  %1887 = vmatpush1.msra.mxu0 %v1619
  %1888 = vmatprep.subr.mxu0 0.0
  %1889 = vmatpush2.msra.mxu0 0.0
  %1890 = vmatprep.subr.mxu0 0.0
  %1891 = vmatpush2.msra.mxu0 0.0
  %1892 = vmatprep.subr.mxu0 0.0
  %1893 = vmatpush2.msra.mxu0 0.0
  %1894 = vmatprep.subr.mxu0 0.0
  %1895 = vmatpush2.msra.mxu0 0.0
  %1896 = vmatprep.subr.mxu0 0.0
  %1897 = vmatpush2.msra.mxu0 0.0
  %1898 = vmatprep.subr.mxu0 0.0
  %1899 = vmatpush2.msra.mxu0 0.0
  %1900 = vmatprep.subr.mxu0 0.0
  %1901 = vmatpush2.msra.mxu0 0.0
  %1902 = vmatprep.subr.mxu0 0.0
  %1903 = vmatpush2.msra.mxu0 0.0
  %1904 = vmatprep.subr.mxu0 0.0
  %1905 = vmatpush2.msra.mxu0 0.0
  %1906 = vmatprep.subr.mxu0 0.0
  %1907 = vmatpush2.msra.mxu0 0.0
  %1908 = vmatprep.subr.mxu0 0.0
  %1909 = vmatpush2.msra.mxu0 0.0
  %1910 = vmatprep.subr.mxu0 0.0
  %1911 = vmatpush2.msra.mxu0 0.0
  %1912 = vmatprep.subr.mxu0 0.0
  %1913 = vmatpush2.msra.mxu0 0.0
  %1914 = vmatprep.subr.mxu0 0.0
  %1915 = vmatpush2.msra.mxu0 0.0
  %1916 = vmatprep.subr.mxu0 0.0
  %1917 = vmatpush2.msra.mxu0 0.0
  %1918 = vmatprep.subr.mxu0 0.0
  %1919 = vmatpush2.msra.mxu0 0.0
  %1920 = vmatprep.mubr.f32.mxu0 0.0
  %1921 = vmatmul.mubr.f32.gmra.mxu0 %v1854
  %v1922 = vpop.f32.mrf.mxu0
  %v1923 = vadd.f32 0.0, %v1922
  %v1924 = vpop.f32.mrf.mxu0
  %v1925 = vadd.f32 0.0, %v1924
  %1926 = vdwg.mxu0
  %v1927 = vlaneseq
  %v1928 = vshrl.u32 %v1927, 7
  %v1929 = vsub.s32 0, %v1928
  %v1930 = vrot.slane %v1849, %v1929
  %v1931 = vlaneseq
  %v1932 = vshrl.u32 %v1931, 7
  %v1933 = vsub.s32 0, %v1932
  %v1934 = vrot.slane %v1851, %v1933
  %v1935 = vmul.f32 %v221, %v1930
  %v1936 = vmul.f32 %v223, %v1934
  %v1937 = vlaneseq
  %v1938 = vshrl.u32 %v1937, 7
  %v1939 = vsub.s32 0, %v1938
  %v1940 = vrot.slane %v1923, %v1939
  %v1941 = vlaneseq
  %v1942 = vshrl.u32 %v1941, 7
  %v1943 = vsub.s32 0, %v1942
  %v1944 = vrot.slane %v1925, %v1943
  %v1945 = vadd.f32 %v1935, %v1940
  %v1946 = vadd.f32 %v1936, %v1944
  %v1947 = vmax.f32 %v1945, 0.0
  %v1948 = vmax.f32 %v1946, 0.0
  %v1949 = vmul.f32 %v380, %v1930
  %v1950 = vmul.f32 %v381, %v1934
  %v1951 = vadd.f32 %v1949, %v1940
  %v1952 = vadd.f32 %v1950, %v1944
  %v1953 = vmax.f32 %v1951, 0.0
  %v1954 = vmax.f32 %v1952, 0.0
  %v1955 = vmul.f32 %v511, %v1930
  %v1956 = vmul.f32 %v512, %v1934
  %v1957 = vadd.f32 %v1955, %v1940
  %v1958 = vadd.f32 %v1956, %v1944
  %v1959 = vmax.f32 %v1957, 0.0
  %v1960 = vmax.f32 %v1958, 0.0
  %v1961 = vmul.f32 %v642, %v1930
  %v1962 = vmul.f32 %v643, %v1934
  %v1963 = vadd.f32 %v1961, %v1940
  %v1964 = vadd.f32 %v1962, %v1944
  %v1965 = vmax.f32 %v1963, 0.0
  %v1966 = vmax.f32 %v1964, 0.0
  %v1967 = vmul.f32 %v773, %v1930
  %v1968 = vmul.f32 %v774, %v1934
  %v1969 = vadd.f32 %v1967, %v1940
  %v1970 = vadd.f32 %v1968, %v1944
  %v1971 = vmax.f32 %v1969, 0.0
  %v1972 = vmax.f32 %v1970, 0.0
  %v1973 = vmul.f32 %v904, %v1930
  %v1974 = vmul.f32 %v905, %v1934
  %v1975 = vadd.f32 %v1973, %v1940
  %v1976 = vadd.f32 %v1974, %v1944
  %v1977 = vmax.f32 %v1975, 0.0
  %v1978 = vmax.f32 %v1976, 0.0
  %v1979 = vmul.f32 %v1035, %v1930
  %v1980 = vmul.f32 %v1036, %v1934
  %v1981 = vadd.f32 %v1979, %v1940
  %v1982 = vadd.f32 %v1980, %v1944
  %v1983 = vmax.f32 %v1981, 0.0
  %v1984 = vmax.f32 %v1982, 0.0
  %v1985 = vmul.f32 %v1166, %v1930
  %v1986 = vmul.f32 %v1167, %v1934
  %v1987 = vadd.f32 %v1985, %v1940
  %v1988 = vadd.f32 %v1986, %v1944
  %v1989 = vmax.f32 %v1987, 0.0
  %v1990 = vmax.f32 %v1988, 0.0
  %v1991 = vpack.c.bf16 %v1947, %v1947
  %v1992 = vpack.c.bf16 %v1948, %v1948
  %v1993 = vpack.c.bf16 %v1953, %v1953
  %v1994 = vpack.c.bf16 %v1954, %v1954
  %v1995 = vpack.c.bf16 %v1959, %v1959
  %v1996 = vpack.c.bf16 %v1960, %v1960
  %v1997 = vpack.c.bf16 %v1965, %v1965
  %v1998 = vpack.c.bf16 %v1966, %v1966
  %v1999 = vpack.c.bf16 %v1971, %v1971
  %v2000 = vpack.c.bf16 %v1972, %v1972
  %v2001 = vpack.c.bf16 %v1977, %v1977
  %v2002 = vpack.c.bf16 %v1978, %v1978
  %v2003 = vpack.c.bf16 %v1983, %v1983
  %v2004 = vpack.c.bf16 %v1984, %v1984
  %v2005 = vpack.c.bf16 %v1989, %v1989
  %v2006 = vpack.c.bf16 %v1990, %v1990
  %s2007 = scalar_lea.vmem %s4, 256
  %v2008 = vld [vmem:[%s2007] sm:$0xff]
  %v2009 = vld [vmem:[%s2007 + $0x8] sm:$0xff]
  %v2010 = vld [vmem:[%s2007 + $0x10] sm:$0xff]
  %v2011 = vld [vmem:[%s2007 + $0x18] sm:$0xff]
  %v2012 = vld [vmem:[%s2007 + $0x20] sm:$0xff]
  %v2013 = vld [vmem:[%s2007 + $0x28] sm:$0xff]
  %v2014 = vld [vmem:[%s2007 + $0x30] sm:$0xff]
  %v2015 = vld [vmem:[%s2007 + $0x38] sm:$0xff]
  %v2016 = vld [vmem:[%s2007 + $0x40] sm:$0xff]
  %v2017 = vld [vmem:[%s2007 + $0x48] sm:$0xff]
  %v2018 = vld [vmem:[%s2007 + $0x50] sm:$0xff]
  %v2019 = vld [vmem:[%s2007 + $0x58] sm:$0xff]
  %v2020 = vld [vmem:[%s2007 + $0x60] sm:$0xff]
  %v2021 = vld [vmem:[%s2007 + $0x68] sm:$0xff]
  %v2022 = vld [vmem:[%s2007 + $0x70] sm:$0xff]
  %v2023 = vld [vmem:[%s2007 + $0x78] sm:$0xff]
  %v2024 = vld [vmem:[%s2007 + $0x80] sm:$0xff]
  %v2025 = vld [vmem:[%s2007 + $0x88] sm:$0xff]
  %v2026 = vld [vmem:[%s2007 + $0x90] sm:$0xff]
  %v2027 = vld [vmem:[%s2007 + $0x98] sm:$0xff]
  %v2028 = vld [vmem:[%s2007 + $0xa0] sm:$0xff]
  %v2029 = vld [vmem:[%s2007 + $0xa8] sm:$0xff]
  %v2030 = vld [vmem:[%s2007 + $0xb0] sm:$0xff]
  %v2031 = vld [vmem:[%s2007 + $0xb8] sm:$0xff]
  %v2032 = vld [vmem:[%s2007 + $0xc0] sm:$0xff]
  %v2033 = vld [vmem:[%s2007 + $0xc8] sm:$0xff]
  %v2034 = vld [vmem:[%s2007 + $0xd0] sm:$0xff]
  %v2035 = vld [vmem:[%s2007 + $0xd8] sm:$0xff]
  %v2036 = vld [vmem:[%s2007 + $0xe0] sm:$0xff]
  %v2037 = vld [vmem:[%s2007 + $0xe8] sm:$0xff]
  %v2038 = vld [vmem:[%s2007 + $0xf0] sm:$0xff]
  %v2039 = vld [vmem:[%s2007 + $0xf8] sm:$0xff]
  %s2040 = scalar_lea.vmem %s4, 512
  %v2041 = vld [vmem:[%s2040] sm:$0xff]
  %v2042 = vld [vmem:[%s2040 + $0x8] sm:$0xff]
  %v2043 = vld [vmem:[%s2040 + $0x10] sm:$0xff]
  %v2044 = vld [vmem:[%s2040 + $0x18] sm:$0xff]
  %v2045 = vld [vmem:[%s2040 + $0x20] sm:$0xff]
  %v2046 = vld [vmem:[%s2040 + $0x28] sm:$0xff]
  %v2047 = vld [vmem:[%s2040 + $0x30] sm:$0xff]
  %v2048 = vld [vmem:[%s2040 + $0x38] sm:$0xff]
  %v2049 = vld [vmem:[%s2040 + $0x40] sm:$0xff]
  %v2050 = vld [vmem:[%s2040 + $0x48] sm:$0xff]
  %v2051 = vld [vmem:[%s2040 + $0x50] sm:$0xff]
  %v2052 = vld [vmem:[%s2040 + $0x58] sm:$0xff]
  %v2053 = vld [vmem:[%s2040 + $0x60] sm:$0xff]
  %v2054 = vld [vmem:[%s2040 + $0x68] sm:$0xff]
  %v2055 = vld [vmem:[%s2040 + $0x70] sm:$0xff]
  %v2056 = vld [vmem:[%s2040 + $0x78] sm:$0xff]
  %v2057 = vld [vmem:[%s2040 + $0x80] sm:$0xff]
  %v2058 = vld [vmem:[%s2040 + $0x88] sm:$0xff]
  %v2059 = vld [vmem:[%s2040 + $0x90] sm:$0xff]
  %v2060 = vld [vmem:[%s2040 + $0x98] sm:$0xff]
  %v2061 = vld [vmem:[%s2040 + $0xa0] sm:$0xff]
  %v2062 = vld [vmem:[%s2040 + $0xa8] sm:$0xff]
  %v2063 = vld [vmem:[%s2040 + $0xb0] sm:$0xff]
  %v2064 = vld [vmem:[%s2040 + $0xb8] sm:$0xff]
  %v2065 = vld [vmem:[%s2040 + $0xc0] sm:$0xff]
  %v2066 = vld [vmem:[%s2040 + $0xc8] sm:$0xff]
  %v2067 = vld [vmem:[%s2040 + $0xd0] sm:$0xff]
  %v2068 = vld [vmem:[%s2040 + $0xd8] sm:$0xff]
  %v2069 = vld [vmem:[%s2040 + $0xe0] sm:$0xff]
  %v2070 = vld [vmem:[%s2040 + $0xe8] sm:$0xff]
  %v2071 = vld [vmem:[%s2040 + $0xf0] sm:$0xff]
  %v2072 = vld [vmem:[%s2040 + $0xf8] sm:$0xff]
  %v2105 = vunpack.c.l.b16 %v2041
  %v2106 = vunpack.c.h.b16 %v2041
  %v2107 = vunpack.c.l.b16 %v2042
  %v2108 = vunpack.c.h.b16 %v2042
  %v2109 = vunpack.c.l.b16 %v2043
  %v2110 = vunpack.c.h.b16 %v2043
  %v2111 = vunpack.c.l.b16 %v2044
  %v2112 = vunpack.c.h.b16 %v2044
  %v2113 = vunpack.c.l.b16 %v2045
  %v2114 = vunpack.c.h.b16 %v2045
  %v2115 = vunpack.c.l.b16 %v2046
  %v2116 = vunpack.c.h.b16 %v2046
  %v2117 = vunpack.c.l.b16 %v2047
  %v2118 = vunpack.c.h.b16 %v2047
  %v2119 = vunpack.c.l.b16 %v2048
  %v2120 = vunpack.c.h.b16 %v2048
  %v2121 = vunpack.c.l.b16 %v2049
  %v2122 = vunpack.c.h.b16 %v2049
  %v2123 = vunpack.c.l.b16 %v2050
  %v2124 = vunpack.c.h.b16 %v2050
  %v2125 = vunpack.c.l.b16 %v2051
  %v2126 = vunpack.c.h.b16 %v2051
  %v2127 = vunpack.c.l.b16 %v2052
  %v2128 = vunpack.c.h.b16 %v2052
  %v2129 = vunpack.c.l.b16 %v2053
  %v2130 = vunpack.c.h.b16 %v2053
  %v2131 = vunpack.c.l.b16 %v2054
  %v2132 = vunpack.c.h.b16 %v2054
  %v2133 = vunpack.c.l.b16 %v2055
  %v2134 = vunpack.c.h.b16 %v2055
  %v2135 = vunpack.c.l.b16 %v2056
  %v2136 = vunpack.c.h.b16 %v2056
  %v2137 = vunpack.c.l.b16 %v2057
  %v2138 = vunpack.c.h.b16 %v2057
  %v2139 = vunpack.c.l.b16 %v2058
  %v2140 = vunpack.c.h.b16 %v2058
  %v2141 = vunpack.c.l.b16 %v2059
  %v2142 = vunpack.c.h.b16 %v2059
  %v2143 = vunpack.c.l.b16 %v2060
  %v2144 = vunpack.c.h.b16 %v2060
  %v2145 = vunpack.c.l.b16 %v2061
  %v2146 = vunpack.c.h.b16 %v2061
  %v2147 = vunpack.c.l.b16 %v2062
  %v2148 = vunpack.c.h.b16 %v2062
  %v2149 = vunpack.c.l.b16 %v2063
  %v2150 = vunpack.c.h.b16 %v2063
  %v2151 = vunpack.c.l.b16 %v2064
  %v2152 = vunpack.c.h.b16 %v2064
  %v2153 = vunpack.c.l.b16 %v2065
  %v2154 = vunpack.c.h.b16 %v2065
  %v2155 = vunpack.c.l.b16 %v2066
  %v2156 = vunpack.c.h.b16 %v2066
  %v2157 = vunpack.c.l.b16 %v2067
  %v2158 = vunpack.c.h.b16 %v2067
  %v2159 = vunpack.c.l.b16 %v2068
  %v2160 = vunpack.c.h.b16 %v2068
  %v2161 = vunpack.c.l.b16 %v2069
  %v2162 = vunpack.c.h.b16 %v2069
  %v2163 = vunpack.c.l.b16 %v2070
  %v2164 = vunpack.c.h.b16 %v2070
  %v2165 = vunpack.c.l.b16 %v2071
  %v2166 = vunpack.c.h.b16 %v2071
  %v2167 = vunpack.c.l.b16 %v2072
  %v2168 = vunpack.c.h.b16 %v2072
  %v2169 = vpack.c.b16 %v2107, %v2105
  %v2170 = vpack.c.b16 %v2108, %v2106
  %v2171 = vpack.c.b16 %v2111, %v2109
  %v2172 = vpack.c.b16 %v2112, %v2110
  %v2173 = vpack.c.b16 %v2115, %v2113
  %v2174 = vpack.c.b16 %v2116, %v2114
  %v2175 = vpack.c.b16 %v2119, %v2117
  %v2176 = vpack.c.b16 %v2120, %v2118
  %v2177 = vpack.c.b16 %v2123, %v2121
  %v2178 = vpack.c.b16 %v2124, %v2122
  %v2179 = vpack.c.b16 %v2127, %v2125
  %v2180 = vpack.c.b16 %v2128, %v2126
  %v2181 = vpack.c.b16 %v2131, %v2129
  %v2182 = vpack.c.b16 %v2132, %v2130
  %v2183 = vpack.c.b16 %v2135, %v2133
  %v2184 = vpack.c.b16 %v2136, %v2134
  %v2185 = vpack.c.b16 %v2139, %v2137
  %v2186 = vpack.c.b16 %v2140, %v2138
  %v2187 = vpack.c.b16 %v2143, %v2141
  %v2188 = vpack.c.b16 %v2144, %v2142
  %v2189 = vpack.c.b16 %v2147, %v2145
  %v2190 = vpack.c.b16 %v2148, %v2146
  %v2191 = vpack.c.b16 %v2151, %v2149
  %v2192 = vpack.c.b16 %v2152, %v2150
  %v2193 = vpack.c.b16 %v2155, %v2153
  %v2194 = vpack.c.b16 %v2156, %v2154
  %v2195 = vpack.c.b16 %v2159, %v2157
  %v2196 = vpack.c.b16 %v2160, %v2158
  %v2197 = vpack.c.b16 %v2163, %v2161
  %v2198 = vpack.c.b16 %v2164, %v2162
  %v2199 = vpack.c.b16 %v2167, %v2165
  %v2200 = vpack.c.b16 %v2168, %v2166
  %2233 = vmatprep.subr.bf16.mxu0 %v2184
  %2234 = vmatpush1.bf16.msra.mxu0 %v2183
  %2235 = vmatprep.subr.bf16.mxu0 %v2182
  %2236 = vmatpush1.bf16.msra.mxu0 %v2181
  %2237 = vmatprep.subr.bf16.mxu0 %v2180
  %2238 = vmatpush1.bf16.msra.mxu0 %v2179
  %2239 = vmatprep.subr.bf16.mxu0 %v2178
  %2240 = vmatpush1.bf16.msra.mxu0 %v2177
  %2241 = vmatprep.subr.bf16.mxu0 %v2176
  %2242 = vmatpush1.bf16.msra.mxu0 %v2175
  %2243 = vmatprep.subr.bf16.mxu0 %v2174
  %2244 = vmatpush1.bf16.msra.mxu0 %v2173
  %2245 = vmatprep.subr.bf16.mxu0 %v2172
  %2246 = vmatpush1.bf16.msra.mxu0 %v2171
  %2247 = vmatprep.subr.bf16.mxu0 %v2170
  %2248 = vmatpush1.bf16.msra.mxu0 %v2169
  %2249 = vmatprep.subr.bf16.mxu0 %v2200
  %2250 = vmatpush2.bf16.msra.mxu0 %v2199
  %2251 = vmatprep.subr.bf16.mxu0 %v2198
  %2252 = vmatpush2.bf16.msra.mxu0 %v2197
  %2253 = vmatprep.subr.bf16.mxu0 %v2196
  %2254 = vmatpush2.bf16.msra.mxu0 %v2195
  %2255 = vmatprep.subr.bf16.mxu0 %v2194
  %2256 = vmatpush2.bf16.msra.mxu0 %v2193
  %2257 = vmatprep.subr.bf16.mxu0 %v2192
  %2258 = vmatpush2.bf16.msra.mxu0 %v2191
  %2259 = vmatprep.subr.bf16.mxu0 %v2190
  %2260 = vmatpush2.bf16.msra.mxu0 %v2189
  %2261 = vmatprep.subr.bf16.mxu0 %v2188
  %2262 = vmatpush2.bf16.msra.mxu0 %v2187
  %2263 = vmatprep.subr.bf16.mxu0 %v2186
  %2264 = vmatpush2.bf16.msra.mxu0 %v2185
  %2265 = vmatprep.mubr.bf16.mxu0 %v1994
  %2266 = vmatmul.mubr.bf16.gmra.mxu0 %v1993
  %v2267 = vpop.f32.mrf.mxu0
  %v2268 = vadd.f32 0.0, %v2267
  %v2269 = vpop.f32.mrf.mxu0
  %v2270 = vadd.f32 0.0, %v2269
  %v2271 = vpop.f32.mrf.mxu0
  %v2272 = vpop.f32.mrf.mxu0
  %2273 = vdwg.mxu0
  %v2306 = vunpack.c.l.b16 %v2008
  %v2307 = vunpack.c.h.b16 %v2008
  %v2308 = vunpack.c.l.b16 %v2009
  %v2309 = vunpack.c.h.b16 %v2009
  %v2310 = vunpack.c.l.b16 %v2010
  %v2311 = vunpack.c.h.b16 %v2010
  %v2312 = vunpack.c.l.b16 %v2011
  %v2313 = vunpack.c.h.b16 %v2011
  %v2314 = vunpack.c.l.b16 %v2012
  %v2315 = vunpack.c.h.b16 %v2012
  %v2316 = vunpack.c.l.b16 %v2013
  %v2317 = vunpack.c.h.b16 %v2013
  %v2318 = vunpack.c.l.b16 %v2014
  %v2319 = vunpack.c.h.b16 %v2014
  %v2320 = vunpack.c.l.b16 %v2015
  %v2321 = vunpack.c.h.b16 %v2015
  %v2322 = vunpack.c.l.b16 %v2016
  %v2323 = vunpack.c.h.b16 %v2016
  %v2324 = vunpack.c.l.b16 %v2017
  %v2325 = vunpack.c.h.b16 %v2017
  %v2326 = vunpack.c.l.b16 %v2018
  %v2327 = vunpack.c.h.b16 %v2018
  %v2328 = vunpack.c.l.b16 %v2019
  %v2329 = vunpack.c.h.b16 %v2019
  %v2330 = vunpack.c.l.b16 %v2020
  %v2331 = vunpack.c.h.b16 %v2020
  %v2332 = vunpack.c.l.b16 %v2021
  %v2333 = vunpack.c.h.b16 %v2021
  %v2334 = vunpack.c.l.b16 %v2022
  %v2335 = vunpack.c.h.b16 %v2022
  %v2336 = vunpack.c.l.b16 %v2023
  %v2337 = vunpack.c.h.b16 %v2023
  %v2338 = vunpack.c.l.b16 %v2024
  %v2339 = vunpack.c.h.b16 %v2024
  %v2340 = vunpack.c.l.b16 %v2025
  %v2341 = vunpack.c.h.b16 %v2025
  %v2342 = vunpack.c.l.b16 %v2026
  %v2343 = vunpack.c.h.b16 %v2026
  %v2344 = vunpack.c.l.b16 %v2027
  %v2345 = vunpack.c.h.b16 %v2027
  %v2346 = vunpack.c.l.b16 %v2028
  %v2347 = vunpack.c.h.b16 %v2028
  %v2348 = vunpack.c.l.b16 %v2029
  %v2349 = vunpack.c.h.b16 %v2029
  %v2350 = vunpack.c.l.b16 %v2030
  %v2351 = vunpack.c.h.b16 %v2030
  %v2352 = vunpack.c.l.b16 %v2031
  %v2353 = vunpack.c.h.b16 %v2031
  %v2354 = vunpack.c.l.b16 %v2032
  %v2355 = vunpack.c.h.b16 %v2032
  %v2356 = vunpack.c.l.b16 %v2033
  %v2357 = vunpack.c.h.b16 %v2033
  %v2358 = vunpack.c.l.b16 %v2034
  %v2359 = vunpack.c.h.b16 %v2034
  %v2360 = vunpack.c.l.b16 %v2035
  %v2361 = vunpack.c.h.b16 %v2035
  %v2362 = vunpack.c.l.b16 %v2036
  %v2363 = vunpack.c.h.b16 %v2036
  %v2364 = vunpack.c.l.b16 %v2037
  %v2365 = vunpack.c.h.b16 %v2037
  %v2366 = vunpack.c.l.b16 %v2038
  %v2367 = vunpack.c.h.b16 %v2038
  %v2368 = vunpack.c.l.b16 %v2039
  %v2369 = vunpack.c.h.b16 %v2039
  %v2370 = vpack.c.b16 %v2308, %v2306
  %v2371 = vpack.c.b16 %v2309, %v2307
  %v2372 = vpack.c.b16 %v2312, %v2310
  %v2373 = vpack.c.b16 %v2313, %v2311
  %v2374 = vpack.c.b16 %v2316, %v2314
  %v2375 = vpack.c.b16 %v2317, %v2315
  %v2376 = vpack.c.b16 %v2320, %v2318
  %v2377 = vpack.c.b16 %v2321, %v2319
  %v2378 = vpack.c.b16 %v2324, %v2322
  %v2379 = vpack.c.b16 %v2325, %v2323
  %v2380 = vpack.c.b16 %v2328, %v2326
  %v2381 = vpack.c.b16 %v2329, %v2327
  %v2382 = vpack.c.b16 %v2332, %v2330
  %v2383 = vpack.c.b16 %v2333, %v2331
  %v2384 = vpack.c.b16 %v2336, %v2334
  %v2385 = vpack.c.b16 %v2337, %v2335
  %v2386 = vpack.c.b16 %v2340, %v2338
  %v2387 = vpack.c.b16 %v2341, %v2339
  %v2388 = vpack.c.b16 %v2344, %v2342
  %v2389 = vpack.c.b16 %v2345, %v2343
  %v2390 = vpack.c.b16 %v2348, %v2346
  %v2391 = vpack.c.b16 %v2349, %v2347
  %v2392 = vpack.c.b16 %v2352, %v2350
  %v2393 = vpack.c.b16 %v2353, %v2351
  %v2394 = vpack.c.b16 %v2356, %v2354
  %v2395 = vpack.c.b16 %v2357, %v2355
  %v2396 = vpack.c.b16 %v2360, %v2358
  %v2397 = vpack.c.b16 %v2361, %v2359
  %v2398 = vpack.c.b16 %v2364, %v2362
  %v2399 = vpack.c.b16 %v2365, %v2363
  %v2400 = vpack.c.b16 %v2368, %v2366
  %v2401 = vpack.c.b16 %v2369, %v2367
  %2434 = vmatprep.subr.bf16.mxu0 %v2385
  %2435 = vmatpush1.bf16.msra.mxu0 %v2384
  %2436 = vmatprep.subr.bf16.mxu0 %v2383
  %2437 = vmatpush1.bf16.msra.mxu0 %v2382
  %2438 = vmatprep.subr.bf16.mxu0 %v2381
  %2439 = vmatpush1.bf16.msra.mxu0 %v2380
  %2440 = vmatprep.subr.bf16.mxu0 %v2379
  %2441 = vmatpush1.bf16.msra.mxu0 %v2378
  %2442 = vmatprep.subr.bf16.mxu0 %v2377
  %2443 = vmatpush1.bf16.msra.mxu0 %v2376
  %2444 = vmatprep.subr.bf16.mxu0 %v2375
  %2445 = vmatpush1.bf16.msra.mxu0 %v2374
  %2446 = vmatprep.subr.bf16.mxu0 %v2373
  %2447 = vmatpush1.bf16.msra.mxu0 %v2372
  %2448 = vmatprep.subr.bf16.mxu0 %v2371
  %2449 = vmatpush1.bf16.msra.mxu0 %v2370
  %2450 = vmatprep.subr.bf16.mxu0 %v2401
  %2451 = vmatpush2.bf16.msra.mxu0 %v2400
  %2452 = vmatprep.subr.bf16.mxu0 %v2399
  %2453 = vmatpush2.bf16.msra.mxu0 %v2398
  %2454 = vmatprep.subr.bf16.mxu0 %v2397
  %2455 = vmatpush2.bf16.msra.mxu0 %v2396
  %2456 = vmatprep.subr.bf16.mxu0 %v2395
  %2457 = vmatpush2.bf16.msra.mxu0 %v2394
  %2458 = vmatprep.subr.bf16.mxu0 %v2393
  %2459 = vmatpush2.bf16.msra.mxu0 %v2392
  %2460 = vmatprep.subr.bf16.mxu0 %v2391
  %2461 = vmatpush2.bf16.msra.mxu0 %v2390
  %2462 = vmatprep.subr.bf16.mxu0 %v2389
  %2463 = vmatpush2.bf16.msra.mxu0 %v2388
  %2464 = vmatprep.subr.bf16.mxu0 %v2387
  %2465 = vmatpush2.bf16.msra.mxu0 %v2386
  %2466 = vmatprep.mubr.bf16.mxu0 %v1992
  %2467 = vmatmul.mubr.bf16.gmra.mxu0 %v1991
  %v2468 = vpop.f32.mrf.mxu0
  %v2469 = vadd.f32 %v2268, %v2468
  %v2470 = vpop.f32.mrf.mxu0
  %v2471 = vadd.f32 %v2270, %v2470
  %v2472 = vpop.f32.mrf.mxu0
  %v2473 = vpop.f32.mrf.mxu0
  %2474 = vdwg.mxu0
  %v2475 = vld [vmem:[%s4] sm:$0xff]
  %v2476 = vld [vmem:[%s4 + $0x8] sm:$0xff]
  %v2477 = vld [vmem:[%s4 + $0x10] sm:$0xff]
  %v2478 = vld [vmem:[%s4 + $0x18] sm:$0xff]
  %v2479 = vld [vmem:[%s4 + $0x20] sm:$0xff]
  %v2480 = vld [vmem:[%s4 + $0x28] sm:$0xff]
  %v2481 = vld [vmem:[%s4 + $0x30] sm:$0xff]
  %v2482 = vld [vmem:[%s4 + $0x38] sm:$0xff]
  %v2483 = vld [vmem:[%s4 + $0x40] sm:$0xff]
  %v2484 = vld [vmem:[%s4 + $0x48] sm:$0xff]
  %v2485 = vld [vmem:[%s4 + $0x50] sm:$0xff]
  %v2486 = vld [vmem:[%s4 + $0x58] sm:$0xff]
  %v2487 = vld [vmem:[%s4 + $0x60] sm:$0xff]
  %v2488 = vld [vmem:[%s4 + $0x68] sm:$0xff]
  %v2489 = vld [vmem:[%s4 + $0x70] sm:$0xff]
  %v2490 = vld [vmem:[%s4 + $0x78] sm:$0xff]
  %v2491 = vld [vmem:[%s4 + $0x80] sm:$0xff]
  %v2492 = vld [vmem:[%s4 + $0x88] sm:$0xff]
  %v2493 = vld [vmem:[%s4 + $0x90] sm:$0xff]
  %v2494 = vld [vmem:[%s4 + $0x98] sm:$0xff]
  %v2495 = vld [vmem:[%s4 + $0xa0] sm:$0xff]
  %v2496 = vld [vmem:[%s4 + $0xa8] sm:$0xff]
  %v2497 = vld [vmem:[%s4 + $0xb0] sm:$0xff]
  %v2498 = vld [vmem:[%s4 + $0xb8] sm:$0xff]
  %v2499 = vld [vmem:[%s4 + $0xc0] sm:$0xff]
  %v2500 = vld [vmem:[%s4 + $0xc8] sm:$0xff]
  %v2501 = vld [vmem:[%s4 + $0xd0] sm:$0xff]
  %v2502 = vld [vmem:[%s4 + $0xd8] sm:$0xff]
  %v2503 = vld [vmem:[%s4 + $0xe0] sm:$0xff]
  %v2504 = vld [vmem:[%s4 + $0xe8] sm:$0xff]
  %v2505 = vld [vmem:[%s4 + $0xf0] sm:$0xff]
  %v2506 = vld [vmem:[%s4 + $0xf8] sm:$0xff]
  %2507 = vmatprep.subr.bf16.mxu0 %v2385
  %2508 = vmatpush1.bf16.msra.mxu0 %v2384
  %2509 = vmatprep.subr.bf16.mxu0 %v2383
  %2510 = vmatpush1.bf16.msra.mxu0 %v2382
  %2511 = vmatprep.subr.bf16.mxu0 %v2381
  %2512 = vmatpush1.bf16.msra.mxu0 %v2380
  %2513 = vmatprep.subr.bf16.mxu0 %v2379
  %2514 = vmatpush1.bf16.msra.mxu0 %v2378
  %2515 = vmatprep.subr.bf16.mxu0 %v2377
  %2516 = vmatpush1.bf16.msra.mxu0 %v2376
  %2517 = vmatprep.subr.bf16.mxu0 %v2375
  %2518 = vmatpush1.bf16.msra.mxu0 %v2374
  %2519 = vmatprep.subr.bf16.mxu0 %v2373
  %2520 = vmatpush1.bf16.msra.mxu0 %v2372
  %2521 = vmatprep.subr.bf16.mxu0 %v2371
  %2522 = vmatpush1.bf16.msra.mxu0 %v2370
  %2523 = vmatprep.subr.bf16.mxu0 %v2401
  %2524 = vmatpush2.bf16.msra.mxu0 %v2400
  %2525 = vmatprep.subr.bf16.mxu0 %v2399
  %2526 = vmatpush2.bf16.msra.mxu0 %v2398
  %2527 = vmatprep.subr.bf16.mxu0 %v2397
  %2528 = vmatpush2.bf16.msra.mxu0 %v2396
  %2529 = vmatprep.subr.bf16.mxu0 %v2395
  %2530 = vmatpush2.bf16.msra.mxu0 %v2394
  %2531 = vmatprep.subr.bf16.mxu0 %v2393
  %2532 = vmatpush2.bf16.msra.mxu0 %v2392
  %2533 = vmatprep.subr.bf16.mxu0 %v2391
  %2534 = vmatpush2.bf16.msra.mxu0 %v2390
  %2535 = vmatprep.subr.bf16.mxu0 %v2389
  %2536 = vmatpush2.bf16.msra.mxu0 %v2388
  %2537 = vmatprep.subr.bf16.mxu0 %v2387
  %2538 = vmatpush2.bf16.msra.mxu0 %v2386
  %2539 = vmatprep.mubr.bf16.mxu0 %v1996
  %2540 = vmatmul.mubr.bf16.gmra.mxu0 %v1995
  %v2541 = vpop.f32.mrf.mxu0
  %v2542 = vadd.f32 0.0, %v2541
  %v2543 = vpop.f32.mrf.mxu0
  %v2544 = vadd.f32 0.0, %v2543
  %v2545 = vpop.f32.mrf.mxu0
  %v2546 = vpop.f32.mrf.mxu0
  %2547 = vdwg.mxu0
  %v2580 = vunpack.c.l.b16 %v2475
  %v2581 = vunpack.c.h.b16 %v2475
  %v2582 = vunpack.c.l.b16 %v2476
  %v2583 = vunpack.c.h.b16 %v2476
  %v2584 = vunpack.c.l.b16 %v2477
  %v2585 = vunpack.c.h.b16 %v2477
  %v2586 = vunpack.c.l.b16 %v2478
  %v2587 = vunpack.c.h.b16 %v2478
  %v2588 = vunpack.c.l.b16 %v2479
  %v2589 = vunpack.c.h.b16 %v2479
  %v2590 = vunpack.c.l.b16 %v2480
  %v2591 = vunpack.c.h.b16 %v2480
  %v2592 = vunpack.c.l.b16 %v2481
  %v2593 = vunpack.c.h.b16 %v2481
  %v2594 = vunpack.c.l.b16 %v2482
  %v2595 = vunpack.c.h.b16 %v2482
  %v2596 = vunpack.c.l.b16 %v2483
  %v2597 = vunpack.c.h.b16 %v2483
  %v2598 = vunpack.c.l.b16 %v2484
  %v2599 = vunpack.c.h.b16 %v2484
  %v2600 = vunpack.c.l.b16 %v2485
  %v2601 = vunpack.c.h.b16 %v2485
  %v2602 = vunpack.c.l.b16 %v2486
  %v2603 = vunpack.c.h.b16 %v2486
  %v2604 = vunpack.c.l.b16 %v2487
  %v2605 = vunpack.c.h.b16 %v2487
  %v2606 = vunpack.c.l.b16 %v2488
  %v2607 = vunpack.c.h.b16 %v2488
  %v2608 = vunpack.c.l.b16 %v2489
  %v2609 = vunpack.c.h.b16 %v2489
  %v2610 = vunpack.c.l.b16 %v2490
  %v2611 = vunpack.c.h.b16 %v2490
  %v2612 = vunpack.c.l.b16 %v2491
  %v2613 = vunpack.c.h.b16 %v2491
  %v2614 = vunpack.c.l.b16 %v2492
  %v2615 = vunpack.c.h.b16 %v2492
  %v2616 = vunpack.c.l.b16 %v2493
  %v2617 = vunpack.c.h.b16 %v2493
  %v2618 = vunpack.c.l.b16 %v2494
  %v2619 = vunpack.c.h.b16 %v2494
  %v2620 = vunpack.c.l.b16 %v2495
  %v2621 = vunpack.c.h.b16 %v2495
  %v2622 = vunpack.c.l.b16 %v2496
  %v2623 = vunpack.c.h.b16 %v2496
  %v2624 = vunpack.c.l.b16 %v2497
  %v2625 = vunpack.c.h.b16 %v2497
  %v2626 = vunpack.c.l.b16 %v2498
  %v2627 = vunpack.c.h.b16 %v2498
  %v2628 = vunpack.c.l.b16 %v2499
  %v2629 = vunpack.c.h.b16 %v2499
  %v2630 = vunpack.c.l.b16 %v2500
  %v2631 = vunpack.c.h.b16 %v2500
  %v2632 = vunpack.c.l.b16 %v2501
  %v2633 = vunpack.c.h.b16 %v2501
  %v2634 = vunpack.c.l.b16 %v2502
  %v2635 = vunpack.c.h.b16 %v2502
  %v2636 = vunpack.c.l.b16 %v2503
  %v2637 = vunpack.c.h.b16 %v2503
  %v2638 = vunpack.c.l.b16 %v2504
  %v2639 = vunpack.c.h.b16 %v2504
  %v2640 = vunpack.c.l.b16 %v2505
  %v2641 = vunpack.c.h.b16 %v2505
  %v2642 = vunpack.c.l.b16 %v2506
  %v2643 = vunpack.c.h.b16 %v2506
  %v2644 = vpack.c.b16 %v2582, %v2580
  %v2645 = vpack.c.b16 %v2583, %v2581
  %v2646 = vpack.c.b16 %v2586, %v2584
  %v2647 = vpack.c.b16 %v2587, %v2585
  %v2648 = vpack.c.b16 %v2590, %v2588
  %v2649 = vpack.c.b16 %v2591, %v2589
  %v2650 = vpack.c.b16 %v2594, %v2592
  %v2651 = vpack.c.b16 %v2595, %v2593
  %v2652 = vpack.c.b16 %v2598, %v2596
  %v2653 = vpack.c.b16 %v2599, %v2597
  %v2654 = vpack.c.b16 %v2602, %v2600
  %v2655 = vpack.c.b16 %v2603, %v2601
  %v2656 = vpack.c.b16 %v2606, %v2604
  %v2657 = vpack.c.b16 %v2607, %v2605
  %v2658 = vpack.c.b16 %v2610, %v2608
  %v2659 = vpack.c.b16 %v2611, %v2609
  %v2660 = vpack.c.b16 %v2614, %v2612
  %v2661 = vpack.c.b16 %v2615, %v2613
  %v2662 = vpack.c.b16 %v2618, %v2616
  %v2663 = vpack.c.b16 %v2619, %v2617
  %v2664 = vpack.c.b16 %v2622, %v2620
  %v2665 = vpack.c.b16 %v2623, %v2621
  %v2666 = vpack.c.b16 %v2626, %v2624
  %v2667 = vpack.c.b16 %v2627, %v2625
  %v2668 = vpack.c.b16 %v2630, %v2628
  %v2669 = vpack.c.b16 %v2631, %v2629
  %v2670 = vpack.c.b16 %v2634, %v2632
  %v2671 = vpack.c.b16 %v2635, %v2633
  %v2672 = vpack.c.b16 %v2638, %v2636
  %v2673 = vpack.c.b16 %v2639, %v2637
  %v2674 = vpack.c.b16 %v2642, %v2640
  %v2675 = vpack.c.b16 %v2643, %v2641
  %2708 = vmatprep.subr.bf16.mxu0 %v2659
  %2709 = vmatpush1.bf16.msra.mxu0 %v2658
  %2710 = vmatprep.subr.bf16.mxu0 %v2657
  %2711 = vmatpush1.bf16.msra.mxu0 %v2656
  %2712 = vmatprep.subr.bf16.mxu0 %v2655
  %2713 = vmatpush1.bf16.msra.mxu0 %v2654
  %2714 = vmatprep.subr.bf16.mxu0 %v2653
  %2715 = vmatpush1.bf16.msra.mxu0 %v2652
  %2716 = vmatprep.subr.bf16.mxu0 %v2651
  %2717 = vmatpush1.bf16.msra.mxu0 %v2650
  %2718 = vmatprep.subr.bf16.mxu0 %v2649
  %2719 = vmatpush1.bf16.msra.mxu0 %v2648
  %2720 = vmatprep.subr.bf16.mxu0 %v2647
  %2721 = vmatpush1.bf16.msra.mxu0 %v2646
  %2722 = vmatprep.subr.bf16.mxu0 %v2645
  %2723 = vmatpush1.bf16.msra.mxu0 %v2644
  %2724 = vmatprep.subr.bf16.mxu0 %v2675
  %2725 = vmatpush2.bf16.msra.mxu0 %v2674
  %2726 = vmatprep.subr.bf16.mxu0 %v2673
  %2727 = vmatpush2.bf16.msra.mxu0 %v2672
  %2728 = vmatprep.subr.bf16.mxu0 %v2671
  %2729 = vmatpush2.bf16.msra.mxu0 %v2670
  %2730 = vmatprep.subr.bf16.mxu0 %v2669
  %2731 = vmatpush2.bf16.msra.mxu0 %v2668
  %2732 = vmatprep.subr.bf16.mxu0 %v2667
  %2733 = vmatpush2.bf16.msra.mxu0 %v2666
  %2734 = vmatprep.subr.bf16.mxu0 %v2665
  %2735 = vmatpush2.bf16.msra.mxu0 %v2664
  %2736 = vmatprep.subr.bf16.mxu0 %v2663
  %2737 = vmatpush2.bf16.msra.mxu0 %v2662
  %2738 = vmatprep.subr.bf16.mxu0 %v2661
  %2739 = vmatpush2.bf16.msra.mxu0 %v2660
  %2740 = vmatprep.mubr.bf16.mxu0 %v1994
  %2741 = vmatmul.mubr.bf16.gmra.mxu0 %v1993
  %v2742 = vpop.f32.mrf.mxu0
  %v2743 = vadd.f32 %v2542, %v2742
  %v2744 = vpop.f32.mrf.mxu0
  %v2745 = vadd.f32 %v2544, %v2744
  %v2746 = vpop.f32.mrf.mxu0
  %v2747 = vpop.f32.mrf.mxu0
  %2748 = vdwg.mxu0
  %2749 = vmatprep.subr.bf16.mxu0 %v2184
  %2750 = vmatpush1.bf16.msra.mxu0 %v2183
  %2751 = vmatprep.subr.bf16.mxu0 %v2182
  %2752 = vmatpush1.bf16.msra.mxu0 %v2181
  %2753 = vmatprep.subr.bf16.mxu0 %v2180
  %2754 = vmatpush1.bf16.msra.mxu0 %v2179
  %2755 = vmatprep.subr.bf16.mxu0 %v2178
  %2756 = vmatpush1.bf16.msra.mxu0 %v2177
  %2757 = vmatprep.subr.bf16.mxu0 %v2176
  %2758 = vmatpush1.bf16.msra.mxu0 %v2175
  %2759 = vmatprep.subr.bf16.mxu0 %v2174
  %2760 = vmatpush1.bf16.msra.mxu0 %v2173
  %2761 = vmatprep.subr.bf16.mxu0 %v2172
  %2762 = vmatpush1.bf16.msra.mxu0 %v2171
  %2763 = vmatprep.subr.bf16.mxu0 %v2170
  %2764 = vmatpush1.bf16.msra.mxu0 %v2169
  %2765 = vmatprep.subr.bf16.mxu0 %v2200
  %2766 = vmatpush2.bf16.msra.mxu0 %v2199
  %2767 = vmatprep.subr.bf16.mxu0 %v2198
  %2768 = vmatpush2.bf16.msra.mxu0 %v2197
  %2769 = vmatprep.subr.bf16.mxu0 %v2196
  %2770 = vmatpush2.bf16.msra.mxu0 %v2195
  %2771 = vmatprep.subr.bf16.mxu0 %v2194
  %2772 = vmatpush2.bf16.msra.mxu0 %v2193
  %2773 = vmatprep.subr.bf16.mxu0 %v2192
  %2774 = vmatpush2.bf16.msra.mxu0 %v2191
  %2775 = vmatprep.subr.bf16.mxu0 %v2190
  %2776 = vmatpush2.bf16.msra.mxu0 %v2189
  %2777 = vmatprep.subr.bf16.mxu0 %v2188
  %2778 = vmatpush2.bf16.msra.mxu0 %v2187
  %2779 = vmatprep.subr.bf16.mxu0 %v2186
  %2780 = vmatpush2.bf16.msra.mxu0 %v2185
  %2781 = vmatprep.mubr.bf16.mxu0 %v1998
  %2782 = vmatmul.mubr.bf16.gmra.mxu0 %v1997
  %v2783 = vpop.f32.mrf.mxu0
  %v2784 = vadd.f32 0.0, %v2783
  %v2785 = vpop.f32.mrf.mxu0
  %v2786 = vadd.f32 0.0, %v2785
  %v2787 = vpop.f32.mrf.mxu0
  %v2788 = vpop.f32.mrf.mxu0
  %2789 = vdwg.mxu0
  %v2790 = vadd.f32 %v2743, %v2784
  %v2791 = vadd.f32 %v2745, %v2786
  %2792 = vmatprep.subr.bf16.mxu0 %v2385
  %2793 = vmatpush1.bf16.msra.mxu0 %v2384
  %2794 = vmatprep.subr.bf16.mxu0 %v2383
  %2795 = vmatpush1.bf16.msra.mxu0 %v2382
  %2796 = vmatprep.subr.bf16.mxu0 %v2381
  %2797 = vmatpush1.bf16.msra.mxu0 %v2380
  %2798 = vmatprep.subr.bf16.mxu0 %v2379
  %2799 = vmatpush1.bf16.msra.mxu0 %v2378
  %2800 = vmatprep.subr.bf16.mxu0 %v2377
  %2801 = vmatpush1.bf16.msra.mxu0 %v2376
  %2802 = vmatprep.subr.bf16.mxu0 %v2375
  %2803 = vmatpush1.bf16.msra.mxu0 %v2374
  %2804 = vmatprep.subr.bf16.mxu0 %v2373
  %2805 = vmatpush1.bf16.msra.mxu0 %v2372
  %2806 = vmatprep.subr.bf16.mxu0 %v2371
  %2807 = vmatpush1.bf16.msra.mxu0 %v2370
  %2808 = vmatprep.subr.bf16.mxu0 %v2401
  %2809 = vmatpush2.bf16.msra.mxu0 %v2400
  %2810 = vmatprep.subr.bf16.mxu0 %v2399
  %2811 = vmatpush2.bf16.msra.mxu0 %v2398
  %2812 = vmatprep.subr.bf16.mxu0 %v2397
  %2813 = vmatpush2.bf16.msra.mxu0 %v2396
  %2814 = vmatprep.subr.bf16.mxu0 %v2395
  %2815 = vmatpush2.bf16.msra.mxu0 %v2394
  %2816 = vmatprep.subr.bf16.mxu0 %v2393
  %2817 = vmatpush2.bf16.msra.mxu0 %v2392
  %2818 = vmatprep.subr.bf16.mxu0 %v2391
  %2819 = vmatpush2.bf16.msra.mxu0 %v2390
  %2820 = vmatprep.subr.bf16.mxu0 %v2389
  %2821 = vmatpush2.bf16.msra.mxu0 %v2388
  %2822 = vmatprep.subr.bf16.mxu0 %v2387
  %2823 = vmatpush2.bf16.msra.mxu0 %v2386
  %2824 = vmatprep.mubr.bf16.mxu0 %v2000
  %2825 = vmatmul.mubr.bf16.gmra.mxu0 %v1999
  %v2826 = vpop.f32.mrf.mxu0
  %v2827 = vadd.f32 0.0, %v2826
  %v2828 = vpop.f32.mrf.mxu0
  %v2829 = vadd.f32 0.0, %v2828
  %v2830 = vpop.f32.mrf.mxu0
  %v2831 = vpop.f32.mrf.mxu0
  %2832 = vdwg.mxu0
  %2833 = vmatprep.subr.bf16.mxu0 %v2659
  %2834 = vmatpush1.bf16.msra.mxu0 %v2658
  %2835 = vmatprep.subr.bf16.mxu0 %v2657
  %2836 = vmatpush1.bf16.msra.mxu0 %v2656
  %2837 = vmatprep.subr.bf16.mxu0 %v2655
  %2838 = vmatpush1.bf16.msra.mxu0 %v2654
  %2839 = vmatprep.subr.bf16.mxu0 %v2653
  %2840 = vmatpush1.bf16.msra.mxu0 %v2652
  %2841 = vmatprep.subr.bf16.mxu0 %v2651
  %2842 = vmatpush1.bf16.msra.mxu0 %v2650
  %2843 = vmatprep.subr.bf16.mxu0 %v2649
  %2844 = vmatpush1.bf16.msra.mxu0 %v2648
  %2845 = vmatprep.subr.bf16.mxu0 %v2647
  %2846 = vmatpush1.bf16.msra.mxu0 %v2646
  %2847 = vmatprep.subr.bf16.mxu0 %v2645
  %2848 = vmatpush1.bf16.msra.mxu0 %v2644
  %2849 = vmatprep.subr.bf16.mxu0 %v2675
  %2850 = vmatpush2.bf16.msra.mxu0 %v2674
  %2851 = vmatprep.subr.bf16.mxu0 %v2673
  %2852 = vmatpush2.bf16.msra.mxu0 %v2672
  %2853 = vmatprep.subr.bf16.mxu0 %v2671
  %2854 = vmatpush2.bf16.msra.mxu0 %v2670
  %2855 = vmatprep.subr.bf16.mxu0 %v2669
  %2856 = vmatpush2.bf16.msra.mxu0 %v2668
  %2857 = vmatprep.subr.bf16.mxu0 %v2667
  %2858 = vmatpush2.bf16.msra.mxu0 %v2666
  %2859 = vmatprep.subr.bf16.mxu0 %v2665
  %2860 = vmatpush2.bf16.msra.mxu0 %v2664
  %2861 = vmatprep.subr.bf16.mxu0 %v2663
  %2862 = vmatpush2.bf16.msra.mxu0 %v2662
  %2863 = vmatprep.subr.bf16.mxu0 %v2661
  %2864 = vmatpush2.bf16.msra.mxu0 %v2660
  %2865 = vmatprep.mubr.bf16.mxu0 %v1998
  %2866 = vmatmul.mubr.bf16.gmra.mxu0 %v1997
  %v2867 = vpop.f32.mrf.mxu0
  %v2868 = vadd.f32 %v2827, %v2867
  %v2869 = vpop.f32.mrf.mxu0
  %v2870 = vadd.f32 %v2829, %v2869
  %v2871 = vpop.f32.mrf.mxu0
  %v2872 = vpop.f32.mrf.mxu0
  %2873 = vdwg.mxu0
  %2874 = vmatprep.subr.bf16.mxu0 %v2184
  %2875 = vmatpush1.bf16.msra.mxu0 %v2183
  %2876 = vmatprep.subr.bf16.mxu0 %v2182
  %2877 = vmatpush1.bf16.msra.mxu0 %v2181
  %2878 = vmatprep.subr.bf16.mxu0 %v2180
  %2879 = vmatpush1.bf16.msra.mxu0 %v2179
  %2880 = vmatprep.subr.bf16.mxu0 %v2178
  %2881 = vmatpush1.bf16.msra.mxu0 %v2177
  %2882 = vmatprep.subr.bf16.mxu0 %v2176
  %2883 = vmatpush1.bf16.msra.mxu0 %v2175
  %2884 = vmatprep.subr.bf16.mxu0 %v2174
  %2885 = vmatpush1.bf16.msra.mxu0 %v2173
  %2886 = vmatprep.subr.bf16.mxu0 %v2172
  %2887 = vmatpush1.bf16.msra.mxu0 %v2171
  %2888 = vmatprep.subr.bf16.mxu0 %v2170
  %2889 = vmatpush1.bf16.msra.mxu0 %v2169
  %2890 = vmatprep.subr.bf16.mxu0 %v2200
  %2891 = vmatpush2.bf16.msra.mxu0 %v2199
  %2892 = vmatprep.subr.bf16.mxu0 %v2198
  %2893 = vmatpush2.bf16.msra.mxu0 %v2197
  %2894 = vmatprep.subr.bf16.mxu0 %v2196
  %2895 = vmatpush2.bf16.msra.mxu0 %v2195
  %2896 = vmatprep.subr.bf16.mxu0 %v2194
  %2897 = vmatpush2.bf16.msra.mxu0 %v2193
  %2898 = vmatprep.subr.bf16.mxu0 %v2192
  %2899 = vmatpush2.bf16.msra.mxu0 %v2191
  %2900 = vmatprep.subr.bf16.mxu0 %v2190
  %2901 = vmatpush2.bf16.msra.mxu0 %v2189
  %2902 = vmatprep.subr.bf16.mxu0 %v2188
  %2903 = vmatpush2.bf16.msra.mxu0 %v2187
  %2904 = vmatprep.subr.bf16.mxu0 %v2186
  %2905 = vmatpush2.bf16.msra.mxu0 %v2185
  %2906 = vmatprep.mubr.bf16.mxu0 %v2002
  %2907 = vmatmul.mubr.bf16.gmra.mxu0 %v2001
  %v2908 = vpop.f32.mrf.mxu0
  %v2909 = vadd.f32 0.0, %v2908
  %v2910 = vpop.f32.mrf.mxu0
  %v2911 = vadd.f32 0.0, %v2910
  %v2912 = vpop.f32.mrf.mxu0
  %v2913 = vpop.f32.mrf.mxu0
  %2914 = vdwg.mxu0
  %v2915 = vadd.f32 %v2868, %v2909
  %v2916 = vadd.f32 %v2870, %v2911
  %2917 = vmatprep.subr.bf16.mxu0 %v2385
  %2918 = vmatpush1.bf16.msra.mxu0 %v2384
  %2919 = vmatprep.subr.bf16.mxu0 %v2383
  %2920 = vmatpush1.bf16.msra.mxu0 %v2382
  %2921 = vmatprep.subr.bf16.mxu0 %v2381
  %2922 = vmatpush1.bf16.msra.mxu0 %v2380
  %2923 = vmatprep.subr.bf16.mxu0 %v2379
  %2924 = vmatpush1.bf16.msra.mxu0 %v2378
  %2925 = vmatprep.subr.bf16.mxu0 %v2377
  %2926 = vmatpush1.bf16.msra.mxu0 %v2376
  %2927 = vmatprep.subr.bf16.mxu0 %v2375
  %2928 = vmatpush1.bf16.msra.mxu0 %v2374
  %2929 = vmatprep.subr.bf16.mxu0 %v2373
  %2930 = vmatpush1.bf16.msra.mxu0 %v2372
  %2931 = vmatprep.subr.bf16.mxu0 %v2371
  %2932 = vmatpush1.bf16.msra.mxu0 %v2370
  %2933 = vmatprep.subr.bf16.mxu0 %v2401
  %2934 = vmatpush2.bf16.msra.mxu0 %v2400
  %2935 = vmatprep.subr.bf16.mxu0 %v2399
  %2936 = vmatpush2.bf16.msra.mxu0 %v2398
  %2937 = vmatprep.subr.bf16.mxu0 %v2397
  %2938 = vmatpush2.bf16.msra.mxu0 %v2396
  %2939 = vmatprep.subr.bf16.mxu0 %v2395
  %2940 = vmatpush2.bf16.msra.mxu0 %v2394
  %2941 = vmatprep.subr.bf16.mxu0 %v2393
  %2942 = vmatpush2.bf16.msra.mxu0 %v2392
  %2943 = vmatprep.subr.bf16.mxu0 %v2391
  %2944 = vmatpush2.bf16.msra.mxu0 %v2390
  %2945 = vmatprep.subr.bf16.mxu0 %v2389
  %2946 = vmatpush2.bf16.msra.mxu0 %v2388
  %2947 = vmatprep.subr.bf16.mxu0 %v2387
  %2948 = vmatpush2.bf16.msra.mxu0 %v2386
  %2949 = vmatprep.mubr.bf16.mxu0 %v2004
  %2950 = vmatmul.mubr.bf16.gmra.mxu0 %v2003
  %v2951 = vpop.f32.mrf.mxu0
  %v2952 = vadd.f32 0.0, %v2951
  %v2953 = vpop.f32.mrf.mxu0
  %v2954 = vadd.f32 0.0, %v2953
  %v2955 = vpop.f32.mrf.mxu0
  %v2956 = vpop.f32.mrf.mxu0
  %2957 = vdwg.mxu0
  %2958 = vmatprep.subr.bf16.mxu0 %v2659
  %2959 = vmatpush1.bf16.msra.mxu0 %v2658
  %2960 = vmatprep.subr.bf16.mxu0 %v2657
  %2961 = vmatpush1.bf16.msra.mxu0 %v2656
  %2962 = vmatprep.subr.bf16.mxu0 %v2655
  %2963 = vmatpush1.bf16.msra.mxu0 %v2654
  %2964 = vmatprep.subr.bf16.mxu0 %v2653
  %2965 = vmatpush1.bf16.msra.mxu0 %v2652
  %2966 = vmatprep.subr.bf16.mxu0 %v2651
  %2967 = vmatpush1.bf16.msra.mxu0 %v2650
  %2968 = vmatprep.subr.bf16.mxu0 %v2649
  %2969 = vmatpush1.bf16.msra.mxu0 %v2648
  %2970 = vmatprep.subr.bf16.mxu0 %v2647
  %2971 = vmatpush1.bf16.msra.mxu0 %v2646
  %2972 = vmatprep.subr.bf16.mxu0 %v2645
  %2973 = vmatpush1.bf16.msra.mxu0 %v2644
  %2974 = vmatprep.subr.bf16.mxu0 %v2675
  %2975 = vmatpush2.bf16.msra.mxu0 %v2674
  %2976 = vmatprep.subr.bf16.mxu0 %v2673
  %2977 = vmatpush2.bf16.msra.mxu0 %v2672
  %2978 = vmatprep.subr.bf16.mxu0 %v2671
  %2979 = vmatpush2.bf16.msra.mxu0 %v2670
  %2980 = vmatprep.subr.bf16.mxu0 %v2669
  %2981 = vmatpush2.bf16.msra.mxu0 %v2668
  %2982 = vmatprep.subr.bf16.mxu0 %v2667
  %2983 = vmatpush2.bf16.msra.mxu0 %v2666
  %2984 = vmatprep.subr.bf16.mxu0 %v2665
  %2985 = vmatpush2.bf16.msra.mxu0 %v2664
  %2986 = vmatprep.subr.bf16.mxu0 %v2663
  %2987 = vmatpush2.bf16.msra.mxu0 %v2662
  %2988 = vmatprep.subr.bf16.mxu0 %v2661
  %2989 = vmatpush2.bf16.msra.mxu0 %v2660
  %2990 = vmatprep.mubr.bf16.mxu0 %v2002
  %2991 = vmatmul.mubr.bf16.gmra.mxu0 %v2001
  %v2992 = vpop.f32.mrf.mxu0
  %v2993 = vadd.f32 %v2952, %v2992
  %v2994 = vpop.f32.mrf.mxu0
  %v2995 = vadd.f32 %v2954, %v2994
  %v2996 = vpop.f32.mrf.mxu0
  %v2997 = vpop.f32.mrf.mxu0
  %2998 = vdwg.mxu0
  %2999 = vmatprep.subr.bf16.mxu0 %v2184
  %3000 = vmatpush1.bf16.msra.mxu0 %v2183
  %3001 = vmatprep.subr.bf16.mxu0 %v2182
  %3002 = vmatpush1.bf16.msra.mxu0 %v2181
  %3003 = vmatprep.subr.bf16.mxu0 %v2180
  %3004 = vmatpush1.bf16.msra.mxu0 %v2179
  %3005 = vmatprep.subr.bf16.mxu0 %v2178
  %3006 = vmatpush1.bf16.msra.mxu0 %v2177
  %3007 = vmatprep.subr.bf16.mxu0 %v2176
  %3008 = vmatpush1.bf16.msra.mxu0 %v2175
  %3009 = vmatprep.subr.bf16.mxu0 %v2174
  %3010 = vmatpush1.bf16.msra.mxu0 %v2173
  %3011 = vmatprep.subr.bf16.mxu0 %v2172
  %3012 = vmatpush1.bf16.msra.mxu0 %v2171
  %3013 = vmatprep.subr.bf16.mxu0 %v2170
  %3014 = vmatpush1.bf16.msra.mxu0 %v2169
  %3015 = vmatprep.subr.bf16.mxu0 %v2200
  %3016 = vmatpush2.bf16.msra.mxu0 %v2199
  %3017 = vmatprep.subr.bf16.mxu0 %v2198
  %3018 = vmatpush2.bf16.msra.mxu0 %v2197
  %3019 = vmatprep.subr.bf16.mxu0 %v2196
  %3020 = vmatpush2.bf16.msra.mxu0 %v2195
  %3021 = vmatprep.subr.bf16.mxu0 %v2194
  %3022 = vmatpush2.bf16.msra.mxu0 %v2193
  %3023 = vmatprep.subr.bf16.mxu0 %v2192
  %3024 = vmatpush2.bf16.msra.mxu0 %v2191
  %3025 = vmatprep.subr.bf16.mxu0 %v2190
  %3026 = vmatpush2.bf16.msra.mxu0 %v2189
  %3027 = vmatprep.subr.bf16.mxu0 %v2188
  %3028 = vmatpush2.bf16.msra.mxu0 %v2187
  %3029 = vmatprep.subr.bf16.mxu0 %v2186
  %3030 = vmatpush2.bf16.msra.mxu0 %v2185
  %3031 = vmatprep.mubr.bf16.mxu0 %v2006
  %3032 = vmatmul.mubr.bf16.gmra.mxu0 %v2005
  %v3033 = vpop.f32.mrf.mxu0
  %v3034 = vadd.f32 0.0, %v3033
  %v3035 = vpop.f32.mrf.mxu0
  %v3036 = vadd.f32 0.0, %v3035
  %v3037 = vpop.f32.mrf.mxu0
  %v3038 = vpop.f32.mrf.mxu0
  %3039 = vdwg.mxu0
  %v3040 = vadd.f32 %v2993, %v3034
  %v3041 = vadd.f32 %v2995, %v3036
  %v3042 = vsel %vm1168, %v2469, 0.0
  %v3043 = vrot.slane %v3042, 4
  %v3044 = vadd.f32 %v3042, %v3043
  %v3045 = vrot.slane %v3044, 2
  %v3046 = vadd.f32 %v3044, %v3045
  %v3047 = vrot.slane %v3046, 1
  %v3048 = vadd.f32 %v3046, %v3047
  %v3049 = vsel %vm1168, %v2471, 0.0
  %v3050 = vrot.slane %v3049, 4
  %v3051 = vadd.f32 %v3049, %v3050
  %v3052 = vrot.slane %v3051, 2
  %v3053 = vadd.f32 %v3051, %v3052
  %v3054 = vrot.slane %v3053, 1
  %v3055 = vadd.f32 %v3053, %v3054
  %v3056 = vmul.f32 %v2469, %v2469
  %v3057 = vmul.f32 %v2471, %v2471
  %v3058 = vsel %vm1168, %v3056, 0.0
  %v3059 = vrot.slane %v3058, 4
  %v3060 = vadd.f32 %v3058, %v3059
  %v3061 = vrot.slane %v3060, 2
  %v3062 = vadd.f32 %v3060, %v3061
  %v3063 = vrot.slane %v3062, 1
  %v3064 = vadd.f32 %v3062, %v3063
  %v3065 = vsel %vm1168, %v3057, 0.0
  %v3066 = vrot.slane %v3065, 4
  %v3067 = vadd.f32 %v3065, %v3066
  %v3068 = vrot.slane %v3067, 2
  %v3069 = vadd.f32 %v3067, %v3068
  %v3070 = vrot.slane %v3069, 1
  %v3071 = vadd.f32 %v3069, %v3070
  %v3072 = vsel %vm1168, %v2790, 0.0
  %v3073 = vrot.slane %v3072, 4
  %v3074 = vadd.f32 %v3072, %v3073
  %v3075 = vrot.slane %v3074, 2
  %v3076 = vadd.f32 %v3074, %v3075
  %v3077 = vrot.slane %v3076, 1
  %v3078 = vadd.f32 %v3076, %v3077
  %v3079 = vsel %vm1168, %v2791, 0.0
  %v3080 = vrot.slane %v3079, 4
  %v3081 = vadd.f32 %v3079, %v3080
  %v3082 = vrot.slane %v3081, 2
  %v3083 = vadd.f32 %v3081, %v3082
  %v3084 = vrot.slane %v3083, 1
  %v3085 = vadd.f32 %v3083, %v3084
  %v3086 = vmul.f32 %v2790, %v2790
  %v3087 = vmul.f32 %v2791, %v2791
  %v3088 = vsel %vm1168, %v3086, 0.0
  %v3089 = vrot.slane %v3088, 4
  %v3090 = vadd.f32 %v3088, %v3089
  %v3091 = vrot.slane %v3090, 2
  %v3092 = vadd.f32 %v3090, %v3091
  %v3093 = vrot.slane %v3092, 1
  %v3094 = vadd.f32 %v3092, %v3093
  %v3095 = vsel %vm1168, %v3087, 0.0
  %v3096 = vrot.slane %v3095, 4
  %v3097 = vadd.f32 %v3095, %v3096
  %v3098 = vrot.slane %v3097, 2
  %v3099 = vadd.f32 %v3097, %v3098
  %v3100 = vrot.slane %v3099, 1
  %v3101 = vadd.f32 %v3099, %v3100
  %v3102 = vadd.f32 %v3048, %v3078
  %v3103 = vadd.f32 %v3055, %v3085
  %v3104 = vadd.f32 %v3064, %v3094
  %v3105 = vadd.f32 %v3071, %v3101
  %v3106 = vsel %vm1168, %v2915, 0.0
  %v3107 = vrot.slane %v3106, 4
  %v3108 = vadd.f32 %v3106, %v3107
  %v3109 = vrot.slane %v3108, 2
  %v3110 = vadd.f32 %v3108, %v3109
  %v3111 = vrot.slane %v3110, 1
  %v3112 = vadd.f32 %v3110, %v3111
  %v3113 = vsel %vm1168, %v2916, 0.0
  %v3114 = vrot.slane %v3113, 4
  %v3115 = vadd.f32 %v3113, %v3114
  %v3116 = vrot.slane %v3115, 2
  %v3117 = vadd.f32 %v3115, %v3116
  %v3118 = vrot.slane %v3117, 1
  %v3119 = vadd.f32 %v3117, %v3118
  %v3120 = vmul.f32 %v2915, %v2915
  %v3121 = vmul.f32 %v2916, %v2916
  %v3122 = vsel %vm1168, %v3120, 0.0
  %v3123 = vrot.slane %v3122, 4
  %v3124 = vadd.f32 %v3122, %v3123
  %v3125 = vrot.slane %v3124, 2
  %v3126 = vadd.f32 %v3124, %v3125
  %v3127 = vrot.slane %v3126, 1
  %v3128 = vadd.f32 %v3126, %v3127
  %v3129 = vsel %vm1168, %v3121, 0.0
  %v3130 = vrot.slane %v3129, 4
  %v3131 = vadd.f32 %v3129, %v3130
  %v3132 = vrot.slane %v3131, 2
  %v3133 = vadd.f32 %v3131, %v3132
  %v3134 = vrot.slane %v3133, 1
  %v3135 = vadd.f32 %v3133, %v3134
  %v3136 = vadd.f32 %v3102, %v3112
  %v3137 = vadd.f32 %v3103, %v3119
  %v3138 = vadd.f32 %v3104, %v3128
  %v3139 = vadd.f32 %v3105, %v3135
  %v3140 = vsel %vm1168, %v3040, 0.0
  %v3141 = vrot.slane %v3140, 4
  %v3142 = vadd.f32 %v3140, %v3141
  %v3143 = vrot.slane %v3142, 2
  %v3144 = vadd.f32 %v3142, %v3143
  %v3145 = vrot.slane %v3144, 1
  %v3146 = vadd.f32 %v3144, %v3145
  %v3147 = vsel %vm1168, %v3041, 0.0
  %v3148 = vrot.slane %v3147, 4
  %v3149 = vadd.f32 %v3147, %v3148
  %v3150 = vrot.slane %v3149, 2
  %v3151 = vadd.f32 %v3149, %v3150
  %v3152 = vrot.slane %v3151, 1
  %v3153 = vadd.f32 %v3151, %v3152
  %v3154 = vmul.f32 %v3040, %v3040
  %v3155 = vmul.f32 %v3041, %v3041
  %v3156 = vsel %vm1168, %v3154, 0.0
  %v3157 = vrot.slane %v3156, 4
  %v3158 = vadd.f32 %v3156, %v3157
  %v3159 = vrot.slane %v3158, 2
  %v3160 = vadd.f32 %v3158, %v3159
  %v3161 = vrot.slane %v3160, 1
  %v3162 = vadd.f32 %v3160, %v3161
  %v3163 = vsel %vm1168, %v3155, 0.0
  %v3164 = vrot.slane %v3163, 4
  %v3165 = vadd.f32 %v3163, %v3164
  %v3166 = vrot.slane %v3165, 2
  %v3167 = vadd.f32 %v3165, %v3166
  %v3168 = vrot.slane %v3167, 1
  %v3169 = vadd.f32 %v3167, %v3168
  %v3170 = vadd.f32 %v3136, %v3146
  %v3171 = vadd.f32 %v3137, %v3153
  %v3172 = vadd.f32 %v3138, %v3162
  %v3173 = vadd.f32 %v3139, %v3169
  %v3174 = vand.u32 %v1438, 63
  %v3175 = vand.u32 %v1439, 63
  %v3176 = vand.u32 %v1440, 63
  %v3177 = vand.u32 %v1441, 63
  %v3178 = vand.u32 %v1442, 63
  %v3179 = vand.u32 %v1443, 63
  %v3180 = vand.u32 %v1444, 63
  %v3181 = vand.u32 %v1445, 63
  %v3182 = vand.u32 %v1446, 63
  %v3183 = vand.u32 %v1447, 63
  %v3184 = vand.u32 %v1448, 63
  %v3185 = vand.u32 %v1449, 63
  %v3186 = vand.u32 %v1450, 63
  %v3187 = vand.u32 %v1451, 63
  %v3188 = vand.u32 %v1452, 63
  %v3189 = vand.u32 %v1453, 63
  %v3190 = vand.u32 %v1454, 63
  %v3191 = vand.u32 %v1455, 63
  %v3192 = vand.u32 %v1456, 63
  %v3193 = vand.u32 %v1457, 63
  %v3194 = vand.u32 %v1458, 63
  %v3195 = vand.u32 %v1459, 63
  %v3196 = vand.u32 %v1460, 63
  %v3197 = vand.u32 %v1461, 63
  %v3198 = vand.u32 %v1462, 63
  %v3199 = vand.u32 %v1463, 63
  %v3200 = vand.u32 %v1464, 63
  %v3201 = vand.u32 %v1465, 63
  %v3202 = vand.u32 %v1466, 63
  %v3203 = vand.u32 %v1467, 63
  %v3204 = vand.u32 %v1468, 63
  %v3205 = vand.u32 %v1469, 63
  %vm3206 = vcmp.eq.s32.totalorder %v3174, %v1471
  %vm3207 = vcmp.eq.s32.totalorder %v3175, %v1471
  %vm3208 = vcmp.eq.s32.totalorder %v3176, %v1471
  %vm3209 = vcmp.eq.s32.totalorder %v3177, %v1471
  %vm3210 = vcmp.eq.s32.totalorder %v3178, %v1471
  %vm3211 = vcmp.eq.s32.totalorder %v3179, %v1471
  %vm3212 = vcmp.eq.s32.totalorder %v3180, %v1471
  %vm3213 = vcmp.eq.s32.totalorder %v3181, %v1471
  %vm3214 = vcmp.eq.s32.totalorder %v3182, %v1471
  %vm3215 = vcmp.eq.s32.totalorder %v3183, %v1471
  %vm3216 = vcmp.eq.s32.totalorder %v3184, %v1471
  %vm3217 = vcmp.eq.s32.totalorder %v3185, %v1471
  %vm3218 = vcmp.eq.s32.totalorder %v3186, %v1471
  %vm3219 = vcmp.eq.s32.totalorder %v3187, %v1471
  %vm3220 = vcmp.eq.s32.totalorder %v3188, %v1471
  %vm3221 = vcmp.eq.s32.totalorder %v3189, %v1471
  %vm3222 = vcmp.eq.s32.totalorder %v3190, %v1471
  %vm3223 = vcmp.eq.s32.totalorder %v3191, %v1471
  %vm3224 = vcmp.eq.s32.totalorder %v3192, %v1471
  %vm3225 = vcmp.eq.s32.totalorder %v3193, %v1471
  %vm3226 = vcmp.eq.s32.totalorder %v3194, %v1471
  %vm3227 = vcmp.eq.s32.totalorder %v3195, %v1471
  %vm3228 = vcmp.eq.s32.totalorder %v3196, %v1471
  %vm3229 = vcmp.eq.s32.totalorder %v3197, %v1471
  %vm3230 = vcmp.eq.s32.totalorder %v3198, %v1471
  %vm3231 = vcmp.eq.s32.totalorder %v3199, %v1471
  %vm3232 = vcmp.eq.s32.totalorder %v3200, %v1471
  %vm3233 = vcmp.eq.s32.totalorder %v3201, %v1471
  %vm3234 = vcmp.eq.s32.totalorder %v3202, %v1471
  %vm3235 = vcmp.eq.s32.totalorder %v3203, %v1471
  %vm3236 = vcmp.eq.s32.totalorder %v3204, %v1471
  %vm3237 = vcmp.eq.s32.totalorder %v3205, %v1471
  %v3238 = vsel %vm3206, 1, 0
  %v3239 = vsel %vm3207, 1, 0
  %v3240 = vsel %vm3208, 1, 0
  %v3241 = vsel %vm3209, 1, 0
  %v3242 = vsel %vm3210, 1, 0
  %v3243 = vsel %vm3211, 1, 0
  %v3244 = vsel %vm3212, 1, 0
  %v3245 = vsel %vm3213, 1, 0
  %v3246 = vsel %vm3214, 1, 0
  %v3247 = vsel %vm3215, 1, 0
  %v3248 = vsel %vm3216, 1, 0
  %v3249 = vsel %vm3217, 1, 0
  %v3250 = vsel %vm3218, 1, 0
  %v3251 = vsel %vm3219, 1, 0
  %v3252 = vsel %vm3220, 1, 0
  %v3253 = vsel %vm3221, 1, 0
  %v3254 = vsel %vm3222, 1, 0
  %v3255 = vsel %vm3223, 1, 0
  %v3256 = vsel %vm3224, 1, 0
  %v3257 = vsel %vm3225, 1, 0
  %v3258 = vsel %vm3226, 1, 0
  %v3259 = vsel %vm3227, 1, 0
  %v3260 = vsel %vm3228, 1, 0
  %v3261 = vsel %vm3229, 1, 0
  %v3262 = vsel %vm3230, 1, 0
  %v3263 = vsel %vm3231, 1, 0
  %v3264 = vsel %vm3232, 1, 0
  %v3265 = vsel %vm3233, 1, 0
  %v3266 = vsel %vm3234, 1, 0
  %v3267 = vsel %vm3235, 1, 0
  %v3268 = vsel %vm3236, 1, 0
  %v3269 = vsel %vm3237, 1, 0
  %v3270 = vcvt.s32.f32 %v3238
  %v3271 = vcvt.s32.f32 %v3239
  %v3272 = vcvt.s32.f32 %v3240
  %v3273 = vcvt.s32.f32 %v3241
  %v3274 = vcvt.s32.f32 %v3242
  %v3275 = vcvt.s32.f32 %v3243
  %v3276 = vcvt.s32.f32 %v3244
  %v3277 = vcvt.s32.f32 %v3245
  %v3278 = vcvt.s32.f32 %v3246
  %v3279 = vcvt.s32.f32 %v3247
  %v3280 = vcvt.s32.f32 %v3248
  %v3281 = vcvt.s32.f32 %v3249
  %v3282 = vcvt.s32.f32 %v3250
  %v3283 = vcvt.s32.f32 %v3251
  %v3284 = vcvt.s32.f32 %v3252
  %v3285 = vcvt.s32.f32 %v3253
  %v3286 = vcvt.s32.f32 %v3254
  %v3287 = vcvt.s32.f32 %v3255
  %v3288 = vcvt.s32.f32 %v3256
  %v3289 = vcvt.s32.f32 %v3257
  %v3290 = vcvt.s32.f32 %v3258
  %v3291 = vcvt.s32.f32 %v3259
  %v3292 = vcvt.s32.f32 %v3260
  %v3293 = vcvt.s32.f32 %v3261
  %v3294 = vcvt.s32.f32 %v3262
  %v3295 = vcvt.s32.f32 %v3263
  %v3296 = vcvt.s32.f32 %v3264
  %v3297 = vcvt.s32.f32 %v3265
  %v3298 = vcvt.s32.f32 %v3266
  %v3299 = vcvt.s32.f32 %v3267
  %v3300 = vcvt.s32.f32 %v3268
  %v3301 = vcvt.s32.f32 %v3269
  %v3302 = vand.u32 %v1471, 63
  %v3303 = vand.u32 %v1600, 63
  %vm3304 = vcmp.eq.s32.totalorder %v3302, %v1438
  %vm3305 = vcmp.eq.s32.totalorder %v3303, %v1438
  %vm3306 = vcmp.eq.s32.totalorder %v3302, %v1439
  %vm3307 = vcmp.eq.s32.totalorder %v3303, %v1439
  %vm3308 = vcmp.eq.s32.totalorder %v3302, %v1440
  %vm3309 = vcmp.eq.s32.totalorder %v3303, %v1440
  %vm3310 = vcmp.eq.s32.totalorder %v3302, %v1441
  %vm3311 = vcmp.eq.s32.totalorder %v3303, %v1441
  %vm3312 = vcmp.eq.s32.totalorder %v3302, %v1442
  %vm3313 = vcmp.eq.s32.totalorder %v3303, %v1442
  %vm3314 = vcmp.eq.s32.totalorder %v3302, %v1443
  %vm3315 = vcmp.eq.s32.totalorder %v3303, %v1443
  %vm3316 = vcmp.eq.s32.totalorder %v3302, %v1444
  %vm3317 = vcmp.eq.s32.totalorder %v3303, %v1444
  %vm3318 = vcmp.eq.s32.totalorder %v3302, %v1445
  %vm3319 = vcmp.eq.s32.totalorder %v3303, %v1445
  %v3320 = vsel %vm3304, 1, 0
  %v3321 = vsel %vm3305, 1, 0
  %v3322 = vsel %vm3306, 1, 0
  %v3323 = vsel %vm3307, 1, 0
  %v3324 = vsel %vm3308, 1, 0
  %v3325 = vsel %vm3309, 1, 0
  %v3326 = vsel %vm3310, 1, 0
  %v3327 = vsel %vm3311, 1, 0
  %v3328 = vsel %vm3312, 1, 0
  %v3329 = vsel %vm3313, 1, 0
  %v3330 = vsel %vm3314, 1, 0
  %v3331 = vsel %vm3315, 1, 0
  %v3332 = vsel %vm3316, 1, 0
  %v3333 = vsel %vm3317, 1, 0
  %v3334 = vsel %vm3318, 1, 0
  %v3335 = vsel %vm3319, 1, 0
  %v3336 = vcvt.s32.f32 %v3320
  %v3337 = vcvt.s32.f32 %v3321
  %v3338 = vcvt.s32.f32 %v3322
  %v3339 = vcvt.s32.f32 %v3323
  %v3340 = vcvt.s32.f32 %v3324
  %v3341 = vcvt.s32.f32 %v3325
  %v3342 = vcvt.s32.f32 %v3326
  %v3343 = vcvt.s32.f32 %v3327
  %v3344 = vcvt.s32.f32 %v3328
  %v3345 = vcvt.s32.f32 %v3329
  %v3346 = vcvt.s32.f32 %v3330
  %v3347 = vcvt.s32.f32 %v3331
  %v3348 = vcvt.s32.f32 %v3332
  %v3349 = vcvt.s32.f32 %v3333
  %v3350 = vcvt.s32.f32 %v3334
  %v3351 = vcvt.s32.f32 %v3335
  %3352 = vmatprep.subr.mxu0 0.0
  %3353 = vmatpush1.msra.mxu0 %v3285
  %3354 = vmatprep.subr.mxu0 0.0
  %3355 = vmatpush1.msra.mxu0 %v3284
  %3356 = vmatprep.subr.mxu0 0.0
  %3357 = vmatpush1.msra.mxu0 %v3283
  %3358 = vmatprep.subr.mxu0 0.0
  %3359 = vmatpush1.msra.mxu0 %v3282
  %3360 = vmatprep.subr.mxu0 0.0
  %3361 = vmatpush1.msra.mxu0 %v3281
  %3362 = vmatprep.subr.mxu0 0.0
  %3363 = vmatpush1.msra.mxu0 %v3280
  %3364 = vmatprep.subr.mxu0 0.0
  %3365 = vmatpush1.msra.mxu0 %v3279
  %3366 = vmatprep.subr.mxu0 0.0
  %3367 = vmatpush1.msra.mxu0 %v3278
  %3368 = vmatprep.subr.mxu0 0.0
  %3369 = vmatpush1.msra.mxu0 %v3277
  %3370 = vmatprep.subr.mxu0 0.0
  %3371 = vmatpush1.msra.mxu0 %v3276
  %3372 = vmatprep.subr.mxu0 0.0
  %3373 = vmatpush1.msra.mxu0 %v3275
  %3374 = vmatprep.subr.mxu0 0.0
  %3375 = vmatpush1.msra.mxu0 %v3274
  %3376 = vmatprep.subr.mxu0 0.0
  %3377 = vmatpush1.msra.mxu0 %v3273
  %3378 = vmatprep.subr.mxu0 0.0
  %3379 = vmatpush1.msra.mxu0 %v3272
  %3380 = vmatprep.subr.mxu0 0.0
  %3381 = vmatpush1.msra.mxu0 %v3271
  %3382 = vmatprep.subr.mxu0 0.0
  %3383 = vmatpush1.msra.mxu0 %v3270
  %3384 = vmatprep.subr.mxu0 0.0
  %3385 = vmatpush2.msra.mxu0 %v3301
  %3386 = vmatprep.subr.mxu0 0.0
  %3387 = vmatpush2.msra.mxu0 %v3300
  %3388 = vmatprep.subr.mxu0 0.0
  %3389 = vmatpush2.msra.mxu0 %v3299
  %3390 = vmatprep.subr.mxu0 0.0
  %3391 = vmatpush2.msra.mxu0 %v3298
  %3392 = vmatprep.subr.mxu0 0.0
  %3393 = vmatpush2.msra.mxu0 %v3297
  %3394 = vmatprep.subr.mxu0 0.0
  %3395 = vmatpush2.msra.mxu0 %v3296
  %3396 = vmatprep.subr.mxu0 0.0
  %3397 = vmatpush2.msra.mxu0 %v3295
  %3398 = vmatprep.subr.mxu0 0.0
  %3399 = vmatpush2.msra.mxu0 %v3294
  %3400 = vmatprep.subr.mxu0 0.0
  %3401 = vmatpush2.msra.mxu0 %v3293
  %3402 = vmatprep.subr.mxu0 0.0
  %3403 = vmatpush2.msra.mxu0 %v3292
  %3404 = vmatprep.subr.mxu0 0.0
  %3405 = vmatpush2.msra.mxu0 %v3291
  %3406 = vmatprep.subr.mxu0 0.0
  %3407 = vmatpush2.msra.mxu0 %v3290
  %3408 = vmatprep.subr.mxu0 0.0
  %3409 = vmatpush2.msra.mxu0 %v3289
  %3410 = vmatprep.subr.mxu0 0.0
  %3411 = vmatpush2.msra.mxu0 %v3288
  %3412 = vmatprep.subr.mxu0 0.0
  %3413 = vmatpush2.msra.mxu0 %v3287
  %3414 = vmatprep.subr.mxu0 0.0
  %3415 = vmatpush2.msra.mxu0 %v3286
  %3416 = vmatprep.mubr.f32.mxu0 %v3171
  %3417 = vmatmul.mubr.f32.gmra.mxu0 %v3170
  %v3418 = vpop.f32.mrf.mxu0
  %v3419 = vadd.f32 0.0, %v3418
  %v3420 = vpop.f32.mrf.mxu0
  %3421 = vdwg.mxu0
  %3422 = vmatprep.subr.mxu0 0.0
  %3423 = vmatpush1.msra.mxu0 %v3285
  %3424 = vmatprep.subr.mxu0 0.0
  %3425 = vmatpush1.msra.mxu0 %v3284
  %3426 = vmatprep.subr.mxu0 0.0
  %3427 = vmatpush1.msra.mxu0 %v3283
  %3428 = vmatprep.subr.mxu0 0.0
  %3429 = vmatpush1.msra.mxu0 %v3282
  %3430 = vmatprep.subr.mxu0 0.0
  %3431 = vmatpush1.msra.mxu0 %v3281
  %3432 = vmatprep.subr.mxu0 0.0
  %3433 = vmatpush1.msra.mxu0 %v3280
  %3434 = vmatprep.subr.mxu0 0.0
  %3435 = vmatpush1.msra.mxu0 %v3279
  %3436 = vmatprep.subr.mxu0 0.0
  %3437 = vmatpush1.msra.mxu0 %v3278
  %3438 = vmatprep.subr.mxu0 0.0
  %3439 = vmatpush1.msra.mxu0 %v3277
  %3440 = vmatprep.subr.mxu0 0.0
  %3441 = vmatpush1.msra.mxu0 %v3276
  %3442 = vmatprep.subr.mxu0 0.0
  %3443 = vmatpush1.msra.mxu0 %v3275
  %3444 = vmatprep.subr.mxu0 0.0
  %3445 = vmatpush1.msra.mxu0 %v3274
  %3446 = vmatprep.subr.mxu0 0.0
  %3447 = vmatpush1.msra.mxu0 %v3273
  %3448 = vmatprep.subr.mxu0 0.0
  %3449 = vmatpush1.msra.mxu0 %v3272
  %3450 = vmatprep.subr.mxu0 0.0
  %3451 = vmatpush1.msra.mxu0 %v3271
  %3452 = vmatprep.subr.mxu0 0.0
  %3453 = vmatpush1.msra.mxu0 %v3270
  %3454 = vmatprep.subr.mxu0 0.0
  %3455 = vmatpush2.msra.mxu0 %v3301
  %3456 = vmatprep.subr.mxu0 0.0
  %3457 = vmatpush2.msra.mxu0 %v3300
  %3458 = vmatprep.subr.mxu0 0.0
  %3459 = vmatpush2.msra.mxu0 %v3299
  %3460 = vmatprep.subr.mxu0 0.0
  %3461 = vmatpush2.msra.mxu0 %v3298
  %3462 = vmatprep.subr.mxu0 0.0
  %3463 = vmatpush2.msra.mxu0 %v3297
  %3464 = vmatprep.subr.mxu0 0.0
  %3465 = vmatpush2.msra.mxu0 %v3296
  %3466 = vmatprep.subr.mxu0 0.0
  %3467 = vmatpush2.msra.mxu0 %v3295
  %3468 = vmatprep.subr.mxu0 0.0
  %3469 = vmatpush2.msra.mxu0 %v3294
  %3470 = vmatprep.subr.mxu0 0.0
  %3471 = vmatpush2.msra.mxu0 %v3293
  %3472 = vmatprep.subr.mxu0 0.0
  %3473 = vmatpush2.msra.mxu0 %v3292
  %3474 = vmatprep.subr.mxu0 0.0
  %3475 = vmatpush2.msra.mxu0 %v3291
  %3476 = vmatprep.subr.mxu0 0.0
  %3477 = vmatpush2.msra.mxu0 %v3290
  %3478 = vmatprep.subr.mxu0 0.0
  %3479 = vmatpush2.msra.mxu0 %v3289
  %3480 = vmatprep.subr.mxu0 0.0
  %3481 = vmatpush2.msra.mxu0 %v3288
  %3482 = vmatprep.subr.mxu0 0.0
  %3483 = vmatpush2.msra.mxu0 %v3287
  %3484 = vmatprep.subr.mxu0 0.0
  %3485 = vmatpush2.msra.mxu0 %v3286
  %3486 = vmatprep.mubr.f32.mxu0 %v3173
  %3487 = vmatmul.mubr.f32.gmra.mxu0 %v3172
  %v3488 = vpop.f32.mrf.mxu0
  %v3489 = vadd.f32 0.0, %v3488
  %v3490 = vpop.f32.mrf.mxu0
  %3491 = vdwg.mxu0
  %v3492 = vmul.f32 %v3419, 0.03125
  %v3493 = vmul.f32 %v3489, 0.03125
  %v3494 = vmul.f32 %v3492, %v3492
  %v3495 = vsub.f32 %v3493, %v3494
  %v3496 = vmax.f32 %v3495, 0.0
  %v3497 = vld [vmem:[%s5] sm:$0x1]
  %v3498 = vadd.f32 %v3496, 1e-05
  %v3499 = vrsqrt.pop %v3498
  %v3500 = vmul.f32 %v3497, %v3499
  %v3501 = vld [vmem:[%s6] sm:$0x1]
  %v3502 = vmul.f32 %v3492, %v3500
  %v3503 = vsub.f32 %v3501, %v3502
  %vm3504 = vcmask 523264
  %v3506 = vsel %vm3504, %v3500, 0
  %3508 = vmatprep.subr.mxu0 0.0
  %3509 = vmatpush1.msra.mxu0 0.0
  %3510 = vmatprep.subr.mxu0 0.0
  %3511 = vmatpush1.msra.mxu0 0.0
  %3512 = vmatprep.subr.mxu0 0.0
  %3513 = vmatpush1.msra.mxu0 0.0
  %3514 = vmatprep.subr.mxu0 0.0
  %3515 = vmatpush1.msra.mxu0 0.0
  %3516 = vmatprep.subr.mxu0 0.0
  %3517 = vmatpush1.msra.mxu0 0.0
  %3518 = vmatprep.subr.mxu0 0.0
  %3519 = vmatpush1.msra.mxu0 0.0
  %3520 = vmatprep.subr.mxu0 0.0
  %3521 = vmatpush1.msra.mxu0 0.0
  %3522 = vmatprep.subr.mxu0 0.0
  %3523 = vmatpush1.msra.mxu0 0.0
  %3524 = vmatprep.subr.mxu0 %v3351
  %3525 = vmatpush1.msra.mxu0 %v3350
  %3526 = vmatprep.subr.mxu0 %v3349
  %3527 = vmatpush1.msra.mxu0 %v3348
  %3528 = vmatprep.subr.mxu0 %v3347
  %3529 = vmatpush1.msra.mxu0 %v3346
  %3530 = vmatprep.subr.mxu0 %v3345
  %3531 = vmatpush1.msra.mxu0 %v3344
  %3532 = vmatprep.subr.mxu0 %v3343
  %3533 = vmatpush1.msra.mxu0 %v3342
  %3534 = vmatprep.subr.mxu0 %v3341
  %3535 = vmatpush1.msra.mxu0 %v3340
  %3536 = vmatprep.subr.mxu0 %v3339
  %3537 = vmatpush1.msra.mxu0 %v3338
  %3538 = vmatprep.subr.mxu0 %v3337
  %3539 = vmatpush1.msra.mxu0 %v3336
  %3540 = vmatprep.subr.mxu0 0.0
  %3541 = vmatpush2.msra.mxu0 0.0
  %3542 = vmatprep.subr.mxu0 0.0
  %3543 = vmatpush2.msra.mxu0 0.0
  %3544 = vmatprep.subr.mxu0 0.0
  %3545 = vmatpush2.msra.mxu0 0.0
  %3546 = vmatprep.subr.mxu0 0.0
  %3547 = vmatpush2.msra.mxu0 0.0
  %3548 = vmatprep.subr.mxu0 0.0
  %3549 = vmatpush2.msra.mxu0 0.0
  %3550 = vmatprep.subr.mxu0 0.0
  %3551 = vmatpush2.msra.mxu0 0.0
  %3552 = vmatprep.subr.mxu0 0.0
  %3553 = vmatpush2.msra.mxu0 0.0
  %3554 = vmatprep.subr.mxu0 0.0
  %3555 = vmatpush2.msra.mxu0 0.0
  %3556 = vmatprep.subr.mxu0 0.0
  %3557 = vmatpush2.msra.mxu0 0.0
  %3558 = vmatprep.subr.mxu0 0.0
  %3559 = vmatpush2.msra.mxu0 0.0
  %3560 = vmatprep.subr.mxu0 0.0
  %3561 = vmatpush2.msra.mxu0 0.0
  %3562 = vmatprep.subr.mxu0 0.0
  %3563 = vmatpush2.msra.mxu0 0.0
  %3564 = vmatprep.subr.mxu0 0.0
  %3565 = vmatpush2.msra.mxu0 0.0
  %3566 = vmatprep.subr.mxu0 0.0
  %3567 = vmatpush2.msra.mxu0 0.0
  %3568 = vmatprep.subr.mxu0 0.0
  %3569 = vmatpush2.msra.mxu0 0.0
  %3570 = vmatprep.subr.mxu0 0.0
  %3571 = vmatpush2.msra.mxu0 0.0
  %3572 = vmatprep.mubr.f32.mxu0 0.0
  %3573 = vmatmul.mubr.f32.gmra.mxu0 %v3506
  %v3574 = vpop.f32.mrf.mxu0
  %v3575 = vadd.f32 0.0, %v3574
  %v3576 = vpop.f32.mrf.mxu0
  %v3577 = vadd.f32 0.0, %v3576
  %3578 = vdwg.mxu0
  %v3580 = vsel %vm3504, %v3503, 0
  %3582 = vmatprep.subr.mxu0 0.0
  %3583 = vmatpush1.msra.mxu0 0.0
  %3584 = vmatprep.subr.mxu0 0.0
  %3585 = vmatpush1.msra.mxu0 0.0
  %3586 = vmatprep.subr.mxu0 0.0
  %3587 = vmatpush1.msra.mxu0 0.0
  %3588 = vmatprep.subr.mxu0 0.0
  %3589 = vmatpush1.msra.mxu0 0.0
  %3590 = vmatprep.subr.mxu0 0.0
  %3591 = vmatpush1.msra.mxu0 0.0
  %3592 = vmatprep.subr.mxu0 0.0
  %3593 = vmatpush1.msra.mxu0 0.0
  %3594 = vmatprep.subr.mxu0 0.0
  %3595 = vmatpush1.msra.mxu0 0.0
  %3596 = vmatprep.subr.mxu0 0.0
  %3597 = vmatpush1.msra.mxu0 0.0
  %3598 = vmatprep.subr.mxu0 %v3351
  %3599 = vmatpush1.msra.mxu0 %v3350
  %3600 = vmatprep.subr.mxu0 %v3349
  %3601 = vmatpush1.msra.mxu0 %v3348
  %3602 = vmatprep.subr.mxu0 %v3347
  %3603 = vmatpush1.msra.mxu0 %v3346
  %3604 = vmatprep.subr.mxu0 %v3345
  %3605 = vmatpush1.msra.mxu0 %v3344
  %3606 = vmatprep.subr.mxu0 %v3343
  %3607 = vmatpush1.msra.mxu0 %v3342
  %3608 = vmatprep.subr.mxu0 %v3341
  %3609 = vmatpush1.msra.mxu0 %v3340
  %3610 = vmatprep.subr.mxu0 %v3339
  %3611 = vmatpush1.msra.mxu0 %v3338
  %3612 = vmatprep.subr.mxu0 %v3337
  %3613 = vmatpush1.msra.mxu0 %v3336
  %3614 = vmatprep.subr.mxu0 0.0
  %3615 = vmatpush2.msra.mxu0 0.0
  %3616 = vmatprep.subr.mxu0 0.0
  %3617 = vmatpush2.msra.mxu0 0.0
  %3618 = vmatprep.subr.mxu0 0.0
  %3619 = vmatpush2.msra.mxu0 0.0
  %3620 = vmatprep.subr.mxu0 0.0
  %3621 = vmatpush2.msra.mxu0 0.0
  %3622 = vmatprep.subr.mxu0 0.0
  %3623 = vmatpush2.msra.mxu0 0.0
  %3624 = vmatprep.subr.mxu0 0.0
  %3625 = vmatpush2.msra.mxu0 0.0
  %3626 = vmatprep.subr.mxu0 0.0
  %3627 = vmatpush2.msra.mxu0 0.0
  %3628 = vmatprep.subr.mxu0 0.0
  %3629 = vmatpush2.msra.mxu0 0.0
  %3630 = vmatprep.subr.mxu0 0.0
  %3631 = vmatpush2.msra.mxu0 0.0
  %3632 = vmatprep.subr.mxu0 0.0
  %3633 = vmatpush2.msra.mxu0 0.0
  %3634 = vmatprep.subr.mxu0 0.0
  %3635 = vmatpush2.msra.mxu0 0.0
  %3636 = vmatprep.subr.mxu0 0.0
  %3637 = vmatpush2.msra.mxu0 0.0
  %3638 = vmatprep.subr.mxu0 0.0
  %3639 = vmatpush2.msra.mxu0 0.0
  %3640 = vmatprep.subr.mxu0 0.0
  %3641 = vmatpush2.msra.mxu0 0.0
  %3642 = vmatprep.subr.mxu0 0.0
  %3643 = vmatpush2.msra.mxu0 0.0
  %3644 = vmatprep.subr.mxu0 0.0
  %3645 = vmatpush2.msra.mxu0 0.0
  %3646 = vmatprep.mubr.f32.mxu0 0.0
  %3647 = vmatmul.mubr.f32.gmra.mxu0 %v3580
  %v3648 = vpop.f32.mrf.mxu0
  %v3649 = vadd.f32 0.0, %v3648
  %v3650 = vpop.f32.mrf.mxu0
  %v3651 = vadd.f32 0.0, %v3650
  %3652 = vdwg.mxu0
  %v3653 = vlaneseq
  %v3654 = vshrl.u32 %v3653, 7
  %v3655 = vsub.s32 0, %v3654
  %v3656 = vrot.slane %v3575, %v3655
  %v3657 = vlaneseq
  %v3658 = vshrl.u32 %v3657, 7
  %v3659 = vsub.s32 0, %v3658
  %v3660 = vrot.slane %v3577, %v3659
  %v3661 = vmul.f32 %v2469, %v3656
  %v3662 = vmul.f32 %v2471, %v3660
  %v3663 = vlaneseq
  %v3664 = vshrl.u32 %v3663, 7
  %v3665 = vsub.s32 0, %v3664
  %v3666 = vrot.slane %v3649, %v3665
  %v3667 = vlaneseq
  %v3668 = vshrl.u32 %v3667, 7
  %v3669 = vsub.s32 0, %v3668
  %v3670 = vrot.slane %v3651, %v3669
  %v3671 = vadd.f32 %v3661, %v3666
  %v3672 = vadd.f32 %v3662, %v3670
  %v3673 = vmax.f32 %v3671, 0.0
  %v3674 = vmax.f32 %v3672, 0.0
  %v3675 = vmul.f32 %v2790, %v3656
  %v3676 = vmul.f32 %v2791, %v3660
  %v3677 = vadd.f32 %v3675, %v3666
  %v3678 = vadd.f32 %v3676, %v3670
  %v3679 = vmax.f32 %v3677, 0.0
  %v3680 = vmax.f32 %v3678, 0.0
  %v3681 = vmul.f32 %v2915, %v3656
  %v3682 = vmul.f32 %v2916, %v3660
  %v3683 = vadd.f32 %v3681, %v3666
  %v3684 = vadd.f32 %v3682, %v3670
  %v3685 = vmax.f32 %v3683, 0.0
  %v3686 = vmax.f32 %v3684, 0.0
  %v3687 = vmul.f32 %v3040, %v3656
  %v3688 = vmul.f32 %v3041, %v3660
  %v3689 = vadd.f32 %v3687, %v3666
  %v3690 = vadd.f32 %v3688, %v3670
  %v3691 = vmax.f32 %v3689, 0.0
  %v3692 = vmax.f32 %v3690, 0.0
  %v3693 = vpack.c.bf16 %v3673, %v3673
  %v3694 = vpack.c.bf16 %v3674, %v3674
  %v3695 = vpack.c.bf16 %v3679, %v3679
  %v3696 = vpack.c.bf16 %v3680, %v3680
  %v3697 = vpack.c.bf16 %v3685, %v3685
  %v3698 = vpack.c.bf16 %v3686, %v3686
  %v3699 = vpack.c.bf16 %v3691, %v3691
  %v3700 = vpack.c.bf16 %v3692, %v3692
  %s3701 = scalar_lea.vmem %s7, 256
  %v3702 = vld [vmem:[%s3701] sm:$0xff]
  %v3703 = vld [vmem:[%s3701 + $0x8] sm:$0xff]
  %v3704 = vld [vmem:[%s3701 + $0x10] sm:$0xff]
  %v3705 = vld [vmem:[%s3701 + $0x18] sm:$0xff]
  %v3706 = vld [vmem:[%s3701 + $0x20] sm:$0xff]
  %v3707 = vld [vmem:[%s3701 + $0x28] sm:$0xff]
  %v3708 = vld [vmem:[%s3701 + $0x30] sm:$0xff]
  %v3709 = vld [vmem:[%s3701 + $0x38] sm:$0xff]
  %v3710 = vld [vmem:[%s3701 + $0x40] sm:$0xff]
  %v3711 = vld [vmem:[%s3701 + $0x48] sm:$0xff]
  %v3712 = vld [vmem:[%s3701 + $0x50] sm:$0xff]
  %v3713 = vld [vmem:[%s3701 + $0x58] sm:$0xff]
  %v3714 = vld [vmem:[%s3701 + $0x60] sm:$0xff]
  %v3715 = vld [vmem:[%s3701 + $0x68] sm:$0xff]
  %v3716 = vld [vmem:[%s3701 + $0x70] sm:$0xff]
  %v3717 = vld [vmem:[%s3701 + $0x78] sm:$0xff]
  %v3718 = vld [vmem:[%s3701 + $0x80] sm:$0xff]
  %v3719 = vld [vmem:[%s3701 + $0x88] sm:$0xff]
  %v3720 = vld [vmem:[%s3701 + $0x90] sm:$0xff]
  %v3721 = vld [vmem:[%s3701 + $0x98] sm:$0xff]
  %v3722 = vld [vmem:[%s3701 + $0xa0] sm:$0xff]
  %v3723 = vld [vmem:[%s3701 + $0xa8] sm:$0xff]
  %v3724 = vld [vmem:[%s3701 + $0xb0] sm:$0xff]
  %v3725 = vld [vmem:[%s3701 + $0xb8] sm:$0xff]
  %v3726 = vld [vmem:[%s3701 + $0xc0] sm:$0xff]
  %v3727 = vld [vmem:[%s3701 + $0xc8] sm:$0xff]
  %v3728 = vld [vmem:[%s3701 + $0xd0] sm:$0xff]
  %v3729 = vld [vmem:[%s3701 + $0xd8] sm:$0xff]
  %v3730 = vld [vmem:[%s3701 + $0xe0] sm:$0xff]
  %v3731 = vld [vmem:[%s3701 + $0xe8] sm:$0xff]
  %v3732 = vld [vmem:[%s3701 + $0xf0] sm:$0xff]
  %v3733 = vld [vmem:[%s3701 + $0xf8] sm:$0xff]
  %s3734 = scalar_lea.vmem %s7, 512
  %v3735 = vld [vmem:[%s3734] sm:$0xff]
  %v3736 = vld [vmem:[%s3734 + $0x8] sm:$0xff]
  %v3737 = vld [vmem:[%s3734 + $0x10] sm:$0xff]
  %v3738 = vld [vmem:[%s3734 + $0x18] sm:$0xff]
  %v3739 = vld [vmem:[%s3734 + $0x20] sm:$0xff]
  %v3740 = vld [vmem:[%s3734 + $0x28] sm:$0xff]
  %v3741 = vld [vmem:[%s3734 + $0x30] sm:$0xff]
  %v3742 = vld [vmem:[%s3734 + $0x38] sm:$0xff]
  %v3743 = vld [vmem:[%s3734 + $0x40] sm:$0xff]
  %v3744 = vld [vmem:[%s3734 + $0x48] sm:$0xff]
  %v3745 = vld [vmem:[%s3734 + $0x50] sm:$0xff]
  %v3746 = vld [vmem:[%s3734 + $0x58] sm:$0xff]
  %v3747 = vld [vmem:[%s3734 + $0x60] sm:$0xff]
  %v3748 = vld [vmem:[%s3734 + $0x68] sm:$0xff]
  %v3749 = vld [vmem:[%s3734 + $0x70] sm:$0xff]
  %v3750 = vld [vmem:[%s3734 + $0x78] sm:$0xff]
  %v3751 = vld [vmem:[%s3734 + $0x80] sm:$0xff]
  %v3752 = vld [vmem:[%s3734 + $0x88] sm:$0xff]
  %v3753 = vld [vmem:[%s3734 + $0x90] sm:$0xff]
  %v3754 = vld [vmem:[%s3734 + $0x98] sm:$0xff]
  %v3755 = vld [vmem:[%s3734 + $0xa0] sm:$0xff]
  %v3756 = vld [vmem:[%s3734 + $0xa8] sm:$0xff]
  %v3757 = vld [vmem:[%s3734 + $0xb0] sm:$0xff]
  %v3758 = vld [vmem:[%s3734 + $0xb8] sm:$0xff]
  %v3759 = vld [vmem:[%s3734 + $0xc0] sm:$0xff]
  %v3760 = vld [vmem:[%s3734 + $0xc8] sm:$0xff]
  %v3761 = vld [vmem:[%s3734 + $0xd0] sm:$0xff]
  %v3762 = vld [vmem:[%s3734 + $0xd8] sm:$0xff]
  %v3763 = vld [vmem:[%s3734 + $0xe0] sm:$0xff]
  %v3764 = vld [vmem:[%s3734 + $0xe8] sm:$0xff]
  %v3765 = vld [vmem:[%s3734 + $0xf0] sm:$0xff]
  %v3766 = vld [vmem:[%s3734 + $0xf8] sm:$0xff]
  %v3799 = vunpack.c.l.b16 %v3735
  %v3800 = vunpack.c.h.b16 %v3735
  %v3801 = vunpack.c.l.b16 %v3736
  %v3802 = vunpack.c.h.b16 %v3736
  %v3803 = vunpack.c.l.b16 %v3737
  %v3804 = vunpack.c.h.b16 %v3737
  %v3805 = vunpack.c.l.b16 %v3738
  %v3806 = vunpack.c.h.b16 %v3738
  %v3807 = vunpack.c.l.b16 %v3739
  %v3808 = vunpack.c.h.b16 %v3739
  %v3809 = vunpack.c.l.b16 %v3740
  %v3810 = vunpack.c.h.b16 %v3740
  %v3811 = vunpack.c.l.b16 %v3741
  %v3812 = vunpack.c.h.b16 %v3741
  %v3813 = vunpack.c.l.b16 %v3742
  %v3814 = vunpack.c.h.b16 %v3742
  %v3815 = vunpack.c.l.b16 %v3743
  %v3816 = vunpack.c.h.b16 %v3743
  %v3817 = vunpack.c.l.b16 %v3744
  %v3818 = vunpack.c.h.b16 %v3744
  %v3819 = vunpack.c.l.b16 %v3745
  %v3820 = vunpack.c.h.b16 %v3745
  %v3821 = vunpack.c.l.b16 %v3746
  %v3822 = vunpack.c.h.b16 %v3746
  %v3823 = vunpack.c.l.b16 %v3747
  %v3824 = vunpack.c.h.b16 %v3747
  %v3825 = vunpack.c.l.b16 %v3748
  %v3826 = vunpack.c.h.b16 %v3748
  %v3827 = vunpack.c.l.b16 %v3749
  %v3828 = vunpack.c.h.b16 %v3749
  %v3829 = vunpack.c.l.b16 %v3750
  %v3830 = vunpack.c.h.b16 %v3750
  %v3831 = vunpack.c.l.b16 %v3751
  %v3832 = vunpack.c.h.b16 %v3751
  %v3833 = vunpack.c.l.b16 %v3752
  %v3834 = vunpack.c.h.b16 %v3752
  %v3835 = vunpack.c.l.b16 %v3753
  %v3836 = vunpack.c.h.b16 %v3753
  %v3837 = vunpack.c.l.b16 %v3754
  %v3838 = vunpack.c.h.b16 %v3754
  %v3839 = vunpack.c.l.b16 %v3755
  %v3840 = vunpack.c.h.b16 %v3755
  %v3841 = vunpack.c.l.b16 %v3756
  %v3842 = vunpack.c.h.b16 %v3756
  %v3843 = vunpack.c.l.b16 %v3757
  %v3844 = vunpack.c.h.b16 %v3757
  %v3845 = vunpack.c.l.b16 %v3758
  %v3846 = vunpack.c.h.b16 %v3758
  %v3847 = vunpack.c.l.b16 %v3759
  %v3848 = vunpack.c.h.b16 %v3759
  %v3849 = vunpack.c.l.b16 %v3760
  %v3850 = vunpack.c.h.b16 %v3760
  %v3851 = vunpack.c.l.b16 %v3761
  %v3852 = vunpack.c.h.b16 %v3761
  %v3853 = vunpack.c.l.b16 %v3762
  %v3854 = vunpack.c.h.b16 %v3762
  %v3855 = vunpack.c.l.b16 %v3763
  %v3856 = vunpack.c.h.b16 %v3763
  %v3857 = vunpack.c.l.b16 %v3764
  %v3858 = vunpack.c.h.b16 %v3764
  %v3859 = vunpack.c.l.b16 %v3765
  %v3860 = vunpack.c.h.b16 %v3765
  %v3861 = vunpack.c.l.b16 %v3766
  %v3862 = vunpack.c.h.b16 %v3766
  %v3863 = vpack.c.b16 %v3801, %v3799
  %v3864 = vpack.c.b16 %v3802, %v3800
  %v3865 = vpack.c.b16 %v3805, %v3803
  %v3866 = vpack.c.b16 %v3806, %v3804
  %v3867 = vpack.c.b16 %v3809, %v3807
  %v3868 = vpack.c.b16 %v3810, %v3808
  %v3869 = vpack.c.b16 %v3813, %v3811
  %v3870 = vpack.c.b16 %v3814, %v3812
  %v3871 = vpack.c.b16 %v3817, %v3815
  %v3872 = vpack.c.b16 %v3818, %v3816
  %v3873 = vpack.c.b16 %v3821, %v3819
  %v3874 = vpack.c.b16 %v3822, %v3820
  %v3875 = vpack.c.b16 %v3825, %v3823
  %v3876 = vpack.c.b16 %v3826, %v3824
  %v3877 = vpack.c.b16 %v3829, %v3827
  %v3878 = vpack.c.b16 %v3830, %v3828
  %v3879 = vpack.c.b16 %v3833, %v3831
  %v3880 = vpack.c.b16 %v3834, %v3832
  %v3881 = vpack.c.b16 %v3837, %v3835
  %v3882 = vpack.c.b16 %v3838, %v3836
  %v3883 = vpack.c.b16 %v3841, %v3839
  %v3884 = vpack.c.b16 %v3842, %v3840
  %v3885 = vpack.c.b16 %v3845, %v3843
  %v3886 = vpack.c.b16 %v3846, %v3844
  %v3887 = vpack.c.b16 %v3849, %v3847
  %v3888 = vpack.c.b16 %v3850, %v3848
  %v3889 = vpack.c.b16 %v3853, %v3851
  %v3890 = vpack.c.b16 %v3854, %v3852
  %v3891 = vpack.c.b16 %v3857, %v3855
  %v3892 = vpack.c.b16 %v3858, %v3856
  %v3893 = vpack.c.b16 %v3861, %v3859
  %v3894 = vpack.c.b16 %v3862, %v3860
  %3927 = vmatprep.subr.bf16.mxu0 %v3878
  %3928 = vmatpush1.bf16.msra.mxu0 %v3877
  %3929 = vmatprep.subr.bf16.mxu0 %v3876
  %3930 = vmatpush1.bf16.msra.mxu0 %v3875
  %3931 = vmatprep.subr.bf16.mxu0 %v3874
  %3932 = vmatpush1.bf16.msra.mxu0 %v3873
  %3933 = vmatprep.subr.bf16.mxu0 %v3872
  %3934 = vmatpush1.bf16.msra.mxu0 %v3871
  %3935 = vmatprep.subr.bf16.mxu0 %v3870
  %3936 = vmatpush1.bf16.msra.mxu0 %v3869
  %3937 = vmatprep.subr.bf16.mxu0 %v3868
  %3938 = vmatpush1.bf16.msra.mxu0 %v3867
  %3939 = vmatprep.subr.bf16.mxu0 %v3866
  %3940 = vmatpush1.bf16.msra.mxu0 %v3865
  %3941 = vmatprep.subr.bf16.mxu0 %v3864
  %3942 = vmatpush1.bf16.msra.mxu0 %v3863
  %3943 = vmatprep.subr.bf16.mxu0 %v3894
  %3944 = vmatpush2.bf16.msra.mxu0 %v3893
  %3945 = vmatprep.subr.bf16.mxu0 %v3892
  %3946 = vmatpush2.bf16.msra.mxu0 %v3891
  %3947 = vmatprep.subr.bf16.mxu0 %v3890
  %3948 = vmatpush2.bf16.msra.mxu0 %v3889
  %3949 = vmatprep.subr.bf16.mxu0 %v3888
  %3950 = vmatpush2.bf16.msra.mxu0 %v3887
  %3951 = vmatprep.subr.bf16.mxu0 %v3886
  %3952 = vmatpush2.bf16.msra.mxu0 %v3885
  %3953 = vmatprep.subr.bf16.mxu0 %v3884
  %3954 = vmatpush2.bf16.msra.mxu0 %v3883
  %3955 = vmatprep.subr.bf16.mxu0 %v3882
  %3956 = vmatpush2.bf16.msra.mxu0 %v3881
  %3957 = vmatprep.subr.bf16.mxu0 %v3880
  %3958 = vmatpush2.bf16.msra.mxu0 %v3879
  %3959 = vmatprep.mubr.bf16.mxu0 %v3696
  %3960 = vmatmul.mubr.bf16.gmra.mxu0 %v3695
  %v3961 = vpop.f32.mrf.mxu0
  %v3962 = vadd.f32 0.0, %v3961
  %v3963 = vpop.f32.mrf.mxu0
  %v3964 = vadd.f32 0.0, %v3963
  %v3965 = vpop.f32.mrf.mxu0
  %v3966 = vpop.f32.mrf.mxu0
  %3967 = vdwg.mxu0
  %v4000 = vunpack.c.l.b16 %v3702
  %v4001 = vunpack.c.h.b16 %v3702
  %v4002 = vunpack.c.l.b16 %v3703
  %v4003 = vunpack.c.h.b16 %v3703
  %v4004 = vunpack.c.l.b16 %v3704
  %v4005 = vunpack.c.h.b16 %v3704
  %v4006 = vunpack.c.l.b16 %v3705
  %v4007 = vunpack.c.h.b16 %v3705
  %v4008 = vunpack.c.l.b16 %v3706
  %v4009 = vunpack.c.h.b16 %v3706
  %v4010 = vunpack.c.l.b16 %v3707
  %v4011 = vunpack.c.h.b16 %v3707
  %v4012 = vunpack.c.l.b16 %v3708
  %v4013 = vunpack.c.h.b16 %v3708
  %v4014 = vunpack.c.l.b16 %v3709
  %v4015 = vunpack.c.h.b16 %v3709
  %v4016 = vunpack.c.l.b16 %v3710
  %v4017 = vunpack.c.h.b16 %v3710
  %v4018 = vunpack.c.l.b16 %v3711
  %v4019 = vunpack.c.h.b16 %v3711
  %v4020 = vunpack.c.l.b16 %v3712
  %v4021 = vunpack.c.h.b16 %v3712
  %v4022 = vunpack.c.l.b16 %v3713
  %v4023 = vunpack.c.h.b16 %v3713
  %v4024 = vunpack.c.l.b16 %v3714
  %v4025 = vunpack.c.h.b16 %v3714
  %v4026 = vunpack.c.l.b16 %v3715
  %v4027 = vunpack.c.h.b16 %v3715
  %v4028 = vunpack.c.l.b16 %v3716
  %v4029 = vunpack.c.h.b16 %v3716
  %v4030 = vunpack.c.l.b16 %v3717
  %v4031 = vunpack.c.h.b16 %v3717
  %v4032 = vunpack.c.l.b16 %v3718
  %v4033 = vunpack.c.h.b16 %v3718
  %v4034 = vunpack.c.l.b16 %v3719
  %v4035 = vunpack.c.h.b16 %v3719
  %v4036 = vunpack.c.l.b16 %v3720
  %v4037 = vunpack.c.h.b16 %v3720
  %v4038 = vunpack.c.l.b16 %v3721
  %v4039 = vunpack.c.h.b16 %v3721
  %v4040 = vunpack.c.l.b16 %v3722
  %v4041 = vunpack.c.h.b16 %v3722
  %v4042 = vunpack.c.l.b16 %v3723
  %v4043 = vunpack.c.h.b16 %v3723
  %v4044 = vunpack.c.l.b16 %v3724
  %v4045 = vunpack.c.h.b16 %v3724
  %v4046 = vunpack.c.l.b16 %v3725
  %v4047 = vunpack.c.h.b16 %v3725
  %v4048 = vunpack.c.l.b16 %v3726
  %v4049 = vunpack.c.h.b16 %v3726
  %v4050 = vunpack.c.l.b16 %v3727
  %v4051 = vunpack.c.h.b16 %v3727
  %v4052 = vunpack.c.l.b16 %v3728
  %v4053 = vunpack.c.h.b16 %v3728
  %v4054 = vunpack.c.l.b16 %v3729
  %v4055 = vunpack.c.h.b16 %v3729
  %v4056 = vunpack.c.l.b16 %v3730
  %v4057 = vunpack.c.h.b16 %v3730
  %v4058 = vunpack.c.l.b16 %v3731
  %v4059 = vunpack.c.h.b16 %v3731
  %v4060 = vunpack.c.l.b16 %v3732
  %v4061 = vunpack.c.h.b16 %v3732
  %v4062 = vunpack.c.l.b16 %v3733
  %v4063 = vunpack.c.h.b16 %v3733
  %v4064 = vpack.c.b16 %v4002, %v4000
  %v4065 = vpack.c.b16 %v4003, %v4001
  %v4066 = vpack.c.b16 %v4006, %v4004
  %v4067 = vpack.c.b16 %v4007, %v4005
  %v4068 = vpack.c.b16 %v4010, %v4008
  %v4069 = vpack.c.b16 %v4011, %v4009
  %v4070 = vpack.c.b16 %v4014, %v4012
  %v4071 = vpack.c.b16 %v4015, %v4013
  %v4072 = vpack.c.b16 %v4018, %v4016
  %v4073 = vpack.c.b16 %v4019, %v4017
  %v4074 = vpack.c.b16 %v4022, %v4020
  %v4075 = vpack.c.b16 %v4023, %v4021
  %v4076 = vpack.c.b16 %v4026, %v4024
  %v4077 = vpack.c.b16 %v4027, %v4025
  %v4078 = vpack.c.b16 %v4030, %v4028
  %v4079 = vpack.c.b16 %v4031, %v4029
  %v4080 = vpack.c.b16 %v4034, %v4032
  %v4081 = vpack.c.b16 %v4035, %v4033
  %v4082 = vpack.c.b16 %v4038, %v4036
  %v4083 = vpack.c.b16 %v4039, %v4037
  %v4084 = vpack.c.b16 %v4042, %v4040
  %v4085 = vpack.c.b16 %v4043, %v4041
  %v4086 = vpack.c.b16 %v4046, %v4044
  %v4087 = vpack.c.b16 %v4047, %v4045
  %v4088 = vpack.c.b16 %v4050, %v4048
  %v4089 = vpack.c.b16 %v4051, %v4049
  %v4090 = vpack.c.b16 %v4054, %v4052
  %v4091 = vpack.c.b16 %v4055, %v4053
  %v4092 = vpack.c.b16 %v4058, %v4056
  %v4093 = vpack.c.b16 %v4059, %v4057
  %v4094 = vpack.c.b16 %v4062, %v4060
  %v4095 = vpack.c.b16 %v4063, %v4061
  %4128 = vmatprep.subr.bf16.mxu0 %v4079
  %4129 = vmatpush1.bf16.msra.mxu0 %v4078
  %4130 = vmatprep.subr.bf16.mxu0 %v4077
  %4131 = vmatpush1.bf16.msra.mxu0 %v4076
  %4132 = vmatprep.subr.bf16.mxu0 %v4075
  %4133 = vmatpush1.bf16.msra.mxu0 %v4074
  %4134 = vmatprep.subr.bf16.mxu0 %v4073
  %4135 = vmatpush1.bf16.msra.mxu0 %v4072
  %4136 = vmatprep.subr.bf16.mxu0 %v4071
  %4137 = vmatpush1.bf16.msra.mxu0 %v4070
  %4138 = vmatprep.subr.bf16.mxu0 %v4069
  %4139 = vmatpush1.bf16.msra.mxu0 %v4068
  %4140 = vmatprep.subr.bf16.mxu0 %v4067
  %4141 = vmatpush1.bf16.msra.mxu0 %v4066
  %4142 = vmatprep.subr.bf16.mxu0 %v4065
  %4143 = vmatpush1.bf16.msra.mxu0 %v4064
  %4144 = vmatprep.subr.bf16.mxu0 %v4095
  %4145 = vmatpush2.bf16.msra.mxu0 %v4094
  %4146 = vmatprep.subr.bf16.mxu0 %v4093
  %4147 = vmatpush2.bf16.msra.mxu0 %v4092
  %4148 = vmatprep.subr.bf16.mxu0 %v4091
  %4149 = vmatpush2.bf16.msra.mxu0 %v4090
  %4150 = vmatprep.subr.bf16.mxu0 %v4089
  %4151 = vmatpush2.bf16.msra.mxu0 %v4088
  %4152 = vmatprep.subr.bf16.mxu0 %v4087
  %4153 = vmatpush2.bf16.msra.mxu0 %v4086
  %4154 = vmatprep.subr.bf16.mxu0 %v4085
  %4155 = vmatpush2.bf16.msra.mxu0 %v4084
  %4156 = vmatprep.subr.bf16.mxu0 %v4083
  %4157 = vmatpush2.bf16.msra.mxu0 %v4082
  %4158 = vmatprep.subr.bf16.mxu0 %v4081
  %4159 = vmatpush2.bf16.msra.mxu0 %v4080
  %4160 = vmatprep.mubr.bf16.mxu0 %v3694
  %4161 = vmatmul.mubr.bf16.gmra.mxu0 %v3693
  %v4162 = vpop.f32.mrf.mxu0
  %v4163 = vadd.f32 %v3962, %v4162
  %v4164 = vpop.f32.mrf.mxu0
  %v4165 = vadd.f32 %v3964, %v4164
  %v4166 = vpop.f32.mrf.mxu0
  %v4167 = vpop.f32.mrf.mxu0
  %4168 = vdwg.mxu0
  %v4169 = vld [vmem:[%s7] sm:$0xff]
  %v4170 = vld [vmem:[%s7 + $0x8] sm:$0xff]
  %v4171 = vld [vmem:[%s7 + $0x10] sm:$0xff]
  %v4172 = vld [vmem:[%s7 + $0x18] sm:$0xff]
  %v4173 = vld [vmem:[%s7 + $0x20] sm:$0xff]
  %v4174 = vld [vmem:[%s7 + $0x28] sm:$0xff]
  %v4175 = vld [vmem:[%s7 + $0x30] sm:$0xff]
  %v4176 = vld [vmem:[%s7 + $0x38] sm:$0xff]
  %v4177 = vld [vmem:[%s7 + $0x40] sm:$0xff]
  %v4178 = vld [vmem:[%s7 + $0x48] sm:$0xff]
  %v4179 = vld [vmem:[%s7 + $0x50] sm:$0xff]
  %v4180 = vld [vmem:[%s7 + $0x58] sm:$0xff]
  %v4181 = vld [vmem:[%s7 + $0x60] sm:$0xff]
  %v4182 = vld [vmem:[%s7 + $0x68] sm:$0xff]
  %v4183 = vld [vmem:[%s7 + $0x70] sm:$0xff]
  %v4184 = vld [vmem:[%s7 + $0x78] sm:$0xff]
  %v4185 = vld [vmem:[%s7 + $0x80] sm:$0xff]
  %v4186 = vld [vmem:[%s7 + $0x88] sm:$0xff]
  %v4187 = vld [vmem:[%s7 + $0x90] sm:$0xff]
  %v4188 = vld [vmem:[%s7 + $0x98] sm:$0xff]
  %v4189 = vld [vmem:[%s7 + $0xa0] sm:$0xff]
  %v4190 = vld [vmem:[%s7 + $0xa8] sm:$0xff]
  %v4191 = vld [vmem:[%s7 + $0xb0] sm:$0xff]
  %v4192 = vld [vmem:[%s7 + $0xb8] sm:$0xff]
  %v4193 = vld [vmem:[%s7 + $0xc0] sm:$0xff]
  %v4194 = vld [vmem:[%s7 + $0xc8] sm:$0xff]
  %v4195 = vld [vmem:[%s7 + $0xd0] sm:$0xff]
  %v4196 = vld [vmem:[%s7 + $0xd8] sm:$0xff]
  %v4197 = vld [vmem:[%s7 + $0xe0] sm:$0xff]
  %v4198 = vld [vmem:[%s7 + $0xe8] sm:$0xff]
  %v4199 = vld [vmem:[%s7 + $0xf0] sm:$0xff]
  %v4200 = vld [vmem:[%s7 + $0xf8] sm:$0xff]
  %4201 = vmatprep.subr.bf16.mxu0 %v4079
  %4202 = vmatpush1.bf16.msra.mxu0 %v4078
  %4203 = vmatprep.subr.bf16.mxu0 %v4077
  %4204 = vmatpush1.bf16.msra.mxu0 %v4076
  %4205 = vmatprep.subr.bf16.mxu0 %v4075
  %4206 = vmatpush1.bf16.msra.mxu0 %v4074
  %4207 = vmatprep.subr.bf16.mxu0 %v4073
  %4208 = vmatpush1.bf16.msra.mxu0 %v4072
  %4209 = vmatprep.subr.bf16.mxu0 %v4071
  %4210 = vmatpush1.bf16.msra.mxu0 %v4070
  %4211 = vmatprep.subr.bf16.mxu0 %v4069
  %4212 = vmatpush1.bf16.msra.mxu0 %v4068
  %4213 = vmatprep.subr.bf16.mxu0 %v4067
  %4214 = vmatpush1.bf16.msra.mxu0 %v4066
  %4215 = vmatprep.subr.bf16.mxu0 %v4065
  %4216 = vmatpush1.bf16.msra.mxu0 %v4064
  %4217 = vmatprep.subr.bf16.mxu0 %v4095
  %4218 = vmatpush2.bf16.msra.mxu0 %v4094
  %4219 = vmatprep.subr.bf16.mxu0 %v4093
  %4220 = vmatpush2.bf16.msra.mxu0 %v4092
  %4221 = vmatprep.subr.bf16.mxu0 %v4091
  %4222 = vmatpush2.bf16.msra.mxu0 %v4090
  %4223 = vmatprep.subr.bf16.mxu0 %v4089
  %4224 = vmatpush2.bf16.msra.mxu0 %v4088
  %4225 = vmatprep.subr.bf16.mxu0 %v4087
  %4226 = vmatpush2.bf16.msra.mxu0 %v4086
  %4227 = vmatprep.subr.bf16.mxu0 %v4085
  %4228 = vmatpush2.bf16.msra.mxu0 %v4084
  %4229 = vmatprep.subr.bf16.mxu0 %v4083
  %4230 = vmatpush2.bf16.msra.mxu0 %v4082
  %4231 = vmatprep.subr.bf16.mxu0 %v4081
  %4232 = vmatpush2.bf16.msra.mxu0 %v4080
  %4233 = vmatprep.mubr.bf16.mxu0 %v3698
  %4234 = vmatmul.mubr.bf16.gmra.mxu0 %v3697
  %v4235 = vpop.f32.mrf.mxu0
  %v4236 = vadd.f32 0.0, %v4235
  %v4237 = vpop.f32.mrf.mxu0
  %v4238 = vadd.f32 0.0, %v4237
  %v4239 = vpop.f32.mrf.mxu0
  %v4240 = vpop.f32.mrf.mxu0
  %4241 = vdwg.mxu0
  %v4274 = vunpack.c.l.b16 %v4169
  %v4275 = vunpack.c.h.b16 %v4169
  %v4276 = vunpack.c.l.b16 %v4170
  %v4277 = vunpack.c.h.b16 %v4170
  %v4278 = vunpack.c.l.b16 %v4171
  %v4279 = vunpack.c.h.b16 %v4171
  %v4280 = vunpack.c.l.b16 %v4172
  %v4281 = vunpack.c.h.b16 %v4172
  %v4282 = vunpack.c.l.b16 %v4173
  %v4283 = vunpack.c.h.b16 %v4173
  %v4284 = vunpack.c.l.b16 %v4174
  %v4285 = vunpack.c.h.b16 %v4174
  %v4286 = vunpack.c.l.b16 %v4175
  %v4287 = vunpack.c.h.b16 %v4175
  %v4288 = vunpack.c.l.b16 %v4176
  %v4289 = vunpack.c.h.b16 %v4176
  %v4290 = vunpack.c.l.b16 %v4177
  %v4291 = vunpack.c.h.b16 %v4177
  %v4292 = vunpack.c.l.b16 %v4178
  %v4293 = vunpack.c.h.b16 %v4178
  %v4294 = vunpack.c.l.b16 %v4179
  %v4295 = vunpack.c.h.b16 %v4179
  %v4296 = vunpack.c.l.b16 %v4180
  %v4297 = vunpack.c.h.b16 %v4180
  %v4298 = vunpack.c.l.b16 %v4181
  %v4299 = vunpack.c.h.b16 %v4181
  %v4300 = vunpack.c.l.b16 %v4182
  %v4301 = vunpack.c.h.b16 %v4182
  %v4302 = vunpack.c.l.b16 %v4183
  %v4303 = vunpack.c.h.b16 %v4183
  %v4304 = vunpack.c.l.b16 %v4184
  %v4305 = vunpack.c.h.b16 %v4184
  %v4306 = vunpack.c.l.b16 %v4185
  %v4307 = vunpack.c.h.b16 %v4185
  %v4308 = vunpack.c.l.b16 %v4186
  %v4309 = vunpack.c.h.b16 %v4186
  %v4310 = vunpack.c.l.b16 %v4187
  %v4311 = vunpack.c.h.b16 %v4187
  %v4312 = vunpack.c.l.b16 %v4188
  %v4313 = vunpack.c.h.b16 %v4188
  %v4314 = vunpack.c.l.b16 %v4189
  %v4315 = vunpack.c.h.b16 %v4189
  %v4316 = vunpack.c.l.b16 %v4190
  %v4317 = vunpack.c.h.b16 %v4190
  %v4318 = vunpack.c.l.b16 %v4191
  %v4319 = vunpack.c.h.b16 %v4191
  %v4320 = vunpack.c.l.b16 %v4192
  %v4321 = vunpack.c.h.b16 %v4192
  %v4322 = vunpack.c.l.b16 %v4193
  %v4323 = vunpack.c.h.b16 %v4193
  %v4324 = vunpack.c.l.b16 %v4194
  %v4325 = vunpack.c.h.b16 %v4194
  %v4326 = vunpack.c.l.b16 %v4195
  %v4327 = vunpack.c.h.b16 %v4195
  %v4328 = vunpack.c.l.b16 %v4196
  %v4329 = vunpack.c.h.b16 %v4196
  %v4330 = vunpack.c.l.b16 %v4197
  %v4331 = vunpack.c.h.b16 %v4197
  %v4332 = vunpack.c.l.b16 %v4198
  %v4333 = vunpack.c.h.b16 %v4198
  %v4334 = vunpack.c.l.b16 %v4199
  %v4335 = vunpack.c.h.b16 %v4199
  %v4336 = vunpack.c.l.b16 %v4200
  %v4337 = vunpack.c.h.b16 %v4200
  %v4338 = vpack.c.b16 %v4276, %v4274
  %v4339 = vpack.c.b16 %v4277, %v4275
  %v4340 = vpack.c.b16 %v4280, %v4278
  %v4341 = vpack.c.b16 %v4281, %v4279
  %v4342 = vpack.c.b16 %v4284, %v4282
  %v4343 = vpack.c.b16 %v4285, %v4283
  %v4344 = vpack.c.b16 %v4288, %v4286
  %v4345 = vpack.c.b16 %v4289, %v4287
  %v4346 = vpack.c.b16 %v4292, %v4290
  %v4347 = vpack.c.b16 %v4293, %v4291
  %v4348 = vpack.c.b16 %v4296, %v4294
  %v4349 = vpack.c.b16 %v4297, %v4295
  %v4350 = vpack.c.b16 %v4300, %v4298
  %v4351 = vpack.c.b16 %v4301, %v4299
  %v4352 = vpack.c.b16 %v4304, %v4302
  %v4353 = vpack.c.b16 %v4305, %v4303
  %v4354 = vpack.c.b16 %v4308, %v4306
  %v4355 = vpack.c.b16 %v4309, %v4307
  %v4356 = vpack.c.b16 %v4312, %v4310
  %v4357 = vpack.c.b16 %v4313, %v4311
  %v4358 = vpack.c.b16 %v4316, %v4314
  %v4359 = vpack.c.b16 %v4317, %v4315
  %v4360 = vpack.c.b16 %v4320, %v4318
  %v4361 = vpack.c.b16 %v4321, %v4319
  %v4362 = vpack.c.b16 %v4324, %v4322
  %v4363 = vpack.c.b16 %v4325, %v4323
  %v4364 = vpack.c.b16 %v4328, %v4326
  %v4365 = vpack.c.b16 %v4329, %v4327
  %v4366 = vpack.c.b16 %v4332, %v4330
  %v4367 = vpack.c.b16 %v4333, %v4331
  %v4368 = vpack.c.b16 %v4336, %v4334
  %v4369 = vpack.c.b16 %v4337, %v4335
  %4402 = vmatprep.subr.bf16.mxu0 %v4353
  %4403 = vmatpush1.bf16.msra.mxu0 %v4352
  %4404 = vmatprep.subr.bf16.mxu0 %v4351
  %4405 = vmatpush1.bf16.msra.mxu0 %v4350
  %4406 = vmatprep.subr.bf16.mxu0 %v4349
  %4407 = vmatpush1.bf16.msra.mxu0 %v4348
  %4408 = vmatprep.subr.bf16.mxu0 %v4347
  %4409 = vmatpush1.bf16.msra.mxu0 %v4346
  %4410 = vmatprep.subr.bf16.mxu0 %v4345
  %4411 = vmatpush1.bf16.msra.mxu0 %v4344
  %4412 = vmatprep.subr.bf16.mxu0 %v4343
  %4413 = vmatpush1.bf16.msra.mxu0 %v4342
  %4414 = vmatprep.subr.bf16.mxu0 %v4341
  %4415 = vmatpush1.bf16.msra.mxu0 %v4340
  %4416 = vmatprep.subr.bf16.mxu0 %v4339
  %4417 = vmatpush1.bf16.msra.mxu0 %v4338
  %4418 = vmatprep.subr.bf16.mxu0 %v4369
  %4419 = vmatpush2.bf16.msra.mxu0 %v4368
  %4420 = vmatprep.subr.bf16.mxu0 %v4367
  %4421 = vmatpush2.bf16.msra.mxu0 %v4366
  %4422 = vmatprep.subr.bf16.mxu0 %v4365
  %4423 = vmatpush2.bf16.msra.mxu0 %v4364
  %4424 = vmatprep.subr.bf16.mxu0 %v4363
  %4425 = vmatpush2.bf16.msra.mxu0 %v4362
  %4426 = vmatprep.subr.bf16.mxu0 %v4361
  %4427 = vmatpush2.bf16.msra.mxu0 %v4360
  %4428 = vmatprep.subr.bf16.mxu0 %v4359
  %4429 = vmatpush2.bf16.msra.mxu0 %v4358
  %4430 = vmatprep.subr.bf16.mxu0 %v4357
  %4431 = vmatpush2.bf16.msra.mxu0 %v4356
  %4432 = vmatprep.subr.bf16.mxu0 %v4355
  %4433 = vmatpush2.bf16.msra.mxu0 %v4354
  %4434 = vmatprep.mubr.bf16.mxu0 %v3696
  %4435 = vmatmul.mubr.bf16.gmra.mxu0 %v3695
  %v4436 = vpop.f32.mrf.mxu0
  %v4437 = vadd.f32 %v4236, %v4436
  %v4438 = vpop.f32.mrf.mxu0
  %v4439 = vadd.f32 %v4238, %v4438
  %v4440 = vpop.f32.mrf.mxu0
  %v4441 = vpop.f32.mrf.mxu0
  %4442 = vdwg.mxu0
  %4443 = vmatprep.subr.bf16.mxu0 %v3878
  %4444 = vmatpush1.bf16.msra.mxu0 %v3877
  %4445 = vmatprep.subr.bf16.mxu0 %v3876
  %4446 = vmatpush1.bf16.msra.mxu0 %v3875
  %4447 = vmatprep.subr.bf16.mxu0 %v3874
  %4448 = vmatpush1.bf16.msra.mxu0 %v3873
  %4449 = vmatprep.subr.bf16.mxu0 %v3872
  %4450 = vmatpush1.bf16.msra.mxu0 %v3871
  %4451 = vmatprep.subr.bf16.mxu0 %v3870
  %4452 = vmatpush1.bf16.msra.mxu0 %v3869
  %4453 = vmatprep.subr.bf16.mxu0 %v3868
  %4454 = vmatpush1.bf16.msra.mxu0 %v3867
  %4455 = vmatprep.subr.bf16.mxu0 %v3866
  %4456 = vmatpush1.bf16.msra.mxu0 %v3865
  %4457 = vmatprep.subr.bf16.mxu0 %v3864
  %4458 = vmatpush1.bf16.msra.mxu0 %v3863
  %4459 = vmatprep.subr.bf16.mxu0 %v3894
  %4460 = vmatpush2.bf16.msra.mxu0 %v3893
  %4461 = vmatprep.subr.bf16.mxu0 %v3892
  %4462 = vmatpush2.bf16.msra.mxu0 %v3891
  %4463 = vmatprep.subr.bf16.mxu0 %v3890
  %4464 = vmatpush2.bf16.msra.mxu0 %v3889
  %4465 = vmatprep.subr.bf16.mxu0 %v3888
  %4466 = vmatpush2.bf16.msra.mxu0 %v3887
  %4467 = vmatprep.subr.bf16.mxu0 %v3886
  %4468 = vmatpush2.bf16.msra.mxu0 %v3885
  %4469 = vmatprep.subr.bf16.mxu0 %v3884
  %4470 = vmatpush2.bf16.msra.mxu0 %v3883
  %4471 = vmatprep.subr.bf16.mxu0 %v3882
  %4472 = vmatpush2.bf16.msra.mxu0 %v3881
  %4473 = vmatprep.subr.bf16.mxu0 %v3880
  %4474 = vmatpush2.bf16.msra.mxu0 %v3879
  %4475 = vmatprep.mubr.bf16.mxu0 %v3700
  %4476 = vmatmul.mubr.bf16.gmra.mxu0 %v3699
  %v4477 = vpop.f32.mrf.mxu0
  %v4478 = vadd.f32 0.0, %v4477
  %v4479 = vpop.f32.mrf.mxu0
  %v4480 = vadd.f32 0.0, %v4479
  %v4481 = vpop.f32.mrf.mxu0
  %v4482 = vpop.f32.mrf.mxu0
  %4483 = vdwg.mxu0
  %v4484 = vadd.f32 %v4437, %v4478
  %v4485 = vadd.f32 %v4439, %v4480
  %v4486 = vsel %vm1168, %v4163, 0.0
  %v4487 = vrot.slane %v4486, 4
  %v4488 = vadd.f32 %v4486, %v4487
  %v4489 = vrot.slane %v4488, 2
  %v4490 = vadd.f32 %v4488, %v4489
  %v4491 = vrot.slane %v4490, 1
  %v4492 = vadd.f32 %v4490, %v4491
  %v4493 = vsel %vm1168, %v4165, 0.0
  %v4494 = vrot.slane %v4493, 4
  %v4495 = vadd.f32 %v4493, %v4494
  %v4496 = vrot.slane %v4495, 2
  %v4497 = vadd.f32 %v4495, %v4496
  %v4498 = vrot.slane %v4497, 1
  %v4499 = vadd.f32 %v4497, %v4498
  %v4500 = vmul.f32 %v4163, %v4163
  %v4501 = vmul.f32 %v4165, %v4165
  %v4502 = vsel %vm1168, %v4500, 0.0
  %v4503 = vrot.slane %v4502, 4
  %v4504 = vadd.f32 %v4502, %v4503
  %v4505 = vrot.slane %v4504, 2
  %v4506 = vadd.f32 %v4504, %v4505
  %v4507 = vrot.slane %v4506, 1
  %v4508 = vadd.f32 %v4506, %v4507
  %v4509 = vsel %vm1168, %v4501, 0.0
  %v4510 = vrot.slane %v4509, 4
  %v4511 = vadd.f32 %v4509, %v4510
  %v4512 = vrot.slane %v4511, 2
  %v4513 = vadd.f32 %v4511, %v4512
  %v4514 = vrot.slane %v4513, 1
  %v4515 = vadd.f32 %v4513, %v4514
  %v4516 = vsel %vm1168, %v4484, 0.0
  %v4517 = vrot.slane %v4516, 4
  %v4518 = vadd.f32 %v4516, %v4517
  %v4519 = vrot.slane %v4518, 2
  %v4520 = vadd.f32 %v4518, %v4519
  %v4521 = vrot.slane %v4520, 1
  %v4522 = vadd.f32 %v4520, %v4521
  %v4523 = vsel %vm1168, %v4485, 0.0
  %v4524 = vrot.slane %v4523, 4
  %v4525 = vadd.f32 %v4523, %v4524
  %v4526 = vrot.slane %v4525, 2
  %v4527 = vadd.f32 %v4525, %v4526
  %v4528 = vrot.slane %v4527, 1
  %v4529 = vadd.f32 %v4527, %v4528
  %v4530 = vmul.f32 %v4484, %v4484
  %v4531 = vmul.f32 %v4485, %v4485
  %v4532 = vsel %vm1168, %v4530, 0.0
  %v4533 = vrot.slane %v4532, 4
  %v4534 = vadd.f32 %v4532, %v4533
  %v4535 = vrot.slane %v4534, 2
  %v4536 = vadd.f32 %v4534, %v4535
  %v4537 = vrot.slane %v4536, 1
  %v4538 = vadd.f32 %v4536, %v4537
  %v4539 = vsel %vm1168, %v4531, 0.0
  %v4540 = vrot.slane %v4539, 4
  %v4541 = vadd.f32 %v4539, %v4540
  %v4542 = vrot.slane %v4541, 2
  %v4543 = vadd.f32 %v4541, %v4542
  %v4544 = vrot.slane %v4543, 1
  %v4545 = vadd.f32 %v4543, %v4544
  %v4546 = vadd.f32 %v4492, %v4522
  %v4547 = vadd.f32 %v4499, %v4529
  %v4548 = vadd.f32 %v4508, %v4538
  %v4549 = vadd.f32 %v4515, %v4545
  %v4550 = vand.u32 %v1438, 127
  %v4551 = vand.u32 %v1439, 127
  %v4552 = vand.u32 %v1440, 127
  %v4553 = vand.u32 %v1441, 127
  %v4554 = vand.u32 %v1442, 127
  %v4555 = vand.u32 %v1443, 127
  %v4556 = vand.u32 %v1444, 127
  %v4557 = vand.u32 %v1445, 127
  %v4558 = vand.u32 %v1446, 127
  %v4559 = vand.u32 %v1447, 127
  %v4560 = vand.u32 %v1448, 127
  %v4561 = vand.u32 %v1449, 127
  %v4562 = vand.u32 %v1450, 127
  %v4563 = vand.u32 %v1451, 127
  %v4564 = vand.u32 %v1452, 127
  %v4565 = vand.u32 %v1453, 127
  %v4566 = vand.u32 %v1454, 127
  %v4567 = vand.u32 %v1455, 127
  %v4568 = vand.u32 %v1456, 127
  %v4569 = vand.u32 %v1457, 127
  %v4570 = vand.u32 %v1458, 127
  %v4571 = vand.u32 %v1459, 127
  %v4572 = vand.u32 %v1460, 127
  %v4573 = vand.u32 %v1461, 127
  %v4574 = vand.u32 %v1462, 127
  %v4575 = vand.u32 %v1463, 127
  %v4576 = vand.u32 %v1464, 127
  %v4577 = vand.u32 %v1465, 127
  %v4578 = vand.u32 %v1466, 127
  %v4579 = vand.u32 %v1467, 127
  %v4580 = vand.u32 %v1468, 127
  %v4581 = vand.u32 %v1469, 127
  %vm4582 = vcmp.eq.s32.totalorder %v4550, %v1471
  %vm4583 = vcmp.eq.s32.totalorder %v4551, %v1471
  %vm4584 = vcmp.eq.s32.totalorder %v4552, %v1471
  %vm4585 = vcmp.eq.s32.totalorder %v4553, %v1471
  %vm4586 = vcmp.eq.s32.totalorder %v4554, %v1471
  %vm4587 = vcmp.eq.s32.totalorder %v4555, %v1471
  %vm4588 = vcmp.eq.s32.totalorder %v4556, %v1471
  %vm4589 = vcmp.eq.s32.totalorder %v4557, %v1471
  %vm4590 = vcmp.eq.s32.totalorder %v4558, %v1471
  %vm4591 = vcmp.eq.s32.totalorder %v4559, %v1471
  %vm4592 = vcmp.eq.s32.totalorder %v4560, %v1471
  %vm4593 = vcmp.eq.s32.totalorder %v4561, %v1471
  %vm4594 = vcmp.eq.s32.totalorder %v4562, %v1471
  %vm4595 = vcmp.eq.s32.totalorder %v4563, %v1471
  %vm4596 = vcmp.eq.s32.totalorder %v4564, %v1471
  %vm4597 = vcmp.eq.s32.totalorder %v4565, %v1471
  %vm4598 = vcmp.eq.s32.totalorder %v4566, %v1471
  %vm4599 = vcmp.eq.s32.totalorder %v4567, %v1471
  %vm4600 = vcmp.eq.s32.totalorder %v4568, %v1471
  %vm4601 = vcmp.eq.s32.totalorder %v4569, %v1471
  %vm4602 = vcmp.eq.s32.totalorder %v4570, %v1471
  %vm4603 = vcmp.eq.s32.totalorder %v4571, %v1471
  %vm4604 = vcmp.eq.s32.totalorder %v4572, %v1471
  %vm4605 = vcmp.eq.s32.totalorder %v4573, %v1471
  %vm4606 = vcmp.eq.s32.totalorder %v4574, %v1471
  %vm4607 = vcmp.eq.s32.totalorder %v4575, %v1471
  %vm4608 = vcmp.eq.s32.totalorder %v4576, %v1471
  %vm4609 = vcmp.eq.s32.totalorder %v4577, %v1471
  %vm4610 = vcmp.eq.s32.totalorder %v4578, %v1471
  %vm4611 = vcmp.eq.s32.totalorder %v4579, %v1471
  %vm4612 = vcmp.eq.s32.totalorder %v4580, %v1471
  %vm4613 = vcmp.eq.s32.totalorder %v4581, %v1471
  %v4614 = vsel %vm4582, 1, 0
  %v4615 = vsel %vm4583, 1, 0
  %v4616 = vsel %vm4584, 1, 0
  %v4617 = vsel %vm4585, 1, 0
  %v4618 = vsel %vm4586, 1, 0
  %v4619 = vsel %vm4587, 1, 0
  %v4620 = vsel %vm4588, 1, 0
  %v4621 = vsel %vm4589, 1, 0
  %v4622 = vsel %vm4590, 1, 0
  %v4623 = vsel %vm4591, 1, 0
  %v4624 = vsel %vm4592, 1, 0
  %v4625 = vsel %vm4593, 1, 0
  %v4626 = vsel %vm4594, 1, 0
  %v4627 = vsel %vm4595, 1, 0
  %v4628 = vsel %vm4596, 1, 0
  %v4629 = vsel %vm4597, 1, 0
  %v4630 = vsel %vm4598, 1, 0
  %v4631 = vsel %vm4599, 1, 0
  %v4632 = vsel %vm4600, 1, 0
  %v4633 = vsel %vm4601, 1, 0
  %v4634 = vsel %vm4602, 1, 0
  %v4635 = vsel %vm4603, 1, 0
  %v4636 = vsel %vm4604, 1, 0
  %v4637 = vsel %vm4605, 1, 0
  %v4638 = vsel %vm4606, 1, 0
  %v4639 = vsel %vm4607, 1, 0
  %v4640 = vsel %vm4608, 1, 0
  %v4641 = vsel %vm4609, 1, 0
  %v4642 = vsel %vm4610, 1, 0
  %v4643 = vsel %vm4611, 1, 0
  %v4644 = vsel %vm4612, 1, 0
  %v4645 = vsel %vm4613, 1, 0
  %v4646 = vcvt.s32.f32 %v4614
  %v4647 = vcvt.s32.f32 %v4615
  %v4648 = vcvt.s32.f32 %v4616
  %v4649 = vcvt.s32.f32 %v4617
  %v4650 = vcvt.s32.f32 %v4618
  %v4651 = vcvt.s32.f32 %v4619
  %v4652 = vcvt.s32.f32 %v4620
  %v4653 = vcvt.s32.f32 %v4621
  %v4654 = vcvt.s32.f32 %v4622
  %v4655 = vcvt.s32.f32 %v4623
  %v4656 = vcvt.s32.f32 %v4624
  %v4657 = vcvt.s32.f32 %v4625
  %v4658 = vcvt.s32.f32 %v4626
  %v4659 = vcvt.s32.f32 %v4627
  %v4660 = vcvt.s32.f32 %v4628
  %v4661 = vcvt.s32.f32 %v4629
  %v4662 = vcvt.s32.f32 %v4630
  %v4663 = vcvt.s32.f32 %v4631
  %v4664 = vcvt.s32.f32 %v4632
  %v4665 = vcvt.s32.f32 %v4633
  %v4666 = vcvt.s32.f32 %v4634
  %v4667 = vcvt.s32.f32 %v4635
  %v4668 = vcvt.s32.f32 %v4636
  %v4669 = vcvt.s32.f32 %v4637
  %v4670 = vcvt.s32.f32 %v4638
  %v4671 = vcvt.s32.f32 %v4639
  %v4672 = vcvt.s32.f32 %v4640
  %v4673 = vcvt.s32.f32 %v4641
  %v4674 = vcvt.s32.f32 %v4642
  %v4675 = vcvt.s32.f32 %v4643
  %v4676 = vcvt.s32.f32 %v4644
  %v4677 = vcvt.s32.f32 %v4645
  %v4678 = vand.u32 %v1471, 127
  %v4679 = vand.u32 %v1600, 127
  %vm4680 = vcmp.eq.s32.totalorder %v4678, %v1438
  %vm4681 = vcmp.eq.s32.totalorder %v4679, %v1438
  %vm4682 = vcmp.eq.s32.totalorder %v4678, %v1439
  %vm4683 = vcmp.eq.s32.totalorder %v4679, %v1439
  %vm4684 = vcmp.eq.s32.totalorder %v4678, %v1440
  %vm4685 = vcmp.eq.s32.totalorder %v4679, %v1440
  %vm4686 = vcmp.eq.s32.totalorder %v4678, %v1441
  %vm4687 = vcmp.eq.s32.totalorder %v4679, %v1441
  %vm4688 = vcmp.eq.s32.totalorder %v4678, %v1442
  %vm4689 = vcmp.eq.s32.totalorder %v4679, %v1442
  %vm4690 = vcmp.eq.s32.totalorder %v4678, %v1443
  %vm4691 = vcmp.eq.s32.totalorder %v4679, %v1443
  %vm4692 = vcmp.eq.s32.totalorder %v4678, %v1444
  %vm4693 = vcmp.eq.s32.totalorder %v4679, %v1444
  %vm4694 = vcmp.eq.s32.totalorder %v4678, %v1445
  %vm4695 = vcmp.eq.s32.totalorder %v4679, %v1445
  %vm4696 = vcmp.eq.s32.totalorder %v4678, %v1446
  %vm4697 = vcmp.eq.s32.totalorder %v4679, %v1446
  %vm4698 = vcmp.eq.s32.totalorder %v4678, %v1447
  %vm4699 = vcmp.eq.s32.totalorder %v4679, %v1447
  %vm4700 = vcmp.eq.s32.totalorder %v4678, %v1448
  %vm4701 = vcmp.eq.s32.totalorder %v4679, %v1448
  %vm4702 = vcmp.eq.s32.totalorder %v4678, %v1449
  %vm4703 = vcmp.eq.s32.totalorder %v4679, %v1449
  %vm4704 = vcmp.eq.s32.totalorder %v4678, %v1450
  %vm4705 = vcmp.eq.s32.totalorder %v4679, %v1450
  %vm4706 = vcmp.eq.s32.totalorder %v4678, %v1451
  %vm4707 = vcmp.eq.s32.totalorder %v4679, %v1451
  %vm4708 = vcmp.eq.s32.totalorder %v4678, %v1452
  %vm4709 = vcmp.eq.s32.totalorder %v4679, %v1452
  %vm4710 = vcmp.eq.s32.totalorder %v4678, %v1453
  %vm4711 = vcmp.eq.s32.totalorder %v4679, %v1453
  %v4712 = vsel %vm4680, 1, 0
  %v4713 = vsel %vm4681, 1, 0
  %v4714 = vsel %vm4682, 1, 0
  %v4715 = vsel %vm4683, 1, 0
  %v4716 = vsel %vm4684, 1, 0
  %v4717 = vsel %vm4685, 1, 0
  %v4718 = vsel %vm4686, 1, 0
  %v4719 = vsel %vm4687, 1, 0
  %v4720 = vsel %vm4688, 1, 0
  %v4721 = vsel %vm4689, 1, 0
  %v4722 = vsel %vm4690, 1, 0
  %v4723 = vsel %vm4691, 1, 0
  %v4724 = vsel %vm4692, 1, 0
  %v4725 = vsel %vm4693, 1, 0
  %v4726 = vsel %vm4694, 1, 0
  %v4727 = vsel %vm4695, 1, 0
  %v4728 = vsel %vm4696, 1, 0
  %v4729 = vsel %vm4697, 1, 0
  %v4730 = vsel %vm4698, 1, 0
  %v4731 = vsel %vm4699, 1, 0
  %v4732 = vsel %vm4700, 1, 0
  %v4733 = vsel %vm4701, 1, 0
  %v4734 = vsel %vm4702, 1, 0
  %v4735 = vsel %vm4703, 1, 0
  %v4736 = vsel %vm4704, 1, 0
  %v4737 = vsel %vm4705, 1, 0
  %v4738 = vsel %vm4706, 1, 0
  %v4739 = vsel %vm4707, 1, 0
  %v4740 = vsel %vm4708, 1, 0
  %v4741 = vsel %vm4709, 1, 0
  %v4742 = vsel %vm4710, 1, 0
  %v4743 = vsel %vm4711, 1, 0
  %v4744 = vcvt.s32.f32 %v4712
  %v4745 = vcvt.s32.f32 %v4713
  %v4746 = vcvt.s32.f32 %v4714
  %v4747 = vcvt.s32.f32 %v4715
  %v4748 = vcvt.s32.f32 %v4716
  %v4749 = vcvt.s32.f32 %v4717
  %v4750 = vcvt.s32.f32 %v4718
  %v4751 = vcvt.s32.f32 %v4719
  %v4752 = vcvt.s32.f32 %v4720
  %v4753 = vcvt.s32.f32 %v4721
  %v4754 = vcvt.s32.f32 %v4722
  %v4755 = vcvt.s32.f32 %v4723
  %v4756 = vcvt.s32.f32 %v4724
  %v4757 = vcvt.s32.f32 %v4725
  %v4758 = vcvt.s32.f32 %v4726
  %v4759 = vcvt.s32.f32 %v4727
  %v4760 = vcvt.s32.f32 %v4728
  %v4761 = vcvt.s32.f32 %v4729
  %v4762 = vcvt.s32.f32 %v4730
  %v4763 = vcvt.s32.f32 %v4731
  %v4764 = vcvt.s32.f32 %v4732
  %v4765 = vcvt.s32.f32 %v4733
  %v4766 = vcvt.s32.f32 %v4734
  %v4767 = vcvt.s32.f32 %v4735
  %v4768 = vcvt.s32.f32 %v4736
  %v4769 = vcvt.s32.f32 %v4737
  %v4770 = vcvt.s32.f32 %v4738
  %v4771 = vcvt.s32.f32 %v4739
  %v4772 = vcvt.s32.f32 %v4740
  %v4773 = vcvt.s32.f32 %v4741
  %v4774 = vcvt.s32.f32 %v4742
  %v4775 = vcvt.s32.f32 %v4743
  %4776 = vmatprep.subr.mxu0 0.0
  %4777 = vmatpush1.msra.mxu0 %v4661
  %4778 = vmatprep.subr.mxu0 0.0
  %4779 = vmatpush1.msra.mxu0 %v4660
  %4780 = vmatprep.subr.mxu0 0.0
  %4781 = vmatpush1.msra.mxu0 %v4659
  %4782 = vmatprep.subr.mxu0 0.0
  %4783 = vmatpush1.msra.mxu0 %v4658
  %4784 = vmatprep.subr.mxu0 0.0
  %4785 = vmatpush1.msra.mxu0 %v4657
  %4786 = vmatprep.subr.mxu0 0.0
  %4787 = vmatpush1.msra.mxu0 %v4656
  %4788 = vmatprep.subr.mxu0 0.0
  %4789 = vmatpush1.msra.mxu0 %v4655
  %4790 = vmatprep.subr.mxu0 0.0
  %4791 = vmatpush1.msra.mxu0 %v4654
  %4792 = vmatprep.subr.mxu0 0.0
  %4793 = vmatpush1.msra.mxu0 %v4653
  %4794 = vmatprep.subr.mxu0 0.0
  %4795 = vmatpush1.msra.mxu0 %v4652
  %4796 = vmatprep.subr.mxu0 0.0
  %4797 = vmatpush1.msra.mxu0 %v4651
  %4798 = vmatprep.subr.mxu0 0.0
  %4799 = vmatpush1.msra.mxu0 %v4650
  %4800 = vmatprep.subr.mxu0 0.0
  %4801 = vmatpush1.msra.mxu0 %v4649
  %4802 = vmatprep.subr.mxu0 0.0
  %4803 = vmatpush1.msra.mxu0 %v4648
  %4804 = vmatprep.subr.mxu0 0.0
  %4805 = vmatpush1.msra.mxu0 %v4647
  %4806 = vmatprep.subr.mxu0 0.0
  %4807 = vmatpush1.msra.mxu0 %v4646
  %4808 = vmatprep.subr.mxu0 0.0
  %4809 = vmatpush2.msra.mxu0 %v4677
  %4810 = vmatprep.subr.mxu0 0.0
  %4811 = vmatpush2.msra.mxu0 %v4676
  %4812 = vmatprep.subr.mxu0 0.0
  %4813 = vmatpush2.msra.mxu0 %v4675
  %4814 = vmatprep.subr.mxu0 0.0
  %4815 = vmatpush2.msra.mxu0 %v4674
  %4816 = vmatprep.subr.mxu0 0.0
  %4817 = vmatpush2.msra.mxu0 %v4673
  %4818 = vmatprep.subr.mxu0 0.0
  %4819 = vmatpush2.msra.mxu0 %v4672
  %4820 = vmatprep.subr.mxu0 0.0
  %4821 = vmatpush2.msra.mxu0 %v4671
  %4822 = vmatprep.subr.mxu0 0.0
  %4823 = vmatpush2.msra.mxu0 %v4670
  %4824 = vmatprep.subr.mxu0 0.0
  %4825 = vmatpush2.msra.mxu0 %v4669
  %4826 = vmatprep.subr.mxu0 0.0
  %4827 = vmatpush2.msra.mxu0 %v4668
  %4828 = vmatprep.subr.mxu0 0.0
  %4829 = vmatpush2.msra.mxu0 %v4667
  %4830 = vmatprep.subr.mxu0 0.0
  %4831 = vmatpush2.msra.mxu0 %v4666
  %4832 = vmatprep.subr.mxu0 0.0
  %4833 = vmatpush2.msra.mxu0 %v4665
  %4834 = vmatprep.subr.mxu0 0.0
  %4835 = vmatpush2.msra.mxu0 %v4664
  %4836 = vmatprep.subr.mxu0 0.0
  %4837 = vmatpush2.msra.mxu0 %v4663
  %4838 = vmatprep.subr.mxu0 0.0
  %4839 = vmatpush2.msra.mxu0 %v4662
  %4840 = vmatprep.mubr.f32.mxu0 %v4547
  %4841 = vmatmul.mubr.f32.gmra.mxu0 %v4546
  %v4842 = vpop.f32.mrf.mxu0
  %v4843 = vadd.f32 0.0, %v4842
  %v4844 = vpop.f32.mrf.mxu0
  %4845 = vdwg.mxu0
  %4846 = vmatprep.subr.mxu0 0.0
  %4847 = vmatpush1.msra.mxu0 %v4661
  %4848 = vmatprep.subr.mxu0 0.0
  %4849 = vmatpush1.msra.mxu0 %v4660
  %4850 = vmatprep.subr.mxu0 0.0
  %4851 = vmatpush1.msra.mxu0 %v4659
  %4852 = vmatprep.subr.mxu0 0.0
  %4853 = vmatpush1.msra.mxu0 %v4658
  %4854 = vmatprep.subr.mxu0 0.0
  %4855 = vmatpush1.msra.mxu0 %v4657
  %4856 = vmatprep.subr.mxu0 0.0
  %4857 = vmatpush1.msra.mxu0 %v4656
  %4858 = vmatprep.subr.mxu0 0.0
  %4859 = vmatpush1.msra.mxu0 %v4655
  %4860 = vmatprep.subr.mxu0 0.0
  %4861 = vmatpush1.msra.mxu0 %v4654
  %4862 = vmatprep.subr.mxu0 0.0
  %4863 = vmatpush1.msra.mxu0 %v4653
  %4864 = vmatprep.subr.mxu0 0.0
  %4865 = vmatpush1.msra.mxu0 %v4652
  %4866 = vmatprep.subr.mxu0 0.0
  %4867 = vmatpush1.msra.mxu0 %v4651
  %4868 = vmatprep.subr.mxu0 0.0
  %4869 = vmatpush1.msra.mxu0 %v4650
  %4870 = vmatprep.subr.mxu0 0.0
  %4871 = vmatpush1.msra.mxu0 %v4649
  %4872 = vmatprep.subr.mxu0 0.0
  %4873 = vmatpush1.msra.mxu0 %v4648
  %4874 = vmatprep.subr.mxu0 0.0
  %4875 = vmatpush1.msra.mxu0 %v4647
  %4876 = vmatprep.subr.mxu0 0.0
  %4877 = vmatpush1.msra.mxu0 %v4646
  %4878 = vmatprep.subr.mxu0 0.0
  %4879 = vmatpush2.msra.mxu0 %v4677
  %4880 = vmatprep.subr.mxu0 0.0
  %4881 = vmatpush2.msra.mxu0 %v4676
  %4882 = vmatprep.subr.mxu0 0.0
  %4883 = vmatpush2.msra.mxu0 %v4675
  %4884 = vmatprep.subr.mxu0 0.0
  %4885 = vmatpush2.msra.mxu0 %v4674
  %4886 = vmatprep.subr.mxu0 0.0
  %4887 = vmatpush2.msra.mxu0 %v4673
  %4888 = vmatprep.subr.mxu0 0.0
  %4889 = vmatpush2.msra.mxu0 %v4672
  %4890 = vmatprep.subr.mxu0 0.0
  %4891 = vmatpush2.msra.mxu0 %v4671
  %4892 = vmatprep.subr.mxu0 0.0
  %4893 = vmatpush2.msra.mxu0 %v4670
  %4894 = vmatprep.subr.mxu0 0.0
  %4895 = vmatpush2.msra.mxu0 %v4669
  %4896 = vmatprep.subr.mxu0 0.0
  %4897 = vmatpush2.msra.mxu0 %v4668
  %4898 = vmatprep.subr.mxu0 0.0
  %4899 = vmatpush2.msra.mxu0 %v4667
  %4900 = vmatprep.subr.mxu0 0.0
  %4901 = vmatpush2.msra.mxu0 %v4666
  %4902 = vmatprep.subr.mxu0 0.0
  %4903 = vmatpush2.msra.mxu0 %v4665
  %4904 = vmatprep.subr.mxu0 0.0
  %4905 = vmatpush2.msra.mxu0 %v4664
  %4906 = vmatprep.subr.mxu0 0.0
  %4907 = vmatpush2.msra.mxu0 %v4663
  %4908 = vmatprep.subr.mxu0 0.0
  %4909 = vmatpush2.msra.mxu0 %v4662
  %4910 = vmatprep.mubr.f32.mxu0 %v4549
  %4911 = vmatmul.mubr.f32.gmra.mxu0 %v4548
  %v4912 = vpop.f32.mrf.mxu0
  %v4913 = vadd.f32 0.0, %v4912
  %v4914 = vpop.f32.mrf.mxu0
  %4915 = vdwg.mxu0
  %v4916 = vmul.f32 %v4843, 0.125
  %v4917 = vmul.f32 %v4913, 0.125
  %v4918 = vmul.f32 %v4916, %v4916
  %v4919 = vsub.f32 %v4917, %v4918
  %v4920 = vmax.f32 %v4919, 0.0
  %v4921 = vld [vmem:[%s8] sm:$0x1]
  %v4922 = vadd.f32 %v4920, 1e-05
  %v4923 = vrsqrt.pop %v4922
  %v4924 = vmul.f32 %v4921, %v4923
  %v4925 = vld [vmem:[%s9] sm:$0x1]
  %v4926 = vmul.f32 %v4916, %v4924
  %v4927 = vsub.f32 %v4925, %v4926
  %4928 = vmatprep.subr.mxu0 %v4775
  %4929 = vmatpush1.msra.mxu0 %v4774
  %4930 = vmatprep.subr.mxu0 %v4773
  %4931 = vmatpush1.msra.mxu0 %v4772
  %4932 = vmatprep.subr.mxu0 %v4771
  %4933 = vmatpush1.msra.mxu0 %v4770
  %4934 = vmatprep.subr.mxu0 %v4769
  %4935 = vmatpush1.msra.mxu0 %v4768
  %4936 = vmatprep.subr.mxu0 %v4767
  %4937 = vmatpush1.msra.mxu0 %v4766
  %4938 = vmatprep.subr.mxu0 %v4765
  %4939 = vmatpush1.msra.mxu0 %v4764
  %4940 = vmatprep.subr.mxu0 %v4763
  %4941 = vmatpush1.msra.mxu0 %v4762
  %4942 = vmatprep.subr.mxu0 %v4761
  %4943 = vmatpush1.msra.mxu0 %v4760
  %4944 = vmatprep.subr.mxu0 %v4759
  %4945 = vmatpush1.msra.mxu0 %v4758
  %4946 = vmatprep.subr.mxu0 %v4757
  %4947 = vmatpush1.msra.mxu0 %v4756
  %4948 = vmatprep.subr.mxu0 %v4755
  %4949 = vmatpush1.msra.mxu0 %v4754
  %4950 = vmatprep.subr.mxu0 %v4753
  %4951 = vmatpush1.msra.mxu0 %v4752
  %4952 = vmatprep.subr.mxu0 %v4751
  %4953 = vmatpush1.msra.mxu0 %v4750
  %4954 = vmatprep.subr.mxu0 %v4749
  %4955 = vmatpush1.msra.mxu0 %v4748
  %4956 = vmatprep.subr.mxu0 %v4747
  %4957 = vmatpush1.msra.mxu0 %v4746
  %4958 = vmatprep.subr.mxu0 %v4745
  %4959 = vmatpush1.msra.mxu0 %v4744
  %4960 = vmatprep.subr.mxu0 0.0
  %4961 = vmatpush2.msra.mxu0 0.0
  %4962 = vmatprep.subr.mxu0 0.0
  %4963 = vmatpush2.msra.mxu0 0.0
  %4964 = vmatprep.subr.mxu0 0.0
  %4965 = vmatpush2.msra.mxu0 0.0
  %4966 = vmatprep.subr.mxu0 0.0
  %4967 = vmatpush2.msra.mxu0 0.0
  %4968 = vmatprep.subr.mxu0 0.0
  %4969 = vmatpush2.msra.mxu0 0.0
  %4970 = vmatprep.subr.mxu0 0.0
  %4971 = vmatpush2.msra.mxu0 0.0
  %4972 = vmatprep.subr.mxu0 0.0
  %4973 = vmatpush2.msra.mxu0 0.0
  %4974 = vmatprep.subr.mxu0 0.0
  %4975 = vmatpush2.msra.mxu0 0.0
  %4976 = vmatprep.subr.mxu0 0.0
  %4977 = vmatpush2.msra.mxu0 0.0
  %4978 = vmatprep.subr.mxu0 0.0
  %4979 = vmatpush2.msra.mxu0 0.0
  %4980 = vmatprep.subr.mxu0 0.0
  %4981 = vmatpush2.msra.mxu0 0.0
  %4982 = vmatprep.subr.mxu0 0.0
  %4983 = vmatpush2.msra.mxu0 0.0
  %4984 = vmatprep.subr.mxu0 0.0
  %4985 = vmatpush2.msra.mxu0 0.0
  %4986 = vmatprep.subr.mxu0 0.0
  %4987 = vmatpush2.msra.mxu0 0.0
  %4988 = vmatprep.subr.mxu0 0.0
  %4989 = vmatpush2.msra.mxu0 0.0
  %4990 = vmatprep.subr.mxu0 0.0
  %4991 = vmatpush2.msra.mxu0 0.0
  %4992 = vmatprep.mubr.f32.mxu0 0.0
  %4993 = vmatmul.mubr.f32.gmra.mxu0 %v4924
  %v4994 = vpop.f32.mrf.mxu0
  %v4995 = vadd.f32 0.0, %v4994
  %v4996 = vpop.f32.mrf.mxu0
  %v4997 = vadd.f32 0.0, %v4996
  %4998 = vdwg.mxu0
  %4999 = vmatprep.subr.mxu0 %v4775
  %5000 = vmatpush1.msra.mxu0 %v4774
  %5001 = vmatprep.subr.mxu0 %v4773
  %5002 = vmatpush1.msra.mxu0 %v4772
  %5003 = vmatprep.subr.mxu0 %v4771
  %5004 = vmatpush1.msra.mxu0 %v4770
  %5005 = vmatprep.subr.mxu0 %v4769
  %5006 = vmatpush1.msra.mxu0 %v4768
  %5007 = vmatprep.subr.mxu0 %v4767
  %5008 = vmatpush1.msra.mxu0 %v4766
  %5009 = vmatprep.subr.mxu0 %v4765
  %5010 = vmatpush1.msra.mxu0 %v4764
  %5011 = vmatprep.subr.mxu0 %v4763
  %5012 = vmatpush1.msra.mxu0 %v4762
  %5013 = vmatprep.subr.mxu0 %v4761
  %5014 = vmatpush1.msra.mxu0 %v4760
  %5015 = vmatprep.subr.mxu0 %v4759
  %5016 = vmatpush1.msra.mxu0 %v4758
  %5017 = vmatprep.subr.mxu0 %v4757
  %5018 = vmatpush1.msra.mxu0 %v4756
  %5019 = vmatprep.subr.mxu0 %v4755
  %5020 = vmatpush1.msra.mxu0 %v4754
  %5021 = vmatprep.subr.mxu0 %v4753
  %5022 = vmatpush1.msra.mxu0 %v4752
  %5023 = vmatprep.subr.mxu0 %v4751
  %5024 = vmatpush1.msra.mxu0 %v4750
  %5025 = vmatprep.subr.mxu0 %v4749
  %5026 = vmatpush1.msra.mxu0 %v4748
  %5027 = vmatprep.subr.mxu0 %v4747
  %5028 = vmatpush1.msra.mxu0 %v4746
  %5029 = vmatprep.subr.mxu0 %v4745
  %5030 = vmatpush1.msra.mxu0 %v4744
  %5031 = vmatprep.subr.mxu0 0.0
  %5032 = vmatpush2.msra.mxu0 0.0
  %5033 = vmatprep.subr.mxu0 0.0
  %5034 = vmatpush2.msra.mxu0 0.0
  %5035 = vmatprep.subr.mxu0 0.0
  %5036 = vmatpush2.msra.mxu0 0.0
  %5037 = vmatprep.subr.mxu0 0.0
  %5038 = vmatpush2.msra.mxu0 0.0
  %5039 = vmatprep.subr.mxu0 0.0
  %5040 = vmatpush2.msra.mxu0 0.0
  %5041 = vmatprep.subr.mxu0 0.0
  %5042 = vmatpush2.msra.mxu0 0.0
  %5043 = vmatprep.subr.mxu0 0.0
  %5044 = vmatpush2.msra.mxu0 0.0
  %5045 = vmatprep.subr.mxu0 0.0
  %5046 = vmatpush2.msra.mxu0 0.0
  %5047 = vmatprep.subr.mxu0 0.0
  %5048 = vmatpush2.msra.mxu0 0.0
  %5049 = vmatprep.subr.mxu0 0.0
  %5050 = vmatpush2.msra.mxu0 0.0
  %5051 = vmatprep.subr.mxu0 0.0
  %5052 = vmatpush2.msra.mxu0 0.0
  %5053 = vmatprep.subr.mxu0 0.0
  %5054 = vmatpush2.msra.mxu0 0.0
  %5055 = vmatprep.subr.mxu0 0.0
  %5056 = vmatpush2.msra.mxu0 0.0
  %5057 = vmatprep.subr.mxu0 0.0
  %5058 = vmatpush2.msra.mxu0 0.0
  %5059 = vmatprep.subr.mxu0 0.0
  %5060 = vmatpush2.msra.mxu0 0.0
  %5061 = vmatprep.subr.mxu0 0.0
  %5062 = vmatpush2.msra.mxu0 0.0
  %5063 = vmatprep.mubr.f32.mxu0 0.0
  %5064 = vmatmul.mubr.f32.gmra.mxu0 %v4927
  %v5065 = vpop.f32.mrf.mxu0
  %v5066 = vadd.f32 0.0, %v5065
  %v5067 = vpop.f32.mrf.mxu0
  %v5068 = vadd.f32 0.0, %v5067
  %5069 = vdwg.mxu0
  %v5070 = vlaneseq
  %v5071 = vshrl.u32 %v5070, 7
  %v5072 = vsub.s32 0, %v5071
  %v5073 = vrot.slane %v4995, %v5072
  %v5074 = vlaneseq
  %v5075 = vshrl.u32 %v5074, 7
  %v5076 = vsub.s32 0, %v5075
  %v5077 = vrot.slane %v4997, %v5076
  %v5078 = vmul.f32 %v4163, %v5073
  %v5079 = vmul.f32 %v4165, %v5077
  %v5080 = vlaneseq
  %v5081 = vshrl.u32 %v5080, 7
  %v5082 = vsub.s32 0, %v5081
  %v5083 = vrot.slane %v5066, %v5082
  %v5084 = vlaneseq
  %v5085 = vshrl.u32 %v5084, 7
  %v5086 = vsub.s32 0, %v5085
  %v5087 = vrot.slane %v5068, %v5086
  %v5088 = vadd.f32 %v5078, %v5083
  %v5089 = vadd.f32 %v5079, %v5087
  %v5090 = vmax.f32 %v5088, 0.0
  %v5091 = vmax.f32 %v5089, 0.0
  %v5092 = vmul.f32 %v4484, %v5073
  %v5093 = vmul.f32 %v4485, %v5077
  %v5094 = vadd.f32 %v5092, %v5083
  %v5095 = vadd.f32 %v5093, %v5087
  %v5096 = vmax.f32 %v5094, 0.0
  %v5097 = vmax.f32 %v5095, 0.0
  %v5098 = vpack.c.bf16 %v5090, %v5090
  %v5099 = vpack.c.bf16 %v5091, %v5091
  %v5100 = vpack.c.bf16 %v5096, %v5096
  %v5101 = vpack.c.bf16 %v5097, %v5097
  %s5102 = scalar_lea.vmem %s10, 256
  %v5103 = vld [vmem:[%s5102] sm:$0xff]
  %v5104 = vld [vmem:[%s5102 + $0x8] sm:$0xff]
  %v5105 = vld [vmem:[%s5102 + $0x10] sm:$0xff]
  %v5106 = vld [vmem:[%s5102 + $0x18] sm:$0xff]
  %v5107 = vld [vmem:[%s5102 + $0x20] sm:$0xff]
  %v5108 = vld [vmem:[%s5102 + $0x28] sm:$0xff]
  %v5109 = vld [vmem:[%s5102 + $0x30] sm:$0xff]
  %v5110 = vld [vmem:[%s5102 + $0x38] sm:$0xff]
  %v5111 = vld [vmem:[%s5102 + $0x40] sm:$0xff]
  %v5112 = vld [vmem:[%s5102 + $0x48] sm:$0xff]
  %v5113 = vld [vmem:[%s5102 + $0x50] sm:$0xff]
  %v5114 = vld [vmem:[%s5102 + $0x58] sm:$0xff]
  %v5115 = vld [vmem:[%s5102 + $0x60] sm:$0xff]
  %v5116 = vld [vmem:[%s5102 + $0x68] sm:$0xff]
  %v5117 = vld [vmem:[%s5102 + $0x70] sm:$0xff]
  %v5118 = vld [vmem:[%s5102 + $0x78] sm:$0xff]
  %v5119 = vld [vmem:[%s5102 + $0x80] sm:$0xff]
  %v5120 = vld [vmem:[%s5102 + $0x88] sm:$0xff]
  %v5121 = vld [vmem:[%s5102 + $0x90] sm:$0xff]
  %v5122 = vld [vmem:[%s5102 + $0x98] sm:$0xff]
  %v5123 = vld [vmem:[%s5102 + $0xa0] sm:$0xff]
  %v5124 = vld [vmem:[%s5102 + $0xa8] sm:$0xff]
  %v5125 = vld [vmem:[%s5102 + $0xb0] sm:$0xff]
  %v5126 = vld [vmem:[%s5102 + $0xb8] sm:$0xff]
  %v5127 = vld [vmem:[%s5102 + $0xc0] sm:$0xff]
  %v5128 = vld [vmem:[%s5102 + $0xc8] sm:$0xff]
  %v5129 = vld [vmem:[%s5102 + $0xd0] sm:$0xff]
  %v5130 = vld [vmem:[%s5102 + $0xd8] sm:$0xff]
  %v5131 = vld [vmem:[%s5102 + $0xe0] sm:$0xff]
  %v5132 = vld [vmem:[%s5102 + $0xe8] sm:$0xff]
  %v5133 = vld [vmem:[%s5102 + $0xf0] sm:$0xff]
  %v5134 = vld [vmem:[%s5102 + $0xf8] sm:$0xff]
  %s5135 = scalar_lea.vmem %s10, 512
  %v5136 = vld [vmem:[%s5135] sm:$0xff]
  %v5137 = vld [vmem:[%s5135 + $0x8] sm:$0xff]
  %v5138 = vld [vmem:[%s5135 + $0x10] sm:$0xff]
  %v5139 = vld [vmem:[%s5135 + $0x18] sm:$0xff]
  %v5140 = vld [vmem:[%s5135 + $0x20] sm:$0xff]
  %v5141 = vld [vmem:[%s5135 + $0x28] sm:$0xff]
  %v5142 = vld [vmem:[%s5135 + $0x30] sm:$0xff]
  %v5143 = vld [vmem:[%s5135 + $0x38] sm:$0xff]
  %v5144 = vld [vmem:[%s5135 + $0x40] sm:$0xff]
  %v5145 = vld [vmem:[%s5135 + $0x48] sm:$0xff]
  %v5146 = vld [vmem:[%s5135 + $0x50] sm:$0xff]
  %v5147 = vld [vmem:[%s5135 + $0x58] sm:$0xff]
  %v5148 = vld [vmem:[%s5135 + $0x60] sm:$0xff]
  %v5149 = vld [vmem:[%s5135 + $0x68] sm:$0xff]
  %v5150 = vld [vmem:[%s5135 + $0x70] sm:$0xff]
  %v5151 = vld [vmem:[%s5135 + $0x78] sm:$0xff]
  %v5152 = vld [vmem:[%s5135 + $0x80] sm:$0xff]
  %v5153 = vld [vmem:[%s5135 + $0x88] sm:$0xff]
  %v5154 = vld [vmem:[%s5135 + $0x90] sm:$0xff]
  %v5155 = vld [vmem:[%s5135 + $0x98] sm:$0xff]
  %v5156 = vld [vmem:[%s5135 + $0xa0] sm:$0xff]
  %v5157 = vld [vmem:[%s5135 + $0xa8] sm:$0xff]
  %v5158 = vld [vmem:[%s5135 + $0xb0] sm:$0xff]
  %v5159 = vld [vmem:[%s5135 + $0xb8] sm:$0xff]
  %v5160 = vld [vmem:[%s5135 + $0xc0] sm:$0xff]
  %v5161 = vld [vmem:[%s5135 + $0xc8] sm:$0xff]
  %v5162 = vld [vmem:[%s5135 + $0xd0] sm:$0xff]
  %v5163 = vld [vmem:[%s5135 + $0xd8] sm:$0xff]
  %v5164 = vld [vmem:[%s5135 + $0xe0] sm:$0xff]
  %v5165 = vld [vmem:[%s5135 + $0xe8] sm:$0xff]
  %v5166 = vld [vmem:[%s5135 + $0xf0] sm:$0xff]
  %v5167 = vld [vmem:[%s5135 + $0xf8] sm:$0xff]
  %v5200 = vunpack.c.l.b16 %v5136
  %v5201 = vunpack.c.h.b16 %v5136
  %v5202 = vunpack.c.l.b16 %v5137
  %v5203 = vunpack.c.h.b16 %v5137
  %v5204 = vunpack.c.l.b16 %v5138
  %v5205 = vunpack.c.h.b16 %v5138
  %v5206 = vunpack.c.l.b16 %v5139
  %v5207 = vunpack.c.h.b16 %v5139
  %v5208 = vunpack.c.l.b16 %v5140
  %v5209 = vunpack.c.h.b16 %v5140
  %v5210 = vunpack.c.l.b16 %v5141
  %v5211 = vunpack.c.h.b16 %v5141
  %v5212 = vunpack.c.l.b16 %v5142
  %v5213 = vunpack.c.h.b16 %v5142
  %v5214 = vunpack.c.l.b16 %v5143
  %v5215 = vunpack.c.h.b16 %v5143
  %v5216 = vunpack.c.l.b16 %v5144
  %v5217 = vunpack.c.h.b16 %v5144
  %v5218 = vunpack.c.l.b16 %v5145
  %v5219 = vunpack.c.h.b16 %v5145
  %v5220 = vunpack.c.l.b16 %v5146
  %v5221 = vunpack.c.h.b16 %v5146
  %v5222 = vunpack.c.l.b16 %v5147
  %v5223 = vunpack.c.h.b16 %v5147
  %v5224 = vunpack.c.l.b16 %v5148
  %v5225 = vunpack.c.h.b16 %v5148
  %v5226 = vunpack.c.l.b16 %v5149
  %v5227 = vunpack.c.h.b16 %v5149
  %v5228 = vunpack.c.l.b16 %v5150
  %v5229 = vunpack.c.h.b16 %v5150
  %v5230 = vunpack.c.l.b16 %v5151
  %v5231 = vunpack.c.h.b16 %v5151
  %v5232 = vunpack.c.l.b16 %v5152
  %v5233 = vunpack.c.h.b16 %v5152
  %v5234 = vunpack.c.l.b16 %v5153
  %v5235 = vunpack.c.h.b16 %v5153
  %v5236 = vunpack.c.l.b16 %v5154
  %v5237 = vunpack.c.h.b16 %v5154
  %v5238 = vunpack.c.l.b16 %v5155
  %v5239 = vunpack.c.h.b16 %v5155
  %v5240 = vunpack.c.l.b16 %v5156
  %v5241 = vunpack.c.h.b16 %v5156
  %v5242 = vunpack.c.l.b16 %v5157
  %v5243 = vunpack.c.h.b16 %v5157
  %v5244 = vunpack.c.l.b16 %v5158
  %v5245 = vunpack.c.h.b16 %v5158
  %v5246 = vunpack.c.l.b16 %v5159
  %v5247 = vunpack.c.h.b16 %v5159
  %v5248 = vunpack.c.l.b16 %v5160
  %v5249 = vunpack.c.h.b16 %v5160
  %v5250 = vunpack.c.l.b16 %v5161
  %v5251 = vunpack.c.h.b16 %v5161
  %v5252 = vunpack.c.l.b16 %v5162
  %v5253 = vunpack.c.h.b16 %v5162
  %v5254 = vunpack.c.l.b16 %v5163
  %v5255 = vunpack.c.h.b16 %v5163
  %v5256 = vunpack.c.l.b16 %v5164
  %v5257 = vunpack.c.h.b16 %v5164
  %v5258 = vunpack.c.l.b16 %v5165
  %v5259 = vunpack.c.h.b16 %v5165
  %v5260 = vunpack.c.l.b16 %v5166
  %v5261 = vunpack.c.h.b16 %v5166
  %v5262 = vunpack.c.l.b16 %v5167
  %v5263 = vunpack.c.h.b16 %v5167
  %v5264 = vpack.c.b16 %v5202, %v5200
  %v5265 = vpack.c.b16 %v5203, %v5201
  %v5266 = vpack.c.b16 %v5206, %v5204
  %v5267 = vpack.c.b16 %v5207, %v5205
  %v5268 = vpack.c.b16 %v5210, %v5208
  %v5269 = vpack.c.b16 %v5211, %v5209
  %v5270 = vpack.c.b16 %v5214, %v5212
  %v5271 = vpack.c.b16 %v5215, %v5213
  %v5272 = vpack.c.b16 %v5218, %v5216
  %v5273 = vpack.c.b16 %v5219, %v5217
  %v5274 = vpack.c.b16 %v5222, %v5220
  %v5275 = vpack.c.b16 %v5223, %v5221
  %v5276 = vpack.c.b16 %v5226, %v5224
  %v5277 = vpack.c.b16 %v5227, %v5225
  %v5278 = vpack.c.b16 %v5230, %v5228
  %v5279 = vpack.c.b16 %v5231, %v5229
  %v5280 = vpack.c.b16 %v5234, %v5232
  %v5281 = vpack.c.b16 %v5235, %v5233
  %v5282 = vpack.c.b16 %v5238, %v5236
  %v5283 = vpack.c.b16 %v5239, %v5237
  %v5284 = vpack.c.b16 %v5242, %v5240
  %v5285 = vpack.c.b16 %v5243, %v5241
  %v5286 = vpack.c.b16 %v5246, %v5244
  %v5287 = vpack.c.b16 %v5247, %v5245
  %v5288 = vpack.c.b16 %v5250, %v5248
  %v5289 = vpack.c.b16 %v5251, %v5249
  %v5290 = vpack.c.b16 %v5254, %v5252
  %v5291 = vpack.c.b16 %v5255, %v5253
  %v5292 = vpack.c.b16 %v5258, %v5256
  %v5293 = vpack.c.b16 %v5259, %v5257
  %v5294 = vpack.c.b16 %v5262, %v5260
  %v5295 = vpack.c.b16 %v5263, %v5261
  %5328 = vmatprep.subr.bf16.mxu0 %v5279
  %5329 = vmatpush1.bf16.msra.mxu0 %v5278
  %5330 = vmatprep.subr.bf16.mxu0 %v5277
  %5331 = vmatpush1.bf16.msra.mxu0 %v5276
  %5332 = vmatprep.subr.bf16.mxu0 %v5275
  %5333 = vmatpush1.bf16.msra.mxu0 %v5274
  %5334 = vmatprep.subr.bf16.mxu0 %v5273
  %5335 = vmatpush1.bf16.msra.mxu0 %v5272
  %5336 = vmatprep.subr.bf16.mxu0 %v5271
  %5337 = vmatpush1.bf16.msra.mxu0 %v5270
  %5338 = vmatprep.subr.bf16.mxu0 %v5269
  %5339 = vmatpush1.bf16.msra.mxu0 %v5268
  %5340 = vmatprep.subr.bf16.mxu0 %v5267
  %5341 = vmatpush1.bf16.msra.mxu0 %v5266
  %5342 = vmatprep.subr.bf16.mxu0 %v5265
  %5343 = vmatpush1.bf16.msra.mxu0 %v5264
  %5344 = vmatprep.subr.bf16.mxu0 %v5295
  %5345 = vmatpush2.bf16.msra.mxu0 %v5294
  %5346 = vmatprep.subr.bf16.mxu0 %v5293
  %5347 = vmatpush2.bf16.msra.mxu0 %v5292
  %5348 = vmatprep.subr.bf16.mxu0 %v5291
  %5349 = vmatpush2.bf16.msra.mxu0 %v5290
  %5350 = vmatprep.subr.bf16.mxu0 %v5289
  %5351 = vmatpush2.bf16.msra.mxu0 %v5288
  %5352 = vmatprep.subr.bf16.mxu0 %v5287
  %5353 = vmatpush2.bf16.msra.mxu0 %v5286
  %5354 = vmatprep.subr.bf16.mxu0 %v5285
  %5355 = vmatpush2.bf16.msra.mxu0 %v5284
  %5356 = vmatprep.subr.bf16.mxu0 %v5283
  %5357 = vmatpush2.bf16.msra.mxu0 %v5282
  %5358 = vmatprep.subr.bf16.mxu0 %v5281
  %5359 = vmatpush2.bf16.msra.mxu0 %v5280
  %5360 = vmatprep.mubr.bf16.mxu0 %v5101
  %5361 = vmatmul.mubr.bf16.gmra.mxu0 %v5100
  %v5362 = vpop.f32.mrf.mxu0
  %v5363 = vadd.f32 0.0, %v5362
  %v5364 = vpop.f32.mrf.mxu0
  %v5365 = vadd.f32 0.0, %v5364
  %v5366 = vpop.f32.mrf.mxu0
  %v5367 = vpop.f32.mrf.mxu0
  %5368 = vdwg.mxu0
  %v5401 = vunpack.c.l.b16 %v5103
  %v5402 = vunpack.c.h.b16 %v5103
  %v5403 = vunpack.c.l.b16 %v5104
  %v5404 = vunpack.c.h.b16 %v5104
  %v5405 = vunpack.c.l.b16 %v5105
  %v5406 = vunpack.c.h.b16 %v5105
  %v5407 = vunpack.c.l.b16 %v5106
  %v5408 = vunpack.c.h.b16 %v5106
  %v5409 = vunpack.c.l.b16 %v5107
  %v5410 = vunpack.c.h.b16 %v5107
  %v5411 = vunpack.c.l.b16 %v5108
  %v5412 = vunpack.c.h.b16 %v5108
  %v5413 = vunpack.c.l.b16 %v5109
  %v5414 = vunpack.c.h.b16 %v5109
  %v5415 = vunpack.c.l.b16 %v5110
  %v5416 = vunpack.c.h.b16 %v5110
  %v5417 = vunpack.c.l.b16 %v5111
  %v5418 = vunpack.c.h.b16 %v5111
  %v5419 = vunpack.c.l.b16 %v5112
  %v5420 = vunpack.c.h.b16 %v5112
  %v5421 = vunpack.c.l.b16 %v5113
  %v5422 = vunpack.c.h.b16 %v5113
  %v5423 = vunpack.c.l.b16 %v5114
  %v5424 = vunpack.c.h.b16 %v5114
  %v5425 = vunpack.c.l.b16 %v5115
  %v5426 = vunpack.c.h.b16 %v5115
  %v5427 = vunpack.c.l.b16 %v5116
  %v5428 = vunpack.c.h.b16 %v5116
  %v5429 = vunpack.c.l.b16 %v5117
  %v5430 = vunpack.c.h.b16 %v5117
  %v5431 = vunpack.c.l.b16 %v5118
  %v5432 = vunpack.c.h.b16 %v5118
  %v5433 = vunpack.c.l.b16 %v5119
  %v5434 = vunpack.c.h.b16 %v5119
  %v5435 = vunpack.c.l.b16 %v5120
  %v5436 = vunpack.c.h.b16 %v5120
  %v5437 = vunpack.c.l.b16 %v5121
  %v5438 = vunpack.c.h.b16 %v5121
  %v5439 = vunpack.c.l.b16 %v5122
  %v5440 = vunpack.c.h.b16 %v5122
  %v5441 = vunpack.c.l.b16 %v5123
  %v5442 = vunpack.c.h.b16 %v5123
  %v5443 = vunpack.c.l.b16 %v5124
  %v5444 = vunpack.c.h.b16 %v5124
  %v5445 = vunpack.c.l.b16 %v5125
  %v5446 = vunpack.c.h.b16 %v5125
  %v5447 = vunpack.c.l.b16 %v5126
  %v5448 = vunpack.c.h.b16 %v5126
  %v5449 = vunpack.c.l.b16 %v5127
  %v5450 = vunpack.c.h.b16 %v5127
  %v5451 = vunpack.c.l.b16 %v5128
  %v5452 = vunpack.c.h.b16 %v5128
  %v5453 = vunpack.c.l.b16 %v5129
  %v5454 = vunpack.c.h.b16 %v5129
  %v5455 = vunpack.c.l.b16 %v5130
  %v5456 = vunpack.c.h.b16 %v5130
  %v5457 = vunpack.c.l.b16 %v5131
  %v5458 = vunpack.c.h.b16 %v5131
  %v5459 = vunpack.c.l.b16 %v5132
  %v5460 = vunpack.c.h.b16 %v5132
  %v5461 = vunpack.c.l.b16 %v5133
  %v5462 = vunpack.c.h.b16 %v5133
  %v5463 = vunpack.c.l.b16 %v5134
  %v5464 = vunpack.c.h.b16 %v5134
  %v5465 = vpack.c.b16 %v5403, %v5401
  %v5466 = vpack.c.b16 %v5404, %v5402
  %v5467 = vpack.c.b16 %v5407, %v5405
  %v5468 = vpack.c.b16 %v5408, %v5406
  %v5469 = vpack.c.b16 %v5411, %v5409
  %v5470 = vpack.c.b16 %v5412, %v5410
  %v5471 = vpack.c.b16 %v5415, %v5413
  %v5472 = vpack.c.b16 %v5416, %v5414
  %v5473 = vpack.c.b16 %v5419, %v5417
  %v5474 = vpack.c.b16 %v5420, %v5418
  %v5475 = vpack.c.b16 %v5423, %v5421
  %v5476 = vpack.c.b16 %v5424, %v5422
  %v5477 = vpack.c.b16 %v5427, %v5425
  %v5478 = vpack.c.b16 %v5428, %v5426
  %v5479 = vpack.c.b16 %v5431, %v5429
  %v5480 = vpack.c.b16 %v5432, %v5430
  %v5481 = vpack.c.b16 %v5435, %v5433
  %v5482 = vpack.c.b16 %v5436, %v5434
  %v5483 = vpack.c.b16 %v5439, %v5437
  %v5484 = vpack.c.b16 %v5440, %v5438
  %v5485 = vpack.c.b16 %v5443, %v5441
  %v5486 = vpack.c.b16 %v5444, %v5442
  %v5487 = vpack.c.b16 %v5447, %v5445
  %v5488 = vpack.c.b16 %v5448, %v5446
  %v5489 = vpack.c.b16 %v5451, %v5449
  %v5490 = vpack.c.b16 %v5452, %v5450
  %v5491 = vpack.c.b16 %v5455, %v5453
  %v5492 = vpack.c.b16 %v5456, %v5454
  %v5493 = vpack.c.b16 %v5459, %v5457
  %v5494 = vpack.c.b16 %v5460, %v5458
  %v5495 = vpack.c.b16 %v5463, %v5461
  %v5496 = vpack.c.b16 %v5464, %v5462
  %5529 = vmatprep.subr.bf16.mxu0 %v5480
  %5530 = vmatpush1.bf16.msra.mxu0 %v5479
  %5531 = vmatprep.subr.bf16.mxu0 %v5478
  %5532 = vmatpush1.bf16.msra.mxu0 %v5477
  %5533 = vmatprep.subr.bf16.mxu0 %v5476
  %5534 = vmatpush1.bf16.msra.mxu0 %v5475
  %5535 = vmatprep.subr.bf16.mxu0 %v5474
  %5536 = vmatpush1.bf16.msra.mxu0 %v5473
  %5537 = vmatprep.subr.bf16.mxu0 %v5472
  %5538 = vmatpush1.bf16.msra.mxu0 %v5471
  %5539 = vmatprep.subr.bf16.mxu0 %v5470
  %5540 = vmatpush1.bf16.msra.mxu0 %v5469
  %5541 = vmatprep.subr.bf16.mxu0 %v5468
  %5542 = vmatpush1.bf16.msra.mxu0 %v5467
  %5543 = vmatprep.subr.bf16.mxu0 %v5466
  %5544 = vmatpush1.bf16.msra.mxu0 %v5465
  %5545 = vmatprep.subr.bf16.mxu0 %v5496
  %5546 = vmatpush2.bf16.msra.mxu0 %v5495
  %5547 = vmatprep.subr.bf16.mxu0 %v5494
  %5548 = vmatpush2.bf16.msra.mxu0 %v5493
  %5549 = vmatprep.subr.bf16.mxu0 %v5492
  %5550 = vmatpush2.bf16.msra.mxu0 %v5491
  %5551 = vmatprep.subr.bf16.mxu0 %v5490
  %5552 = vmatpush2.bf16.msra.mxu0 %v5489
  %5553 = vmatprep.subr.bf16.mxu0 %v5488
  %5554 = vmatpush2.bf16.msra.mxu0 %v5487
  %5555 = vmatprep.subr.bf16.mxu0 %v5486
  %5556 = vmatpush2.bf16.msra.mxu0 %v5485
  %5557 = vmatprep.subr.bf16.mxu0 %v5484
  %5558 = vmatpush2.bf16.msra.mxu0 %v5483
  %5559 = vmatprep.subr.bf16.mxu0 %v5482
  %5560 = vmatpush2.bf16.msra.mxu0 %v5481
  %5561 = vmatprep.mubr.bf16.mxu0 %v5099
  %5562 = vmatmul.mubr.bf16.gmra.mxu0 %v5098
  %v5563 = vpop.f32.mrf.mxu0
  %v5564 = vadd.f32 %v5363, %v5563
  %v5565 = vpop.f32.mrf.mxu0
  %v5566 = vadd.f32 %v5365, %v5565
  %v5567 = vpop.f32.mrf.mxu0
  %v5568 = vpop.f32.mrf.mxu0
  %5569 = vdwg.mxu0
  %v5570 = vsel %vm1168, %v5564, 0.0
  %v5571 = vrot.slane %v5570, 4
  %v5572 = vadd.f32 %v5570, %v5571
  %v5573 = vrot.slane %v5572, 2
  %v5574 = vadd.f32 %v5572, %v5573
  %v5575 = vrot.slane %v5574, 1
  %v5576 = vadd.f32 %v5574, %v5575
  %v5577 = vsel %vm1168, %v5566, 0.0
  %v5578 = vrot.slane %v5577, 4
  %v5579 = vadd.f32 %v5577, %v5578
  %v5580 = vrot.slane %v5579, 2
  %v5581 = vadd.f32 %v5579, %v5580
  %v5582 = vrot.slane %v5581, 1
  %v5583 = vadd.f32 %v5581, %v5582
  %v5584 = vmul.f32 %v5564, %v5564
  %v5585 = vmul.f32 %v5566, %v5566
  %v5586 = vsel %vm1168, %v5584, 0.0
  %v5587 = vrot.slane %v5586, 4
  %v5588 = vadd.f32 %v5586, %v5587
  %v5589 = vrot.slane %v5588, 2
  %v5590 = vadd.f32 %v5588, %v5589
  %v5591 = vrot.slane %v5590, 1
  %v5592 = vadd.f32 %v5590, %v5591
  %v5593 = vsel %vm1168, %v5585, 0.0
  %v5594 = vrot.slane %v5593, 4
  %v5595 = vadd.f32 %v5593, %v5594
  %v5596 = vrot.slane %v5595, 2
  %v5597 = vadd.f32 %v5595, %v5596
  %v5598 = vrot.slane %v5597, 1
  %v5599 = vadd.f32 %v5597, %v5598
  %v5600 = vmul.f32 %v5576, 0.5
  %v5601 = vmul.f32 %v5583, 0.5
  %v5602 = vmul.f32 %v5592, 0.5
  %v5603 = vmul.f32 %v5599, 0.5
  %v5604 = vmul.f32 %v5600, %v5600
  %v5605 = vmul.f32 %v5601, %v5601
  %v5606 = vsub.f32 %v5602, %v5604
  %v5607 = vsub.f32 %v5603, %v5605
  %v5608 = vmax.f32 %v5606, 0.0
  %v5609 = vmax.f32 %v5607, 0.0
  %v5610 = vld [vmem:[%s11] sm:$0x3]
  %v5611 = vadd.f32 %v5608, 1e-05
  %v5612 = vadd.f32 %v5609, 1e-05
  %v5613 = vrsqrt.pop %v5611
  %v5614 = vrsqrt.pop %v5612
  %v5617 = vcombine.low %v5613, %v5614
  %v5619 = vunpack.c.l.s4 1966171168
  %v5620 = vunpack.c.0.s8 %v5619
  %v5621 = vlaneseq
  %v5622 = vshrl.u32 %v5621, 7
  %v5623 = vsub.s32 %v5620, %v5622
  %v5624 = vrot.slane %v5617, %v5623
  %v5626 = vunpack.c.l.s4 1966171168
  %v5627 = vunpack.c.0.s8 %v5626
  %v5628 = vlaneseq
  %v5629 = vshrl.u32 %v5628, 7
  %v5630 = vsub.s32 %v5627, %v5629
  %v5631 = vrot.slane %v5624, %v5630
  %v5633 = vmul.f32 %v5610, %v5631
  %v5634 = vld [vmem:[%s12] sm:$0x3]
  %v5636 = vlaneseq
  %v5637 = vshrl.u32 %v5636, 7
  %v5638 = vsub.s32 0, %v5637
  %v5639 = vrot.slane %v5633, %v5638
  %v5640 = vlaneseq
  %v5641 = vshrl.u32 %v5640, 7
  %v5642 = vsub.s32 1, %v5641
  %v5643 = vrot.slane %v5633, %v5642
  %v5646 = vmul.f32 %v5600, %v5639
  %v5647 = vmul.f32 %v5601, %v5643
  %v5650 = vcombine.low %v5646, %v5647
  %v5652 = vunpack.c.l.s4 1966171168
  %v5653 = vunpack.c.0.s8 %v5652
  %v5654 = vlaneseq
  %v5655 = vshrl.u32 %v5654, 7
  %v5656 = vsub.s32 %v5653, %v5655
  %v5657 = vrot.slane %v5650, %v5656
  %v5659 = vunpack.c.l.s4 1966171168
  %v5660 = vunpack.c.0.s8 %v5659
  %v5661 = vlaneseq
  %v5662 = vshrl.u32 %v5661, 7
  %v5663 = vsub.s32 %v5660, %v5662
  %v5664 = vrot.slane %v5657, %v5663
  %v5666 = vsub.f32 %v5634, %v5664
  %v5667 = vmul.f32 %v5564, %v5639
  %v5668 = vmul.f32 %v5566, %v5643
  %v5670 = vlaneseq
  %v5671 = vshrl.u32 %v5670, 7
  %v5672 = vsub.s32 0, %v5671
  %v5673 = vrot.slane %v5666, %v5672
  %v5674 = vlaneseq
  %v5675 = vshrl.u32 %v5674, 7
  %v5676 = vsub.s32 1, %v5675
  %v5677 = vrot.slane %v5666, %v5676
  %v5680 = vadd.f32 %v5667, %v5673
  %v5681 = vadd.f32 %v5668, %v5677
  %v5682 = vmax.f32 %v5680, 0.0
  %v5683 = vmax.f32 %v5681, 0.0
  %v5684 = vpack.c.bf16 %v5682, %v5682
  %v5685 = vpack.c.bf16 %v5683, %v5683
  %s5686 = scalar_lea.vmem %s13, 512
  %v5687 = vld [vmem:[%s5686] sm:$0xff]
  %v5688 = vld [vmem:[%s5686 + $0x8] sm:$0xff]
  %v5689 = vld [vmem:[%s5686 + $0x10] sm:$0xff]
  %v5690 = vld [vmem:[%s5686 + $0x18] sm:$0xff]
  %v5691 = vld [vmem:[%s5686 + $0x20] sm:$0xff]
  %v5692 = vld [vmem:[%s5686 + $0x28] sm:$0xff]
  %v5693 = vld [vmem:[%s5686 + $0x30] sm:$0xff]
  %v5694 = vld [vmem:[%s5686 + $0x38] sm:$0xff]
  %v5695 = vld [vmem:[%s5686 + $0x40] sm:$0xff]
  %v5696 = vld [vmem:[%s5686 + $0x48] sm:$0xff]
  %v5697 = vld [vmem:[%s5686 + $0x50] sm:$0xff]
  %v5698 = vld [vmem:[%s5686 + $0x58] sm:$0xff]
  %v5699 = vld [vmem:[%s5686 + $0x60] sm:$0xff]
  %v5700 = vld [vmem:[%s5686 + $0x68] sm:$0xff]
  %v5701 = vld [vmem:[%s5686 + $0x70] sm:$0xff]
  %v5702 = vld [vmem:[%s5686 + $0x78] sm:$0xff]
  %v5703 = vld [vmem:[%s5686 + $0x80] sm:$0xff]
  %v5704 = vld [vmem:[%s5686 + $0x88] sm:$0xff]
  %v5705 = vld [vmem:[%s5686 + $0x90] sm:$0xff]
  %v5706 = vld [vmem:[%s5686 + $0x98] sm:$0xff]
  %v5707 = vld [vmem:[%s5686 + $0xa0] sm:$0xff]
  %v5708 = vld [vmem:[%s5686 + $0xa8] sm:$0xff]
  %v5709 = vld [vmem:[%s5686 + $0xb0] sm:$0xff]
  %v5710 = vld [vmem:[%s5686 + $0xb8] sm:$0xff]
  %v5711 = vld [vmem:[%s5686 + $0xc0] sm:$0xff]
  %v5712 = vld [vmem:[%s5686 + $0xc8] sm:$0xff]
  %v5713 = vld [vmem:[%s5686 + $0xd0] sm:$0xff]
  %v5714 = vld [vmem:[%s5686 + $0xd8] sm:$0xff]
  %v5715 = vld [vmem:[%s5686 + $0xe0] sm:$0xff]
  %v5716 = vld [vmem:[%s5686 + $0xe8] sm:$0xff]
  %v5717 = vld [vmem:[%s5686 + $0xf0] sm:$0xff]
  %v5718 = vld [vmem:[%s5686 + $0xf8] sm:$0xff]
  %v5719 = vld [vmem:[%s5686 + $0x100] sm:$0xff]
  %v5720 = vld [vmem:[%s5686 + $0x108] sm:$0xff]
  %v5721 = vld [vmem:[%s5686 + $0x110] sm:$0xff]
  %v5722 = vld [vmem:[%s5686 + $0x118] sm:$0xff]
  %v5723 = vld [vmem:[%s5686 + $0x120] sm:$0xff]
  %v5724 = vld [vmem:[%s5686 + $0x128] sm:$0xff]
  %v5725 = vld [vmem:[%s5686 + $0x130] sm:$0xff]
  %v5726 = vld [vmem:[%s5686 + $0x138] sm:$0xff]
  %v5727 = vld [vmem:[%s5686 + $0x140] sm:$0xff]
  %v5728 = vld [vmem:[%s5686 + $0x148] sm:$0xff]
  %v5729 = vld [vmem:[%s5686 + $0x150] sm:$0xff]
  %v5730 = vld [vmem:[%s5686 + $0x158] sm:$0xff]
  %v5731 = vld [vmem:[%s5686 + $0x160] sm:$0xff]
  %v5732 = vld [vmem:[%s5686 + $0x168] sm:$0xff]
  %v5733 = vld [vmem:[%s5686 + $0x170] sm:$0xff]
  %v5734 = vld [vmem:[%s5686 + $0x178] sm:$0xff]
  %v5735 = vld [vmem:[%s5686 + $0x180] sm:$0xff]
  %v5736 = vld [vmem:[%s5686 + $0x188] sm:$0xff]
  %v5737 = vld [vmem:[%s5686 + $0x190] sm:$0xff]
  %v5738 = vld [vmem:[%s5686 + $0x198] sm:$0xff]
  %v5739 = vld [vmem:[%s5686 + $0x1a0] sm:$0xff]
  %v5740 = vld [vmem:[%s5686 + $0x1a8] sm:$0xff]
  %v5741 = vld [vmem:[%s5686 + $0x1b0] sm:$0xff]
  %v5742 = vld [vmem:[%s5686 + $0x1b8] sm:$0xff]
  %v5743 = vld [vmem:[%s5686 + $0x1c0] sm:$0xff]
  %v5744 = vld [vmem:[%s5686 + $0x1c8] sm:$0xff]
  %v5745 = vld [vmem:[%s5686 + $0x1d0] sm:$0xff]
  %v5746 = vld [vmem:[%s5686 + $0x1d8] sm:$0xff]
  %v5747 = vld [vmem:[%s5686 + $0x1e0] sm:$0xff]
  %v5748 = vld [vmem:[%s5686 + $0x1e8] sm:$0xff]
  %v5749 = vld [vmem:[%s5686 + $0x1f0] sm:$0xff]
  %v5750 = vld [vmem:[%s5686 + $0x1f8] sm:$0xff]
  %v5815 = vunpack.c.l.b16 %v5687
  %v5816 = vunpack.c.h.b16 %v5687
  %v5817 = vunpack.c.l.b16 %v5688
  %v5818 = vunpack.c.h.b16 %v5688
  %v5819 = vunpack.c.l.b16 %v5689
  %v5820 = vunpack.c.h.b16 %v5689
  %v5821 = vunpack.c.l.b16 %v5690
  %v5822 = vunpack.c.h.b16 %v5690
  %v5823 = vunpack.c.l.b16 %v5691
  %v5824 = vunpack.c.h.b16 %v5691
  %v5825 = vunpack.c.l.b16 %v5692
  %v5826 = vunpack.c.h.b16 %v5692
  %v5827 = vunpack.c.l.b16 %v5693
  %v5828 = vunpack.c.h.b16 %v5693
  %v5829 = vunpack.c.l.b16 %v5694
  %v5830 = vunpack.c.h.b16 %v5694
  %v5831 = vunpack.c.l.b16 %v5695
  %v5832 = vunpack.c.h.b16 %v5695
  %v5833 = vunpack.c.l.b16 %v5696
  %v5834 = vunpack.c.h.b16 %v5696
  %v5835 = vunpack.c.l.b16 %v5697
  %v5836 = vunpack.c.h.b16 %v5697
  %v5837 = vunpack.c.l.b16 %v5698
  %v5838 = vunpack.c.h.b16 %v5698
  %v5839 = vunpack.c.l.b16 %v5699
  %v5840 = vunpack.c.h.b16 %v5699
  %v5841 = vunpack.c.l.b16 %v5700
  %v5842 = vunpack.c.h.b16 %v5700
  %v5843 = vunpack.c.l.b16 %v5701
  %v5844 = vunpack.c.h.b16 %v5701
  %v5845 = vunpack.c.l.b16 %v5702
  %v5846 = vunpack.c.h.b16 %v5702
  %v5847 = vunpack.c.l.b16 %v5703
  %v5848 = vunpack.c.h.b16 %v5703
  %v5849 = vunpack.c.l.b16 %v5704
  %v5850 = vunpack.c.h.b16 %v5704
  %v5851 = vunpack.c.l.b16 %v5705
  %v5852 = vunpack.c.h.b16 %v5705
  %v5853 = vunpack.c.l.b16 %v5706
  %v5854 = vunpack.c.h.b16 %v5706
  %v5855 = vunpack.c.l.b16 %v5707
  %v5856 = vunpack.c.h.b16 %v5707
  %v5857 = vunpack.c.l.b16 %v5708
  %v5858 = vunpack.c.h.b16 %v5708
  %v5859 = vunpack.c.l.b16 %v5709
  %v5860 = vunpack.c.h.b16 %v5709
  %v5861 = vunpack.c.l.b16 %v5710
  %v5862 = vunpack.c.h.b16 %v5710
  %v5863 = vunpack.c.l.b16 %v5711
  %v5864 = vunpack.c.h.b16 %v5711
  %v5865 = vunpack.c.l.b16 %v5712
  %v5866 = vunpack.c.h.b16 %v5712
  %v5867 = vunpack.c.l.b16 %v5713
  %v5868 = vunpack.c.h.b16 %v5713
  %v5869 = vunpack.c.l.b16 %v5714
  %v5870 = vunpack.c.h.b16 %v5714
  %v5871 = vunpack.c.l.b16 %v5715
  %v5872 = vunpack.c.h.b16 %v5715
  %v5873 = vunpack.c.l.b16 %v5716
  %v5874 = vunpack.c.h.b16 %v5716
  %v5875 = vunpack.c.l.b16 %v5717
  %v5876 = vunpack.c.h.b16 %v5717
  %v5877 = vunpack.c.l.b16 %v5718
  %v5878 = vunpack.c.h.b16 %v5718
  %v5879 = vunpack.c.l.b16 %v5719
  %v5880 = vunpack.c.h.b16 %v5719
  %v5881 = vunpack.c.l.b16 %v5720
  %v5882 = vunpack.c.h.b16 %v5720
  %v5883 = vunpack.c.l.b16 %v5721
  %v5884 = vunpack.c.h.b16 %v5721
  %v5885 = vunpack.c.l.b16 %v5722
  %v5886 = vunpack.c.h.b16 %v5722
  %v5887 = vunpack.c.l.b16 %v5723
  %v5888 = vunpack.c.h.b16 %v5723
  %v5889 = vunpack.c.l.b16 %v5724
  %v5890 = vunpack.c.h.b16 %v5724
  %v5891 = vunpack.c.l.b16 %v5725
  %v5892 = vunpack.c.h.b16 %v5725
  %v5893 = vunpack.c.l.b16 %v5726
  %v5894 = vunpack.c.h.b16 %v5726
  %v5895 = vunpack.c.l.b16 %v5727
  %v5896 = vunpack.c.h.b16 %v5727
  %v5897 = vunpack.c.l.b16 %v5728
  %v5898 = vunpack.c.h.b16 %v5728
  %v5899 = vunpack.c.l.b16 %v5729
  %v5900 = vunpack.c.h.b16 %v5729
  %v5901 = vunpack.c.l.b16 %v5730
  %v5902 = vunpack.c.h.b16 %v5730
  %v5903 = vunpack.c.l.b16 %v5731
  %v5904 = vunpack.c.h.b16 %v5731
  %v5905 = vunpack.c.l.b16 %v5732
  %v5906 = vunpack.c.h.b16 %v5732
  %v5907 = vunpack.c.l.b16 %v5733
  %v5908 = vunpack.c.h.b16 %v5733
  %v5909 = vunpack.c.l.b16 %v5734
  %v5910 = vunpack.c.h.b16 %v5734
  %v5911 = vunpack.c.l.b16 %v5735
  %v5912 = vunpack.c.h.b16 %v5735
  %v5913 = vunpack.c.l.b16 %v5736
  %v5914 = vunpack.c.h.b16 %v5736
  %v5915 = vunpack.c.l.b16 %v5737
  %v5916 = vunpack.c.h.b16 %v5737
  %v5917 = vunpack.c.l.b16 %v5738
  %v5918 = vunpack.c.h.b16 %v5738
  %v5919 = vunpack.c.l.b16 %v5739
  %v5920 = vunpack.c.h.b16 %v5739
  %v5921 = vunpack.c.l.b16 %v5740
  %v5922 = vunpack.c.h.b16 %v5740
  %v5923 = vunpack.c.l.b16 %v5741
  %v5924 = vunpack.c.h.b16 %v5741
  %v5925 = vunpack.c.l.b16 %v5742
  %v5926 = vunpack.c.h.b16 %v5742
  %v5927 = vunpack.c.l.b16 %v5743
  %v5928 = vunpack.c.h.b16 %v5743
  %v5929 = vunpack.c.l.b16 %v5744
  %v5930 = vunpack.c.h.b16 %v5744
  %v5931 = vunpack.c.l.b16 %v5745
  %v5932 = vunpack.c.h.b16 %v5745
  %v5933 = vunpack.c.l.b16 %v5746
  %v5934 = vunpack.c.h.b16 %v5746
  %v5935 = vunpack.c.l.b16 %v5747
  %v5936 = vunpack.c.h.b16 %v5747
  %v5937 = vunpack.c.l.b16 %v5748
  %v5938 = vunpack.c.h.b16 %v5748
  %v5939 = vunpack.c.l.b16 %v5749
  %v5940 = vunpack.c.h.b16 %v5749
  %v5941 = vunpack.c.l.b16 %v5750
  %v5942 = vunpack.c.h.b16 %v5750
  %v5943 = vpack.c.b16 %v5819, %v5815
  %v5944 = vpack.c.b16 %v5820, %v5816
  %v5945 = vpack.c.b16 %v5821, %v5817
  %v5946 = vpack.c.b16 %v5822, %v5818
  %v5947 = vpack.c.b16 %v5827, %v5823
  %v5948 = vpack.c.b16 %v5828, %v5824
  %v5949 = vpack.c.b16 %v5829, %v5825
  %v5950 = vpack.c.b16 %v5830, %v5826
  %v5951 = vpack.c.b16 %v5835, %v5831
  %v5952 = vpack.c.b16 %v5836, %v5832
  %v5953 = vpack.c.b16 %v5837, %v5833
  %v5954 = vpack.c.b16 %v5838, %v5834
  %v5955 = vpack.c.b16 %v5843, %v5839
  %v5956 = vpack.c.b16 %v5844, %v5840
  %v5957 = vpack.c.b16 %v5845, %v5841
  %v5958 = vpack.c.b16 %v5846, %v5842
  %v5959 = vpack.c.b16 %v5851, %v5847
  %v5960 = vpack.c.b16 %v5852, %v5848
  %v5961 = vpack.c.b16 %v5853, %v5849
  %v5962 = vpack.c.b16 %v5854, %v5850
  %v5963 = vpack.c.b16 %v5859, %v5855
  %v5964 = vpack.c.b16 %v5860, %v5856
  %v5965 = vpack.c.b16 %v5861, %v5857
  %v5966 = vpack.c.b16 %v5862, %v5858
  %v5967 = vpack.c.b16 %v5867, %v5863
  %v5968 = vpack.c.b16 %v5868, %v5864
  %v5969 = vpack.c.b16 %v5869, %v5865
  %v5970 = vpack.c.b16 %v5870, %v5866
  %v5971 = vpack.c.b16 %v5875, %v5871
  %v5972 = vpack.c.b16 %v5876, %v5872
  %v5973 = vpack.c.b16 %v5877, %v5873
  %v5974 = vpack.c.b16 %v5878, %v5874
  %v5975 = vpack.c.b16 %v5883, %v5879
  %v5976 = vpack.c.b16 %v5884, %v5880
  %v5977 = vpack.c.b16 %v5885, %v5881
  %v5978 = vpack.c.b16 %v5886, %v5882
  %v5979 = vpack.c.b16 %v5891, %v5887
  %v5980 = vpack.c.b16 %v5892, %v5888
  %v5981 = vpack.c.b16 %v5893, %v5889
  %v5982 = vpack.c.b16 %v5894, %v5890
  %v5983 = vpack.c.b16 %v5899, %v5895
  %v5984 = vpack.c.b16 %v5900, %v5896
  %v5985 = vpack.c.b16 %v5901, %v5897
  %v5986 = vpack.c.b16 %v5902, %v5898
  %v5987 = vpack.c.b16 %v5907, %v5903
  %v5988 = vpack.c.b16 %v5908, %v5904
  %v5989 = vpack.c.b16 %v5909, %v5905
  %v5990 = vpack.c.b16 %v5910, %v5906
  %v5991 = vpack.c.b16 %v5915, %v5911
  %v5992 = vpack.c.b16 %v5916, %v5912
  %v5993 = vpack.c.b16 %v5917, %v5913
  %v5994 = vpack.c.b16 %v5918, %v5914
  %v5995 = vpack.c.b16 %v5923, %v5919
  %v5996 = vpack.c.b16 %v5924, %v5920
  %v5997 = vpack.c.b16 %v5925, %v5921
  %v5998 = vpack.c.b16 %v5926, %v5922
  %v5999 = vpack.c.b16 %v5931, %v5927
  %v6000 = vpack.c.b16 %v5932, %v5928
  %v6001 = vpack.c.b16 %v5933, %v5929
  %v6002 = vpack.c.b16 %v5934, %v5930
  %v6003 = vpack.c.b16 %v5939, %v5935
  %v6004 = vpack.c.b16 %v5940, %v5936
  %v6005 = vpack.c.b16 %v5941, %v5937
  %v6006 = vpack.c.b16 %v5942, %v5938
  %6071 = vmatprep.subr.bf16.mxu0 %v5972
  %6072 = vmatpush1.bf16.msra.mxu0 %v5971
  %6073 = vmatprep.subr.bf16.mxu0 %v5968
  %6074 = vmatpush1.bf16.msra.mxu0 %v5967
  %6075 = vmatprep.subr.bf16.mxu0 %v5964
  %6076 = vmatpush1.bf16.msra.mxu0 %v5963
  %6077 = vmatprep.subr.bf16.mxu0 %v5960
  %6078 = vmatpush1.bf16.msra.mxu0 %v5959
  %6079 = vmatprep.subr.bf16.mxu0 %v5956
  %6080 = vmatpush1.bf16.msra.mxu0 %v5955
  %6081 = vmatprep.subr.bf16.mxu0 %v5952
  %6082 = vmatpush1.bf16.msra.mxu0 %v5951
  %6083 = vmatprep.subr.bf16.mxu0 %v5948
  %6084 = vmatpush1.bf16.msra.mxu0 %v5947
  %6085 = vmatprep.subr.bf16.mxu0 %v5944
  %6086 = vmatpush1.bf16.msra.mxu0 %v5943
  %6087 = vmatprep.subr.bf16.mxu0 %v6004
  %6088 = vmatpush2.bf16.msra.mxu0 %v6003
  %6089 = vmatprep.subr.bf16.mxu0 %v6000
  %6090 = vmatpush2.bf16.msra.mxu0 %v5999
  %6091 = vmatprep.subr.bf16.mxu0 %v5996
  %6092 = vmatpush2.bf16.msra.mxu0 %v5995
  %6093 = vmatprep.subr.bf16.mxu0 %v5992
  %6094 = vmatpush2.bf16.msra.mxu0 %v5991
  %6095 = vmatprep.subr.bf16.mxu0 %v5988
  %6096 = vmatpush2.bf16.msra.mxu0 %v5987
  %6097 = vmatprep.subr.bf16.mxu0 %v5984
  %6098 = vmatpush2.bf16.msra.mxu0 %v5983
  %6099 = vmatprep.subr.bf16.mxu0 %v5980
  %6100 = vmatpush2.bf16.msra.mxu0 %v5979
  %6101 = vmatprep.subr.bf16.mxu0 %v5976
  %6102 = vmatpush2.bf16.msra.mxu0 %v5975
  %6103 = vmatprep.mubr.bf16.mxu0 %v5685
  %6104 = vmatmul.mubr.bf16.gmra.mxu0 %v5684
  %v6105 = vpop.f32.mrf.mxu0
  %v6106 = vadd.f32 0.0, %v6105
  %v6107 = vpop.f32.mrf.mxu0
  %v6108 = vadd.f32 0.0, %v6107
  %v6109 = vpop.f32.mrf.mxu0
  %v6110 = vpop.f32.mrf.mxu0
  %6111 = vdwg.mxu0
  %6112 = vmatprep.subr.bf16.mxu0 %v5974
  %6113 = vmatpush1.bf16.msra.mxu0 %v5973
  %6114 = vmatprep.subr.bf16.mxu0 %v5970
  %6115 = vmatpush1.bf16.msra.mxu0 %v5969
  %6116 = vmatprep.subr.bf16.mxu0 %v5966
  %6117 = vmatpush1.bf16.msra.mxu0 %v5965
  %6118 = vmatprep.subr.bf16.mxu0 %v5962
  %6119 = vmatpush1.bf16.msra.mxu0 %v5961
  %6120 = vmatprep.subr.bf16.mxu0 %v5958
  %6121 = vmatpush1.bf16.msra.mxu0 %v5957
  %6122 = vmatprep.subr.bf16.mxu0 %v5954
  %6123 = vmatpush1.bf16.msra.mxu0 %v5953
  %6124 = vmatprep.subr.bf16.mxu0 %v5950
  %6125 = vmatpush1.bf16.msra.mxu0 %v5949
  %6126 = vmatprep.subr.bf16.mxu0 %v5946
  %6127 = vmatpush1.bf16.msra.mxu0 %v5945
  %6128 = vmatprep.subr.bf16.mxu0 %v6006
  %6129 = vmatpush2.bf16.msra.mxu0 %v6005
  %6130 = vmatprep.subr.bf16.mxu0 %v6002
  %6131 = vmatpush2.bf16.msra.mxu0 %v6001
  %6132 = vmatprep.subr.bf16.mxu0 %v5998
  %6133 = vmatpush2.bf16.msra.mxu0 %v5997
  %6134 = vmatprep.subr.bf16.mxu0 %v5994
  %6135 = vmatpush2.bf16.msra.mxu0 %v5993
  %6136 = vmatprep.subr.bf16.mxu0 %v5990
  %6137 = vmatpush2.bf16.msra.mxu0 %v5989
  %6138 = vmatprep.subr.bf16.mxu0 %v5986
  %6139 = vmatpush2.bf16.msra.mxu0 %v5985
  %6140 = vmatprep.subr.bf16.mxu0 %v5982
  %6141 = vmatpush2.bf16.msra.mxu0 %v5981
  %6142 = vmatprep.subr.bf16.mxu0 %v5978
  %6143 = vmatpush2.bf16.msra.mxu0 %v5977
  %6144 = vmatprep.mubr.bf16.mxu0 %v5685
  %6145 = vmatmul.mubr.bf16.gmra.mxu0 %v5684
  %v6146 = vpop.f32.mrf.mxu0
  %v6147 = vadd.f32 0.0, %v6146
  %v6148 = vpop.f32.mrf.mxu0
  %v6149 = vadd.f32 0.0, %v6148
  %v6150 = vpop.f32.mrf.mxu0
  %v6151 = vpop.f32.mrf.mxu0
  %6152 = vdwg.mxu0
  %v6153 = vsel %vm1168, %v6106, 0.0
  %v6154 = vrot.slane %v6153, 4
  %v6155 = vadd.f32 %v6153, %v6154
  %v6156 = vrot.slane %v6155, 2
  %v6157 = vadd.f32 %v6155, %v6156
  %v6158 = vrot.slane %v6157, 1
  %v6159 = vadd.f32 %v6157, %v6158
  %v6160 = vsel %vm1168, %v6108, 0.0
  %v6161 = vrot.slane %v6160, 4
  %v6162 = vadd.f32 %v6160, %v6161
  %v6163 = vrot.slane %v6162, 2
  %v6164 = vadd.f32 %v6162, %v6163
  %v6165 = vrot.slane %v6164, 1
  %v6166 = vadd.f32 %v6164, %v6165
  %v6167 = vsel %vm1168, %v6147, 0.0
  %v6168 = vrot.slane %v6167, 4
  %v6169 = vadd.f32 %v6167, %v6168
  %v6170 = vrot.slane %v6169, 2
  %v6171 = vadd.f32 %v6169, %v6170
  %v6172 = vrot.slane %v6171, 1
  %v6173 = vadd.f32 %v6171, %v6172
  %v6174 = vsel %vm1168, %v6149, 0.0
  %v6175 = vrot.slane %v6174, 4
  %v6176 = vadd.f32 %v6174, %v6175
  %v6177 = vrot.slane %v6176, 2
  %v6178 = vadd.f32 %v6176, %v6177
  %v6179 = vrot.slane %v6178, 1
  %v6180 = vadd.f32 %v6178, %v6179
  %v6181 = vmul.f32 %v6106, %v6106
  %v6182 = vmul.f32 %v6108, %v6108
  %v6183 = vmul.f32 %v6147, %v6147
  %v6184 = vmul.f32 %v6149, %v6149
  %v6185 = vsel %vm1168, %v6181, 0.0
  %v6186 = vrot.slane %v6185, 4
  %v6187 = vadd.f32 %v6185, %v6186
  %v6188 = vrot.slane %v6187, 2
  %v6189 = vadd.f32 %v6187, %v6188
  %v6190 = vrot.slane %v6189, 1
  %v6191 = vadd.f32 %v6189, %v6190
  %v6192 = vsel %vm1168, %v6182, 0.0
  %v6193 = vrot.slane %v6192, 4
  %v6194 = vadd.f32 %v6192, %v6193
  %v6195 = vrot.slane %v6194, 2
  %v6196 = vadd.f32 %v6194, %v6195
  %v6197 = vrot.slane %v6196, 1
  %v6198 = vadd.f32 %v6196, %v6197
  %v6199 = vsel %vm1168, %v6183, 0.0
  %v6200 = vrot.slane %v6199, 4
  %v6201 = vadd.f32 %v6199, %v6200
  %v6202 = vrot.slane %v6201, 2
  %v6203 = vadd.f32 %v6201, %v6202
  %v6204 = vrot.slane %v6203, 1
  %v6205 = vadd.f32 %v6203, %v6204
  %v6206 = vsel %vm1168, %v6184, 0.0
  %v6207 = vrot.slane %v6206, 4
  %v6208 = vadd.f32 %v6206, %v6207
  %v6209 = vrot.slane %v6208, 2
  %v6210 = vadd.f32 %v6208, %v6209
  %v6211 = vrot.slane %v6210, 1
  %v6212 = vadd.f32 %v6210, %v6211
  %v6213 = vmul.f32 %v6159, 0.5
  %v6214 = vmul.f32 %v6166, 0.5
  %v6215 = vmul.f32 %v6173, 0.5
  %v6216 = vmul.f32 %v6180, 0.5
  %v6217 = vmul.f32 %v6191, 0.5
  %v6218 = vmul.f32 %v6198, 0.5
  %v6219 = vmul.f32 %v6205, 0.5
  %v6220 = vmul.f32 %v6212, 0.5
  %v6221 = vmul.f32 %v6213, %v6213
  %v6222 = vmul.f32 %v6214, %v6214
  %v6223 = vmul.f32 %v6215, %v6215
  %v6224 = vmul.f32 %v6216, %v6216
  %v6225 = vsub.f32 %v6217, %v6221
  %v6226 = vsub.f32 %v6218, %v6222
  %v6227 = vsub.f32 %v6219, %v6223
  %v6228 = vsub.f32 %v6220, %v6224
  %v6229 = vmax.f32 %v6225, 0.0
  %v6230 = vmax.f32 %v6226, 0.0
  %v6231 = vmax.f32 %v6227, 0.0
  %v6232 = vmax.f32 %v6228, 0.0
  %v6233 = vld [vmem:[%s14] sm:$0xf]
  %v6234 = vadd.f32 %v6229, 1e-05
  %v6235 = vadd.f32 %v6230, 1e-05
  %v6236 = vadd.f32 %v6231, 1e-05
  %v6237 = vadd.f32 %v6232, 1e-05
  %v6238 = vrsqrt.pop %v6234
  %v6239 = vrsqrt.pop %v6235
  %v6240 = vrsqrt.pop %v6236
  %v6241 = vrsqrt.pop %v6237
  %v6246 = vcombine.low %v6238, %v6239
  %v6247 = vcombine.low %v6240, %v6241
  %v6249 = vunpack.c.l.s4 1966171168
  %v6250 = vunpack.c.0.s8 %v6249
  %v6251 = vlaneseq
  %v6252 = vshrl.u32 %v6251, 7
  %v6253 = vsub.s32 %v6250, %v6252
  %v6254 = vrot.slane %v6246, %v6253
  %v6256 = vunpack.c.l.s4 1966171168
  %v6257 = vunpack.c.0.s8 %v6256
  %v6258 = vlaneseq
  %v6259 = vshrl.u32 %v6258, 7
  %v6260 = vsub.s32 %v6257, %v6259
  %v6261 = vrot.slane %v6247, %v6260
  %v6262 = vcombine.low %v6254, %v6261
  %v6264 = vunpack.c.l.s4 1966171168
  %v6265 = vunpack.c.0.s8 %v6264
  %v6266 = vlaneseq
  %v6267 = vshrl.u32 %v6266, 7
  %v6268 = vsub.s32 %v6265, %v6267
  %v6269 = vrot.slane %v6262, %v6268
  %v6271 = vmul.f32 %v6233, %v6269
  %v6272 = vld [vmem:[%s15] sm:$0xf]
  %v6274 = vlaneseq
  %v6275 = vshrl.u32 %v6274, 7
  %v6276 = vsub.s32 0, %v6275
  %v6277 = vrot.slane %v6271, %v6276
  %v6278 = vlaneseq
  %v6279 = vshrl.u32 %v6278, 7
  %v6280 = vsub.s32 1, %v6279
  %v6281 = vrot.slane %v6271, %v6280
  %v6282 = vlaneseq
  %v6283 = vshrl.u32 %v6282, 7
  %v6284 = vsub.s32 2, %v6283
  %v6285 = vrot.slane %v6271, %v6284
  %v6286 = vlaneseq
  %v6287 = vshrl.u32 %v6286, 7
  %v6288 = vsub.s32 3, %v6287
  %v6289 = vrot.slane %v6271, %v6288
  %v6294 = vmul.f32 %v6213, %v6277
  %v6295 = vmul.f32 %v6214, %v6281
  %v6296 = vmul.f32 %v6215, %v6285
  %v6297 = vmul.f32 %v6216, %v6289
  %v6302 = vcombine.low %v6294, %v6295
  %v6303 = vcombine.low %v6296, %v6297
  %v6305 = vunpack.c.l.s4 1966171168
  %v6306 = vunpack.c.0.s8 %v6305
  %v6307 = vlaneseq
  %v6308 = vshrl.u32 %v6307, 7
  %v6309 = vsub.s32 %v6306, %v6308
  %v6310 = vrot.slane %v6302, %v6309
  %v6312 = vunpack.c.l.s4 1966171168
  %v6313 = vunpack.c.0.s8 %v6312
  %v6314 = vlaneseq
  %v6315 = vshrl.u32 %v6314, 7
  %v6316 = vsub.s32 %v6313, %v6315
  %v6317 = vrot.slane %v6303, %v6316
  %v6318 = vcombine.low %v6310, %v6317
  %v6320 = vunpack.c.l.s4 1966171168
  %v6321 = vunpack.c.0.s8 %v6320
  %v6322 = vlaneseq
  %v6323 = vshrl.u32 %v6322, 7
  %v6324 = vsub.s32 %v6321, %v6323
  %v6325 = vrot.slane %v6318, %v6324
  %v6327 = vsub.f32 %v6272, %v6325
  %v6328 = vmul.f32 %v6106, %v6277
  %v6329 = vmul.f32 %v6108, %v6281
  %v6330 = vmul.f32 %v6147, %v6285
  %v6331 = vmul.f32 %v6149, %v6289
  %v6333 = vlaneseq
  %v6334 = vshrl.u32 %v6333, 7
  %v6335 = vsub.s32 0, %v6334
  %v6336 = vrot.slane %v6327, %v6335
  %v6337 = vlaneseq
  %v6338 = vshrl.u32 %v6337, 7
  %v6339 = vsub.s32 1, %v6338
  %v6340 = vrot.slane %v6327, %v6339
  %v6341 = vlaneseq
  %v6342 = vshrl.u32 %v6341, 7
  %v6343 = vsub.s32 2, %v6342
  %v6344 = vrot.slane %v6327, %v6343
  %v6345 = vlaneseq
  %v6346 = vshrl.u32 %v6345, 7
  %v6347 = vsub.s32 3, %v6346
  %v6348 = vrot.slane %v6327, %v6347
  %v6353 = vadd.f32 %v6328, %v6336
  %v6354 = vadd.f32 %v6329, %v6340
  %v6355 = vadd.f32 %v6330, %v6344
  %v6356 = vadd.f32 %v6331, %v6348
  %v6357 = vmax.f32 %v6353, 0.0
  %v6358 = vmax.f32 %v6354, 0.0
  %v6359 = vmax.f32 %v6355, 0.0
  %v6360 = vmax.f32 %v6356, 0.0
  %v6361 = vld [vmem:[%s16] sm:$0xff]
  %v6362 = vld [vmem:[%s16 + $0x8] sm:$0xff]
  %v6363 = vld [vmem:[%s16 + $0x10] sm:$0xff]
  %v6364 = vld [vmem:[%s16 + $0x18] sm:$0xff]
  %v6365 = vld [vmem:[%s16 + $0x20] sm:$0xff]
  %v6366 = vld [vmem:[%s16 + $0x28] sm:$0xff]
  %v6367 = vld [vmem:[%s16 + $0x30] sm:$0xff]
  %v6368 = vld [vmem:[%s16 + $0x38] sm:$0xff]
  %v6369 = vld [vmem:[%s16 + $0x40] sm:$0xff]
  %v6370 = vld [vmem:[%s16 + $0x48] sm:$0xff]
  %v6371 = vld [vmem:[%s16 + $0x50] sm:$0xff]
  %v6372 = vld [vmem:[%s16 + $0x58] sm:$0xff]
  %v6373 = vld [vmem:[%s16 + $0x60] sm:$0xff]
  %v6374 = vld [vmem:[%s16 + $0x68] sm:$0xff]
  %v6375 = vld [vmem:[%s16 + $0x70] sm:$0xff]
  %v6376 = vld [vmem:[%s16 + $0x78] sm:$0xff]
  %v6377 = vld [vmem:[%s16 + $0x80] sm:$0xff]
  %v6378 = vld [vmem:[%s16 + $0x88] sm:$0xff]
  %v6379 = vld [vmem:[%s16 + $0x90] sm:$0xff]
  %v6380 = vld [vmem:[%s16 + $0x98] sm:$0xff]
  %v6381 = vld [vmem:[%s16 + $0xa0] sm:$0xff]
  %v6382 = vld [vmem:[%s16 + $0xa8] sm:$0xff]
  %v6383 = vld [vmem:[%s16 + $0xb0] sm:$0xff]
  %v6384 = vld [vmem:[%s16 + $0xb8] sm:$0xff]
  %v6385 = vld [vmem:[%s16 + $0xc0] sm:$0xff]
  %v6386 = vld [vmem:[%s16 + $0xc8] sm:$0xff]
  %v6387 = vld [vmem:[%s16 + $0xd0] sm:$0xff]
  %v6388 = vld [vmem:[%s16 + $0xd8] sm:$0xff]
  %v6389 = vld [vmem:[%s16 + $0xe0] sm:$0xff]
  %v6390 = vld [vmem:[%s16 + $0xe8] sm:$0xff]
  %v6391 = vld [vmem:[%s16 + $0xf0] sm:$0xff]
  %v6392 = vld [vmem:[%s16 + $0xf8] sm:$0xff]
  %v6393 = vld [vmem:[%s16 + $0x100] sm:$0xff]
  %v6394 = vld [vmem:[%s16 + $0x108] sm:$0xff]
  %v6395 = vld [vmem:[%s16 + $0x110] sm:$0xff]
  %v6396 = vld [vmem:[%s16 + $0x118] sm:$0xff]
  %v6397 = vld [vmem:[%s16 + $0x120] sm:$0xff]
  %v6398 = vld [vmem:[%s16 + $0x128] sm:$0xff]
  %v6399 = vld [vmem:[%s16 + $0x130] sm:$0xff]
  %v6400 = vld [vmem:[%s16 + $0x138] sm:$0xff]
  %v6401 = vld [vmem:[%s16 + $0x140] sm:$0xff]
  %v6402 = vld [vmem:[%s16 + $0x148] sm:$0xff]
  %v6403 = vld [vmem:[%s16 + $0x150] sm:$0xff]
  %v6404 = vld [vmem:[%s16 + $0x158] sm:$0xff]
  %v6405 = vld [vmem:[%s16 + $0x160] sm:$0xff]
  %v6406 = vld [vmem:[%s16 + $0x168] sm:$0xff]
  %v6407 = vld [vmem:[%s16 + $0x170] sm:$0xff]
  %v6408 = vld [vmem:[%s16 + $0x178] sm:$0xff]
  %v6409 = vld [vmem:[%s16 + $0x180] sm:$0xff]
  %v6410 = vld [vmem:[%s16 + $0x188] sm:$0xff]
  %v6411 = vld [vmem:[%s16 + $0x190] sm:$0xff]
  %v6412 = vld [vmem:[%s16 + $0x198] sm:$0xff]
  %v6413 = vld [vmem:[%s16 + $0x1a0] sm:$0xff]
  %v6414 = vld [vmem:[%s16 + $0x1a8] sm:$0xff]
  %v6415 = vld [vmem:[%s16 + $0x1b0] sm:$0xff]
  %v6416 = vld [vmem:[%s16 + $0x1b8] sm:$0xff]
  %v6417 = vld [vmem:[%s16 + $0x1c0] sm:$0xff]
  %v6418 = vld [vmem:[%s16 + $0x1c8] sm:$0xff]
  %v6419 = vld [vmem:[%s16 + $0x1d0] sm:$0xff]
  %v6420 = vld [vmem:[%s16 + $0x1d8] sm:$0xff]
  %v6421 = vld [vmem:[%s16 + $0x1e0] sm:$0xff]
  %v6422 = vld [vmem:[%s16 + $0x1e8] sm:$0xff]
  %v6423 = vld [vmem:[%s16 + $0x1f0] sm:$0xff]
  %v6424 = vld [vmem:[%s16 + $0x1f8] sm:$0xff]
  %6425 = vmatprep.subr.mxu0 0.0
  %6426 = vmatpush1.msra.mxu0 %v6376
  %6427 = vmatprep.subr.mxu0 0.0
  %6428 = vmatpush1.msra.mxu0 %v6375
  %6429 = vmatprep.subr.mxu0 0.0
  %6430 = vmatpush1.msra.mxu0 %v6374
  %6431 = vmatprep.subr.mxu0 0.0
  %6432 = vmatpush1.msra.mxu0 %v6373
  %6433 = vmatprep.subr.mxu0 0.0
  %6434 = vmatpush1.msra.mxu0 %v6372
  %6435 = vmatprep.subr.mxu0 0.0
  %6436 = vmatpush1.msra.mxu0 %v6371
  %6437 = vmatprep.subr.mxu0 0.0
  %6438 = vmatpush1.msra.mxu0 %v6370
  %6439 = vmatprep.subr.mxu0 0.0
  %6440 = vmatpush1.msra.mxu0 %v6369
  %6441 = vmatprep.subr.mxu0 0.0
  %6442 = vmatpush1.msra.mxu0 %v6368
  %6443 = vmatprep.subr.mxu0 0.0
  %6444 = vmatpush1.msra.mxu0 %v6367
  %6445 = vmatprep.subr.mxu0 0.0
  %6446 = vmatpush1.msra.mxu0 %v6366
  %6447 = vmatprep.subr.mxu0 0.0
  %6448 = vmatpush1.msra.mxu0 %v6365
  %6449 = vmatprep.subr.mxu0 0.0
  %6450 = vmatpush1.msra.mxu0 %v6364
  %6451 = vmatprep.subr.mxu0 0.0
  %6452 = vmatpush1.msra.mxu0 %v6363
  %6453 = vmatprep.subr.mxu0 0.0
  %6454 = vmatpush1.msra.mxu0 %v6362
  %6455 = vmatprep.subr.mxu0 0.0
  %6456 = vmatpush1.msra.mxu0 %v6361
  %6457 = vmatprep.subr.mxu0 0.0
  %6458 = vmatpush2.msra.mxu0 %v6392
  %6459 = vmatprep.subr.mxu0 0.0
  %6460 = vmatpush2.msra.mxu0 %v6391
  %6461 = vmatprep.subr.mxu0 0.0
  %6462 = vmatpush2.msra.mxu0 %v6390
  %6463 = vmatprep.subr.mxu0 0.0
  %6464 = vmatpush2.msra.mxu0 %v6389
  %6465 = vmatprep.subr.mxu0 0.0
  %6466 = vmatpush2.msra.mxu0 %v6388
  %6467 = vmatprep.subr.mxu0 0.0
  %6468 = vmatpush2.msra.mxu0 %v6387
  %6469 = vmatprep.subr.mxu0 0.0
  %6470 = vmatpush2.msra.mxu0 %v6386
  %6471 = vmatprep.subr.mxu0 0.0
  %6472 = vmatpush2.msra.mxu0 %v6385
  %6473 = vmatprep.subr.mxu0 0.0
  %6474 = vmatpush2.msra.mxu0 %v6384
  %6475 = vmatprep.subr.mxu0 0.0
  %6476 = vmatpush2.msra.mxu0 %v6383
  %6477 = vmatprep.subr.mxu0 0.0
  %6478 = vmatpush2.msra.mxu0 %v6382
  %6479 = vmatprep.subr.mxu0 0.0
  %6480 = vmatpush2.msra.mxu0 %v6381
  %6481 = vmatprep.subr.mxu0 0.0
  %6482 = vmatpush2.msra.mxu0 %v6380
  %6483 = vmatprep.subr.mxu0 0.0
  %6484 = vmatpush2.msra.mxu0 %v6379
  %6485 = vmatprep.subr.mxu0 0.0
  %6486 = vmatpush2.msra.mxu0 %v6378
  %6487 = vmatprep.subr.mxu0 0.0
  %6488 = vmatpush2.msra.mxu0 %v6377
  %6489 = vmatprep.mubr.f32.mxu0 %v6358
  %6490 = vmatmul.mubr.f32.gmra.mxu0 %v6357
  %v6491 = vpop.f32.mrf.mxu0
  %v6492 = vadd.f32 0.0, %v6491
  %v6493 = vpop.f32.mrf.mxu0
  %6494 = vdwg.mxu0
  %6495 = vmatprep.subr.mxu0 0.0
  %6496 = vmatpush1.msra.mxu0 %v6408
  %6497 = vmatprep.subr.mxu0 0.0
  %6498 = vmatpush1.msra.mxu0 %v6407
  %6499 = vmatprep.subr.mxu0 0.0
  %6500 = vmatpush1.msra.mxu0 %v6406
  %6501 = vmatprep.subr.mxu0 0.0
  %6502 = vmatpush1.msra.mxu0 %v6405
  %6503 = vmatprep.subr.mxu0 0.0
  %6504 = vmatpush1.msra.mxu0 %v6404
  %6505 = vmatprep.subr.mxu0 0.0
  %6506 = vmatpush1.msra.mxu0 %v6403
  %6507 = vmatprep.subr.mxu0 0.0
  %6508 = vmatpush1.msra.mxu0 %v6402
  %6509 = vmatprep.subr.mxu0 0.0
  %6510 = vmatpush1.msra.mxu0 %v6401
  %6511 = vmatprep.subr.mxu0 0.0
  %6512 = vmatpush1.msra.mxu0 %v6400
  %6513 = vmatprep.subr.mxu0 0.0
  %6514 = vmatpush1.msra.mxu0 %v6399
  %6515 = vmatprep.subr.mxu0 0.0
  %6516 = vmatpush1.msra.mxu0 %v6398
  %6517 = vmatprep.subr.mxu0 0.0
  %6518 = vmatpush1.msra.mxu0 %v6397
  %6519 = vmatprep.subr.mxu0 0.0
  %6520 = vmatpush1.msra.mxu0 %v6396
  %6521 = vmatprep.subr.mxu0 0.0
  %6522 = vmatpush1.msra.mxu0 %v6395
  %6523 = vmatprep.subr.mxu0 0.0
  %6524 = vmatpush1.msra.mxu0 %v6394
  %6525 = vmatprep.subr.mxu0 0.0
  %6526 = vmatpush1.msra.mxu0 %v6393
  %6527 = vmatprep.subr.mxu0 0.0
  %6528 = vmatpush2.msra.mxu0 %v6424
  %6529 = vmatprep.subr.mxu0 0.0
  %6530 = vmatpush2.msra.mxu0 %v6423
  %6531 = vmatprep.subr.mxu0 0.0
  %6532 = vmatpush2.msra.mxu0 %v6422
  %6533 = vmatprep.subr.mxu0 0.0
  %6534 = vmatpush2.msra.mxu0 %v6421
  %6535 = vmatprep.subr.mxu0 0.0
  %6536 = vmatpush2.msra.mxu0 %v6420
  %6537 = vmatprep.subr.mxu0 0.0
  %6538 = vmatpush2.msra.mxu0 %v6419
  %6539 = vmatprep.subr.mxu0 0.0
  %6540 = vmatpush2.msra.mxu0 %v6418
  %6541 = vmatprep.subr.mxu0 0.0
  %6542 = vmatpush2.msra.mxu0 %v6417
  %6543 = vmatprep.subr.mxu0 0.0
  %6544 = vmatpush2.msra.mxu0 %v6416
  %6545 = vmatprep.subr.mxu0 0.0
  %6546 = vmatpush2.msra.mxu0 %v6415
  %6547 = vmatprep.subr.mxu0 0.0
  %6548 = vmatpush2.msra.mxu0 %v6414
  %6549 = vmatprep.subr.mxu0 0.0
  %6550 = vmatpush2.msra.mxu0 %v6413
  %6551 = vmatprep.subr.mxu0 0.0
  %6552 = vmatpush2.msra.mxu0 %v6412
  %6553 = vmatprep.subr.mxu0 0.0
  %6554 = vmatpush2.msra.mxu0 %v6411
  %6555 = vmatprep.subr.mxu0 0.0
  %6556 = vmatpush2.msra.mxu0 %v6410
  %6557 = vmatprep.subr.mxu0 0.0
  %6558 = vmatpush2.msra.mxu0 %v6409
  %6559 = vmatprep.mubr.f32.mxu0 %v6360
  %6560 = vmatmul.mubr.f32.gmra.mxu0 %v6359
  %v6561 = vpop.f32.mrf.mxu0
  %v6562 = vadd.f32 %v6492, %v6561
  %v6563 = vpop.f32.mrf.mxu0
  %6564 = vdwg.mxu0
  %vm6565 = vcmask 1024
  %6566 = vst.msk [vmem:[%s17] sm:$0x3] %vm6565, %v6562
  // Predicated region
  $region70: #{discriminator_forward.1} parent=0 // pred_check
    _
  $region71: #{discriminator_forward.1} parent=0 // pred_check_branch
    %6568 = sbr.rel (0) target = $region73
  $region72: #{discriminator_forward.1} parent=0 // pred_region
    _
  $region73: #{discriminator_forward.1} parent=0 // pred_fallthru
    _
  // Predicated region
  $region74: #{discriminator_forward.1} parent=0 // pred_check
    _
  $region75: #{discriminator_forward.1} parent=0 // pred_check_branch
    %6570 = sbr.rel (0) target = $region77
  $region76: #{discriminator_forward.1} parent=0 // pred_region
    _
  $region77: #{discriminator_forward.1} parent=0 // pred_fallthru
    _

</llo_original>
